<compile_context>
chip_gen: v6e
topology: v6e:2x2x1
jax: 0.10.0
libtpu: 0.0.40
codegen_flags: <defaults>
</compile_context>

<pallas_src>
import math
import jax
import jax.numpy as jnp
from jax.experimental import pallas as pl
from jax.experimental.pallas import tpu as pltpu

INPUT_SIZE = 4
ENCODED_SIZE = 256   # rff encoded size -> concat(cos, sin) = 512
H = 1024
OUT = 512
MAX_TB = 256         # batch tile upper bound (matches v6e/v7x 256-wide MXU)


def _capsule_kernel(x_ref, bt_ref,
                    w1c_ref, w1s_ref, b1_ref,
                    w2_ref, b2_ref,
                    w3_ref, b3_ref,
                    w4_ref, b4_ref,
                    o_ref):
    x = x_ref[...]                                            # (TB, 4) f32

    # Random Fourier Features in f32: v = x @ (2*pi*B.T)  (scale folded into bt).
    # K=4 contraction is tiny either way; phase must stay f32 for cos/sin accuracy.
    v = jnp.dot(x, bt_ref[...], preferred_element_type=jnp.float32)   # (TB, 256)
    cos_v = jnp.cos(v).astype(jnp.bfloat16)
    sin_v = jnp.sin(v).astype(jnp.bfloat16)

    # Layer 1: W1 split into its cos-rows / sin-rows -> no lane concat needed.
    h = (jnp.dot(cos_v, w1c_ref[...], preferred_element_type=jnp.float32)
         + jnp.dot(sin_v, w1s_ref[...], preferred_element_type=jnp.float32)
         + b1_ref[...])
    h = jnp.maximum(h, 0.0).astype(jnp.bfloat16)              # (TB, 1024)

    h = jnp.dot(h, w2_ref[...], preferred_element_type=jnp.float32) + b2_ref[...]
    h = jnp.maximum(h, 0.0).astype(jnp.bfloat16)              # (TB, 1024)

    h = jnp.dot(h, w3_ref[...], preferred_element_type=jnp.float32) + b3_ref[...]
    h = jnp.maximum(h, 0.0).astype(jnp.bfloat16)              # (TB, 1024)

    # head
    h = jnp.dot(h, w4_ref[...], preferred_element_type=jnp.float32) + b4_ref[...]
    h = jnp.maximum(h, 0.0)                                   # (TB, 512) f32

    o_ref[...] = h.astype(o_ref.dtype)


def location_encoder_capsule(x, params, *, max_tb=MAX_TB):
    """x: (N, 4) float32.  params: dict of weights (see init_params)."""
    n = x.shape[0]

    # Adaptive batch tile: multiple of 8 sublanes, at most max_tb, no over-padding
    # for tiny batches.
    tb = min(max_tb, pl.cdiv(n, 8) * 8)
    n_pad = pl.cdiv(n, tb) * tb
    if n_pad != n:
        x = jnp.pad(x, ((0, n_pad - n), (0, 0)))

    # 2*pi folded into the RFF projection; kept f32 for phase accuracy.
    bt = (2.0 * math.pi) * params["B"].T.astype(jnp.float32)          # (4, 256)

    # Linear weights pre-transposed to (in, out) and cast to bf16 for the MXU;
    # biases stay f32 (added to the f32 accumulator).
    w1t = params["w1"].T                                              # (512, 1024)
    w1c = w1t[:ENCODED_SIZE].astype(jnp.bfloat16)                     # (256, 1024) cos rows
    w1s = w1t[ENCODED_SIZE:].astype(jnp.bfloat16)                     # (256, 1024) sin rows
    b1 = params["b1"][None, :].astype(jnp.float32)                    # (1, 1024)
    w2t, b2 = params["w2"].T.astype(jnp.bfloat16), params["b2"][None, :].astype(jnp.float32)
    w3t, b3 = params["w3"].T.astype(jnp.bfloat16), params["b3"][None, :].astype(jnp.float32)
    w4t, b4 = params["w4"].T.astype(jnp.bfloat16), params["b4"][None, :].astype(jnp.float32)

    # Whole-array, grid-invariant blocks (constant index_map -> resident, no re-DMA).
    full = lambda arr: pl.BlockSpec(arr.shape, lambda i: (0,) * arr.ndim)

    out = pl.pallas_call(
        _capsule_kernel,
        out_shape=jax.ShapeDtypeStruct((n_pad, OUT), jnp.float32),
        grid_spec=pltpu.PrefetchScalarGridSpec(
            num_scalar_prefetch=0,
            grid=(n_pad // tb,),
            in_specs=[
                pl.BlockSpec((tb, INPUT_SIZE), lambda i: (i, 0)),
                full(bt),
                full(w1c), full(w1s), full(b1),
                full(w2t), full(b2),
                full(w3t), full(b3),
                full(w4t), full(b4),
            ],
            out_specs=pl.BlockSpec((tb, OUT), lambda i: (i, 0)),
        ),
        compiler_params=pltpu.CompilerParams(
            dimension_semantics=("parallel",),     # batch steps are independent (2 TCs on v7x)
            vmem_limit_bytes=48 << 20,             # < v7x 64 MiB physical; ~6 MiB bf16 weights + tiles
        ),
    )(x, bt, w1c, w1s, b1, w2t, b2, w3t, b3, w4t, b4)

    return out[:n]


def init_params(key, sigma):
    """Deterministic synthetic parameters matching the module's shapes."""
    ks = jax.random.split(key, 9)

    def linear(kw, kb, fan_in, fan_out):
        # PyTorch default init: U(-1/sqrt(fan_in), 1/sqrt(fan_in)); weight is (out, in).
        bound = 1.0 / math.sqrt(fan_in)
        w = jax.random.uniform(kw, (fan_out, fan_in), jnp.float32, -bound, bound)
        b = jax.random.uniform(kb, (fan_out,), jnp.float32, -bound, bound)
        return w, b

    B = sigma * jax.random.normal(ks[0], (ENCODED_SIZE, INPUT_SIZE), jnp.float32)
    w1, b1 = linear(ks[1], ks[2], 2 * ENCODED_SIZE, H)
    w2, b2 = linear(ks[3], ks[4], H, H)
    w3, b3 = linear(ks[5], ks[6], H, H)
    w4, b4 = linear(ks[7], ks[8], H, OUT)
    return dict(B=B, w1=w1, b1=b1, w2=w2, b2=b2, w3=w3, b3=b3, w4=w4, b4=b4)


def reference(x, p):
    v = 2.0 * math.pi * (x @ p["B"].T)
    h = jnp.concatenate([jnp.cos(v), jnp.sin(v)], axis=-1)
    h = jnp.maximum(h @ p["w1"].T + p["b1"], 0.0)
    h = jnp.maximum(h @ p["w2"].T + p["b2"], 0.0)
    h = jnp.maximum(h @ p["w3"].T + p["b3"], 0.0)
    h = jnp.maximum(h @ p["w4"].T + p["b4"], 0.0)
    return h


if __name__ == "__main__":
    key = jax.random.PRNGKey(0)
    k_x1, k_x2, k_p = jax.random.split(key, 3)

    sigma = 2 ** 4  # one of GeoCLIP's sigma values
    params = init_params(k_p, sigma)

    # bf16 matmul operands with f32 accumulation -> allow a few percent tolerance
    # vs the pure-f32 reference.
    ATOL = 5e-2
    RTOL = 5e-2

    # Case 1: tiny batch (tile clamps to 8 rows, single grid step).
    x_small = jax.random.normal(k_x1, (8, INPUT_SIZE), jnp.float32)
    out_small = location_encoder_capsule(x_small, params)
    jax.block_until_ready(out_small)
    ref_small = reference(x_small, params)
    assert out_small.shape == (8, OUT), out_small.shape
    assert jnp.allclose(out_small, ref_small, atol=ATOL, rtol=RTOL), \
        float(jnp.max(jnp.abs(out_small - ref_small)))

    # Case 2: larger batch (full 256-row MXU tiles, grid > 1, with padding slice-off).
    x_big = jax.random.normal(k_x2, (300, INPUT_SIZE), jnp.float32)
    out_big = location_encoder_capsule(x_big, params)
    jax.block_until_ready(out_big)
    ref_big = reference(x_big, params)
    assert out_big.shape == (300, OUT), out_big.shape
    assert jnp.allclose(out_big, ref_big, atol=ATOL, rtol=RTOL), \
        float(jnp.max(jnp.abs(out_big - ref_big)))

    print("KERNEL_OK")
</pallas_src>

<mosaic_0001>
module attributes {stable_mosaic.version = 11 : i64} {
  func.func @_capsule_kernel(%arg0: i32, %arg1: memref<8x4xf32, #tpu.memory_space<vmem>>, %arg2: memref<4x256xf32, #tpu.memory_space<vmem>>, %arg3: memref<256x1024xbf16, #tpu.memory_space<vmem>>, %arg4: memref<256x1024xbf16, #tpu.memory_space<vmem>>, %arg5: memref<1x1024xf32, #tpu.memory_space<vmem>>, %arg6: memref<1024x1024xbf16, #tpu.memory_space<vmem>>, %arg7: memref<1x1024xf32, #tpu.memory_space<vmem>>, %arg8: memref<1024x1024xbf16, #tpu.memory_space<vmem>>, %arg9: memref<1x1024xf32, #tpu.memory_space<vmem>>, %arg10: memref<1024x512xbf16, #tpu.memory_space<vmem>>, %arg11: memref<1x512xf32, #tpu.memory_space<vmem>>, %arg12: memref<8x512xf32, #tpu.memory_space<vmem>>) attributes {dimension_semantics = [#tpu.dimension_semantics<parallel>], iteration_bounds = array<i64: 1>, scalar_prefetch = 0 : i64, scratch_operands = 0 : i64, tpu.core_type = #tpu.core_type<tc>, window_params = [{transform_indices = @transform_0, window_bounds = array<i64: 8, 4>}, {pipeline_mode = #tpu.pipeline_mode<synchronous>, transform_indices = @transform_1, window_bounds = array<i64: 4, 256>}, {pipeline_mode = #tpu.pipeline_mode<synchronous>, transform_indices = @transform_2, window_bounds = array<i64: 256, 1024>}, {pipeline_mode = #tpu.pipeline_mode<synchronous>, transform_indices = @transform_3, window_bounds = array<i64: 256, 1024>}, {pipeline_mode = #tpu.pipeline_mode<synchronous>, transform_indices = @transform_4, window_bounds = array<i64: 1, 1024>}, {pipeline_mode = #tpu.pipeline_mode<synchronous>, transform_indices = @transform_5, window_bounds = array<i64: 1024, 1024>}, {pipeline_mode = #tpu.pipeline_mode<synchronous>, transform_indices = @transform_6, window_bounds = array<i64: 1, 1024>}, {pipeline_mode = #tpu.pipeline_mode<synchronous>, transform_indices = @transform_7, window_bounds = array<i64: 1024, 1024>}, {pipeline_mode = #tpu.pipeline_mode<synchronous>, transform_indices = @transform_8, window_bounds = array<i64: 1, 1024>}, {pipeline_mode = #tpu.pipeline_mode<synchronous>, transform_indices = @transform_9, window_bounds = array<i64: 1024, 512>}, {pipeline_mode = #tpu.pipeline_mode<synchronous>, transform_indices = @transform_10, window_bounds = array<i64: 1, 512>}, {transform_indices = @transform_11, window_bounds = array<i64: 8, 512>}]} {
    %c0 = arith.constant 0 : index
    %c0_0 = arith.constant 0 : index
    %0 = vector.load %arg1[%c0, %c0_0] : memref<8x4xf32, #tpu.memory_space<vmem>>, vector<8x4xf32>
    %c0_1 = arith.constant 0 : index
    %c0_2 = arith.constant 0 : index
    %1 = vector.load %arg2[%c0_1, %c0_2] : memref<4x256xf32, #tpu.memory_space<vmem>>, vector<4x256xf32>
    %cst = arith.constant dense<0.000000e+00> : vector<8x256xf32>
    %2 = tpu.matmul %0, %1, %cst {dimension_numbers = #tpu.dot_dimension_numbers<[1], [0], [0], [1], [0, 0, 1, 1], [], []>} : vector<8x4xf32>, vector<4x256xf32>, vector<8x256xf32> -> vector<8x256xf32>
    %3 = math.cos %2 : vector<8x256xf32>
    %4 = arith.truncf %3 : vector<8x256xf32> to vector<8x256xbf16>
    %5 = math.sin %2 : vector<8x256xf32>
    %6 = arith.truncf %5 : vector<8x256xf32> to vector<8x256xbf16>
    %c0_3 = arith.constant 0 : index
    %c0_4 = arith.constant 0 : index
    %7 = vector.load %arg3[%c0_3, %c0_4] : memref<256x1024xbf16, #tpu.memory_space<vmem>>, vector<256x1024xbf16>
    %cst_5 = arith.constant dense<0.000000e+00> : vector<8x1024xf32>
    %8 = tpu.matmul %4, %7, %cst_5 {dimension_numbers = #tpu.dot_dimension_numbers<[1], [0], [0], [1], [0, 0, 1, 1], [], []>} : vector<8x256xbf16>, vector<256x1024xbf16>, vector<8x1024xf32> -> vector<8x1024xf32>
    %c0_6 = arith.constant 0 : index
    %c0_7 = arith.constant 0 : index
    %9 = vector.load %arg4[%c0_6, %c0_7] : memref<256x1024xbf16, #tpu.memory_space<vmem>>, vector<256x1024xbf16>
    %cst_8 = arith.constant dense<0.000000e+00> : vector<8x1024xf32>
    %10 = tpu.matmul %6, %9, %cst_8 {dimension_numbers = #tpu.dot_dimension_numbers<[1], [0], [0], [1], [0, 0, 1, 1], [], []>} : vector<8x256xbf16>, vector<256x1024xbf16>, vector<8x1024xf32> -> vector<8x1024xf32>
    %11 = arith.addf %8, %10 : vector<8x1024xf32>
    %c0_9 = arith.constant 0 : index
    %c0_10 = arith.constant 0 : index
    %12 = vector.load %arg5[%c0_9, %c0_10] : memref<1x1024xf32, #tpu.memory_space<vmem>>, vector<1x1024xf32>
    %13 = vector.broadcast %12 : vector<1x1024xf32> to vector<8x1024xf32>
    %14 = arith.addf %11, %13 : vector<8x1024xf32>
    %cst_11 = arith.constant 0.000000e+00 : f32
    %15 = vector.broadcast %cst_11 : f32 to vector<8x1024xf32>
    %16 = arith.maximumf %14, %15 : vector<8x1024xf32>
    %17 = arith.truncf %16 : vector<8x1024xf32> to vector<8x1024xbf16>
    %c0_12 = arith.constant 0 : index
    %c0_13 = arith.constant 0 : index
    %18 = vector.load %arg6[%c0_12, %c0_13] : memref<1024x1024xbf16, #tpu.memory_space<vmem>>, vector<1024x1024xbf16>
    %cst_14 = arith.constant dense<0.000000e+00> : vector<8x1024xf32>
    %19 = tpu.matmul %17, %18, %cst_14 {dimension_numbers = #tpu.dot_dimension_numbers<[1], [0], [0], [1], [0, 0, 1, 1], [], []>} : vector<8x1024xbf16>, vector<1024x1024xbf16>, vector<8x1024xf32> -> vector<8x1024xf32>
    %c0_15 = arith.constant 0 : index
    %c0_16 = arith.constant 0 : index
    %20 = vector.load %arg7[%c0_15, %c0_16] : memref<1x1024xf32, #tpu.memory_space<vmem>>, vector<1x1024xf32>
    %21 = vector.broadcast %20 : vector<1x1024xf32> to vector<8x1024xf32>
    %22 = arith.addf %19, %21 : vector<8x1024xf32>
    %cst_17 = arith.constant 0.000000e+00 : f32
    %23 = vector.broadcast %cst_17 : f32 to vector<8x1024xf32>
    %24 = arith.maximumf %22, %23 : vector<8x1024xf32>
    %25 = arith.truncf %24 : vector<8x1024xf32> to vector<8x1024xbf16>
    %c0_18 = arith.constant 0 : index
    %c0_19 = arith.constant 0 : index
    %26 = vector.load %arg8[%c0_18, %c0_19] : memref<1024x1024xbf16, #tpu.memory_space<vmem>>, vector<1024x1024xbf16>
    %cst_20 = arith.constant dense<0.000000e+00> : vector<8x1024xf32>
    %27 = tpu.matmul %25, %26, %cst_20 {dimension_numbers = #tpu.dot_dimension_numbers<[1], [0], [0], [1], [0, 0, 1, 1], [], []>} : vector<8x1024xbf16>, vector<1024x1024xbf16>, vector<8x1024xf32> -> vector<8x1024xf32>
    %c0_21 = arith.constant 0 : index
    %c0_22 = arith.constant 0 : index
    %28 = vector.load %arg9[%c0_21, %c0_22] : memref<1x1024xf32, #tpu.memory_space<vmem>>, vector<1x1024xf32>
    %29 = vector.broadcast %28 : vector<1x1024xf32> to vector<8x1024xf32>
    %30 = arith.addf %27, %29 : vector<8x1024xf32>
    %cst_23 = arith.constant 0.000000e+00 : f32
    %31 = vector.broadcast %cst_23 : f32 to vector<8x1024xf32>
    %32 = arith.maximumf %30, %31 : vector<8x1024xf32>
    %33 = arith.truncf %32 : vector<8x1024xf32> to vector<8x1024xbf16>
    %c0_24 = arith.constant 0 : index
    %c0_25 = arith.constant 0 : index
    %34 = vector.load %arg10[%c0_24, %c0_25] : memref<1024x512xbf16, #tpu.memory_space<vmem>>, vector<1024x512xbf16>
    %cst_26 = arith.constant dense<0.000000e+00> : vector<8x512xf32>
    %35 = tpu.matmul %33, %34, %cst_26 {dimension_numbers = #tpu.dot_dimension_numbers<[1], [0], [0], [1], [0, 0, 1, 1], [], []>} : vector<8x1024xbf16>, vector<1024x512xbf16>, vector<8x512xf32> -> vector<8x512xf32>
    %c0_27 = arith.constant 0 : index
    %c0_28 = arith.constant 0 : index
    %36 = vector.load %arg11[%c0_27, %c0_28] : memref<1x512xf32, #tpu.memory_space<vmem>>, vector<1x512xf32>
    %37 = vector.broadcast %36 : vector<1x512xf32> to vector<8x512xf32>
    %38 = arith.addf %35, %37 : vector<8x512xf32>
    %cst_29 = arith.constant 0.000000e+00 : f32
    %39 = vector.broadcast %cst_29 : f32 to vector<8x512xf32>
    %40 = arith.maximumf %38, %39 : vector<8x512xf32>
    %c0_30 = arith.constant 0 : index
    %c0_31 = arith.constant 0 : index
    %41 = vector.load %arg12[%c0_30, %c0_31] : memref<8x512xf32, #tpu.memory_space<vmem>>, vector<8x512xf32>
    tpu.vector_store %arg12[%c0_30, %c0_31], %40 {strides = array<i32>} : memref<8x512xf32, #tpu.memory_space<vmem>>, vector<8x512xf32>,
    return
  }
  func.func @transform_0(%arg0: i32) -> (i32, i32) {
    %c0_i32 = arith.constant 0 : i32
    %c0_i32_0 = arith.constant 0 : i32
    return %arg0, %c0_i32 : i32, i32
  }
  func.func @transform_1(%arg0: i32) -> (i32, i32) {
    %c0_i32 = arith.constant 0 : i32
    %c0_i32_0 = arith.constant 0 : i32
    %c0_i32_1 = arith.constant 0 : i32
    return %c0_i32, %c0_i32_0 : i32, i32
  }
  func.func @transform_2(%arg0: i32) -> (i32, i32) {
    %c0_i32 = arith.constant 0 : i32
    %c0_i32_0 = arith.constant 0 : i32
    %c0_i32_1 = arith.constant 0 : i32
    return %c0_i32, %c0_i32_0 : i32, i32
  }
  func.func @transform_3(%arg0: i32) -> (i32, i32) {
    %c0_i32 = arith.constant 0 : i32
    %c0_i32_0 = arith.constant 0 : i32
    %c0_i32_1 = arith.constant 0 : i32
    return %c0_i32, %c0_i32_0 : i32, i32
  }
  func.func @transform_4(%arg0: i32) -> (i32, i32) {
    %c0_i32 = arith.constant 0 : i32
    %c0_i32_0 = arith.constant 0 : i32
    %c0_i32_1 = arith.constant 0 : i32
    return %c0_i32, %c0_i32_0 : i32, i32
  }
  func.func @transform_5(%arg0: i32) -> (i32, i32) {
    %c0_i32 = arith.constant 0 : i32
    %c0_i32_0 = arith.constant 0 : i32
    %c0_i32_1 = arith.constant 0 : i32
    return %c0_i32, %c0_i32_0 : i32, i32
  }
  func.func @transform_6(%arg0: i32) -> (i32, i32) {
    %c0_i32 = arith.constant 0 : i32
    %c0_i32_0 = arith.constant 0 : i32
    %c0_i32_1 = arith.constant 0 : i32
    return %c0_i32, %c0_i32_0 : i32, i32
  }
  func.func @transform_7(%arg0: i32) -> (i32, i32) {
    %c0_i32 = arith.constant 0 : i32
    %c0_i32_0 = arith.constant 0 : i32
    %c0_i32_1 = arith.constant 0 : i32
    return %c0_i32, %c0_i32_0 : i32, i32
  }
  func.func @transform_8(%arg0: i32) -> (i32, i32) {
    %c0_i32 = arith.constant 0 : i32
    %c0_i32_0 = arith.constant 0 : i32
    %c0_i32_1 = arith.constant 0 : i32
    return %c0_i32, %c0_i32_0 : i32, i32
  }
  func.func @transform_9(%arg0: i32) -> (i32, i32) {
    %c0_i32 = arith.constant 0 : i32
    %c0_i32_0 = arith.constant 0 : i32
    %c0_i32_1 = arith.constant 0 : i32
    return %c0_i32, %c0_i32_0 : i32, i32
  }
  func.func @transform_10(%arg0: i32) -> (i32, i32) {
    %c0_i32 = arith.constant 0 : i32
    %c0_i32_0 = arith.constant 0 : i32
    %c0_i32_1 = arith.constant 0 : i32
    return %c0_i32, %c0_i32_0 : i32, i32
  }
  func.func @transform_11(%arg0: i32) -> (i32, i32) {
    %c0_i32 = arith.constant 0 : i32
    %c0_i32_0 = arith.constant 0 : i32
    return %arg0, %c0_i32 : i32, i32
  }
}

</mosaic_0001>

<llo_original>
// kernel: tpu_custom_call.1
$region0: #{tpu_custom_call.1}
  #allocation0 [shape = 'u32[]', space=smem, size = 0x4, offset = 0x4, fixed_abs, tag = 'smem constant byte address 0x4 - core index']
  #allocation1 [shape = 'u32[144,128]{1,0:T(1,128)}', space=vmem, size = 0x12000, scoped, tag = 'internal scratch']
  %s0 = inlined_call_operand.vmem [shape: f32[8,4], index: 0, kind: input, shape index: {}]
  %s1 = inlined_call_operand.hbm [shape: f32[4,256], index: 1, kind: input, shape index: {}]
  %s2 = inlined_call_operand.hbm [shape: bf16[256,1024], index: 2, kind: input, shape index: {}]
  %s3 = inlined_call_operand.hbm [shape: bf16[256,1024], index: 3, kind: input, shape index: {}]
  %s4 = inlined_call_operand.hbm [shape: f32[1,1024], index: 4, kind: input, shape index: {}]
  %s5 = inlined_call_operand.hbm [shape: bf16[1024,1024], index: 5, kind: input, shape index: {}]
  %s6 = inlined_call_operand.hbm [shape: f32[1,1024], index: 6, kind: input, shape index: {}]
  %s7 = inlined_call_operand.hbm [shape: bf16[1024,1024], index: 7, kind: input, shape index: {}]
  %s8 = inlined_call_operand.hbm [shape: f32[1,1024], index: 8, kind: input, shape index: {}]
  %s9 = inlined_call_operand.hbm [shape: bf16[1024,512], index: 9, kind: input, shape index: {}]
  %s10 = inlined_call_operand.hbm [shape: f32[1,512], index: 10, kind: input, shape index: {}]
  %s11 = inlined_call_operand.hbm [shape: f32[8,512], index: 11, kind: output, shape index: {}]
  %s12 = sld [smem:[#allocation0]]
  $region94: #{tpu_custom_call.1} parent=0
    _
  %s14 = ssub.s32 1, %s12
  %s15 = scalar_select 0, %s14, %s12
  $region1: #{tpu_custom_call.1} parent=0
    #allocation2 [shape = 'u8[4096]{0}', space=vmem, size = 0x1000, scoped, tag = 'input window, operand 1, single buffered']
    #allocation3 [shape = 's32[1]{0}', space=sflag, size = 0x4, scoped, tag = 'scoped memory for tpu_custom_call.1']
    #allocation4 [shape = 's32[1]{0}', space=sflag, size = 0x4, scoped, tag = 'scoped memory for tpu_custom_call.1']
    #allocation5 [shape = 'u8[524288]{0}', space=vmem, size = 0x80000, scoped, tag = 'input window, operand 2, single buffered']
    #allocation6 [shape = 's32[1]{0}', space=sflag, size = 0x4, scoped, tag = 'scoped memory for tpu_custom_call.1']
    #allocation7 [shape = 'u8[524288]{0}', space=vmem, size = 0x80000, scoped, tag = 'input window, operand 3, single buffered']
    #allocation8 [shape = 'u8[4096]{0}', space=vmem, size = 0x1000, scoped, tag = 'input window, operand 4, single buffered']
    #allocation9 [shape = 's32[1]{0}', space=sflag, size = 0x4, scoped, tag = 'scoped memory for tpu_custom_call.1']
    #allocation10 [shape = 'u8[2097152]{0}', space=vmem, size = 0x200000, scoped, tag = 'input window, operand 5, single buffered']
    #allocation11 [shape = 'u8[4096]{0}', space=vmem, size = 0x1000, scoped, tag = 'input window, operand 6, single buffered']
    #allocation12 [shape = 's32[1]{0}', space=sflag, size = 0x4, scoped, tag = 'scoped memory for tpu_custom_call.1']
    #allocation13 [shape = 'u8[2097152]{0}', space=vmem, size = 0x200000, scoped, tag = 'input window, operand 7, single buffered']
    #allocation14 [shape = 'u8[4096]{0}', space=vmem, size = 0x1000, scoped, tag = 'input window, operand 8, single buffered']
    #allocation15 [shape = 's32[1]{0}', space=sflag, size = 0x4, scoped, tag = 'scoped memory for tpu_custom_call.1']
    #allocation16 [shape = 'u8[1048576]{0}', space=vmem, size = 0x100000, scoped, tag = 'input window, operand 9, single buffered']
    #allocation17 [shape = 'u8[2048]{0}', space=vmem, size = 0x800, scoped, tag = 'input window, operand 10, single buffered']
    #allocation18 [shape = 's32[1]{0}', space=sflag, size = 0x4, scoped, tag = 'scoped memory for tpu_custom_call.1']
    #allocation19 [shape = 'u8[16384]{0}', space=vmem, size = 0x4000, scoped, tag = 'output window, operand 0, single buffered']
    %16 = vsyncpa [#allocation3], 0
    %17 = vsyncpa [#allocation6], 0
    %18 = vsyncpa [#allocation9], 0
    %19 = vsyncpa [#allocation12], 0
    %20 = vsyncpa [#allocation15], 0
    %21 = vsyncpa [#allocation18], 0
    %22 = vsyncpa [#allocation4], 0
    // Predicated region
    $region2: #{tpu_custom_call.1} parent=1 // pred_check
      _
    $region3: #{tpu_custom_call.1} parent=1 // pred_check_branch
      %24 = sbr.rel (0) target = $region5
    $region4: #{tpu_custom_call.1} parent=1 // pred_region
      _
    $region5: #{tpu_custom_call.1} parent=1 // pred_fallthru
      _
    // Predicated region
    $region6: #{tpu_custom_call.1} parent=1 // pred_check
      _
    $region7: #{tpu_custom_call.1} parent=1 // pred_check_branch
      %26 = sbr.rel (0) target = $region9
    $region8: #{tpu_custom_call.1} parent=1 // pred_region
      %s28 = ssub.s32 128, 128
      %29 = vsyncadd [#allocation3], %s28
      %s31 = sshll.u32 [#allocation2], 4
      %s32 = int_to_ptr.vmem [resolvable:$true] %s31
      %34 = dma.hbm_to_vmem [thread:$0]  %s1, 128, %s32, [#allocation3]
    $region9: #{tpu_custom_call.1} parent=1 // pred_fallthru
      _
    // Predicated region
    $region10: #{tpu_custom_call.1} parent=1 // pred_check
      _
    $region11: #{tpu_custom_call.1} parent=1 // pred_check_branch
      %36 = sbr.rel (0) target = $region13
    $region12: #{tpu_custom_call.1} parent=1 // pred_region
      %s38 = ssub.s32 16384, 16384
      %39 = vsyncadd [#allocation6], %s38
      %s40 = sshll.u32 [#allocation5], 4
      %s41 = int_to_ptr.vmem [resolvable:$true] %s40
      %46 = dma.hbm_to_vmem [thread:$0]  %s2, 16384, %s41, [#allocation6], 512, 512, 32
    $region13: #{tpu_custom_call.1} parent=1 // pred_fallthru
      _
    // Predicated region
    $region14: #{tpu_custom_call.1} parent=1 // pred_check
      _
    $region15: #{tpu_custom_call.1} parent=1 // pred_check_branch
      %48 = sbr.rel (0) target = $region17
    $region16: #{tpu_custom_call.1} parent=1 // pred_region
      %s50 = ssub.s32 16384, 16384
      %51 = vsyncadd [#allocation6], %s50
      %s52 = sshll.u32 [#allocation7], 4
      %s53 = int_to_ptr.vmem [resolvable:$true] %s52
      %58 = dma.hbm_to_vmem [thread:$0]  %s3, 16384, %s53, [#allocation6], 512, 512, 32
    $region17: #{tpu_custom_call.1} parent=1 // pred_fallthru
      _
    // Predicated region
    $region18: #{tpu_custom_call.1} parent=1 // pred_check
      _
    $region19: #{tpu_custom_call.1} parent=1 // pred_check_branch
      %60 = sbr.rel (0) target = $region21
    $region20: #{tpu_custom_call.1} parent=1 // pred_region
      %s62 = ssub.s32 128, 128
      %63 = vsyncadd [#allocation9], %s62
      %s65 = sshll.u32 [#allocation8], 4
      %s66 = int_to_ptr.vmem [resolvable:$true] %s65
      %68 = dma.hbm_to_vmem [thread:$0]  %s4, 128, %s66, [#allocation9]
    $region21: #{tpu_custom_call.1} parent=1 // pred_fallthru
      _
    // Predicated region
    $region22: #{tpu_custom_call.1} parent=1 // pred_check
      _
    $region23: #{tpu_custom_call.1} parent=1 // pred_check_branch
      %70 = sbr.rel (0) target = $region25
    $region24: #{tpu_custom_call.1} parent=1 // pred_region
      %s72 = ssub.s32 65536, 65536
      %73 = vsyncadd [#allocation9], %s72
      %s74 = sshll.u32 [#allocation10], 4
      %s75 = int_to_ptr.vmem [resolvable:$true] %s74
      %80 = dma.hbm_to_vmem [thread:$0]  %s5, 65536, %s75, [#allocation9], 512, 512, 32
    $region25: #{tpu_custom_call.1} parent=1 // pred_fallthru
      _
    // Predicated region
    $region26: #{tpu_custom_call.1} parent=1 // pred_check
      _
    $region27: #{tpu_custom_call.1} parent=1 // pred_check_branch
      %82 = sbr.rel (0) target = $region29
    $region28: #{tpu_custom_call.1} parent=1 // pred_region
      %s84 = ssub.s32 128, 128
      %85 = vsyncadd [#allocation12], %s84
      %s87 = sshll.u32 [#allocation11], 4
      %s88 = int_to_ptr.vmem [resolvable:$true] %s87
      %90 = dma.hbm_to_vmem [thread:$0]  %s6, 128, %s88, [#allocation12]
    $region29: #{tpu_custom_call.1} parent=1 // pred_fallthru
      _
    // Predicated region
    $region30: #{tpu_custom_call.1} parent=1 // pred_check
      _
    $region31: #{tpu_custom_call.1} parent=1 // pred_check_branch
      %92 = sbr.rel (0) target = $region33
    $region32: #{tpu_custom_call.1} parent=1 // pred_region
      %s94 = ssub.s32 65536, 65536
      %95 = vsyncadd [#allocation12], %s94
      %s96 = sshll.u32 [#allocation13], 4
      %s97 = int_to_ptr.vmem [resolvable:$true] %s96
      %102 = dma.hbm_to_vmem [thread:$0]  %s7, 65536, %s97, [#allocation12], 512, 512, 32
    $region33: #{tpu_custom_call.1} parent=1 // pred_fallthru
      _
    // Predicated region
    $region34: #{tpu_custom_call.1} parent=1 // pred_check
      _
    $region35: #{tpu_custom_call.1} parent=1 // pred_check_branch
      %104 = sbr.rel (0) target = $region37
    $region36: #{tpu_custom_call.1} parent=1 // pred_region
      %s106 = ssub.s32 128, 128
      %107 = vsyncadd [#allocation15], %s106
      %s109 = sshll.u32 [#allocation14], 4
      %s110 = int_to_ptr.vmem [resolvable:$true] %s109
      %112 = dma.hbm_to_vmem [thread:$0]  %s8, 128, %s110, [#allocation15]
    $region37: #{tpu_custom_call.1} parent=1 // pred_fallthru
      _
    // Predicated region
    $region38: #{tpu_custom_call.1} parent=1 // pred_check
      _
    $region39: #{tpu_custom_call.1} parent=1 // pred_check_branch
      %114 = sbr.rel (0) target = $region41
    $region40: #{tpu_custom_call.1} parent=1 // pred_region
      %s116 = ssub.s32 32768, 32768
      %117 = vsyncadd [#allocation15], %s116
      %s118 = sshll.u32 [#allocation16], 4
      %s119 = int_to_ptr.vmem [resolvable:$true] %s118
      %124 = dma.hbm_to_vmem [thread:$0]  %s9, 32768, %s119, [#allocation15], 256, 256, 16
    $region41: #{tpu_custom_call.1} parent=1 // pred_fallthru
      _
    // Predicated region
    $region42: #{tpu_custom_call.1} parent=1 // pred_check
      _
    $region43: #{tpu_custom_call.1} parent=1 // pred_check_branch
      %126 = sbr.rel (0) target = $region45
    $region44: #{tpu_custom_call.1} parent=1 // pred_region
      %s128 = ssub.s32 64, 64
      %129 = vsyncadd [#allocation18], %s128
      %s131 = sshll.u32 [#allocation17], 4
      %s132 = int_to_ptr.vmem [resolvable:$true] %s131
      %134 = dma.hbm_to_vmem [thread:$0]  %s10, 64, %s132, [#allocation18]
    $region45: #{tpu_custom_call.1} parent=1 // pred_fallthru
      _
    // Predicated region
    $region46: #{tpu_custom_call.1} parent=1 // pred_check
      _
    $region47: #{tpu_custom_call.1} parent=1 // pred_check_branch
      %136 = sbr.rel (0) target = $region49
    $region48: #{tpu_custom_call.1} parent=1 // pred_region
      %137 = dma.done [#allocation3], 128
    $region49: #{tpu_custom_call.1} parent=1 // pred_fallthru
      _
    // Predicated region
    $region50: #{tpu_custom_call.1} parent=1 // pred_check
      _
    $region51: #{tpu_custom_call.1} parent=1 // pred_check_branch
      %139 = sbr.rel (0) target = $region53
    $region52: #{tpu_custom_call.1} parent=1 // pred_region
      %140 = dma.done [#allocation6], 16384
    $region53: #{tpu_custom_call.1} parent=1 // pred_fallthru
      _
    // Predicated region
    $region54: #{tpu_custom_call.1} parent=1 // pred_check
      _
    $region55: #{tpu_custom_call.1} parent=1 // pred_check_branch
      %142 = sbr.rel (0) target = $region57
    $region56: #{tpu_custom_call.1} parent=1 // pred_region
      %143 = dma.done [#allocation6], 16384
    $region57: #{tpu_custom_call.1} parent=1 // pred_fallthru
      _
    // Predicated region
    $region58: #{tpu_custom_call.1} parent=1 // pred_check
      _
    $region59: #{tpu_custom_call.1} parent=1 // pred_check_branch
      %145 = sbr.rel (0) target = $region61
    $region60: #{tpu_custom_call.1} parent=1 // pred_region
      %146 = dma.done [#allocation9], 128
    $region61: #{tpu_custom_call.1} parent=1 // pred_fallthru
      _
    // Predicated region
    $region62: #{tpu_custom_call.1} parent=1 // pred_check
      _
    $region63: #{tpu_custom_call.1} parent=1 // pred_check_branch
      %148 = sbr.rel (0) target = $region65
    $region64: #{tpu_custom_call.1} parent=1 // pred_region
      %149 = dma.done [#allocation9], 65536
    $region65: #{tpu_custom_call.1} parent=1 // pred_fallthru
      _
    // Predicated region
    $region66: #{tpu_custom_call.1} parent=1 // pred_check
      _
    $region67: #{tpu_custom_call.1} parent=1 // pred_check_branch
      %151 = sbr.rel (0) target = $region69
    $region68: #{tpu_custom_call.1} parent=1 // pred_region
      %152 = dma.done [#allocation12], 128
    $region69: #{tpu_custom_call.1} parent=1 // pred_fallthru
      _
    // Predicated region
    $region70: #{tpu_custom_call.1} parent=1 // pred_check
      _
    $region71: #{tpu_custom_call.1} parent=1 // pred_check_branch
      %154 = sbr.rel (0) target = $region73
    $region72: #{tpu_custom_call.1} parent=1 // pred_region
      %155 = dma.done [#allocation12], 65536
    $region73: #{tpu_custom_call.1} parent=1 // pred_fallthru
      _
    // Predicated region
    $region74: #{tpu_custom_call.1} parent=1 // pred_check
      _
    $region75: #{tpu_custom_call.1} parent=1 // pred_check_branch
      %157 = sbr.rel (0) target = $region77
    $region76: #{tpu_custom_call.1} parent=1 // pred_region
      %158 = dma.done [#allocation15], 128
    $region77: #{tpu_custom_call.1} parent=1 // pred_fallthru
      _
    // Predicated region
    $region78: #{tpu_custom_call.1} parent=1 // pred_check
      _
    $region79: #{tpu_custom_call.1} parent=1 // pred_check_branch
      %160 = sbr.rel (0) target = $region81
    $region80: #{tpu_custom_call.1} parent=1 // pred_region
      %161 = dma.done [#allocation15], 32768
    $region81: #{tpu_custom_call.1} parent=1 // pred_fallthru
      _
    // Predicated region
    $region82: #{tpu_custom_call.1} parent=1 // pred_check
      _
    $region83: #{tpu_custom_call.1} parent=1 // pred_check_branch
      %163 = sbr.rel (0) target = $region85
    $region84: #{tpu_custom_call.1} parent=1 // pred_region
      %164 = dma.done [#allocation18], 64
    $region85: #{tpu_custom_call.1} parent=1 // pred_fallthru
      _
    %v165 = vld [vmem:[%s0] sm:$0xff]
    %v166 = vld [vmem:[#allocation2] sm:$0xff]
    %v168 = vcombine.high %v166, %v166
    %vm169 = vcmask 31744
    %v171 = vsel %vm169, %v165, 0
    %vm173 = vcmask 1043456
    %v174 = vsel %vm173, %v166, 0
    %v176 = vsel %vm173, %v168, 0
    %178 = vmatprep.subr.mxu0 0.0
    %179 = vmatpush1.msra.mxu0 0.0
    %180 = vmatprep.subr.mxu0 0.0
    %181 = vmatpush1.msra.mxu0 0.0
    %182 = vmatprep.subr.mxu0 0.0
    %183 = vmatpush1.msra.mxu0 0.0
    %184 = vmatprep.subr.mxu0 0.0
    %185 = vmatpush1.msra.mxu0 0.0
    %186 = vmatprep.subr.mxu0 0.0
    %187 = vmatpush1.msra.mxu0 0.0
    %188 = vmatprep.subr.mxu0 0.0
    %189 = vmatpush1.msra.mxu0 0.0
    %190 = vmatprep.subr.mxu0 0.0
    %191 = vmatpush1.msra.mxu0 0.0
    %192 = vmatprep.subr.mxu0 0.0
    %193 = vmatpush1.msra.mxu0 0.0
    %194 = vmatprep.subr.mxu0 0.0
    %195 = vmatpush1.msra.mxu0 0.0
    %196 = vmatprep.subr.mxu0 0.0
    %197 = vmatpush1.msra.mxu0 0.0
    %198 = vmatprep.subr.mxu0 0.0
    %199 = vmatpush1.msra.mxu0 0.0
    %200 = vmatprep.subr.mxu0 0.0
    %201 = vmatpush1.msra.mxu0 0.0
    %202 = vmatprep.subr.mxu0 0.0
    %203 = vmatpush1.msra.mxu0 0.0
    %204 = vmatprep.subr.mxu0 0.0
    %205 = vmatpush1.msra.mxu0 0.0
    %206 = vmatprep.subr.mxu0 0.0
    %207 = vmatpush1.msra.mxu0 0.0
    %208 = vmatprep.subr.mxu0 %v176
    %209 = vmatpush1.msra.mxu0 %v174
    %210 = vmatprep.subr.mxu0 0.0
    %211 = vmatpush2.msra.mxu0 0.0
    %212 = vmatprep.subr.mxu0 0.0
    %213 = vmatpush2.msra.mxu0 0.0
    %214 = vmatprep.subr.mxu0 0.0
    %215 = vmatpush2.msra.mxu0 0.0
    %216 = vmatprep.subr.mxu0 0.0
    %217 = vmatpush2.msra.mxu0 0.0
    %218 = vmatprep.subr.mxu0 0.0
    %219 = vmatpush2.msra.mxu0 0.0
    %220 = vmatprep.subr.mxu0 0.0
    %221 = vmatpush2.msra.mxu0 0.0
    %222 = vmatprep.subr.mxu0 0.0
    %223 = vmatpush2.msra.mxu0 0.0
    %224 = vmatprep.subr.mxu0 0.0
    %225 = vmatpush2.msra.mxu0 0.0
    %226 = vmatprep.subr.mxu0 0.0
    %227 = vmatpush2.msra.mxu0 0.0
    %228 = vmatprep.subr.mxu0 0.0
    %229 = vmatpush2.msra.mxu0 0.0
    %230 = vmatprep.subr.mxu0 0.0
    %231 = vmatpush2.msra.mxu0 0.0
    %232 = vmatprep.subr.mxu0 0.0
    %233 = vmatpush2.msra.mxu0 0.0
    %234 = vmatprep.subr.mxu0 0.0
    %235 = vmatpush2.msra.mxu0 0.0
    %236 = vmatprep.subr.mxu0 0.0
    %237 = vmatpush2.msra.mxu0 0.0
    %238 = vmatprep.subr.mxu0 0.0
    %239 = vmatpush2.msra.mxu0 0.0
    %240 = vmatprep.subr.mxu0 0.0
    %241 = vmatpush2.msra.mxu0 0.0
    %242 = vmatprep.mubr.f32.mxu0 0.0
    %243 = vmatmul.mubr.f32.gmra.mxu0 %v171
    %v244 = vpop.f32.mrf.mxu0
    %v245 = vadd.f32 0.0, %v244
    %v246 = vpop.f32.mrf.mxu0
    %v247 = vadd.f32 0.0, %v246
    %248 = vdwg.mxu0
    %v249 = vand.u32 2147483647, %v245
    %vm250 = vcmp.le.f32.partialorder %v249, 0.7853982
    %vm251 = vcmp.lt.s32.totalorder %v245, 0
    %v252 = vand.u32 %v245, 2139095040
    %v253 = vshrl.u32 %v252, 23
    %v254 = vsub.s32 %v253, 127
    %v255 = vand.u32 2147483647, %v245
    %v256 = vand.u32 %v255, 8388607
    %v257 = vor.u32 %v256, 8388608
    %v258 = vsub.s32 0, %v257
    %v259 = vadd.s32 %v254, 1
    %vm260 = vcmp.gt.s32.totalorder %v259, 0
    %v261 = vsel %vm260, %v259, 0
    %v262 = vshrl.u32 %v261, 5
    %v263 = vand.u32 %v261, 31
    %v264 = vsub.s32 32, %v263
    %v265 = vshrl.u32 683565275, %v264
    %v266 = vshll.u32 683565275, %v263
    %v267 = vshrl.u32 2475754826, %v264
    %v268 = vor.u32 %v266, %v267
    %v269 = vshll.u32 2475754826, %v263
    %v270 = vshrl.u32 2131351028, %v264
    %v271 = vor.u32 %v269, %v270
    %v272 = vshll.u32 2131351028, %v263
    %v273 = vshrl.u32 2102212464, %v264
    %v274 = vor.u32 %v272, %v273
    %v275 = vshll.u32 2102212464, %v263
    %v276 = vshrl.u32 920167782, %v264
    %v277 = vor.u32 %v275, %v276
    %v278 = vshll.u32 920167782, %v263
    %v279 = vshrl.u32 1326507024, %v264
    %v280 = vor.u32 %v278, %v279
    %vm281 = vcmp.lt.s32.totalorder %v262, 1
    %vm282 = vcmp.lt.s32.totalorder %v262, 2
    %vm283 = vcmp.lt.s32.totalorder %v262, 3
    %vm284 = vcmp.lt.s32.totalorder %v262, 4
    %v285 = vsel %vm281, %v265, %v268
    %v286 = vsel %vm284, %v274, 2102212464
    %v287 = vsel %vm283, %v271, %v286
    %v288 = vsel %vm282, %v285, %v287
    %v289 = vsel %vm281, %v268, %v271
    %v290 = vsel %vm284, %v277, 920167782
    %v291 = vsel %vm283, %v274, %v290
    %v292 = vsel %vm282, %v289, %v291
    %v293 = vsel %vm281, %v271, %v274
    %v294 = vsel %vm284, %v280, 1326507024
    %v295 = vsel %vm283, %v277, %v294
    %v296 = vsel %vm282, %v293, %v295
    %v297 = vshll.u32 %v257, 8
    %v298 = vmul.u32.u64.compose %v297, %v296
    %v299 = vextract.low.u32 %v298
    %v300 = vextract.high.u32 %v298
    %v301 = vmul.u32.u64.compose %v297, %v292
    %v302 = vextract.low.u32 %v301
    %v303 = vextract.high.u32 %v301
    %v304 = vmul.u32 %v297, %v288
    %v305 = vadd.s32 %v300, %v302
    %vm306 = vc.u32 %v300, %v302
    %v307 = vadd.s32 %v303, 1
    %v308 = vsel %vm306, %v307, %v303
    %v309 = vadd.s32 %v304, %v308
    %v310 = vadd.s32 %v309, 536870912
    %v311 = vshrl.u32 %v310, 30
    %v312 = vshll.u32 %v311, 30
    %v313 = vsub.s32 %v309, %v312
    %vm314 = vcmp.lt.s32.totalorder %v313, 0
    %v315 = vsub.s32 0, %v313
    %v316 = vsel %vm314, %v315, %v313
    %v317 = vclz %v316
    %v318 = vsub.s32 %v317, 2
    %vm319 = vcmp.gt.s32.totalorder 0, %v318
    %v320 = vsel %vm319, 0, %v318
    %v321 = vsub.s32 32, %v320
    %v322 = vshll.u32 %v313, %v320
    %v323 = vshrl.u32 %v305, %v321
    %v324 = vor.u32 %v322, %v323
    %v325 = vsub.s32 4294967266, %v320
    %v326 = vadd.s32 %v325, 127
    %v327 = vshll.u32 %v326, 23
    %v328 = vor.u32 4788187, %v327
    %v329 = vand.u32 2147483647, %v328
    %v331 = vcvt.s32.f32 %v324
    %v332 = vmul.f32 %v331, %v329
    %v333 = vxor.u32 %v332, 2147483648
    %v334 = vsel %vm251, %v333, %v332
    %v335 = vsub.s32 4, %v311
    %v336 = vsel %vm251, %v335, %v311
    %v337 = vsel %vm250, %v245, %v334
    %v338 = vsel %vm250, 0, %v336
    %v339 = vcosq.f32.pop %v337
    %v340 = vsinq.f32.pop %v337
    %vm341 = vweird.f32 %v245
    %v342 = vand.u32 %v338, 3
    %vm343 = vcmp.lt.s32.totalorder %v342, 2
    %vm344 = vcmp.eq.s32.totalorder %v342, 0
    %v345 = vxor.u32 %v340, 2147483648
    %v346 = vsel %vm344, %v339, %v345
    %vm347 = vcmp.eq.s32.totalorder %v342, 2
    %v348 = vxor.u32 %v339, 2147483648
    %v349 = vsel %vm347, %v348, %v340
    %v350 = vsel %vm343, %v346, %v349
    %v351 = vsel %vm341, nan, %v350
    %v352 = vand.u32 2147483647, %v247
    %vm353 = vcmp.le.f32.partialorder %v352, 0.7853982
    %vm354 = vcmp.lt.s32.totalorder %v247, 0
    %v355 = vand.u32 %v247, 2139095040
    %v356 = vshrl.u32 %v355, 23
    %v357 = vsub.s32 %v356, 127
    %v358 = vand.u32 2147483647, %v247
    %v359 = vand.u32 %v358, 8388607
    %v360 = vor.u32 %v359, 8388608
    %v361 = vsub.s32 0, %v360
    %v362 = vadd.s32 %v357, 1
    %vm363 = vcmp.gt.s32.totalorder %v362, 0
    %v364 = vsel %vm363, %v362, 0
    %v365 = vshrl.u32 %v364, 5
    %v366 = vand.u32 %v364, 31
    %v367 = vsub.s32 32, %v366
    %v368 = vshrl.u32 683565275, %v367
    %v369 = vshll.u32 683565275, %v366
    %v370 = vshrl.u32 2475754826, %v367
    %v371 = vor.u32 %v369, %v370
    %v372 = vshll.u32 2475754826, %v366
    %v373 = vshrl.u32 2131351028, %v367
    %v374 = vor.u32 %v372, %v373
    %v375 = vshll.u32 2131351028, %v366
    %v376 = vshrl.u32 2102212464, %v367
    %v377 = vor.u32 %v375, %v376
    %v378 = vshll.u32 2102212464, %v366
    %v379 = vshrl.u32 920167782, %v367
    %v380 = vor.u32 %v378, %v379
    %v381 = vshll.u32 920167782, %v366
    %v382 = vshrl.u32 1326507024, %v367
    %v383 = vor.u32 %v381, %v382
    %vm384 = vcmp.lt.s32.totalorder %v365, 1
    %vm385 = vcmp.lt.s32.totalorder %v365, 2
    %vm386 = vcmp.lt.s32.totalorder %v365, 3
    %vm387 = vcmp.lt.s32.totalorder %v365, 4
    %v388 = vsel %vm384, %v368, %v371
    %v389 = vsel %vm387, %v377, 2102212464
    %v390 = vsel %vm386, %v374, %v389
    %v391 = vsel %vm385, %v388, %v390
    %v392 = vsel %vm384, %v371, %v374
    %v393 = vsel %vm387, %v380, 920167782
    %v394 = vsel %vm386, %v377, %v393
    %v395 = vsel %vm385, %v392, %v394
    %v396 = vsel %vm384, %v374, %v377
    %v397 = vsel %vm387, %v383, 1326507024
    %v398 = vsel %vm386, %v380, %v397
    %v399 = vsel %vm385, %v396, %v398
    %v400 = vshll.u32 %v360, 8
    %v401 = vmul.u32.u64.compose %v400, %v399
    %v402 = vextract.low.u32 %v401
    %v403 = vextract.high.u32 %v401
    %v404 = vmul.u32.u64.compose %v400, %v395
    %v405 = vextract.low.u32 %v404
    %v406 = vextract.high.u32 %v404
    %v407 = vmul.u32 %v400, %v391
    %v408 = vadd.s32 %v403, %v405
    %vm409 = vc.u32 %v403, %v405
    %v410 = vadd.s32 %v406, 1
    %v411 = vsel %vm409, %v410, %v406
    %v412 = vadd.s32 %v407, %v411
    %v413 = vadd.s32 %v412, 536870912
    %v414 = vshrl.u32 %v413, 30
    %v415 = vshll.u32 %v414, 30
    %v416 = vsub.s32 %v412, %v415
    %vm417 = vcmp.lt.s32.totalorder %v416, 0
    %v418 = vsub.s32 0, %v416
    %v419 = vsel %vm417, %v418, %v416
    %v420 = vclz %v419
    %v421 = vsub.s32 %v420, 2
    %vm422 = vcmp.gt.s32.totalorder 0, %v421
    %v423 = vsel %vm422, 0, %v421
    %v424 = vsub.s32 32, %v423
    %v425 = vshll.u32 %v416, %v423
    %v426 = vshrl.u32 %v408, %v424
    %v427 = vor.u32 %v425, %v426
    %v428 = vsub.s32 4294967266, %v423
    %v429 = vadd.s32 %v428, 127
    %v430 = vshll.u32 %v429, 23
    %v431 = vor.u32 4788187, %v430
    %v432 = vand.u32 2147483647, %v431
    %v434 = vcvt.s32.f32 %v427
    %v435 = vmul.f32 %v434, %v432
    %v436 = vxor.u32 %v435, 2147483648
    %v437 = vsel %vm354, %v436, %v435
    %v438 = vsub.s32 4, %v414
    %v439 = vsel %vm354, %v438, %v414
    %v440 = vsel %vm353, %v247, %v437
    %v441 = vsel %vm353, 0, %v439
    %v442 = vcosq.f32.pop %v440
    %v443 = vsinq.f32.pop %v440
    %vm444 = vweird.f32 %v247
    %v445 = vand.u32 %v441, 3
    %vm446 = vcmp.lt.s32.totalorder %v445, 2
    %vm447 = vcmp.eq.s32.totalorder %v445, 0
    %v448 = vxor.u32 %v443, 2147483648
    %v449 = vsel %vm447, %v442, %v448
    %vm450 = vcmp.eq.s32.totalorder %v445, 2
    %v451 = vxor.u32 %v442, 2147483648
    %v452 = vsel %vm450, %v451, %v443
    %v453 = vsel %vm446, %v449, %v452
    %v454 = vsel %vm444, nan, %v453
    %v455 = vpack.c.bf16 %v351, %v351
    %v456 = vpack.c.bf16 %v454, %v454
    %v457 = vand.u32 2147483647, %v245
    %vm458 = vcmp.le.f32.partialorder %v457, 0.7853982
    %vm459 = vcmp.lt.s32.totalorder %v245, 0
    %v460 = vand.u32 %v245, 2139095040
    %v461 = vshrl.u32 %v460, 23
    %v462 = vsub.s32 %v461, 127
    %v463 = vand.u32 2147483647, %v245
    %v464 = vand.u32 %v463, 8388607
    %v465 = vor.u32 %v464, 8388608
    %v466 = vsub.s32 0, %v465
    %v467 = vadd.s32 %v462, 1
    %vm468 = vcmp.gt.s32.totalorder %v467, 0
    %v469 = vsel %vm468, %v467, 0
    %v470 = vshrl.u32 %v469, 5
    %v471 = vand.u32 %v469, 31
    %v472 = vsub.s32 32, %v471
    %v473 = vshrl.u32 683565275, %v472
    %v474 = vshll.u32 683565275, %v471
    %v475 = vshrl.u32 2475754826, %v472
    %v476 = vor.u32 %v474, %v475
    %v477 = vshll.u32 2475754826, %v471
    %v478 = vshrl.u32 2131351028, %v472
    %v479 = vor.u32 %v477, %v478
    %v480 = vshll.u32 2131351028, %v471
    %v481 = vshrl.u32 2102212464, %v472
    %v482 = vor.u32 %v480, %v481
    %v483 = vshll.u32 2102212464, %v471
    %v484 = vshrl.u32 920167782, %v472
    %v485 = vor.u32 %v483, %v484
    %v486 = vshll.u32 920167782, %v471
    %v487 = vshrl.u32 1326507024, %v472
    %v488 = vor.u32 %v486, %v487
    %vm489 = vcmp.lt.s32.totalorder %v470, 1
    %vm490 = vcmp.lt.s32.totalorder %v470, 2
    %vm491 = vcmp.lt.s32.totalorder %v470, 3
    %vm492 = vcmp.lt.s32.totalorder %v470, 4
    %v493 = vsel %vm489, %v473, %v476
    %v494 = vsel %vm492, %v482, 2102212464
    %v495 = vsel %vm491, %v479, %v494
    %v496 = vsel %vm490, %v493, %v495
    %v497 = vsel %vm489, %v476, %v479
    %v498 = vsel %vm492, %v485, 920167782
    %v499 = vsel %vm491, %v482, %v498
    %v500 = vsel %vm490, %v497, %v499
    %v501 = vsel %vm489, %v479, %v482
    %v502 = vsel %vm492, %v488, 1326507024
    %v503 = vsel %vm491, %v485, %v502
    %v504 = vsel %vm490, %v501, %v503
    %v505 = vshll.u32 %v465, 8
    %v506 = vmul.u32.u64.compose %v505, %v504
    %v507 = vextract.low.u32 %v506
    %v508 = vextract.high.u32 %v506
    %v509 = vmul.u32.u64.compose %v505, %v500
    %v510 = vextract.low.u32 %v509
    %v511 = vextract.high.u32 %v509
    %v512 = vmul.u32 %v505, %v496
    %v513 = vadd.s32 %v508, %v510
    %vm514 = vc.u32 %v508, %v510
    %v515 = vadd.s32 %v511, 1
    %v516 = vsel %vm514, %v515, %v511
    %v517 = vadd.s32 %v512, %v516
    %v518 = vadd.s32 %v517, 536870912
    %v519 = vshrl.u32 %v518, 30
    %v520 = vshll.u32 %v519, 30
    %v521 = vsub.s32 %v517, %v520
    %vm522 = vcmp.lt.s32.totalorder %v521, 0
    %v523 = vsub.s32 0, %v521
    %v524 = vsel %vm522, %v523, %v521
    %v525 = vclz %v524
    %v526 = vsub.s32 %v525, 2
    %vm527 = vcmp.gt.s32.totalorder 0, %v526
    %v528 = vsel %vm527, 0, %v526
    %v529 = vsub.s32 32, %v528
    %v530 = vshll.u32 %v521, %v528
    %v531 = vshrl.u32 %v513, %v529
    %v532 = vor.u32 %v530, %v531
    %v533 = vsub.s32 4294967266, %v528
    %v534 = vadd.s32 %v533, 127
    %v535 = vshll.u32 %v534, 23
    %v536 = vor.u32 4788187, %v535
    %v537 = vand.u32 2147483647, %v536
    %v539 = vcvt.s32.f32 %v532
    %v540 = vmul.f32 %v539, %v537
    %v541 = vxor.u32 %v540, 2147483648
    %v542 = vsel %vm459, %v541, %v540
    %v543 = vsub.s32 4, %v519
    %v544 = vsel %vm459, %v543, %v519
    %v545 = vsel %vm458, %v245, %v542
    %v546 = vsel %vm458, 0, %v544
    %v547 = vcosq.f32.pop %v545
    %v548 = vsinq.f32.pop %v545
    %vm549 = vweird.f32 %v245
    %v550 = vadd.s32 %v546, 3
    %v551 = vand.u32 %v550, 3
    %vm552 = vcmp.lt.s32.totalorder %v551, 2
    %vm553 = vcmp.eq.s32.totalorder %v551, 0
    %v554 = vxor.u32 %v548, 2147483648
    %v555 = vsel %vm553, %v547, %v554
    %vm556 = vcmp.eq.s32.totalorder %v551, 2
    %v557 = vxor.u32 %v547, 2147483648
    %v558 = vsel %vm556, %v557, %v548
    %v559 = vsel %vm552, %v555, %v558
    %v560 = vsel %vm549, nan, %v559
    %v561 = vand.u32 2147483647, %v247
    %vm562 = vcmp.le.f32.partialorder %v561, 0.7853982
    %vm563 = vcmp.lt.s32.totalorder %v247, 0
    %v564 = vand.u32 %v247, 2139095040
    %v565 = vshrl.u32 %v564, 23
    %v566 = vsub.s32 %v565, 127
    %v567 = vand.u32 2147483647, %v247
    %v568 = vand.u32 %v567, 8388607
    %v569 = vor.u32 %v568, 8388608
    %v570 = vsub.s32 0, %v569
    %v571 = vadd.s32 %v566, 1
    %vm572 = vcmp.gt.s32.totalorder %v571, 0
    %v573 = vsel %vm572, %v571, 0
    %v574 = vshrl.u32 %v573, 5
    %v575 = vand.u32 %v573, 31
    %v576 = vsub.s32 32, %v575
    %v577 = vshrl.u32 683565275, %v576
    %v578 = vshll.u32 683565275, %v575
    %v579 = vshrl.u32 2475754826, %v576
    %v580 = vor.u32 %v578, %v579
    %v581 = vshll.u32 2475754826, %v575
    %v582 = vshrl.u32 2131351028, %v576
    %v583 = vor.u32 %v581, %v582
    %v584 = vshll.u32 2131351028, %v575
    %v585 = vshrl.u32 2102212464, %v576
    %v586 = vor.u32 %v584, %v585
    %v587 = vshll.u32 2102212464, %v575
    %v588 = vshrl.u32 920167782, %v576
    %v589 = vor.u32 %v587, %v588
    %v590 = vshll.u32 920167782, %v575
    %v591 = vshrl.u32 1326507024, %v576
    %v592 = vor.u32 %v590, %v591
    %vm593 = vcmp.lt.s32.totalorder %v574, 1
    %vm594 = vcmp.lt.s32.totalorder %v574, 2
    %vm595 = vcmp.lt.s32.totalorder %v574, 3
    %vm596 = vcmp.lt.s32.totalorder %v574, 4
    %v597 = vsel %vm593, %v577, %v580
    %v598 = vsel %vm596, %v586, 2102212464
    %v599 = vsel %vm595, %v583, %v598
    %v600 = vsel %vm594, %v597, %v599
    %v601 = vsel %vm593, %v580, %v583
    %v602 = vsel %vm596, %v589, 920167782
    %v603 = vsel %vm595, %v586, %v602
    %v604 = vsel %vm594, %v601, %v603
    %v605 = vsel %vm593, %v583, %v586
    %v606 = vsel %vm596, %v592, 1326507024
    %v607 = vsel %vm595, %v589, %v606
    %v608 = vsel %vm594, %v605, %v607
    %v609 = vshll.u32 %v569, 8
    %v610 = vmul.u32.u64.compose %v609, %v608
    %v611 = vextract.low.u32 %v610
    %v612 = vextract.high.u32 %v610
    %v613 = vmul.u32.u64.compose %v609, %v604
    %v614 = vextract.low.u32 %v613
    %v615 = vextract.high.u32 %v613
    %v616 = vmul.u32 %v609, %v600
    %v617 = vadd.s32 %v612, %v614
    %vm618 = vc.u32 %v612, %v614
    %v619 = vadd.s32 %v615, 1
    %v620 = vsel %vm618, %v619, %v615
    %v621 = vadd.s32 %v616, %v620
    %v622 = vadd.s32 %v621, 536870912
    %v623 = vshrl.u32 %v622, 30
    %v624 = vshll.u32 %v623, 30
    %v625 = vsub.s32 %v621, %v624
    %vm626 = vcmp.lt.s32.totalorder %v625, 0
    %v627 = vsub.s32 0, %v625
    %v628 = vsel %vm626, %v627, %v625
    %v629 = vclz %v628
    %v630 = vsub.s32 %v629, 2
    %vm631 = vcmp.gt.s32.totalorder 0, %v630
    %v632 = vsel %vm631, 0, %v630
    %v633 = vsub.s32 32, %v632
    %v634 = vshll.u32 %v625, %v632
    %v635 = vshrl.u32 %v617, %v633
    %v636 = vor.u32 %v634, %v635
    %v637 = vsub.s32 4294967266, %v632
    %v638 = vadd.s32 %v637, 127
    %v639 = vshll.u32 %v638, 23
    %v640 = vor.u32 4788187, %v639
    %v641 = vand.u32 2147483647, %v640
    %v643 = vcvt.s32.f32 %v636
    %v644 = vmul.f32 %v643, %v641
    %v645 = vxor.u32 %v644, 2147483648
    %v646 = vsel %vm563, %v645, %v644
    %v647 = vsub.s32 4, %v623
    %v648 = vsel %vm563, %v647, %v623
    %v649 = vsel %vm562, %v247, %v646
    %v650 = vsel %vm562, 0, %v648
    %v651 = vcosq.f32.pop %v649
    %v652 = vsinq.f32.pop %v649
    %vm653 = vweird.f32 %v247
    %v654 = vadd.s32 %v650, 3
    %v655 = vand.u32 %v654, 3
    %vm656 = vcmp.lt.s32.totalorder %v655, 2
    %vm657 = vcmp.eq.s32.totalorder %v655, 0
    %v658 = vxor.u32 %v652, 2147483648
    %v659 = vsel %vm657, %v651, %v658
    %vm660 = vcmp.eq.s32.totalorder %v655, 2
    %v661 = vxor.u32 %v651, 2147483648
    %v662 = vsel %vm660, %v661, %v652
    %v663 = vsel %vm656, %v659, %v662
    %v664 = vsel %vm653, nan, %v663
    %v665 = vpack.c.bf16 %v560, %v560
    %v666 = vpack.c.bf16 %v664, %v664
    %v667 = vld [vmem:[#allocation5] sm:$0xff]
    %v668 = vld [vmem:[#allocation5 + $0x8] sm:$0xff]
    %v669 = vld [vmem:[#allocation5 + $0x10] sm:$0xff]
    %v670 = vld [vmem:[#allocation5 + $0x18] sm:$0xff]
    %v671 = vld [vmem:[#allocation5 + $0x20] sm:$0xff]
    %v672 = vld [vmem:[#allocation5 + $0x28] sm:$0xff]
    %v673 = vld [vmem:[#allocation5 + $0x30] sm:$0xff]
    %v674 = vld [vmem:[#allocation5 + $0x38] sm:$0xff]
    %v675 = vld [vmem:[#allocation5 + $0x40] sm:$0xff]
    %v676 = vld [vmem:[#allocation5 + $0x48] sm:$0xff]
    %v677 = vld [vmem:[#allocation5 + $0x50] sm:$0xff]
    %v678 = vld [vmem:[#allocation5 + $0x58] sm:$0xff]
    %v679 = vld [vmem:[#allocation5 + $0x60] sm:$0xff]
    %v680 = vld [vmem:[#allocation5 + $0x68] sm:$0xff]
    %v681 = vld [vmem:[#allocation5 + $0x70] sm:$0xff]
    %v682 = vld [vmem:[#allocation5 + $0x78] sm:$0xff]
    %v683 = vld [vmem:[#allocation5 + $0x80] sm:$0xff]
    %v684 = vld [vmem:[#allocation5 + $0x88] sm:$0xff]
    %v685 = vld [vmem:[#allocation5 + $0x90] sm:$0xff]
    %v686 = vld [vmem:[#allocation5 + $0x98] sm:$0xff]
    %v687 = vld [vmem:[#allocation5 + $0xa0] sm:$0xff]
    %v688 = vld [vmem:[#allocation5 + $0xa8] sm:$0xff]
    %v689 = vld [vmem:[#allocation5 + $0xb0] sm:$0xff]
    %v690 = vld [vmem:[#allocation5 + $0xb8] sm:$0xff]
    %v691 = vld [vmem:[#allocation5 + $0xc0] sm:$0xff]
    %v692 = vld [vmem:[#allocation5 + $0xc8] sm:$0xff]
    %v693 = vld [vmem:[#allocation5 + $0xd0] sm:$0xff]
    %v694 = vld [vmem:[#allocation5 + $0xd8] sm:$0xff]
    %v695 = vld [vmem:[#allocation5 + $0xe0] sm:$0xff]
    %v696 = vld [vmem:[#allocation5 + $0xe8] sm:$0xff]
    %v697 = vld [vmem:[#allocation5 + $0xf0] sm:$0xff]
    %v698 = vld [vmem:[#allocation5 + $0xf8] sm:$0xff]
    %v699 = vld [vmem:[#allocation5 + $0x100] sm:$0xff]
    %v700 = vld [vmem:[#allocation5 + $0x108] sm:$0xff]
    %v701 = vld [vmem:[#allocation5 + $0x110] sm:$0xff]
    %v702 = vld [vmem:[#allocation5 + $0x118] sm:$0xff]
    %v703 = vld [vmem:[#allocation5 + $0x120] sm:$0xff]
    %v704 = vld [vmem:[#allocation5 + $0x128] sm:$0xff]
    %v705 = vld [vmem:[#allocation5 + $0x130] sm:$0xff]
    %v706 = vld [vmem:[#allocation5 + $0x138] sm:$0xff]
    %v707 = vld [vmem:[#allocation5 + $0x140] sm:$0xff]
    %v708 = vld [vmem:[#allocation5 + $0x148] sm:$0xff]
    %v709 = vld [vmem:[#allocation5 + $0x150] sm:$0xff]
    %v710 = vld [vmem:[#allocation5 + $0x158] sm:$0xff]
    %v711 = vld [vmem:[#allocation5 + $0x160] sm:$0xff]
    %v712 = vld [vmem:[#allocation5 + $0x168] sm:$0xff]
    %v713 = vld [vmem:[#allocation5 + $0x170] sm:$0xff]
    %v714 = vld [vmem:[#allocation5 + $0x178] sm:$0xff]
    %v715 = vld [vmem:[#allocation5 + $0x180] sm:$0xff]
    %v716 = vld [vmem:[#allocation5 + $0x188] sm:$0xff]
    %v717 = vld [vmem:[#allocation5 + $0x190] sm:$0xff]
    %v718 = vld [vmem:[#allocation5 + $0x198] sm:$0xff]
    %v719 = vld [vmem:[#allocation5 + $0x1a0] sm:$0xff]
    %v720 = vld [vmem:[#allocation5 + $0x1a8] sm:$0xff]
    %v721 = vld [vmem:[#allocation5 + $0x1b0] sm:$0xff]
    %v722 = vld [vmem:[#allocation5 + $0x1b8] sm:$0xff]
    %v723 = vld [vmem:[#allocation5 + $0x1c0] sm:$0xff]
    %v724 = vld [vmem:[#allocation5 + $0x1c8] sm:$0xff]
    %v725 = vld [vmem:[#allocation5 + $0x1d0] sm:$0xff]
    %v726 = vld [vmem:[#allocation5 + $0x1d8] sm:$0xff]
    %v727 = vld [vmem:[#allocation5 + $0x1e0] sm:$0xff]
    %v728 = vld [vmem:[#allocation5 + $0x1e8] sm:$0xff]
    %v729 = vld [vmem:[#allocation5 + $0x1f0] sm:$0xff]
    %v730 = vld [vmem:[#allocation5 + $0x1f8] sm:$0xff]
    %v731 = vld [vmem:[#allocation5 + $0x200] sm:$0xff]
    %v732 = vld [vmem:[#allocation5 + $0x208] sm:$0xff]
    %v733 = vld [vmem:[#allocation5 + $0x210] sm:$0xff]
    %v734 = vld [vmem:[#allocation5 + $0x218] sm:$0xff]
    %v735 = vld [vmem:[#allocation5 + $0x220] sm:$0xff]
    %v736 = vld [vmem:[#allocation5 + $0x228] sm:$0xff]
    %v737 = vld [vmem:[#allocation5 + $0x230] sm:$0xff]
    %v738 = vld [vmem:[#allocation5 + $0x238] sm:$0xff]
    %v739 = vld [vmem:[#allocation5 + $0x240] sm:$0xff]
    %v740 = vld [vmem:[#allocation5 + $0x248] sm:$0xff]
    %v741 = vld [vmem:[#allocation5 + $0x250] sm:$0xff]
    %v742 = vld [vmem:[#allocation5 + $0x258] sm:$0xff]
    %v743 = vld [vmem:[#allocation5 + $0x260] sm:$0xff]
    %v744 = vld [vmem:[#allocation5 + $0x268] sm:$0xff]
    %v745 = vld [vmem:[#allocation5 + $0x270] sm:$0xff]
    %v746 = vld [vmem:[#allocation5 + $0x278] sm:$0xff]
    %v747 = vld [vmem:[#allocation5 + $0x280] sm:$0xff]
    %v748 = vld [vmem:[#allocation5 + $0x288] sm:$0xff]
    %v749 = vld [vmem:[#allocation5 + $0x290] sm:$0xff]
    %v750 = vld [vmem:[#allocation5 + $0x298] sm:$0xff]
    %v751 = vld [vmem:[#allocation5 + $0x2a0] sm:$0xff]
    %v752 = vld [vmem:[#allocation5 + $0x2a8] sm:$0xff]
    %v753 = vld [vmem:[#allocation5 + $0x2b0] sm:$0xff]
    %v754 = vld [vmem:[#allocation5 + $0x2b8] sm:$0xff]
    %v755 = vld [vmem:[#allocation5 + $0x2c0] sm:$0xff]
    %v756 = vld [vmem:[#allocation5 + $0x2c8] sm:$0xff]
    %v757 = vld [vmem:[#allocation5 + $0x2d0] sm:$0xff]
    %v758 = vld [vmem:[#allocation5 + $0x2d8] sm:$0xff]
    %v759 = vld [vmem:[#allocation5 + $0x2e0] sm:$0xff]
    %v760 = vld [vmem:[#allocation5 + $0x2e8] sm:$0xff]
    %v761 = vld [vmem:[#allocation5 + $0x2f0] sm:$0xff]
    %v762 = vld [vmem:[#allocation5 + $0x2f8] sm:$0xff]
    %v763 = vld [vmem:[#allocation5 + $0x300] sm:$0xff]
    %v764 = vld [vmem:[#allocation5 + $0x308] sm:$0xff]
    %v765 = vld [vmem:[#allocation5 + $0x310] sm:$0xff]
    %v766 = vld [vmem:[#allocation5 + $0x318] sm:$0xff]
    %v767 = vld [vmem:[#allocation5 + $0x320] sm:$0xff]
    %v768 = vld [vmem:[#allocation5 + $0x328] sm:$0xff]
    %v769 = vld [vmem:[#allocation5 + $0x330] sm:$0xff]
    %v770 = vld [vmem:[#allocation5 + $0x338] sm:$0xff]
    %v771 = vld [vmem:[#allocation5 + $0x340] sm:$0xff]
    %v772 = vld [vmem:[#allocation5 + $0x348] sm:$0xff]
    %v773 = vld [vmem:[#allocation5 + $0x350] sm:$0xff]
    %v774 = vld [vmem:[#allocation5 + $0x358] sm:$0xff]
    %v775 = vld [vmem:[#allocation5 + $0x360] sm:$0xff]
    %v776 = vld [vmem:[#allocation5 + $0x368] sm:$0xff]
    %v777 = vld [vmem:[#allocation5 + $0x370] sm:$0xff]
    %v778 = vld [vmem:[#allocation5 + $0x378] sm:$0xff]
    %v779 = vld [vmem:[#allocation5 + $0x380] sm:$0xff]
    %v780 = vld [vmem:[#allocation5 + $0x388] sm:$0xff]
    %v781 = vld [vmem:[#allocation5 + $0x390] sm:$0xff]
    %v782 = vld [vmem:[#allocation5 + $0x398] sm:$0xff]
    %v783 = vld [vmem:[#allocation5 + $0x3a0] sm:$0xff]
    %v784 = vld [vmem:[#allocation5 + $0x3a8] sm:$0xff]
    %v785 = vld [vmem:[#allocation5 + $0x3b0] sm:$0xff]
    %v786 = vld [vmem:[#allocation5 + $0x3b8] sm:$0xff]
    %v787 = vld [vmem:[#allocation5 + $0x3c0] sm:$0xff]
    %v788 = vld [vmem:[#allocation5 + $0x3c8] sm:$0xff]
    %v789 = vld [vmem:[#allocation5 + $0x3d0] sm:$0xff]
    %v790 = vld [vmem:[#allocation5 + $0x3d8] sm:$0xff]
    %v791 = vld [vmem:[#allocation5 + $0x3e0] sm:$0xff]
    %v792 = vld [vmem:[#allocation5 + $0x3e8] sm:$0xff]
    %v793 = vld [vmem:[#allocation5 + $0x3f0] sm:$0xff]
    %v794 = vld [vmem:[#allocation5 + $0x3f8] sm:$0xff]
    %v795 = vld [vmem:[#allocation7] sm:$0xff]
    %v796 = vld [vmem:[#allocation7 + $0x8] sm:$0xff]
    %v797 = vld [vmem:[#allocation7 + $0x10] sm:$0xff]
    %v798 = vld [vmem:[#allocation7 + $0x18] sm:$0xff]
    %v799 = vld [vmem:[#allocation7 + $0x20] sm:$0xff]
    %v800 = vld [vmem:[#allocation7 + $0x28] sm:$0xff]
    %v801 = vld [vmem:[#allocation7 + $0x30] sm:$0xff]
    %v802 = vld [vmem:[#allocation7 + $0x38] sm:$0xff]
    %v803 = vld [vmem:[#allocation7 + $0x40] sm:$0xff]
    %v804 = vld [vmem:[#allocation7 + $0x48] sm:$0xff]
    %v805 = vld [vmem:[#allocation7 + $0x50] sm:$0xff]
    %v806 = vld [vmem:[#allocation7 + $0x58] sm:$0xff]
    %v807 = vld [vmem:[#allocation7 + $0x60] sm:$0xff]
    %v808 = vld [vmem:[#allocation7 + $0x68] sm:$0xff]
    %v809 = vld [vmem:[#allocation7 + $0x70] sm:$0xff]
    %v810 = vld [vmem:[#allocation7 + $0x78] sm:$0xff]
    %v811 = vld [vmem:[#allocation7 + $0x80] sm:$0xff]
    %v812 = vld [vmem:[#allocation7 + $0x88] sm:$0xff]
    %v813 = vld [vmem:[#allocation7 + $0x90] sm:$0xff]
    %v814 = vld [vmem:[#allocation7 + $0x98] sm:$0xff]
    %v815 = vld [vmem:[#allocation7 + $0xa0] sm:$0xff]
    %v816 = vld [vmem:[#allocation7 + $0xa8] sm:$0xff]
    %v817 = vld [vmem:[#allocation7 + $0xb0] sm:$0xff]
    %v818 = vld [vmem:[#allocation7 + $0xb8] sm:$0xff]
    %v819 = vld [vmem:[#allocation7 + $0xc0] sm:$0xff]
    %v820 = vld [vmem:[#allocation7 + $0xc8] sm:$0xff]
    %v821 = vld [vmem:[#allocation7 + $0xd0] sm:$0xff]
    %v822 = vld [vmem:[#allocation7 + $0xd8] sm:$0xff]
    %v823 = vld [vmem:[#allocation7 + $0xe0] sm:$0xff]
    %v824 = vld [vmem:[#allocation7 + $0xe8] sm:$0xff]
    %v825 = vld [vmem:[#allocation7 + $0xf0] sm:$0xff]
    %v826 = vld [vmem:[#allocation7 + $0xf8] sm:$0xff]
    %v827 = vld [vmem:[#allocation7 + $0x100] sm:$0xff]
    %v828 = vld [vmem:[#allocation7 + $0x108] sm:$0xff]
    %v829 = vld [vmem:[#allocation7 + $0x110] sm:$0xff]
    %v830 = vld [vmem:[#allocation7 + $0x118] sm:$0xff]
    %v831 = vld [vmem:[#allocation7 + $0x120] sm:$0xff]
    %v832 = vld [vmem:[#allocation7 + $0x128] sm:$0xff]
    %v833 = vld [vmem:[#allocation7 + $0x130] sm:$0xff]
    %v834 = vld [vmem:[#allocation7 + $0x138] sm:$0xff]
    %v835 = vld [vmem:[#allocation7 + $0x140] sm:$0xff]
    %v836 = vld [vmem:[#allocation7 + $0x148] sm:$0xff]
    %v837 = vld [vmem:[#allocation7 + $0x150] sm:$0xff]
    %v838 = vld [vmem:[#allocation7 + $0x158] sm:$0xff]
    %v839 = vld [vmem:[#allocation7 + $0x160] sm:$0xff]
    %v840 = vld [vmem:[#allocation7 + $0x168] sm:$0xff]
    %v841 = vld [vmem:[#allocation7 + $0x170] sm:$0xff]
    %v842 = vld [vmem:[#allocation7 + $0x178] sm:$0xff]
    %v843 = vld [vmem:[#allocation7 + $0x180] sm:$0xff]
    %v844 = vld [vmem:[#allocation7 + $0x188] sm:$0xff]
    %v845 = vld [vmem:[#allocation7 + $0x190] sm:$0xff]
    %v846 = vld [vmem:[#allocation7 + $0x198] sm:$0xff]
    %v847 = vld [vmem:[#allocation7 + $0x1a0] sm:$0xff]
    %v848 = vld [vmem:[#allocation7 + $0x1a8] sm:$0xff]
    %v849 = vld [vmem:[#allocation7 + $0x1b0] sm:$0xff]
    %v850 = vld [vmem:[#allocation7 + $0x1b8] sm:$0xff]
    %v851 = vld [vmem:[#allocation7 + $0x1c0] sm:$0xff]
    %v852 = vld [vmem:[#allocation7 + $0x1c8] sm:$0xff]
    %v853 = vld [vmem:[#allocation7 + $0x1d0] sm:$0xff]
    %v854 = vld [vmem:[#allocation7 + $0x1d8] sm:$0xff]
    %v855 = vld [vmem:[#allocation7 + $0x1e0] sm:$0xff]
    %v856 = vld [vmem:[#allocation7 + $0x1e8] sm:$0xff]
    %v857 = vld [vmem:[#allocation7 + $0x1f0] sm:$0xff]
    %v858 = vld [vmem:[#allocation7 + $0x1f8] sm:$0xff]
    %v859 = vld [vmem:[#allocation7 + $0x200] sm:$0xff]
    %v860 = vld [vmem:[#allocation7 + $0x208] sm:$0xff]
    %v861 = vld [vmem:[#allocation7 + $0x210] sm:$0xff]
    %v862 = vld [vmem:[#allocation7 + $0x218] sm:$0xff]
    %v863 = vld [vmem:[#allocation7 + $0x220] sm:$0xff]
    %v864 = vld [vmem:[#allocation7 + $0x228] sm:$0xff]
    %v865 = vld [vmem:[#allocation7 + $0x230] sm:$0xff]
    %v866 = vld [vmem:[#allocation7 + $0x238] sm:$0xff]
    %v867 = vld [vmem:[#allocation7 + $0x240] sm:$0xff]
    %v868 = vld [vmem:[#allocation7 + $0x248] sm:$0xff]
    %v869 = vld [vmem:[#allocation7 + $0x250] sm:$0xff]
    %v870 = vld [vmem:[#allocation7 + $0x258] sm:$0xff]
    %v871 = vld [vmem:[#allocation7 + $0x260] sm:$0xff]
    %v872 = vld [vmem:[#allocation7 + $0x268] sm:$0xff]
    %v873 = vld [vmem:[#allocation7 + $0x270] sm:$0xff]
    %v874 = vld [vmem:[#allocation7 + $0x278] sm:$0xff]
    %v875 = vld [vmem:[#allocation7 + $0x280] sm:$0xff]
    %v876 = vld [vmem:[#allocation7 + $0x288] sm:$0xff]
    %v877 = vld [vmem:[#allocation7 + $0x290] sm:$0xff]
    %v878 = vld [vmem:[#allocation7 + $0x298] sm:$0xff]
    %v879 = vld [vmem:[#allocation7 + $0x2a0] sm:$0xff]
    %v880 = vld [vmem:[#allocation7 + $0x2a8] sm:$0xff]
    %v881 = vld [vmem:[#allocation7 + $0x2b0] sm:$0xff]
    %v882 = vld [vmem:[#allocation7 + $0x2b8] sm:$0xff]
    %v883 = vld [vmem:[#allocation7 + $0x2c0] sm:$0xff]
    %v884 = vld [vmem:[#allocation7 + $0x2c8] sm:$0xff]
    %v885 = vld [vmem:[#allocation7 + $0x2d0] sm:$0xff]
    %v886 = vld [vmem:[#allocation7 + $0x2d8] sm:$0xff]
    %v887 = vld [vmem:[#allocation7 + $0x2e0] sm:$0xff]
    %v888 = vld [vmem:[#allocation7 + $0x2e8] sm:$0xff]
    %v889 = vld [vmem:[#allocation7 + $0x2f0] sm:$0xff]
    %v890 = vld [vmem:[#allocation7 + $0x2f8] sm:$0xff]
    %v891 = vld [vmem:[#allocation7 + $0x300] sm:$0xff]
    %v892 = vld [vmem:[#allocation7 + $0x308] sm:$0xff]
    %v893 = vld [vmem:[#allocation7 + $0x310] sm:$0xff]
    %v894 = vld [vmem:[#allocation7 + $0x318] sm:$0xff]
    %v895 = vld [vmem:[#allocation7 + $0x320] sm:$0xff]
    %v896 = vld [vmem:[#allocation7 + $0x328] sm:$0xff]
    %v897 = vld [vmem:[#allocation7 + $0x330] sm:$0xff]
    %v898 = vld [vmem:[#allocation7 + $0x338] sm:$0xff]
    %v899 = vld [vmem:[#allocation7 + $0x340] sm:$0xff]
    %v900 = vld [vmem:[#allocation7 + $0x348] sm:$0xff]
    %v901 = vld [vmem:[#allocation7 + $0x350] sm:$0xff]
    %v902 = vld [vmem:[#allocation7 + $0x358] sm:$0xff]
    %v903 = vld [vmem:[#allocation7 + $0x360] sm:$0xff]
    %v904 = vld [vmem:[#allocation7 + $0x368] sm:$0xff]
    %v905 = vld [vmem:[#allocation7 + $0x370] sm:$0xff]
    %v906 = vld [vmem:[#allocation7 + $0x378] sm:$0xff]
    %v907 = vld [vmem:[#allocation7 + $0x380] sm:$0xff]
    %v908 = vld [vmem:[#allocation7 + $0x388] sm:$0xff]
    %v909 = vld [vmem:[#allocation7 + $0x390] sm:$0xff]
    %v910 = vld [vmem:[#allocation7 + $0x398] sm:$0xff]
    %v911 = vld [vmem:[#allocation7 + $0x3a0] sm:$0xff]
    %v912 = vld [vmem:[#allocation7 + $0x3a8] sm:$0xff]
    %v913 = vld [vmem:[#allocation7 + $0x3b0] sm:$0xff]
    %v914 = vld [vmem:[#allocation7 + $0x3b8] sm:$0xff]
    %v915 = vld [vmem:[#allocation7 + $0x3c0] sm:$0xff]
    %v916 = vld [vmem:[#allocation7 + $0x3c8] sm:$0xff]
    %v917 = vld [vmem:[#allocation7 + $0x3d0] sm:$0xff]
    %v918 = vld [vmem:[#allocation7 + $0x3d8] sm:$0xff]
    %v919 = vld [vmem:[#allocation7 + $0x3e0] sm:$0xff]
    %v920 = vld [vmem:[#allocation7 + $0x3e8] sm:$0xff]
    %v921 = vld [vmem:[#allocation7 + $0x3f0] sm:$0xff]
    %v922 = vld [vmem:[#allocation7 + $0x3f8] sm:$0xff]
    %v1051 = vunpack.c.l.b16 %v795
    %v1052 = vunpack.c.h.b16 %v795
    %v1053 = vunpack.c.l.b16 %v796
    %v1054 = vunpack.c.h.b16 %v796
    %v1055 = vunpack.c.l.b16 %v797
    %v1056 = vunpack.c.h.b16 %v797
    %v1057 = vunpack.c.l.b16 %v798
    %v1058 = vunpack.c.h.b16 %v798
    %v1059 = vunpack.c.l.b16 %v799
    %v1060 = vunpack.c.h.b16 %v799
    %v1061 = vunpack.c.l.b16 %v800
    %v1062 = vunpack.c.h.b16 %v800
    %v1063 = vunpack.c.l.b16 %v801
    %v1064 = vunpack.c.h.b16 %v801
    %v1065 = vunpack.c.l.b16 %v802
    %v1066 = vunpack.c.h.b16 %v802
    %v1067 = vunpack.c.l.b16 %v803
    %v1068 = vunpack.c.h.b16 %v803
    %v1069 = vunpack.c.l.b16 %v804
    %v1070 = vunpack.c.h.b16 %v804
    %v1071 = vunpack.c.l.b16 %v805
    %v1072 = vunpack.c.h.b16 %v805
    %v1073 = vunpack.c.l.b16 %v806
    %v1074 = vunpack.c.h.b16 %v806
    %v1075 = vunpack.c.l.b16 %v807
    %v1076 = vunpack.c.h.b16 %v807
    %v1077 = vunpack.c.l.b16 %v808
    %v1078 = vunpack.c.h.b16 %v808
    %v1079 = vunpack.c.l.b16 %v809
    %v1080 = vunpack.c.h.b16 %v809
    %v1081 = vunpack.c.l.b16 %v810
    %v1082 = vunpack.c.h.b16 %v810
    %v1083 = vunpack.c.l.b16 %v811
    %v1084 = vunpack.c.h.b16 %v811
    %v1085 = vunpack.c.l.b16 %v812
    %v1086 = vunpack.c.h.b16 %v812
    %v1087 = vunpack.c.l.b16 %v813
    %v1088 = vunpack.c.h.b16 %v813
    %v1089 = vunpack.c.l.b16 %v814
    %v1090 = vunpack.c.h.b16 %v814
    %v1091 = vunpack.c.l.b16 %v815
    %v1092 = vunpack.c.h.b16 %v815
    %v1093 = vunpack.c.l.b16 %v816
    %v1094 = vunpack.c.h.b16 %v816
    %v1095 = vunpack.c.l.b16 %v817
    %v1096 = vunpack.c.h.b16 %v817
    %v1097 = vunpack.c.l.b16 %v818
    %v1098 = vunpack.c.h.b16 %v818
    %v1099 = vunpack.c.l.b16 %v819
    %v1100 = vunpack.c.h.b16 %v819
    %v1101 = vunpack.c.l.b16 %v820
    %v1102 = vunpack.c.h.b16 %v820
    %v1103 = vunpack.c.l.b16 %v821
    %v1104 = vunpack.c.h.b16 %v821
    %v1105 = vunpack.c.l.b16 %v822
    %v1106 = vunpack.c.h.b16 %v822
    %v1107 = vunpack.c.l.b16 %v823
    %v1108 = vunpack.c.h.b16 %v823
    %v1109 = vunpack.c.l.b16 %v824
    %v1110 = vunpack.c.h.b16 %v824
    %v1111 = vunpack.c.l.b16 %v825
    %v1112 = vunpack.c.h.b16 %v825
    %v1113 = vunpack.c.l.b16 %v826
    %v1114 = vunpack.c.h.b16 %v826
    %v1115 = vunpack.c.l.b16 %v827
    %v1116 = vunpack.c.h.b16 %v827
    %v1117 = vunpack.c.l.b16 %v828
    %v1118 = vunpack.c.h.b16 %v828
    %v1119 = vunpack.c.l.b16 %v829
    %v1120 = vunpack.c.h.b16 %v829
    %v1121 = vunpack.c.l.b16 %v830
    %v1122 = vunpack.c.h.b16 %v830
    %v1123 = vunpack.c.l.b16 %v831
    %v1124 = vunpack.c.h.b16 %v831
    %v1125 = vunpack.c.l.b16 %v832
    %v1126 = vunpack.c.h.b16 %v832
    %v1127 = vunpack.c.l.b16 %v833
    %v1128 = vunpack.c.h.b16 %v833
    %v1129 = vunpack.c.l.b16 %v834
    %v1130 = vunpack.c.h.b16 %v834
    %v1131 = vunpack.c.l.b16 %v835
    %v1132 = vunpack.c.h.b16 %v835
    %v1133 = vunpack.c.l.b16 %v836
    %v1134 = vunpack.c.h.b16 %v836
    %v1135 = vunpack.c.l.b16 %v837
    %v1136 = vunpack.c.h.b16 %v837
    %v1137 = vunpack.c.l.b16 %v838
    %v1138 = vunpack.c.h.b16 %v838
    %v1139 = vunpack.c.l.b16 %v839
    %v1140 = vunpack.c.h.b16 %v839
    %v1141 = vunpack.c.l.b16 %v840
    %v1142 = vunpack.c.h.b16 %v840
    %v1143 = vunpack.c.l.b16 %v841
    %v1144 = vunpack.c.h.b16 %v841
    %v1145 = vunpack.c.l.b16 %v842
    %v1146 = vunpack.c.h.b16 %v842
    %v1147 = vunpack.c.l.b16 %v843
    %v1148 = vunpack.c.h.b16 %v843
    %v1149 = vunpack.c.l.b16 %v844
    %v1150 = vunpack.c.h.b16 %v844
    %v1151 = vunpack.c.l.b16 %v845
    %v1152 = vunpack.c.h.b16 %v845
    %v1153 = vunpack.c.l.b16 %v846
    %v1154 = vunpack.c.h.b16 %v846
    %v1155 = vunpack.c.l.b16 %v847
    %v1156 = vunpack.c.h.b16 %v847
    %v1157 = vunpack.c.l.b16 %v848
    %v1158 = vunpack.c.h.b16 %v848
    %v1159 = vunpack.c.l.b16 %v849
    %v1160 = vunpack.c.h.b16 %v849
    %v1161 = vunpack.c.l.b16 %v850
    %v1162 = vunpack.c.h.b16 %v850
    %v1163 = vunpack.c.l.b16 %v851
    %v1164 = vunpack.c.h.b16 %v851
    %v1165 = vunpack.c.l.b16 %v852
    %v1166 = vunpack.c.h.b16 %v852
    %v1167 = vunpack.c.l.b16 %v853
    %v1168 = vunpack.c.h.b16 %v853
    %v1169 = vunpack.c.l.b16 %v854
    %v1170 = vunpack.c.h.b16 %v854
    %v1171 = vunpack.c.l.b16 %v855
    %v1172 = vunpack.c.h.b16 %v855
    %v1173 = vunpack.c.l.b16 %v856
    %v1174 = vunpack.c.h.b16 %v856
    %v1175 = vunpack.c.l.b16 %v857
    %v1176 = vunpack.c.h.b16 %v857
    %v1177 = vunpack.c.l.b16 %v858
    %v1178 = vunpack.c.h.b16 %v858
    %v1179 = vunpack.c.l.b16 %v859
    %v1180 = vunpack.c.h.b16 %v859
    %v1181 = vunpack.c.l.b16 %v860
    %v1182 = vunpack.c.h.b16 %v860
    %v1183 = vunpack.c.l.b16 %v861
    %v1184 = vunpack.c.h.b16 %v861
    %v1185 = vunpack.c.l.b16 %v862
    %v1186 = vunpack.c.h.b16 %v862
    %v1187 = vunpack.c.l.b16 %v863
    %v1188 = vunpack.c.h.b16 %v863
    %v1189 = vunpack.c.l.b16 %v864
    %v1190 = vunpack.c.h.b16 %v864
    %v1191 = vunpack.c.l.b16 %v865
    %v1192 = vunpack.c.h.b16 %v865
    %v1193 = vunpack.c.l.b16 %v866
    %v1194 = vunpack.c.h.b16 %v866
    %v1195 = vunpack.c.l.b16 %v867
    %v1196 = vunpack.c.h.b16 %v867
    %v1197 = vunpack.c.l.b16 %v868
    %v1198 = vunpack.c.h.b16 %v868
    %v1199 = vunpack.c.l.b16 %v869
    %v1200 = vunpack.c.h.b16 %v869
    %v1201 = vunpack.c.l.b16 %v870
    %v1202 = vunpack.c.h.b16 %v870
    %v1203 = vunpack.c.l.b16 %v871
    %v1204 = vunpack.c.h.b16 %v871
    %v1205 = vunpack.c.l.b16 %v872
    %v1206 = vunpack.c.h.b16 %v872
    %v1207 = vunpack.c.l.b16 %v873
    %v1208 = vunpack.c.h.b16 %v873
    %v1209 = vunpack.c.l.b16 %v874
    %v1210 = vunpack.c.h.b16 %v874
    %v1211 = vunpack.c.l.b16 %v875
    %v1212 = vunpack.c.h.b16 %v875
    %v1213 = vunpack.c.l.b16 %v876
    %v1214 = vunpack.c.h.b16 %v876
    %v1215 = vunpack.c.l.b16 %v877
    %v1216 = vunpack.c.h.b16 %v877
    %v1217 = vunpack.c.l.b16 %v878
    %v1218 = vunpack.c.h.b16 %v878
    %v1219 = vunpack.c.l.b16 %v879
    %v1220 = vunpack.c.h.b16 %v879
    %v1221 = vunpack.c.l.b16 %v880
    %v1222 = vunpack.c.h.b16 %v880
    %v1223 = vunpack.c.l.b16 %v881
    %v1224 = vunpack.c.h.b16 %v881
    %v1225 = vunpack.c.l.b16 %v882
    %v1226 = vunpack.c.h.b16 %v882
    %v1227 = vunpack.c.l.b16 %v883
    %v1228 = vunpack.c.h.b16 %v883
    %v1229 = vunpack.c.l.b16 %v884
    %v1230 = vunpack.c.h.b16 %v884
    %v1231 = vunpack.c.l.b16 %v885
    %v1232 = vunpack.c.h.b16 %v885
    %v1233 = vunpack.c.l.b16 %v886
    %v1234 = vunpack.c.h.b16 %v886
    %v1235 = vunpack.c.l.b16 %v887
    %v1236 = vunpack.c.h.b16 %v887
    %v1237 = vunpack.c.l.b16 %v888
    %v1238 = vunpack.c.h.b16 %v888
    %v1239 = vunpack.c.l.b16 %v889
    %v1240 = vunpack.c.h.b16 %v889
    %v1241 = vunpack.c.l.b16 %v890
    %v1242 = vunpack.c.h.b16 %v890
    %v1243 = vunpack.c.l.b16 %v891
    %v1244 = vunpack.c.h.b16 %v891
    %v1245 = vunpack.c.l.b16 %v892
    %v1246 = vunpack.c.h.b16 %v892
    %v1247 = vunpack.c.l.b16 %v893
    %v1248 = vunpack.c.h.b16 %v893
    %v1249 = vunpack.c.l.b16 %v894
    %v1250 = vunpack.c.h.b16 %v894
    %v1251 = vunpack.c.l.b16 %v895
    %v1252 = vunpack.c.h.b16 %v895
    %v1253 = vunpack.c.l.b16 %v896
    %v1254 = vunpack.c.h.b16 %v896
    %v1255 = vunpack.c.l.b16 %v897
    %v1256 = vunpack.c.h.b16 %v897
    %v1257 = vunpack.c.l.b16 %v898
    %v1258 = vunpack.c.h.b16 %v898
    %v1259 = vunpack.c.l.b16 %v899
    %v1260 = vunpack.c.h.b16 %v899
    %v1261 = vunpack.c.l.b16 %v900
    %v1262 = vunpack.c.h.b16 %v900
    %v1263 = vunpack.c.l.b16 %v901
    %v1264 = vunpack.c.h.b16 %v901
    %v1265 = vunpack.c.l.b16 %v902
    %v1266 = vunpack.c.h.b16 %v902
    %v1267 = vunpack.c.l.b16 %v903
    %v1268 = vunpack.c.h.b16 %v903
    %v1269 = vunpack.c.l.b16 %v904
    %v1270 = vunpack.c.h.b16 %v904
    %v1271 = vunpack.c.l.b16 %v905
    %v1272 = vunpack.c.h.b16 %v905
    %v1273 = vunpack.c.l.b16 %v906
    %v1274 = vunpack.c.h.b16 %v906
    %v1275 = vunpack.c.l.b16 %v907
    %v1276 = vunpack.c.h.b16 %v907
    %v1277 = vunpack.c.l.b16 %v908
    %v1278 = vunpack.c.h.b16 %v908
    %v1279 = vunpack.c.l.b16 %v909
    %v1280 = vunpack.c.h.b16 %v909
    %v1281 = vunpack.c.l.b16 %v910
    %v1282 = vunpack.c.h.b16 %v910
    %v1283 = vunpack.c.l.b16 %v911
    %v1284 = vunpack.c.h.b16 %v911
    %v1285 = vunpack.c.l.b16 %v912
    %v1286 = vunpack.c.h.b16 %v912
    %v1287 = vunpack.c.l.b16 %v913
    %v1288 = vunpack.c.h.b16 %v913
    %v1289 = vunpack.c.l.b16 %v914
    %v1290 = vunpack.c.h.b16 %v914
    %v1291 = vunpack.c.l.b16 %v915
    %v1292 = vunpack.c.h.b16 %v915
    %v1293 = vunpack.c.l.b16 %v916
    %v1294 = vunpack.c.h.b16 %v916
    %v1295 = vunpack.c.l.b16 %v917
    %v1296 = vunpack.c.h.b16 %v917
    %v1297 = vunpack.c.l.b16 %v918
    %v1298 = vunpack.c.h.b16 %v918
    %v1299 = vunpack.c.l.b16 %v919
    %v1300 = vunpack.c.h.b16 %v919
    %v1301 = vunpack.c.l.b16 %v920
    %v1302 = vunpack.c.h.b16 %v920
    %v1303 = vunpack.c.l.b16 %v921
    %v1304 = vunpack.c.h.b16 %v921
    %v1305 = vunpack.c.l.b16 %v922
    %v1306 = vunpack.c.h.b16 %v922
    %v1307 = vpack.c.b16 %v1059, %v1051
    %v1308 = vpack.c.b16 %v1060, %v1052
    %v1309 = vpack.c.b16 %v1061, %v1053
    %v1310 = vpack.c.b16 %v1062, %v1054
    %v1311 = vpack.c.b16 %v1063, %v1055
    %v1312 = vpack.c.b16 %v1064, %v1056
    %v1313 = vpack.c.b16 %v1065, %v1057
    %v1314 = vpack.c.b16 %v1066, %v1058
    %v1315 = vpack.c.b16 %v1075, %v1067
    %v1316 = vpack.c.b16 %v1076, %v1068
    %v1317 = vpack.c.b16 %v1077, %v1069
    %v1318 = vpack.c.b16 %v1078, %v1070
    %v1319 = vpack.c.b16 %v1079, %v1071
    %v1320 = vpack.c.b16 %v1080, %v1072
    %v1321 = vpack.c.b16 %v1081, %v1073
    %v1322 = vpack.c.b16 %v1082, %v1074
    %v1323 = vpack.c.b16 %v1091, %v1083
    %v1324 = vpack.c.b16 %v1092, %v1084
    %v1325 = vpack.c.b16 %v1093, %v1085
    %v1326 = vpack.c.b16 %v1094, %v1086
    %v1327 = vpack.c.b16 %v1095, %v1087
    %v1328 = vpack.c.b16 %v1096, %v1088
    %v1329 = vpack.c.b16 %v1097, %v1089
    %v1330 = vpack.c.b16 %v1098, %v1090
    %v1331 = vpack.c.b16 %v1107, %v1099
    %v1332 = vpack.c.b16 %v1108, %v1100
    %v1333 = vpack.c.b16 %v1109, %v1101
    %v1334 = vpack.c.b16 %v1110, %v1102
    %v1335 = vpack.c.b16 %v1111, %v1103
    %v1336 = vpack.c.b16 %v1112, %v1104
    %v1337 = vpack.c.b16 %v1113, %v1105
    %v1338 = vpack.c.b16 %v1114, %v1106
    %v1339 = vpack.c.b16 %v1123, %v1115
    %v1340 = vpack.c.b16 %v1124, %v1116
    %v1341 = vpack.c.b16 %v1125, %v1117
    %v1342 = vpack.c.b16 %v1126, %v1118
    %v1343 = vpack.c.b16 %v1127, %v1119
    %v1344 = vpack.c.b16 %v1128, %v1120
    %v1345 = vpack.c.b16 %v1129, %v1121
    %v1346 = vpack.c.b16 %v1130, %v1122
    %v1347 = vpack.c.b16 %v1139, %v1131
    %v1348 = vpack.c.b16 %v1140, %v1132
    %v1349 = vpack.c.b16 %v1141, %v1133
    %v1350 = vpack.c.b16 %v1142, %v1134
    %v1351 = vpack.c.b16 %v1143, %v1135
    %v1352 = vpack.c.b16 %v1144, %v1136
    %v1353 = vpack.c.b16 %v1145, %v1137
    %v1354 = vpack.c.b16 %v1146, %v1138
    %v1355 = vpack.c.b16 %v1155, %v1147
    %v1356 = vpack.c.b16 %v1156, %v1148
    %v1357 = vpack.c.b16 %v1157, %v1149
    %v1358 = vpack.c.b16 %v1158, %v1150
    %v1359 = vpack.c.b16 %v1159, %v1151
    %v1360 = vpack.c.b16 %v1160, %v1152
    %v1361 = vpack.c.b16 %v1161, %v1153
    %v1362 = vpack.c.b16 %v1162, %v1154
    %v1363 = vpack.c.b16 %v1171, %v1163
    %v1364 = vpack.c.b16 %v1172, %v1164
    %v1365 = vpack.c.b16 %v1173, %v1165
    %v1366 = vpack.c.b16 %v1174, %v1166
    %v1367 = vpack.c.b16 %v1175, %v1167
    %v1368 = vpack.c.b16 %v1176, %v1168
    %v1369 = vpack.c.b16 %v1177, %v1169
    %v1370 = vpack.c.b16 %v1178, %v1170
    %v1371 = vpack.c.b16 %v1187, %v1179
    %v1372 = vpack.c.b16 %v1188, %v1180
    %v1373 = vpack.c.b16 %v1189, %v1181
    %v1374 = vpack.c.b16 %v1190, %v1182
    %v1375 = vpack.c.b16 %v1191, %v1183
    %v1376 = vpack.c.b16 %v1192, %v1184
    %v1377 = vpack.c.b16 %v1193, %v1185
    %v1378 = vpack.c.b16 %v1194, %v1186
    %v1379 = vpack.c.b16 %v1203, %v1195
    %v1380 = vpack.c.b16 %v1204, %v1196
    %v1381 = vpack.c.b16 %v1205, %v1197
    %v1382 = vpack.c.b16 %v1206, %v1198
    %v1383 = vpack.c.b16 %v1207, %v1199
    %v1384 = vpack.c.b16 %v1208, %v1200
    %v1385 = vpack.c.b16 %v1209, %v1201
    %v1386 = vpack.c.b16 %v1210, %v1202
    %v1387 = vpack.c.b16 %v1219, %v1211
    %v1388 = vpack.c.b16 %v1220, %v1212
    %v1389 = vpack.c.b16 %v1221, %v1213
    %v1390 = vpack.c.b16 %v1222, %v1214
    %v1391 = vpack.c.b16 %v1223, %v1215
    %v1392 = vpack.c.b16 %v1224, %v1216
    %v1393 = vpack.c.b16 %v1225, %v1217
    %v1394 = vpack.c.b16 %v1226, %v1218
    %v1395 = vpack.c.b16 %v1235, %v1227
    %v1396 = vpack.c.b16 %v1236, %v1228
    %v1397 = vpack.c.b16 %v1237, %v1229
    %v1398 = vpack.c.b16 %v1238, %v1230
    %v1399 = vpack.c.b16 %v1239, %v1231
    %v1400 = vpack.c.b16 %v1240, %v1232
    %v1401 = vpack.c.b16 %v1241, %v1233
    %v1402 = vpack.c.b16 %v1242, %v1234
    %v1403 = vpack.c.b16 %v1251, %v1243
    %v1404 = vpack.c.b16 %v1252, %v1244
    %v1405 = vpack.c.b16 %v1253, %v1245
    %v1406 = vpack.c.b16 %v1254, %v1246
    %v1407 = vpack.c.b16 %v1255, %v1247
    %v1408 = vpack.c.b16 %v1256, %v1248
    %v1409 = vpack.c.b16 %v1257, %v1249
    %v1410 = vpack.c.b16 %v1258, %v1250
    %v1411 = vpack.c.b16 %v1267, %v1259
    %v1412 = vpack.c.b16 %v1268, %v1260
    %v1413 = vpack.c.b16 %v1269, %v1261
    %v1414 = vpack.c.b16 %v1270, %v1262
    %v1415 = vpack.c.b16 %v1271, %v1263
    %v1416 = vpack.c.b16 %v1272, %v1264
    %v1417 = vpack.c.b16 %v1273, %v1265
    %v1418 = vpack.c.b16 %v1274, %v1266
    %v1419 = vpack.c.b16 %v1283, %v1275
    %v1420 = vpack.c.b16 %v1284, %v1276
    %v1421 = vpack.c.b16 %v1285, %v1277
    %v1422 = vpack.c.b16 %v1286, %v1278
    %v1423 = vpack.c.b16 %v1287, %v1279
    %v1424 = vpack.c.b16 %v1288, %v1280
    %v1425 = vpack.c.b16 %v1289, %v1281
    %v1426 = vpack.c.b16 %v1290, %v1282
    %v1427 = vpack.c.b16 %v1299, %v1291
    %v1428 = vpack.c.b16 %v1300, %v1292
    %v1429 = vpack.c.b16 %v1301, %v1293
    %v1430 = vpack.c.b16 %v1302, %v1294
    %v1431 = vpack.c.b16 %v1303, %v1295
    %v1432 = vpack.c.b16 %v1304, %v1296
    %v1433 = vpack.c.b16 %v1305, %v1297
    %v1434 = vpack.c.b16 %v1306, %v1298
    %1563 = vmatprep.subr.bf16.mxu0 %v1364
    %1564 = vmatpush1.bf16.msra.mxu0 %v1363
    %1565 = vmatprep.subr.bf16.mxu0 %v1356
    %1566 = vmatpush1.bf16.msra.mxu0 %v1355
    %1567 = vmatprep.subr.bf16.mxu0 %v1348
    %1568 = vmatpush1.bf16.msra.mxu0 %v1347
    %1569 = vmatprep.subr.bf16.mxu0 %v1340
    %1570 = vmatpush1.bf16.msra.mxu0 %v1339
    %1571 = vmatprep.subr.bf16.mxu0 %v1332
    %1572 = vmatpush1.bf16.msra.mxu0 %v1331
    %1573 = vmatprep.subr.bf16.mxu0 %v1324
    %1574 = vmatpush1.bf16.msra.mxu0 %v1323
    %1575 = vmatprep.subr.bf16.mxu0 %v1316
    %1576 = vmatpush1.bf16.msra.mxu0 %v1315
    %1577 = vmatprep.subr.bf16.mxu0 %v1308
    %1578 = vmatpush1.bf16.msra.mxu0 %v1307
    %1579 = vmatprep.subr.bf16.mxu0 %v1428
    %1580 = vmatpush2.bf16.msra.mxu0 %v1427
    %1581 = vmatprep.subr.bf16.mxu0 %v1420
    %1582 = vmatpush2.bf16.msra.mxu0 %v1419
    %1583 = vmatprep.subr.bf16.mxu0 %v1412
    %1584 = vmatpush2.bf16.msra.mxu0 %v1411
    %1585 = vmatprep.subr.bf16.mxu0 %v1404
    %1586 = vmatpush2.bf16.msra.mxu0 %v1403
    %1587 = vmatprep.subr.bf16.mxu0 %v1396
    %1588 = vmatpush2.bf16.msra.mxu0 %v1395
    %1589 = vmatprep.subr.bf16.mxu0 %v1388
    %1590 = vmatpush2.bf16.msra.mxu0 %v1387
    %1591 = vmatprep.subr.bf16.mxu0 %v1380
    %1592 = vmatpush2.bf16.msra.mxu0 %v1379
    %1593 = vmatprep.subr.bf16.mxu0 %v1372
    %1594 = vmatpush2.bf16.msra.mxu0 %v1371
    %1595 = vmatprep.mubr.bf16.mxu0 %v666
    %1596 = vmatmul.mubr.bf16.gmra.mxu0 %v665
    %v1597 = vpop.f32.mrf.mxu0
    %v1598 = vadd.f32 0.0, %v1597
    %v1599 = vpop.f32.mrf.mxu0
    %v1600 = vadd.f32 0.0, %v1599
    %v1601 = vpop.f32.mrf.mxu0
    %v1602 = vpop.f32.mrf.mxu0
    %1603 = vdwg.mxu0
    %1604 = vmatprep.subr.bf16.mxu0 %v1366
    %1605 = vmatpush1.bf16.msra.mxu0 %v1365
    %1606 = vmatprep.subr.bf16.mxu0 %v1358
    %1607 = vmatpush1.bf16.msra.mxu0 %v1357
    %1608 = vmatprep.subr.bf16.mxu0 %v1350
    %1609 = vmatpush1.bf16.msra.mxu0 %v1349
    %1610 = vmatprep.subr.bf16.mxu0 %v1342
    %1611 = vmatpush1.bf16.msra.mxu0 %v1341
    %1612 = vmatprep.subr.bf16.mxu0 %v1334
    %1613 = vmatpush1.bf16.msra.mxu0 %v1333
    %1614 = vmatprep.subr.bf16.mxu0 %v1326
    %1615 = vmatpush1.bf16.msra.mxu0 %v1325
    %1616 = vmatprep.subr.bf16.mxu0 %v1318
    %1617 = vmatpush1.bf16.msra.mxu0 %v1317
    %1618 = vmatprep.subr.bf16.mxu0 %v1310
    %1619 = vmatpush1.bf16.msra.mxu0 %v1309
    %1620 = vmatprep.subr.bf16.mxu0 %v1430
    %1621 = vmatpush2.bf16.msra.mxu0 %v1429
    %1622 = vmatprep.subr.bf16.mxu0 %v1422
    %1623 = vmatpush2.bf16.msra.mxu0 %v1421
    %1624 = vmatprep.subr.bf16.mxu0 %v1414
    %1625 = vmatpush2.bf16.msra.mxu0 %v1413
    %1626 = vmatprep.subr.bf16.mxu0 %v1406
    %1627 = vmatpush2.bf16.msra.mxu0 %v1405
    %1628 = vmatprep.subr.bf16.mxu0 %v1398
    %1629 = vmatpush2.bf16.msra.mxu0 %v1397
    %1630 = vmatprep.subr.bf16.mxu0 %v1390
    %1631 = vmatpush2.bf16.msra.mxu0 %v1389
    %1632 = vmatprep.subr.bf16.mxu0 %v1382
    %1633 = vmatpush2.bf16.msra.mxu0 %v1381
    %1634 = vmatprep.subr.bf16.mxu0 %v1374
    %1635 = vmatpush2.bf16.msra.mxu0 %v1373
    %1636 = vmatprep.mubr.bf16.mxu0 %v666
    %1637 = vmatmul.mubr.bf16.gmra.mxu0 %v665
    %v1638 = vpop.f32.mrf.mxu0
    %v1639 = vadd.f32 0.0, %v1638
    %v1640 = vpop.f32.mrf.mxu0
    %v1641 = vadd.f32 0.0, %v1640
    %v1642 = vpop.f32.mrf.mxu0
    %v1643 = vpop.f32.mrf.mxu0
    %1644 = vdwg.mxu0
    %1645 = vmatprep.subr.bf16.mxu0 %v1368
    %1646 = vmatpush1.bf16.msra.mxu0 %v1367
    %1647 = vmatprep.subr.bf16.mxu0 %v1360
    %1648 = vmatpush1.bf16.msra.mxu0 %v1359
    %1649 = vmatprep.subr.bf16.mxu0 %v1352
    %1650 = vmatpush1.bf16.msra.mxu0 %v1351
    %1651 = vmatprep.subr.bf16.mxu0 %v1344
    %1652 = vmatpush1.bf16.msra.mxu0 %v1343
    %1653 = vmatprep.subr.bf16.mxu0 %v1336
    %1654 = vmatpush1.bf16.msra.mxu0 %v1335
    %1655 = vmatprep.subr.bf16.mxu0 %v1328
    %1656 = vmatpush1.bf16.msra.mxu0 %v1327
    %1657 = vmatprep.subr.bf16.mxu0 %v1320
    %1658 = vmatpush1.bf16.msra.mxu0 %v1319
    %1659 = vmatprep.subr.bf16.mxu0 %v1312
    %1660 = vmatpush1.bf16.msra.mxu0 %v1311
    %1661 = vmatprep.subr.bf16.mxu0 %v1432
    %1662 = vmatpush2.bf16.msra.mxu0 %v1431
    %1663 = vmatprep.subr.bf16.mxu0 %v1424
    %1664 = vmatpush2.bf16.msra.mxu0 %v1423
    %1665 = vmatprep.subr.bf16.mxu0 %v1416
    %1666 = vmatpush2.bf16.msra.mxu0 %v1415
    %1667 = vmatprep.subr.bf16.mxu0 %v1408
    %1668 = vmatpush2.bf16.msra.mxu0 %v1407
    %1669 = vmatprep.subr.bf16.mxu0 %v1400
    %1670 = vmatpush2.bf16.msra.mxu0 %v1399
    %1671 = vmatprep.subr.bf16.mxu0 %v1392
    %1672 = vmatpush2.bf16.msra.mxu0 %v1391
    %1673 = vmatprep.subr.bf16.mxu0 %v1384
    %1674 = vmatpush2.bf16.msra.mxu0 %v1383
    %1675 = vmatprep.subr.bf16.mxu0 %v1376
    %1676 = vmatpush2.bf16.msra.mxu0 %v1375
    %1677 = vmatprep.mubr.bf16.mxu0 %v666
    %1678 = vmatmul.mubr.bf16.gmra.mxu0 %v665
    %v1679 = vpop.f32.mrf.mxu0
    %v1680 = vadd.f32 0.0, %v1679
    %v1681 = vpop.f32.mrf.mxu0
    %v1682 = vadd.f32 0.0, %v1681
    %v1683 = vpop.f32.mrf.mxu0
    %v1684 = vpop.f32.mrf.mxu0
    %1685 = vdwg.mxu0
    %1686 = vmatprep.subr.bf16.mxu0 %v1370
    %1687 = vmatpush1.bf16.msra.mxu0 %v1369
    %1688 = vmatprep.subr.bf16.mxu0 %v1362
    %1689 = vmatpush1.bf16.msra.mxu0 %v1361
    %1690 = vmatprep.subr.bf16.mxu0 %v1354
    %1691 = vmatpush1.bf16.msra.mxu0 %v1353
    %1692 = vmatprep.subr.bf16.mxu0 %v1346
    %1693 = vmatpush1.bf16.msra.mxu0 %v1345
    %1694 = vmatprep.subr.bf16.mxu0 %v1338
    %1695 = vmatpush1.bf16.msra.mxu0 %v1337
    %1696 = vmatprep.subr.bf16.mxu0 %v1330
    %1697 = vmatpush1.bf16.msra.mxu0 %v1329
    %1698 = vmatprep.subr.bf16.mxu0 %v1322
    %1699 = vmatpush1.bf16.msra.mxu0 %v1321
    %1700 = vmatprep.subr.bf16.mxu0 %v1314
    %1701 = vmatpush1.bf16.msra.mxu0 %v1313
    %1702 = vmatprep.subr.bf16.mxu0 %v1434
    %1703 = vmatpush2.bf16.msra.mxu0 %v1433
    %1704 = vmatprep.subr.bf16.mxu0 %v1426
    %1705 = vmatpush2.bf16.msra.mxu0 %v1425
    %1706 = vmatprep.subr.bf16.mxu0 %v1418
    %1707 = vmatpush2.bf16.msra.mxu0 %v1417
    %1708 = vmatprep.subr.bf16.mxu0 %v1410
    %1709 = vmatpush2.bf16.msra.mxu0 %v1409
    %1710 = vmatprep.subr.bf16.mxu0 %v1402
    %1711 = vmatpush2.bf16.msra.mxu0 %v1401
    %1712 = vmatprep.subr.bf16.mxu0 %v1394
    %1713 = vmatpush2.bf16.msra.mxu0 %v1393
    %1714 = vmatprep.subr.bf16.mxu0 %v1386
    %1715 = vmatpush2.bf16.msra.mxu0 %v1385
    %1716 = vmatprep.subr.bf16.mxu0 %v1378
    %1717 = vmatpush2.bf16.msra.mxu0 %v1377
    %1718 = vmatprep.mubr.bf16.mxu0 %v666
    %1719 = vmatmul.mubr.bf16.gmra.mxu0 %v665
    %v1720 = vpop.f32.mrf.mxu0
    %v1721 = vadd.f32 0.0, %v1720
    %v1722 = vpop.f32.mrf.mxu0
    %v1723 = vadd.f32 0.0, %v1722
    %v1724 = vpop.f32.mrf.mxu0
    %v1725 = vpop.f32.mrf.mxu0
    %1726 = vdwg.mxu0
    %v1855 = vunpack.c.l.b16 %v667
    %v1856 = vunpack.c.h.b16 %v667
    %v1857 = vunpack.c.l.b16 %v668
    %v1858 = vunpack.c.h.b16 %v668
    %v1859 = vunpack.c.l.b16 %v669
    %v1860 = vunpack.c.h.b16 %v669
    %v1861 = vunpack.c.l.b16 %v670
    %v1862 = vunpack.c.h.b16 %v670
    %v1863 = vunpack.c.l.b16 %v671
    %v1864 = vunpack.c.h.b16 %v671
    %v1865 = vunpack.c.l.b16 %v672
    %v1866 = vunpack.c.h.b16 %v672
    %v1867 = vunpack.c.l.b16 %v673
    %v1868 = vunpack.c.h.b16 %v673
    %v1869 = vunpack.c.l.b16 %v674
    %v1870 = vunpack.c.h.b16 %v674
    %v1871 = vunpack.c.l.b16 %v675
    %v1872 = vunpack.c.h.b16 %v675
    %v1873 = vunpack.c.l.b16 %v676
    %v1874 = vunpack.c.h.b16 %v676
    %v1875 = vunpack.c.l.b16 %v677
    %v1876 = vunpack.c.h.b16 %v677
    %v1877 = vunpack.c.l.b16 %v678
    %v1878 = vunpack.c.h.b16 %v678
    %v1879 = vunpack.c.l.b16 %v679
    %v1880 = vunpack.c.h.b16 %v679
    %v1881 = vunpack.c.l.b16 %v680
    %v1882 = vunpack.c.h.b16 %v680
    %v1883 = vunpack.c.l.b16 %v681
    %v1884 = vunpack.c.h.b16 %v681
    %v1885 = vunpack.c.l.b16 %v682
    %v1886 = vunpack.c.h.b16 %v682
    %v1887 = vunpack.c.l.b16 %v683
    %v1888 = vunpack.c.h.b16 %v683
    %v1889 = vunpack.c.l.b16 %v684
    %v1890 = vunpack.c.h.b16 %v684
    %v1891 = vunpack.c.l.b16 %v685
    %v1892 = vunpack.c.h.b16 %v685
    %v1893 = vunpack.c.l.b16 %v686
    %v1894 = vunpack.c.h.b16 %v686
    %v1895 = vunpack.c.l.b16 %v687
    %v1896 = vunpack.c.h.b16 %v687
    %v1897 = vunpack.c.l.b16 %v688
    %v1898 = vunpack.c.h.b16 %v688
    %v1899 = vunpack.c.l.b16 %v689
    %v1900 = vunpack.c.h.b16 %v689
    %v1901 = vunpack.c.l.b16 %v690
    %v1902 = vunpack.c.h.b16 %v690
    %v1903 = vunpack.c.l.b16 %v691
    %v1904 = vunpack.c.h.b16 %v691
    %v1905 = vunpack.c.l.b16 %v692
    %v1906 = vunpack.c.h.b16 %v692
    %v1907 = vunpack.c.l.b16 %v693
    %v1908 = vunpack.c.h.b16 %v693
    %v1909 = vunpack.c.l.b16 %v694
    %v1910 = vunpack.c.h.b16 %v694
    %v1911 = vunpack.c.l.b16 %v695
    %v1912 = vunpack.c.h.b16 %v695
    %v1913 = vunpack.c.l.b16 %v696
    %v1914 = vunpack.c.h.b16 %v696
    %v1915 = vunpack.c.l.b16 %v697
    %v1916 = vunpack.c.h.b16 %v697
    %v1917 = vunpack.c.l.b16 %v698
    %v1918 = vunpack.c.h.b16 %v698
    %v1919 = vunpack.c.l.b16 %v699
    %v1920 = vunpack.c.h.b16 %v699
    %v1921 = vunpack.c.l.b16 %v700
    %v1922 = vunpack.c.h.b16 %v700
    %v1923 = vunpack.c.l.b16 %v701
    %v1924 = vunpack.c.h.b16 %v701
    %v1925 = vunpack.c.l.b16 %v702
    %v1926 = vunpack.c.h.b16 %v702
    %v1927 = vunpack.c.l.b16 %v703
    %v1928 = vunpack.c.h.b16 %v703
    %v1929 = vunpack.c.l.b16 %v704
    %v1930 = vunpack.c.h.b16 %v704
    %v1931 = vunpack.c.l.b16 %v705
    %v1932 = vunpack.c.h.b16 %v705
    %v1933 = vunpack.c.l.b16 %v706
    %v1934 = vunpack.c.h.b16 %v706
    %v1935 = vunpack.c.l.b16 %v707
    %v1936 = vunpack.c.h.b16 %v707
    %v1937 = vunpack.c.l.b16 %v708
    %v1938 = vunpack.c.h.b16 %v708
    %v1939 = vunpack.c.l.b16 %v709
    %v1940 = vunpack.c.h.b16 %v709
    %v1941 = vunpack.c.l.b16 %v710
    %v1942 = vunpack.c.h.b16 %v710
    %v1943 = vunpack.c.l.b16 %v711
    %v1944 = vunpack.c.h.b16 %v711
    %v1945 = vunpack.c.l.b16 %v712
    %v1946 = vunpack.c.h.b16 %v712
    %v1947 = vunpack.c.l.b16 %v713
    %v1948 = vunpack.c.h.b16 %v713
    %v1949 = vunpack.c.l.b16 %v714
    %v1950 = vunpack.c.h.b16 %v714
    %v1951 = vunpack.c.l.b16 %v715
    %v1952 = vunpack.c.h.b16 %v715
    %v1953 = vunpack.c.l.b16 %v716
    %v1954 = vunpack.c.h.b16 %v716
    %v1955 = vunpack.c.l.b16 %v717
    %v1956 = vunpack.c.h.b16 %v717
    %v1957 = vunpack.c.l.b16 %v718
    %v1958 = vunpack.c.h.b16 %v718
    %v1959 = vunpack.c.l.b16 %v719
    %v1960 = vunpack.c.h.b16 %v719
    %v1961 = vunpack.c.l.b16 %v720
    %v1962 = vunpack.c.h.b16 %v720
    %v1963 = vunpack.c.l.b16 %v721
    %v1964 = vunpack.c.h.b16 %v721
    %v1965 = vunpack.c.l.b16 %v722
    %v1966 = vunpack.c.h.b16 %v722
    %v1967 = vunpack.c.l.b16 %v723
    %v1968 = vunpack.c.h.b16 %v723
    %v1969 = vunpack.c.l.b16 %v724
    %v1970 = vunpack.c.h.b16 %v724
    %v1971 = vunpack.c.l.b16 %v725
    %v1972 = vunpack.c.h.b16 %v725
    %v1973 = vunpack.c.l.b16 %v726
    %v1974 = vunpack.c.h.b16 %v726
    %v1975 = vunpack.c.l.b16 %v727
    %v1976 = vunpack.c.h.b16 %v727
    %v1977 = vunpack.c.l.b16 %v728
    %v1978 = vunpack.c.h.b16 %v728
    %v1979 = vunpack.c.l.b16 %v729
    %v1980 = vunpack.c.h.b16 %v729
    %v1981 = vunpack.c.l.b16 %v730
    %v1982 = vunpack.c.h.b16 %v730
    %v1983 = vunpack.c.l.b16 %v731
    %v1984 = vunpack.c.h.b16 %v731
    %v1985 = vunpack.c.l.b16 %v732
    %v1986 = vunpack.c.h.b16 %v732
    %v1987 = vunpack.c.l.b16 %v733
    %v1988 = vunpack.c.h.b16 %v733
    %v1989 = vunpack.c.l.b16 %v734
    %v1990 = vunpack.c.h.b16 %v734
    %v1991 = vunpack.c.l.b16 %v735
    %v1992 = vunpack.c.h.b16 %v735
    %v1993 = vunpack.c.l.b16 %v736
    %v1994 = vunpack.c.h.b16 %v736
    %v1995 = vunpack.c.l.b16 %v737
    %v1996 = vunpack.c.h.b16 %v737
    %v1997 = vunpack.c.l.b16 %v738
    %v1998 = vunpack.c.h.b16 %v738
    %v1999 = vunpack.c.l.b16 %v739
    %v2000 = vunpack.c.h.b16 %v739
    %v2001 = vunpack.c.l.b16 %v740
    %v2002 = vunpack.c.h.b16 %v740
    %v2003 = vunpack.c.l.b16 %v741
    %v2004 = vunpack.c.h.b16 %v741
    %v2005 = vunpack.c.l.b16 %v742
    %v2006 = vunpack.c.h.b16 %v742
    %v2007 = vunpack.c.l.b16 %v743
    %v2008 = vunpack.c.h.b16 %v743
    %v2009 = vunpack.c.l.b16 %v744
    %v2010 = vunpack.c.h.b16 %v744
    %v2011 = vunpack.c.l.b16 %v745
    %v2012 = vunpack.c.h.b16 %v745
    %v2013 = vunpack.c.l.b16 %v746
    %v2014 = vunpack.c.h.b16 %v746
    %v2015 = vunpack.c.l.b16 %v747
    %v2016 = vunpack.c.h.b16 %v747
    %v2017 = vunpack.c.l.b16 %v748
    %v2018 = vunpack.c.h.b16 %v748
    %v2019 = vunpack.c.l.b16 %v749
    %v2020 = vunpack.c.h.b16 %v749
    %v2021 = vunpack.c.l.b16 %v750
    %v2022 = vunpack.c.h.b16 %v750
    %v2023 = vunpack.c.l.b16 %v751
    %v2024 = vunpack.c.h.b16 %v751
    %v2025 = vunpack.c.l.b16 %v752
    %v2026 = vunpack.c.h.b16 %v752
    %v2027 = vunpack.c.l.b16 %v753
    %v2028 = vunpack.c.h.b16 %v753
    %v2029 = vunpack.c.l.b16 %v754
    %v2030 = vunpack.c.h.b16 %v754
    %v2031 = vunpack.c.l.b16 %v755
    %v2032 = vunpack.c.h.b16 %v755
    %v2033 = vunpack.c.l.b16 %v756
    %v2034 = vunpack.c.h.b16 %v756
    %v2035 = vunpack.c.l.b16 %v757
    %v2036 = vunpack.c.h.b16 %v757
    %v2037 = vunpack.c.l.b16 %v758
    %v2038 = vunpack.c.h.b16 %v758
    %v2039 = vunpack.c.l.b16 %v759
    %v2040 = vunpack.c.h.b16 %v759
    %v2041 = vunpack.c.l.b16 %v760
    %v2042 = vunpack.c.h.b16 %v760
    %v2043 = vunpack.c.l.b16 %v761
    %v2044 = vunpack.c.h.b16 %v761
    %v2045 = vunpack.c.l.b16 %v762
    %v2046 = vunpack.c.h.b16 %v762
    %v2047 = vunpack.c.l.b16 %v763
    %v2048 = vunpack.c.h.b16 %v763
    %v2049 = vunpack.c.l.b16 %v764
    %v2050 = vunpack.c.h.b16 %v764
    %v2051 = vunpack.c.l.b16 %v765
    %v2052 = vunpack.c.h.b16 %v765
    %v2053 = vunpack.c.l.b16 %v766
    %v2054 = vunpack.c.h.b16 %v766
    %v2055 = vunpack.c.l.b16 %v767
    %v2056 = vunpack.c.h.b16 %v767
    %v2057 = vunpack.c.l.b16 %v768
    %v2058 = vunpack.c.h.b16 %v768
    %v2059 = vunpack.c.l.b16 %v769
    %v2060 = vunpack.c.h.b16 %v769
    %v2061 = vunpack.c.l.b16 %v770
    %v2062 = vunpack.c.h.b16 %v770
    %v2063 = vunpack.c.l.b16 %v771
    %v2064 = vunpack.c.h.b16 %v771
    %v2065 = vunpack.c.l.b16 %v772
    %v2066 = vunpack.c.h.b16 %v772
    %v2067 = vunpack.c.l.b16 %v773
    %v2068 = vunpack.c.h.b16 %v773
    %v2069 = vunpack.c.l.b16 %v774
    %v2070 = vunpack.c.h.b16 %v774
    %v2071 = vunpack.c.l.b16 %v775
    %v2072 = vunpack.c.h.b16 %v775
    %v2073 = vunpack.c.l.b16 %v776
    %v2074 = vunpack.c.h.b16 %v776
    %v2075 = vunpack.c.l.b16 %v777
    %v2076 = vunpack.c.h.b16 %v777
    %v2077 = vunpack.c.l.b16 %v778
    %v2078 = vunpack.c.h.b16 %v778
    %v2079 = vunpack.c.l.b16 %v779
    %v2080 = vunpack.c.h.b16 %v779
    %v2081 = vunpack.c.l.b16 %v780
    %v2082 = vunpack.c.h.b16 %v780
    %v2083 = vunpack.c.l.b16 %v781
    %v2084 = vunpack.c.h.b16 %v781
    %v2085 = vunpack.c.l.b16 %v782
    %v2086 = vunpack.c.h.b16 %v782
    %v2087 = vunpack.c.l.b16 %v783
    %v2088 = vunpack.c.h.b16 %v783
    %v2089 = vunpack.c.l.b16 %v784
    %v2090 = vunpack.c.h.b16 %v784
    %v2091 = vunpack.c.l.b16 %v785
    %v2092 = vunpack.c.h.b16 %v785
    %v2093 = vunpack.c.l.b16 %v786
    %v2094 = vunpack.c.h.b16 %v786
    %v2095 = vunpack.c.l.b16 %v787
    %v2096 = vunpack.c.h.b16 %v787
    %v2097 = vunpack.c.l.b16 %v788
    %v2098 = vunpack.c.h.b16 %v788
    %v2099 = vunpack.c.l.b16 %v789
    %v2100 = vunpack.c.h.b16 %v789
    %v2101 = vunpack.c.l.b16 %v790
    %v2102 = vunpack.c.h.b16 %v790
    %v2103 = vunpack.c.l.b16 %v791
    %v2104 = vunpack.c.h.b16 %v791
    %v2105 = vunpack.c.l.b16 %v792
    %v2106 = vunpack.c.h.b16 %v792
    %v2107 = vunpack.c.l.b16 %v793
    %v2108 = vunpack.c.h.b16 %v793
    %v2109 = vunpack.c.l.b16 %v794
    %v2110 = vunpack.c.h.b16 %v794
    %v2111 = vpack.c.b16 %v1863, %v1855
    %v2112 = vpack.c.b16 %v1864, %v1856
    %v2113 = vpack.c.b16 %v1865, %v1857
    %v2114 = vpack.c.b16 %v1866, %v1858
    %v2115 = vpack.c.b16 %v1867, %v1859
    %v2116 = vpack.c.b16 %v1868, %v1860
    %v2117 = vpack.c.b16 %v1869, %v1861
    %v2118 = vpack.c.b16 %v1870, %v1862
    %v2119 = vpack.c.b16 %v1879, %v1871
    %v2120 = vpack.c.b16 %v1880, %v1872
    %v2121 = vpack.c.b16 %v1881, %v1873
    %v2122 = vpack.c.b16 %v1882, %v1874
    %v2123 = vpack.c.b16 %v1883, %v1875
    %v2124 = vpack.c.b16 %v1884, %v1876
    %v2125 = vpack.c.b16 %v1885, %v1877
    %v2126 = vpack.c.b16 %v1886, %v1878
    %v2127 = vpack.c.b16 %v1895, %v1887
    %v2128 = vpack.c.b16 %v1896, %v1888
    %v2129 = vpack.c.b16 %v1897, %v1889
    %v2130 = vpack.c.b16 %v1898, %v1890
    %v2131 = vpack.c.b16 %v1899, %v1891
    %v2132 = vpack.c.b16 %v1900, %v1892
    %v2133 = vpack.c.b16 %v1901, %v1893
    %v2134 = vpack.c.b16 %v1902, %v1894
    %v2135 = vpack.c.b16 %v1911, %v1903
    %v2136 = vpack.c.b16 %v1912, %v1904
    %v2137 = vpack.c.b16 %v1913, %v1905
    %v2138 = vpack.c.b16 %v1914, %v1906
    %v2139 = vpack.c.b16 %v1915, %v1907
    %v2140 = vpack.c.b16 %v1916, %v1908
    %v2141 = vpack.c.b16 %v1917, %v1909
    %v2142 = vpack.c.b16 %v1918, %v1910
    %v2143 = vpack.c.b16 %v1927, %v1919
    %v2144 = vpack.c.b16 %v1928, %v1920
    %v2145 = vpack.c.b16 %v1929, %v1921
    %v2146 = vpack.c.b16 %v1930, %v1922
    %v2147 = vpack.c.b16 %v1931, %v1923
    %v2148 = vpack.c.b16 %v1932, %v1924
    %v2149 = vpack.c.b16 %v1933, %v1925
    %v2150 = vpack.c.b16 %v1934, %v1926
    %v2151 = vpack.c.b16 %v1943, %v1935
    %v2152 = vpack.c.b16 %v1944, %v1936
    %v2153 = vpack.c.b16 %v1945, %v1937
    %v2154 = vpack.c.b16 %v1946, %v1938
    %v2155 = vpack.c.b16 %v1947, %v1939
    %v2156 = vpack.c.b16 %v1948, %v1940
    %v2157 = vpack.c.b16 %v1949, %v1941
    %v2158 = vpack.c.b16 %v1950, %v1942
    %v2159 = vpack.c.b16 %v1959, %v1951
    %v2160 = vpack.c.b16 %v1960, %v1952
    %v2161 = vpack.c.b16 %v1961, %v1953
    %v2162 = vpack.c.b16 %v1962, %v1954
    %v2163 = vpack.c.b16 %v1963, %v1955
    %v2164 = vpack.c.b16 %v1964, %v1956
    %v2165 = vpack.c.b16 %v1965, %v1957
    %v2166 = vpack.c.b16 %v1966, %v1958
    %v2167 = vpack.c.b16 %v1975, %v1967
    %v2168 = vpack.c.b16 %v1976, %v1968
    %v2169 = vpack.c.b16 %v1977, %v1969
    %v2170 = vpack.c.b16 %v1978, %v1970
    %v2171 = vpack.c.b16 %v1979, %v1971
    %v2172 = vpack.c.b16 %v1980, %v1972
    %v2173 = vpack.c.b16 %v1981, %v1973
    %v2174 = vpack.c.b16 %v1982, %v1974
    %v2175 = vpack.c.b16 %v1991, %v1983
    %v2176 = vpack.c.b16 %v1992, %v1984
    %v2177 = vpack.c.b16 %v1993, %v1985
    %v2178 = vpack.c.b16 %v1994, %v1986
    %v2179 = vpack.c.b16 %v1995, %v1987
    %v2180 = vpack.c.b16 %v1996, %v1988
    %v2181 = vpack.c.b16 %v1997, %v1989
    %v2182 = vpack.c.b16 %v1998, %v1990
    %v2183 = vpack.c.b16 %v2007, %v1999
    %v2184 = vpack.c.b16 %v2008, %v2000
    %v2185 = vpack.c.b16 %v2009, %v2001
    %v2186 = vpack.c.b16 %v2010, %v2002
    %v2187 = vpack.c.b16 %v2011, %v2003
    %v2188 = vpack.c.b16 %v2012, %v2004
    %v2189 = vpack.c.b16 %v2013, %v2005
    %v2190 = vpack.c.b16 %v2014, %v2006
    %v2191 = vpack.c.b16 %v2023, %v2015
    %v2192 = vpack.c.b16 %v2024, %v2016
    %v2193 = vpack.c.b16 %v2025, %v2017
    %v2194 = vpack.c.b16 %v2026, %v2018
    %v2195 = vpack.c.b16 %v2027, %v2019
    %v2196 = vpack.c.b16 %v2028, %v2020
    %v2197 = vpack.c.b16 %v2029, %v2021
    %v2198 = vpack.c.b16 %v2030, %v2022
    %v2199 = vpack.c.b16 %v2039, %v2031
    %v2200 = vpack.c.b16 %v2040, %v2032
    %v2201 = vpack.c.b16 %v2041, %v2033
    %v2202 = vpack.c.b16 %v2042, %v2034
    %v2203 = vpack.c.b16 %v2043, %v2035
    %v2204 = vpack.c.b16 %v2044, %v2036
    %v2205 = vpack.c.b16 %v2045, %v2037
    %v2206 = vpack.c.b16 %v2046, %v2038
    %v2207 = vpack.c.b16 %v2055, %v2047
    %v2208 = vpack.c.b16 %v2056, %v2048
    %v2209 = vpack.c.b16 %v2057, %v2049
    %v2210 = vpack.c.b16 %v2058, %v2050
    %v2211 = vpack.c.b16 %v2059, %v2051
    %v2212 = vpack.c.b16 %v2060, %v2052
    %v2213 = vpack.c.b16 %v2061, %v2053
    %v2214 = vpack.c.b16 %v2062, %v2054
    %v2215 = vpack.c.b16 %v2071, %v2063
    %v2216 = vpack.c.b16 %v2072, %v2064
    %v2217 = vpack.c.b16 %v2073, %v2065
    %v2218 = vpack.c.b16 %v2074, %v2066
    %v2219 = vpack.c.b16 %v2075, %v2067
    %v2220 = vpack.c.b16 %v2076, %v2068
    %v2221 = vpack.c.b16 %v2077, %v2069
    %v2222 = vpack.c.b16 %v2078, %v2070
    %v2223 = vpack.c.b16 %v2087, %v2079
    %v2224 = vpack.c.b16 %v2088, %v2080
    %v2225 = vpack.c.b16 %v2089, %v2081
    %v2226 = vpack.c.b16 %v2090, %v2082
    %v2227 = vpack.c.b16 %v2091, %v2083
    %v2228 = vpack.c.b16 %v2092, %v2084
    %v2229 = vpack.c.b16 %v2093, %v2085
    %v2230 = vpack.c.b16 %v2094, %v2086
    %v2231 = vpack.c.b16 %v2103, %v2095
    %v2232 = vpack.c.b16 %v2104, %v2096
    %v2233 = vpack.c.b16 %v2105, %v2097
    %v2234 = vpack.c.b16 %v2106, %v2098
    %v2235 = vpack.c.b16 %v2107, %v2099
    %v2236 = vpack.c.b16 %v2108, %v2100
    %v2237 = vpack.c.b16 %v2109, %v2101
    %v2238 = vpack.c.b16 %v2110, %v2102
    %2367 = vmatprep.subr.bf16.mxu0 %v2168
    %2368 = vmatpush1.bf16.msra.mxu0 %v2167
    %2369 = vmatprep.subr.bf16.mxu0 %v2160
    %2370 = vmatpush1.bf16.msra.mxu0 %v2159
    %2371 = vmatprep.subr.bf16.mxu0 %v2152
    %2372 = vmatpush1.bf16.msra.mxu0 %v2151
    %2373 = vmatprep.subr.bf16.mxu0 %v2144
    %2374 = vmatpush1.bf16.msra.mxu0 %v2143
    %2375 = vmatprep.subr.bf16.mxu0 %v2136
    %2376 = vmatpush1.bf16.msra.mxu0 %v2135
    %2377 = vmatprep.subr.bf16.mxu0 %v2128
    %2378 = vmatpush1.bf16.msra.mxu0 %v2127
    %2379 = vmatprep.subr.bf16.mxu0 %v2120
    %2380 = vmatpush1.bf16.msra.mxu0 %v2119
    %2381 = vmatprep.subr.bf16.mxu0 %v2112
    %2382 = vmatpush1.bf16.msra.mxu0 %v2111
    %2383 = vmatprep.subr.bf16.mxu0 %v2232
    %2384 = vmatpush2.bf16.msra.mxu0 %v2231
    %2385 = vmatprep.subr.bf16.mxu0 %v2224
    %2386 = vmatpush2.bf16.msra.mxu0 %v2223
    %2387 = vmatprep.subr.bf16.mxu0 %v2216
    %2388 = vmatpush2.bf16.msra.mxu0 %v2215
    %2389 = vmatprep.subr.bf16.mxu0 %v2208
    %2390 = vmatpush2.bf16.msra.mxu0 %v2207
    %2391 = vmatprep.subr.bf16.mxu0 %v2200
    %2392 = vmatpush2.bf16.msra.mxu0 %v2199
    %2393 = vmatprep.subr.bf16.mxu0 %v2192
    %2394 = vmatpush2.bf16.msra.mxu0 %v2191
    %2395 = vmatprep.subr.bf16.mxu0 %v2184
    %2396 = vmatpush2.bf16.msra.mxu0 %v2183
    %2397 = vmatprep.subr.bf16.mxu0 %v2176
    %2398 = vmatpush2.bf16.msra.mxu0 %v2175
    %2399 = vmatprep.mubr.bf16.mxu0 %v456
    %2400 = vmatmul.mubr.bf16.gmra.mxu0 %v455
    %v2401 = vpop.f32.mrf.mxu0
    %v2402 = vadd.f32 %v1598, %v2401
    %v2403 = vpop.f32.mrf.mxu0
    %v2404 = vadd.f32 %v1600, %v2403
    %v2405 = vpop.f32.mrf.mxu0
    %v2406 = vpop.f32.mrf.mxu0
    %2407 = vdwg.mxu0
    %2408 = vmatprep.subr.bf16.mxu0 %v2170
    %2409 = vmatpush1.bf16.msra.mxu0 %v2169
    %2410 = vmatprep.subr.bf16.mxu0 %v2162
    %2411 = vmatpush1.bf16.msra.mxu0 %v2161
    %2412 = vmatprep.subr.bf16.mxu0 %v2154
    %2413 = vmatpush1.bf16.msra.mxu0 %v2153
    %2414 = vmatprep.subr.bf16.mxu0 %v2146
    %2415 = vmatpush1.bf16.msra.mxu0 %v2145
    %2416 = vmatprep.subr.bf16.mxu0 %v2138
    %2417 = vmatpush1.bf16.msra.mxu0 %v2137
    %2418 = vmatprep.subr.bf16.mxu0 %v2130
    %2419 = vmatpush1.bf16.msra.mxu0 %v2129
    %2420 = vmatprep.subr.bf16.mxu0 %v2122
    %2421 = vmatpush1.bf16.msra.mxu0 %v2121
    %2422 = vmatprep.subr.bf16.mxu0 %v2114
    %2423 = vmatpush1.bf16.msra.mxu0 %v2113
    %2424 = vmatprep.subr.bf16.mxu0 %v2234
    %2425 = vmatpush2.bf16.msra.mxu0 %v2233
    %2426 = vmatprep.subr.bf16.mxu0 %v2226
    %2427 = vmatpush2.bf16.msra.mxu0 %v2225
    %2428 = vmatprep.subr.bf16.mxu0 %v2218
    %2429 = vmatpush2.bf16.msra.mxu0 %v2217
    %2430 = vmatprep.subr.bf16.mxu0 %v2210
    %2431 = vmatpush2.bf16.msra.mxu0 %v2209
    %2432 = vmatprep.subr.bf16.mxu0 %v2202
    %2433 = vmatpush2.bf16.msra.mxu0 %v2201
    %2434 = vmatprep.subr.bf16.mxu0 %v2194
    %2435 = vmatpush2.bf16.msra.mxu0 %v2193
    %2436 = vmatprep.subr.bf16.mxu0 %v2186
    %2437 = vmatpush2.bf16.msra.mxu0 %v2185
    %2438 = vmatprep.subr.bf16.mxu0 %v2178
    %2439 = vmatpush2.bf16.msra.mxu0 %v2177
    %2440 = vmatprep.mubr.bf16.mxu0 %v456
    %2441 = vmatmul.mubr.bf16.gmra.mxu0 %v455
    %v2442 = vpop.f32.mrf.mxu0
    %v2443 = vadd.f32 %v1639, %v2442
    %v2444 = vpop.f32.mrf.mxu0
    %v2445 = vadd.f32 %v1641, %v2444
    %v2446 = vpop.f32.mrf.mxu0
    %v2447 = vpop.f32.mrf.mxu0
    %2448 = vdwg.mxu0
    %2449 = vmatprep.subr.bf16.mxu0 %v2172
    %2450 = vmatpush1.bf16.msra.mxu0 %v2171
    %2451 = vmatprep.subr.bf16.mxu0 %v2164
    %2452 = vmatpush1.bf16.msra.mxu0 %v2163
    %2453 = vmatprep.subr.bf16.mxu0 %v2156
    %2454 = vmatpush1.bf16.msra.mxu0 %v2155
    %2455 = vmatprep.subr.bf16.mxu0 %v2148
    %2456 = vmatpush1.bf16.msra.mxu0 %v2147
    %2457 = vmatprep.subr.bf16.mxu0 %v2140
    %2458 = vmatpush1.bf16.msra.mxu0 %v2139
    %2459 = vmatprep.subr.bf16.mxu0 %v2132
    %2460 = vmatpush1.bf16.msra.mxu0 %v2131
    %2461 = vmatprep.subr.bf16.mxu0 %v2124
    %2462 = vmatpush1.bf16.msra.mxu0 %v2123
    %2463 = vmatprep.subr.bf16.mxu0 %v2116
    %2464 = vmatpush1.bf16.msra.mxu0 %v2115
    %2465 = vmatprep.subr.bf16.mxu0 %v2236
    %2466 = vmatpush2.bf16.msra.mxu0 %v2235
    %2467 = vmatprep.subr.bf16.mxu0 %v2228
    %2468 = vmatpush2.bf16.msra.mxu0 %v2227
    %2469 = vmatprep.subr.bf16.mxu0 %v2220
    %2470 = vmatpush2.bf16.msra.mxu0 %v2219
    %2471 = vmatprep.subr.bf16.mxu0 %v2212
    %2472 = vmatpush2.bf16.msra.mxu0 %v2211
    %2473 = vmatprep.subr.bf16.mxu0 %v2204
    %2474 = vmatpush2.bf16.msra.mxu0 %v2203
    %2475 = vmatprep.subr.bf16.mxu0 %v2196
    %2476 = vmatpush2.bf16.msra.mxu0 %v2195
    %2477 = vmatprep.subr.bf16.mxu0 %v2188
    %2478 = vmatpush2.bf16.msra.mxu0 %v2187
    %2479 = vmatprep.subr.bf16.mxu0 %v2180
    %2480 = vmatpush2.bf16.msra.mxu0 %v2179
    %2481 = vmatprep.mubr.bf16.mxu0 %v456
    %2482 = vmatmul.mubr.bf16.gmra.mxu0 %v455
    %v2483 = vpop.f32.mrf.mxu0
    %v2484 = vadd.f32 %v1680, %v2483
    %v2485 = vpop.f32.mrf.mxu0
    %v2486 = vadd.f32 %v1682, %v2485
    %v2487 = vpop.f32.mrf.mxu0
    %v2488 = vpop.f32.mrf.mxu0
    %2489 = vdwg.mxu0
    %2490 = vmatprep.subr.bf16.mxu0 %v2174
    %2491 = vmatpush1.bf16.msra.mxu0 %v2173
    %2492 = vmatprep.subr.bf16.mxu0 %v2166
    %2493 = vmatpush1.bf16.msra.mxu0 %v2165
    %2494 = vmatprep.subr.bf16.mxu0 %v2158
    %2495 = vmatpush1.bf16.msra.mxu0 %v2157
    %2496 = vmatprep.subr.bf16.mxu0 %v2150
    %2497 = vmatpush1.bf16.msra.mxu0 %v2149
    %2498 = vmatprep.subr.bf16.mxu0 %v2142
    %2499 = vmatpush1.bf16.msra.mxu0 %v2141
    %2500 = vmatprep.subr.bf16.mxu0 %v2134
    %2501 = vmatpush1.bf16.msra.mxu0 %v2133
    %2502 = vmatprep.subr.bf16.mxu0 %v2126
    %2503 = vmatpush1.bf16.msra.mxu0 %v2125
    %2504 = vmatprep.subr.bf16.mxu0 %v2118
    %2505 = vmatpush1.bf16.msra.mxu0 %v2117
    %2506 = vmatprep.subr.bf16.mxu0 %v2238
    %2507 = vmatpush2.bf16.msra.mxu0 %v2237
    %2508 = vmatprep.subr.bf16.mxu0 %v2230
    %2509 = vmatpush2.bf16.msra.mxu0 %v2229
    %2510 = vmatprep.subr.bf16.mxu0 %v2222
    %2511 = vmatpush2.bf16.msra.mxu0 %v2221
    %2512 = vmatprep.subr.bf16.mxu0 %v2214
    %2513 = vmatpush2.bf16.msra.mxu0 %v2213
    %2514 = vmatprep.subr.bf16.mxu0 %v2206
    %2515 = vmatpush2.bf16.msra.mxu0 %v2205
    %2516 = vmatprep.subr.bf16.mxu0 %v2198
    %2517 = vmatpush2.bf16.msra.mxu0 %v2197
    %2518 = vmatprep.subr.bf16.mxu0 %v2190
    %2519 = vmatpush2.bf16.msra.mxu0 %v2189
    %2520 = vmatprep.subr.bf16.mxu0 %v2182
    %2521 = vmatpush2.bf16.msra.mxu0 %v2181
    %2522 = vmatprep.mubr.bf16.mxu0 %v456
    %2523 = vmatmul.mubr.bf16.gmra.mxu0 %v455
    %v2524 = vpop.f32.mrf.mxu0
    %v2525 = vadd.f32 %v1721, %v2524
    %v2526 = vpop.f32.mrf.mxu0
    %v2527 = vadd.f32 %v1723, %v2526
    %v2528 = vpop.f32.mrf.mxu0
    %v2529 = vpop.f32.mrf.mxu0
    %2530 = vdwg.mxu0
    %v2531 = vld [vmem:[#allocation8] sm:$0xff]
    %v2533 = vlaneseq
    %v2534 = vshrl.u32 %v2533, 7
    %v2535 = vsub.s32 0, %v2534
    %v2536 = vrot.slane %v2531, %v2535
    %v2537 = vlaneseq
    %v2538 = vshrl.u32 %v2537, 7
    %v2539 = vsub.s32 1, %v2538
    %v2540 = vrot.slane %v2531, %v2539
    %v2541 = vlaneseq
    %v2542 = vshrl.u32 %v2541, 7
    %v2543 = vsub.s32 2, %v2542
    %v2544 = vrot.slane %v2531, %v2543
    %v2545 = vlaneseq
    %v2546 = vshrl.u32 %v2545, 7
    %v2547 = vsub.s32 3, %v2546
    %v2548 = vrot.slane %v2531, %v2547
    %v2549 = vlaneseq
    %v2550 = vshrl.u32 %v2549, 7
    %v2551 = vsub.s32 4, %v2550
    %v2552 = vrot.slane %v2531, %v2551
    %v2553 = vlaneseq
    %v2554 = vshrl.u32 %v2553, 7
    %v2555 = vsub.s32 5, %v2554
    %v2556 = vrot.slane %v2531, %v2555
    %v2557 = vlaneseq
    %v2558 = vshrl.u32 %v2557, 7
    %v2559 = vsub.s32 6, %v2558
    %v2560 = vrot.slane %v2531, %v2559
    %v2561 = vlaneseq
    %v2562 = vshrl.u32 %v2561, 7
    %v2563 = vsub.s32 7, %v2562
    %v2564 = vrot.slane %v2531, %v2563
    %v2573 = vadd.f32 %v2402, %v2536
    %v2574 = vadd.f32 %v2404, %v2540
    %v2575 = vadd.f32 %v2443, %v2544
    %v2576 = vadd.f32 %v2445, %v2548
    %v2577 = vadd.f32 %v2484, %v2552
    %v2578 = vadd.f32 %v2486, %v2556
    %v2579 = vadd.f32 %v2525, %v2560
    %v2580 = vadd.f32 %v2527, %v2564
    %v2581 = vmax.f32 %v2573, 0.0
    %v2582 = vmax.f32 %v2574, 0.0
    %v2583 = vmax.f32 %v2575, 0.0
    %v2584 = vmax.f32 %v2576, 0.0
    %v2585 = vmax.f32 %v2577, 0.0
    %v2586 = vmax.f32 %v2578, 0.0
    %v2587 = vmax.f32 %v2579, 0.0
    %v2588 = vmax.f32 %v2580, 0.0
    %v2589 = vpack.c.bf16 %v2581, %v2581
    %v2590 = vpack.c.bf16 %v2582, %v2582
    %v2591 = vpack.c.bf16 %v2583, %v2583
    %v2592 = vpack.c.bf16 %v2584, %v2584
    %v2593 = vpack.c.bf16 %v2585, %v2585
    %v2594 = vpack.c.bf16 %v2586, %v2586
    %v2595 = vpack.c.bf16 %v2587, %v2587
    %v2596 = vpack.c.bf16 %v2588, %v2588
    %v2597 = vld [vmem:[#allocation10] sm:$0xff]
    %v2598 = vld [vmem:[#allocation10 + $0x8] sm:$0xff]
    %v2599 = vld [vmem:[#allocation10 + $0x10] sm:$0xff]
    %v2600 = vld [vmem:[#allocation10 + $0x18] sm:$0xff]
    %v2601 = vld [vmem:[#allocation10 + $0x20] sm:$0xff]
    %v2602 = vld [vmem:[#allocation10 + $0x28] sm:$0xff]
    %v2603 = vld [vmem:[#allocation10 + $0x30] sm:$0xff]
    %v2604 = vld [vmem:[#allocation10 + $0x38] sm:$0xff]
    %v2605 = vld [vmem:[#allocation10 + $0x40] sm:$0xff]
    %v2606 = vld [vmem:[#allocation10 + $0x48] sm:$0xff]
    %v2607 = vld [vmem:[#allocation10 + $0x50] sm:$0xff]
    %v2608 = vld [vmem:[#allocation10 + $0x58] sm:$0xff]
    %v2609 = vld [vmem:[#allocation10 + $0x60] sm:$0xff]
    %v2610 = vld [vmem:[#allocation10 + $0x68] sm:$0xff]
    %v2611 = vld [vmem:[#allocation10 + $0x70] sm:$0xff]
    %v2612 = vld [vmem:[#allocation10 + $0x78] sm:$0xff]
    %v2613 = vld [vmem:[#allocation10 + $0x80] sm:$0xff]
    %v2614 = vld [vmem:[#allocation10 + $0x88] sm:$0xff]
    %v2615 = vld [vmem:[#allocation10 + $0x90] sm:$0xff]
    %v2616 = vld [vmem:[#allocation10 + $0x98] sm:$0xff]
    %v2617 = vld [vmem:[#allocation10 + $0xa0] sm:$0xff]
    %v2618 = vld [vmem:[#allocation10 + $0xa8] sm:$0xff]
    %v2619 = vld [vmem:[#allocation10 + $0xb0] sm:$0xff]
    %v2620 = vld [vmem:[#allocation10 + $0xb8] sm:$0xff]
    %v2621 = vld [vmem:[#allocation10 + $0xc0] sm:$0xff]
    %v2622 = vld [vmem:[#allocation10 + $0xc8] sm:$0xff]
    %v2623 = vld [vmem:[#allocation10 + $0xd0] sm:$0xff]
    %v2624 = vld [vmem:[#allocation10 + $0xd8] sm:$0xff]
    %v2625 = vld [vmem:[#allocation10 + $0xe0] sm:$0xff]
    %v2626 = vld [vmem:[#allocation10 + $0xe8] sm:$0xff]
    %v2627 = vld [vmem:[#allocation10 + $0xf0] sm:$0xff]
    %v2628 = vld [vmem:[#allocation10 + $0xf8] sm:$0xff]
    %v2629 = vld [vmem:[#allocation10 + $0x100] sm:$0xff]
    %v2630 = vld [vmem:[#allocation10 + $0x108] sm:$0xff]
    %v2631 = vld [vmem:[#allocation10 + $0x110] sm:$0xff]
    %v2632 = vld [vmem:[#allocation10 + $0x118] sm:$0xff]
    %v2633 = vld [vmem:[#allocation10 + $0x120] sm:$0xff]
    %v2634 = vld [vmem:[#allocation10 + $0x128] sm:$0xff]
    %v2635 = vld [vmem:[#allocation10 + $0x130] sm:$0xff]
    %v2636 = vld [vmem:[#allocation10 + $0x138] sm:$0xff]
    %v2637 = vld [vmem:[#allocation10 + $0x140] sm:$0xff]
    %v2638 = vld [vmem:[#allocation10 + $0x148] sm:$0xff]
    %v2639 = vld [vmem:[#allocation10 + $0x150] sm:$0xff]
    %v2640 = vld [vmem:[#allocation10 + $0x158] sm:$0xff]
    %v2641 = vld [vmem:[#allocation10 + $0x160] sm:$0xff]
    %v2642 = vld [vmem:[#allocation10 + $0x168] sm:$0xff]
    %v2643 = vld [vmem:[#allocation10 + $0x170] sm:$0xff]
    %v2644 = vld [vmem:[#allocation10 + $0x178] sm:$0xff]
    %v2645 = vld [vmem:[#allocation10 + $0x180] sm:$0xff]
    %v2646 = vld [vmem:[#allocation10 + $0x188] sm:$0xff]
    %v2647 = vld [vmem:[#allocation10 + $0x190] sm:$0xff]
    %v2648 = vld [vmem:[#allocation10 + $0x198] sm:$0xff]
    %v2649 = vld [vmem:[#allocation10 + $0x1a0] sm:$0xff]
    %v2650 = vld [vmem:[#allocation10 + $0x1a8] sm:$0xff]
    %v2651 = vld [vmem:[#allocation10 + $0x1b0] sm:$0xff]
    %v2652 = vld [vmem:[#allocation10 + $0x1b8] sm:$0xff]
    %v2653 = vld [vmem:[#allocation10 + $0x1c0] sm:$0xff]
    %v2654 = vld [vmem:[#allocation10 + $0x1c8] sm:$0xff]
    %v2655 = vld [vmem:[#allocation10 + $0x1d0] sm:$0xff]
    %v2656 = vld [vmem:[#allocation10 + $0x1d8] sm:$0xff]
    %v2657 = vld [vmem:[#allocation10 + $0x1e0] sm:$0xff]
    %v2658 = vld [vmem:[#allocation10 + $0x1e8] sm:$0xff]
    %v2659 = vld [vmem:[#allocation10 + $0x1f0] sm:$0xff]
    %v2660 = vld [vmem:[#allocation10 + $0x1f8] sm:$0xff]
    %v2661 = vld [vmem:[#allocation10 + $0x200] sm:$0xff]
    %v2662 = vld [vmem:[#allocation10 + $0x208] sm:$0xff]
    %v2663 = vld [vmem:[#allocation10 + $0x210] sm:$0xff]
    %v2664 = vld [vmem:[#allocation10 + $0x218] sm:$0xff]
    %v2665 = vld [vmem:[#allocation10 + $0x220] sm:$0xff]
    %v2666 = vld [vmem:[#allocation10 + $0x228] sm:$0xff]
    %v2667 = vld [vmem:[#allocation10 + $0x230] sm:$0xff]
    %v2668 = vld [vmem:[#allocation10 + $0x238] sm:$0xff]
    %v2669 = vld [vmem:[#allocation10 + $0x240] sm:$0xff]
    %v2670 = vld [vmem:[#allocation10 + $0x248] sm:$0xff]
    %v2671 = vld [vmem:[#allocation10 + $0x250] sm:$0xff]
    %v2672 = vld [vmem:[#allocation10 + $0x258] sm:$0xff]
    %v2673 = vld [vmem:[#allocation10 + $0x260] sm:$0xff]
    %v2674 = vld [vmem:[#allocation10 + $0x268] sm:$0xff]
    %v2675 = vld [vmem:[#allocation10 + $0x270] sm:$0xff]
    %v2676 = vld [vmem:[#allocation10 + $0x278] sm:$0xff]
    %v2677 = vld [vmem:[#allocation10 + $0x280] sm:$0xff]
    %v2678 = vld [vmem:[#allocation10 + $0x288] sm:$0xff]
    %v2679 = vld [vmem:[#allocation10 + $0x290] sm:$0xff]
    %v2680 = vld [vmem:[#allocation10 + $0x298] sm:$0xff]
    %v2681 = vld [vmem:[#allocation10 + $0x2a0] sm:$0xff]
    %v2682 = vld [vmem:[#allocation10 + $0x2a8] sm:$0xff]
    %v2683 = vld [vmem:[#allocation10 + $0x2b0] sm:$0xff]
    %v2684 = vld [vmem:[#allocation10 + $0x2b8] sm:$0xff]
    %v2685 = vld [vmem:[#allocation10 + $0x2c0] sm:$0xff]
    %v2686 = vld [vmem:[#allocation10 + $0x2c8] sm:$0xff]
    %v2687 = vld [vmem:[#allocation10 + $0x2d0] sm:$0xff]
    %v2688 = vld [vmem:[#allocation10 + $0x2d8] sm:$0xff]
    %v2689 = vld [vmem:[#allocation10 + $0x2e0] sm:$0xff]
    %v2690 = vld [vmem:[#allocation10 + $0x2e8] sm:$0xff]
    %v2691 = vld [vmem:[#allocation10 + $0x2f0] sm:$0xff]
    %v2692 = vld [vmem:[#allocation10 + $0x2f8] sm:$0xff]
    %v2693 = vld [vmem:[#allocation10 + $0x300] sm:$0xff]
    %v2694 = vld [vmem:[#allocation10 + $0x308] sm:$0xff]
    %v2695 = vld [vmem:[#allocation10 + $0x310] sm:$0xff]
    %v2696 = vld [vmem:[#allocation10 + $0x318] sm:$0xff]
    %v2697 = vld [vmem:[#allocation10 + $0x320] sm:$0xff]
    %v2698 = vld [vmem:[#allocation10 + $0x328] sm:$0xff]
    %v2699 = vld [vmem:[#allocation10 + $0x330] sm:$0xff]
    %v2700 = vld [vmem:[#allocation10 + $0x338] sm:$0xff]
    %v2701 = vld [vmem:[#allocation10 + $0x340] sm:$0xff]
    %v2702 = vld [vmem:[#allocation10 + $0x348] sm:$0xff]
    %v2703 = vld [vmem:[#allocation10 + $0x350] sm:$0xff]
    %v2704 = vld [vmem:[#allocation10 + $0x358] sm:$0xff]
    %v2705 = vld [vmem:[#allocation10 + $0x360] sm:$0xff]
    %v2706 = vld [vmem:[#allocation10 + $0x368] sm:$0xff]
    %v2707 = vld [vmem:[#allocation10 + $0x370] sm:$0xff]
    %v2708 = vld [vmem:[#allocation10 + $0x378] sm:$0xff]
    %v2709 = vld [vmem:[#allocation10 + $0x380] sm:$0xff]
    %v2710 = vld [vmem:[#allocation10 + $0x388] sm:$0xff]
    %v2711 = vld [vmem:[#allocation10 + $0x390] sm:$0xff]
    %v2712 = vld [vmem:[#allocation10 + $0x398] sm:$0xff]
    %v2713 = vld [vmem:[#allocation10 + $0x3a0] sm:$0xff]
    %v2714 = vld [vmem:[#allocation10 + $0x3a8] sm:$0xff]
    %v2715 = vld [vmem:[#allocation10 + $0x3b0] sm:$0xff]
    %v2716 = vld [vmem:[#allocation10 + $0x3b8] sm:$0xff]
    %v2717 = vld [vmem:[#allocation10 + $0x3c0] sm:$0xff]
    %v2718 = vld [vmem:[#allocation10 + $0x3c8] sm:$0xff]
    %v2719 = vld [vmem:[#allocation10 + $0x3d0] sm:$0xff]
    %v2720 = vld [vmem:[#allocation10 + $0x3d8] sm:$0xff]
    %v2721 = vld [vmem:[#allocation10 + $0x3e0] sm:$0xff]
    %v2722 = vld [vmem:[#allocation10 + $0x3e8] sm:$0xff]
    %v2723 = vld [vmem:[#allocation10 + $0x3f0] sm:$0xff]
    %v2724 = vld [vmem:[#allocation10 + $0x3f8] sm:$0xff]
    %v2725 = vld [vmem:[#allocation10 + $0x400] sm:$0xff]
    %v2726 = vld [vmem:[#allocation10 + $0x408] sm:$0xff]
    %v2727 = vld [vmem:[#allocation10 + $0x410] sm:$0xff]
    %v2728 = vld [vmem:[#allocation10 + $0x418] sm:$0xff]
    %v2729 = vld [vmem:[#allocation10 + $0x420] sm:$0xff]
    %v2730 = vld [vmem:[#allocation10 + $0x428] sm:$0xff]
    %v2731 = vld [vmem:[#allocation10 + $0x430] sm:$0xff]
    %v2732 = vld [vmem:[#allocation10 + $0x438] sm:$0xff]
    %v2733 = vld [vmem:[#allocation10 + $0x440] sm:$0xff]
    %v2734 = vld [vmem:[#allocation10 + $0x448] sm:$0xff]
    %v2735 = vld [vmem:[#allocation10 + $0x450] sm:$0xff]
    %v2736 = vld [vmem:[#allocation10 + $0x458] sm:$0xff]
    %v2737 = vld [vmem:[#allocation10 + $0x460] sm:$0xff]
    %v2738 = vld [vmem:[#allocation10 + $0x468] sm:$0xff]
    %v2739 = vld [vmem:[#allocation10 + $0x470] sm:$0xff]
    %v2740 = vld [vmem:[#allocation10 + $0x478] sm:$0xff]
    %v2741 = vld [vmem:[#allocation10 + $0x480] sm:$0xff]
    %v2742 = vld [vmem:[#allocation10 + $0x488] sm:$0xff]
    %v2743 = vld [vmem:[#allocation10 + $0x490] sm:$0xff]
    %v2744 = vld [vmem:[#allocation10 + $0x498] sm:$0xff]
    %v2745 = vld [vmem:[#allocation10 + $0x4a0] sm:$0xff]
    %v2746 = vld [vmem:[#allocation10 + $0x4a8] sm:$0xff]
    %v2747 = vld [vmem:[#allocation10 + $0x4b0] sm:$0xff]
    %v2748 = vld [vmem:[#allocation10 + $0x4b8] sm:$0xff]
    %v2749 = vld [vmem:[#allocation10 + $0x4c0] sm:$0xff]
    %v2750 = vld [vmem:[#allocation10 + $0x4c8] sm:$0xff]
    %v2751 = vld [vmem:[#allocation10 + $0x4d0] sm:$0xff]
    %v2752 = vld [vmem:[#allocation10 + $0x4d8] sm:$0xff]
    %v2753 = vld [vmem:[#allocation10 + $0x4e0] sm:$0xff]
    %v2754 = vld [vmem:[#allocation10 + $0x4e8] sm:$0xff]
    %v2755 = vld [vmem:[#allocation10 + $0x4f0] sm:$0xff]
    %v2756 = vld [vmem:[#allocation10 + $0x4f8] sm:$0xff]
    %v2757 = vld [vmem:[#allocation10 + $0x500] sm:$0xff]
    %v2758 = vld [vmem:[#allocation10 + $0x508] sm:$0xff]
    %v2759 = vld [vmem:[#allocation10 + $0x510] sm:$0xff]
    %v2760 = vld [vmem:[#allocation10 + $0x518] sm:$0xff]
    %v2761 = vld [vmem:[#allocation10 + $0x520] sm:$0xff]
    %v2762 = vld [vmem:[#allocation10 + $0x528] sm:$0xff]
    %v2763 = vld [vmem:[#allocation10 + $0x530] sm:$0xff]
    %v2764 = vld [vmem:[#allocation10 + $0x538] sm:$0xff]
    %v2765 = vld [vmem:[#allocation10 + $0x540] sm:$0xff]
    %v2766 = vld [vmem:[#allocation10 + $0x548] sm:$0xff]
    %v2767 = vld [vmem:[#allocation10 + $0x550] sm:$0xff]
    %v2768 = vld [vmem:[#allocation10 + $0x558] sm:$0xff]
    %v2769 = vld [vmem:[#allocation10 + $0x560] sm:$0xff]
    %v2770 = vld [vmem:[#allocation10 + $0x568] sm:$0xff]
    %v2771 = vld [vmem:[#allocation10 + $0x570] sm:$0xff]
    %v2772 = vld [vmem:[#allocation10 + $0x578] sm:$0xff]
    %v2773 = vld [vmem:[#allocation10 + $0x580] sm:$0xff]
    %v2774 = vld [vmem:[#allocation10 + $0x588] sm:$0xff]
    %v2775 = vld [vmem:[#allocation10 + $0x590] sm:$0xff]
    %v2776 = vld [vmem:[#allocation10 + $0x598] sm:$0xff]
    %v2777 = vld [vmem:[#allocation10 + $0x5a0] sm:$0xff]
    %v2778 = vld [vmem:[#allocation10 + $0x5a8] sm:$0xff]
    %v2779 = vld [vmem:[#allocation10 + $0x5b0] sm:$0xff]
    %v2780 = vld [vmem:[#allocation10 + $0x5b8] sm:$0xff]
    %v2781 = vld [vmem:[#allocation10 + $0x5c0] sm:$0xff]
    %v2782 = vld [vmem:[#allocation10 + $0x5c8] sm:$0xff]
    %v2783 = vld [vmem:[#allocation10 + $0x5d0] sm:$0xff]
    %v2784 = vld [vmem:[#allocation10 + $0x5d8] sm:$0xff]
    %v2785 = vld [vmem:[#allocation10 + $0x5e0] sm:$0xff]
    %v2786 = vld [vmem:[#allocation10 + $0x5e8] sm:$0xff]
    %v2787 = vld [vmem:[#allocation10 + $0x5f0] sm:$0xff]
    %v2788 = vld [vmem:[#allocation10 + $0x5f8] sm:$0xff]
    %v2789 = vld [vmem:[#allocation10 + $0x600] sm:$0xff]
    %v2790 = vld [vmem:[#allocation10 + $0x608] sm:$0xff]
    %v2791 = vld [vmem:[#allocation10 + $0x610] sm:$0xff]
    %v2792 = vld [vmem:[#allocation10 + $0x618] sm:$0xff]
    %v2793 = vld [vmem:[#allocation10 + $0x620] sm:$0xff]
    %v2794 = vld [vmem:[#allocation10 + $0x628] sm:$0xff]
    %v2795 = vld [vmem:[#allocation10 + $0x630] sm:$0xff]
    %v2796 = vld [vmem:[#allocation10 + $0x638] sm:$0xff]
    %v2797 = vld [vmem:[#allocation10 + $0x640] sm:$0xff]
    %v2798 = vld [vmem:[#allocation10 + $0x648] sm:$0xff]
    %v2799 = vld [vmem:[#allocation10 + $0x650] sm:$0xff]
    %v2800 = vld [vmem:[#allocation10 + $0x658] sm:$0xff]
    %v2801 = vld [vmem:[#allocation10 + $0x660] sm:$0xff]
    %v2802 = vld [vmem:[#allocation10 + $0x668] sm:$0xff]
    %v2803 = vld [vmem:[#allocation10 + $0x670] sm:$0xff]
    %v2804 = vld [vmem:[#allocation10 + $0x678] sm:$0xff]
    %v2805 = vld [vmem:[#allocation10 + $0x680] sm:$0xff]
    %v2806 = vld [vmem:[#allocation10 + $0x688] sm:$0xff]
    %v2807 = vld [vmem:[#allocation10 + $0x690] sm:$0xff]
    %v2808 = vld [vmem:[#allocation10 + $0x698] sm:$0xff]
    %v2809 = vld [vmem:[#allocation10 + $0x6a0] sm:$0xff]
    %v2810 = vld [vmem:[#allocation10 + $0x6a8] sm:$0xff]
    %v2811 = vld [vmem:[#allocation10 + $0x6b0] sm:$0xff]
    %v2812 = vld [vmem:[#allocation10 + $0x6b8] sm:$0xff]
    %v2813 = vld [vmem:[#allocation10 + $0x6c0] sm:$0xff]
    %v2814 = vld [vmem:[#allocation10 + $0x6c8] sm:$0xff]
    %v2815 = vld [vmem:[#allocation10 + $0x6d0] sm:$0xff]
    %v2816 = vld [vmem:[#allocation10 + $0x6d8] sm:$0xff]
    %v2817 = vld [vmem:[#allocation10 + $0x6e0] sm:$0xff]
    %v2818 = vld [vmem:[#allocation10 + $0x6e8] sm:$0xff]
    %v2819 = vld [vmem:[#allocation10 + $0x6f0] sm:$0xff]
    %v2820 = vld [vmem:[#allocation10 + $0x6f8] sm:$0xff]
    %v2821 = vld [vmem:[#allocation10 + $0x700] sm:$0xff]
    %v2822 = vld [vmem:[#allocation10 + $0x708] sm:$0xff]
    %v2823 = vld [vmem:[#allocation10 + $0x710] sm:$0xff]
    %v2824 = vld [vmem:[#allocation10 + $0x718] sm:$0xff]
    %v2825 = vld [vmem:[#allocation10 + $0x720] sm:$0xff]
    %v2826 = vld [vmem:[#allocation10 + $0x728] sm:$0xff]
    %v2827 = vld [vmem:[#allocation10 + $0x730] sm:$0xff]
    %v2828 = vld [vmem:[#allocation10 + $0x738] sm:$0xff]
    %v2829 = vld [vmem:[#allocation10 + $0x740] sm:$0xff]
    %v2830 = vld [vmem:[#allocation10 + $0x748] sm:$0xff]
    %v2831 = vld [vmem:[#allocation10 + $0x750] sm:$0xff]
    %v2832 = vld [vmem:[#allocation10 + $0x758] sm:$0xff]
    %v2833 = vld [vmem:[#allocation10 + $0x760] sm:$0xff]
    %v2834 = vld [vmem:[#allocation10 + $0x768] sm:$0xff]
    %v2835 = vld [vmem:[#allocation10 + $0x770] sm:$0xff]
    %v2836 = vld [vmem:[#allocation10 + $0x778] sm:$0xff]
    %v2837 = vld [vmem:[#allocation10 + $0x780] sm:$0xff]
    %v2838 = vld [vmem:[#allocation10 + $0x788] sm:$0xff]
    %v2839 = vld [vmem:[#allocation10 + $0x790] sm:$0xff]
    %v2840 = vld [vmem:[#allocation10 + $0x798] sm:$0xff]
    %v2841 = vld [vmem:[#allocation10 + $0x7a0] sm:$0xff]
    %v2842 = vld [vmem:[#allocation10 + $0x7a8] sm:$0xff]
    %v2843 = vld [vmem:[#allocation10 + $0x7b0] sm:$0xff]
    %v2844 = vld [vmem:[#allocation10 + $0x7b8] sm:$0xff]
    %v2845 = vld [vmem:[#allocation10 + $0x7c0] sm:$0xff]
    %v2846 = vld [vmem:[#allocation10 + $0x7c8] sm:$0xff]
    %v2847 = vld [vmem:[#allocation10 + $0x7d0] sm:$0xff]
    %v2848 = vld [vmem:[#allocation10 + $0x7d8] sm:$0xff]
    %v2849 = vld [vmem:[#allocation10 + $0x7e0] sm:$0xff]
    %v2850 = vld [vmem:[#allocation10 + $0x7e8] sm:$0xff]
    %v2851 = vld [vmem:[#allocation10 + $0x7f0] sm:$0xff]
    %v2852 = vld [vmem:[#allocation10 + $0x7f8] sm:$0xff]
    %v2853 = vld [vmem:[#allocation10 + $0x800] sm:$0xff]
    %v2854 = vld [vmem:[#allocation10 + $0x808] sm:$0xff]
    %v2855 = vld [vmem:[#allocation10 + $0x810] sm:$0xff]
    %v2856 = vld [vmem:[#allocation10 + $0x818] sm:$0xff]
    %v2857 = vld [vmem:[#allocation10 + $0x820] sm:$0xff]
    %v2858 = vld [vmem:[#allocation10 + $0x828] sm:$0xff]
    %v2859 = vld [vmem:[#allocation10 + $0x830] sm:$0xff]
    %v2860 = vld [vmem:[#allocation10 + $0x838] sm:$0xff]
    %v2861 = vld [vmem:[#allocation10 + $0x840] sm:$0xff]
    %v2862 = vld [vmem:[#allocation10 + $0x848] sm:$0xff]
    %v2863 = vld [vmem:[#allocation10 + $0x850] sm:$0xff]
    %v2864 = vld [vmem:[#allocation10 + $0x858] sm:$0xff]
    %v2865 = vld [vmem:[#allocation10 + $0x860] sm:$0xff]
    %v2866 = vld [vmem:[#allocation10 + $0x868] sm:$0xff]
    %v2867 = vld [vmem:[#allocation10 + $0x870] sm:$0xff]
    %v2868 = vld [vmem:[#allocation10 + $0x878] sm:$0xff]
    %v2869 = vld [vmem:[#allocation10 + $0x880] sm:$0xff]
    %v2870 = vld [vmem:[#allocation10 + $0x888] sm:$0xff]
    %v2871 = vld [vmem:[#allocation10 + $0x890] sm:$0xff]
    %v2872 = vld [vmem:[#allocation10 + $0x898] sm:$0xff]
    %v2873 = vld [vmem:[#allocation10 + $0x8a0] sm:$0xff]
    %v2874 = vld [vmem:[#allocation10 + $0x8a8] sm:$0xff]
    %v2875 = vld [vmem:[#allocation10 + $0x8b0] sm:$0xff]
    %v2876 = vld [vmem:[#allocation10 + $0x8b8] sm:$0xff]
    %v2877 = vld [vmem:[#allocation10 + $0x8c0] sm:$0xff]
    %v2878 = vld [vmem:[#allocation10 + $0x8c8] sm:$0xff]
    %v2879 = vld [vmem:[#allocation10 + $0x8d0] sm:$0xff]
    %v2880 = vld [vmem:[#allocation10 + $0x8d8] sm:$0xff]
    %v2881 = vld [vmem:[#allocation10 + $0x8e0] sm:$0xff]
    %v2882 = vld [vmem:[#allocation10 + $0x8e8] sm:$0xff]
    %v2883 = vld [vmem:[#allocation10 + $0x8f0] sm:$0xff]
    %v2884 = vld [vmem:[#allocation10 + $0x8f8] sm:$0xff]
    %v2885 = vld [vmem:[#allocation10 + $0x900] sm:$0xff]
    %v2886 = vld [vmem:[#allocation10 + $0x908] sm:$0xff]
    %v2887 = vld [vmem:[#allocation10 + $0x910] sm:$0xff]
    %v2888 = vld [vmem:[#allocation10 + $0x918] sm:$0xff]
    %v2889 = vld [vmem:[#allocation10 + $0x920] sm:$0xff]
    %v2890 = vld [vmem:[#allocation10 + $0x928] sm:$0xff]
    %v2891 = vld [vmem:[#allocation10 + $0x930] sm:$0xff]
    %v2892 = vld [vmem:[#allocation10 + $0x938] sm:$0xff]
    %v2893 = vld [vmem:[#allocation10 + $0x940] sm:$0xff]
    %v2894 = vld [vmem:[#allocation10 + $0x948] sm:$0xff]
    %v2895 = vld [vmem:[#allocation10 + $0x950] sm:$0xff]
    %v2896 = vld [vmem:[#allocation10 + $0x958] sm:$0xff]
    %v2897 = vld [vmem:[#allocation10 + $0x960] sm:$0xff]
    %v2898 = vld [vmem:[#allocation10 + $0x968] sm:$0xff]
    %v2899 = vld [vmem:[#allocation10 + $0x970] sm:$0xff]
    %v2900 = vld [vmem:[#allocation10 + $0x978] sm:$0xff]
    %v2901 = vld [vmem:[#allocation10 + $0x980] sm:$0xff]
    %v2902 = vld [vmem:[#allocation10 + $0x988] sm:$0xff]
    %v2903 = vld [vmem:[#allocation10 + $0x990] sm:$0xff]
    %v2904 = vld [vmem:[#allocation10 + $0x998] sm:$0xff]
    %v2905 = vld [vmem:[#allocation10 + $0x9a0] sm:$0xff]
    %v2906 = vld [vmem:[#allocation10 + $0x9a8] sm:$0xff]
    %v2907 = vld [vmem:[#allocation10 + $0x9b0] sm:$0xff]
    %v2908 = vld [vmem:[#allocation10 + $0x9b8] sm:$0xff]
    %v2909 = vld [vmem:[#allocation10 + $0x9c0] sm:$0xff]
    %v2910 = vld [vmem:[#allocation10 + $0x9c8] sm:$0xff]
    %v2911 = vld [vmem:[#allocation10 + $0x9d0] sm:$0xff]
    %v2912 = vld [vmem:[#allocation10 + $0x9d8] sm:$0xff]
    %v2913 = vld [vmem:[#allocation10 + $0x9e0] sm:$0xff]
    %v2914 = vld [vmem:[#allocation10 + $0x9e8] sm:$0xff]
    %v2915 = vld [vmem:[#allocation10 + $0x9f0] sm:$0xff]
    %v2916 = vld [vmem:[#allocation10 + $0x9f8] sm:$0xff]
    %v2917 = vld [vmem:[#allocation10 + $0xa00] sm:$0xff]
    %v2918 = vld [vmem:[#allocation10 + $0xa08] sm:$0xff]
    %v2919 = vld [vmem:[#allocation10 + $0xa10] sm:$0xff]
    %v2920 = vld [vmem:[#allocation10 + $0xa18] sm:$0xff]
    %v2921 = vld [vmem:[#allocation10 + $0xa20] sm:$0xff]
    %v2922 = vld [vmem:[#allocation10 + $0xa28] sm:$0xff]
    %v2923 = vld [vmem:[#allocation10 + $0xa30] sm:$0xff]
    %v2924 = vld [vmem:[#allocation10 + $0xa38] sm:$0xff]
    %v2925 = vld [vmem:[#allocation10 + $0xa40] sm:$0xff]
    %v2926 = vld [vmem:[#allocation10 + $0xa48] sm:$0xff]
    %v2927 = vld [vmem:[#allocation10 + $0xa50] sm:$0xff]
    %v2928 = vld [vmem:[#allocation10 + $0xa58] sm:$0xff]
    %v2929 = vld [vmem:[#allocation10 + $0xa60] sm:$0xff]
    %v2930 = vld [vmem:[#allocation10 + $0xa68] sm:$0xff]
    %v2931 = vld [vmem:[#allocation10 + $0xa70] sm:$0xff]
    %v2932 = vld [vmem:[#allocation10 + $0xa78] sm:$0xff]
    %v2933 = vld [vmem:[#allocation10 + $0xa80] sm:$0xff]
    %v2934 = vld [vmem:[#allocation10 + $0xa88] sm:$0xff]
    %v2935 = vld [vmem:[#allocation10 + $0xa90] sm:$0xff]
    %v2936 = vld [vmem:[#allocation10 + $0xa98] sm:$0xff]
    %v2937 = vld [vmem:[#allocation10 + $0xaa0] sm:$0xff]
    %v2938 = vld [vmem:[#allocation10 + $0xaa8] sm:$0xff]
    %v2939 = vld [vmem:[#allocation10 + $0xab0] sm:$0xff]
    %v2940 = vld [vmem:[#allocation10 + $0xab8] sm:$0xff]
    %v2941 = vld [vmem:[#allocation10 + $0xac0] sm:$0xff]
    %v2942 = vld [vmem:[#allocation10 + $0xac8] sm:$0xff]
    %v2943 = vld [vmem:[#allocation10 + $0xad0] sm:$0xff]
    %v2944 = vld [vmem:[#allocation10 + $0xad8] sm:$0xff]
    %v2945 = vld [vmem:[#allocation10 + $0xae0] sm:$0xff]
    %v2946 = vld [vmem:[#allocation10 + $0xae8] sm:$0xff]
    %v2947 = vld [vmem:[#allocation10 + $0xaf0] sm:$0xff]
    %v2948 = vld [vmem:[#allocation10 + $0xaf8] sm:$0xff]
    %v2949 = vld [vmem:[#allocation10 + $0xb00] sm:$0xff]
    %v2950 = vld [vmem:[#allocation10 + $0xb08] sm:$0xff]
    %v2951 = vld [vmem:[#allocation10 + $0xb10] sm:$0xff]
    %v2952 = vld [vmem:[#allocation10 + $0xb18] sm:$0xff]
    %v2953 = vld [vmem:[#allocation10 + $0xb20] sm:$0xff]
    %v2954 = vld [vmem:[#allocation10 + $0xb28] sm:$0xff]
    %v2955 = vld [vmem:[#allocation10 + $0xb30] sm:$0xff]
    %v2956 = vld [vmem:[#allocation10 + $0xb38] sm:$0xff]
    %v2957 = vld [vmem:[#allocation10 + $0xb40] sm:$0xff]
    %v2958 = vld [vmem:[#allocation10 + $0xb48] sm:$0xff]
    %v2959 = vld [vmem:[#allocation10 + $0xb50] sm:$0xff]
    %v2960 = vld [vmem:[#allocation10 + $0xb58] sm:$0xff]
    %v2961 = vld [vmem:[#allocation10 + $0xb60] sm:$0xff]
    %v2962 = vld [vmem:[#allocation10 + $0xb68] sm:$0xff]
    %v2963 = vld [vmem:[#allocation10 + $0xb70] sm:$0xff]
    %v2964 = vld [vmem:[#allocation10 + $0xb78] sm:$0xff]
    %v2965 = vld [vmem:[#allocation10 + $0xb80] sm:$0xff]
    %v2966 = vld [vmem:[#allocation10 + $0xb88] sm:$0xff]
    %v2967 = vld [vmem:[#allocation10 + $0xb90] sm:$0xff]
    %v2968 = vld [vmem:[#allocation10 + $0xb98] sm:$0xff]
    %v2969 = vld [vmem:[#allocation10 + $0xba0] sm:$0xff]
    %v2970 = vld [vmem:[#allocation10 + $0xba8] sm:$0xff]
    %v2971 = vld [vmem:[#allocation10 + $0xbb0] sm:$0xff]
    %v2972 = vld [vmem:[#allocation10 + $0xbb8] sm:$0xff]
    %v2973 = vld [vmem:[#allocation10 + $0xbc0] sm:$0xff]
    %v2974 = vld [vmem:[#allocation10 + $0xbc8] sm:$0xff]
    %v2975 = vld [vmem:[#allocation10 + $0xbd0] sm:$0xff]
    %v2976 = vld [vmem:[#allocation10 + $0xbd8] sm:$0xff]
    %v2977 = vld [vmem:[#allocation10 + $0xbe0] sm:$0xff]
    %v2978 = vld [vmem:[#allocation10 + $0xbe8] sm:$0xff]
    %v2979 = vld [vmem:[#allocation10 + $0xbf0] sm:$0xff]
    %v2980 = vld [vmem:[#allocation10 + $0xbf8] sm:$0xff]
    %v2981 = vld [vmem:[#allocation10 + $0xc00] sm:$0xff]
    %v2982 = vld [vmem:[#allocation10 + $0xc08] sm:$0xff]
    %v2983 = vld [vmem:[#allocation10 + $0xc10] sm:$0xff]
    %v2984 = vld [vmem:[#allocation10 + $0xc18] sm:$0xff]
    %v2985 = vld [vmem:[#allocation10 + $0xc20] sm:$0xff]
    %v2986 = vld [vmem:[#allocation10 + $0xc28] sm:$0xff]
    %v2987 = vld [vmem:[#allocation10 + $0xc30] sm:$0xff]
    %v2988 = vld [vmem:[#allocation10 + $0xc38] sm:$0xff]
    %v2989 = vld [vmem:[#allocation10 + $0xc40] sm:$0xff]
    %v2990 = vld [vmem:[#allocation10 + $0xc48] sm:$0xff]
    %v2991 = vld [vmem:[#allocation10 + $0xc50] sm:$0xff]
    %v2992 = vld [vmem:[#allocation10 + $0xc58] sm:$0xff]
    %v2993 = vld [vmem:[#allocation10 + $0xc60] sm:$0xff]
    %v2994 = vld [vmem:[#allocation10 + $0xc68] sm:$0xff]
    %v2995 = vld [vmem:[#allocation10 + $0xc70] sm:$0xff]
    %v2996 = vld [vmem:[#allocation10 + $0xc78] sm:$0xff]
    %v2997 = vld [vmem:[#allocation10 + $0xc80] sm:$0xff]
    %v2998 = vld [vmem:[#allocation10 + $0xc88] sm:$0xff]
    %v2999 = vld [vmem:[#allocation10 + $0xc90] sm:$0xff]
    %v3000 = vld [vmem:[#allocation10 + $0xc98] sm:$0xff]
    %v3001 = vld [vmem:[#allocation10 + $0xca0] sm:$0xff]
    %v3002 = vld [vmem:[#allocation10 + $0xca8] sm:$0xff]
    %v3003 = vld [vmem:[#allocation10 + $0xcb0] sm:$0xff]
    %v3004 = vld [vmem:[#allocation10 + $0xcb8] sm:$0xff]
    %v3005 = vld [vmem:[#allocation10 + $0xcc0] sm:$0xff]
    %v3006 = vld [vmem:[#allocation10 + $0xcc8] sm:$0xff]
    %v3007 = vld [vmem:[#allocation10 + $0xcd0] sm:$0xff]
    %v3008 = vld [vmem:[#allocation10 + $0xcd8] sm:$0xff]
    %v3009 = vld [vmem:[#allocation10 + $0xce0] sm:$0xff]
    %v3010 = vld [vmem:[#allocation10 + $0xce8] sm:$0xff]
    %v3011 = vld [vmem:[#allocation10 + $0xcf0] sm:$0xff]
    %v3012 = vld [vmem:[#allocation10 + $0xcf8] sm:$0xff]
    %v3013 = vld [vmem:[#allocation10 + $0xd00] sm:$0xff]
    %v3014 = vld [vmem:[#allocation10 + $0xd08] sm:$0xff]
    %v3015 = vld [vmem:[#allocation10 + $0xd10] sm:$0xff]
    %v3016 = vld [vmem:[#allocation10 + $0xd18] sm:$0xff]
    %v3017 = vld [vmem:[#allocation10 + $0xd20] sm:$0xff]
    %v3018 = vld [vmem:[#allocation10 + $0xd28] sm:$0xff]
    %v3019 = vld [vmem:[#allocation10 + $0xd30] sm:$0xff]
    %v3020 = vld [vmem:[#allocation10 + $0xd38] sm:$0xff]
    %v3021 = vld [vmem:[#allocation10 + $0xd40] sm:$0xff]
    %v3022 = vld [vmem:[#allocation10 + $0xd48] sm:$0xff]
    %v3023 = vld [vmem:[#allocation10 + $0xd50] sm:$0xff]
    %v3024 = vld [vmem:[#allocation10 + $0xd58] sm:$0xff]
    %v3025 = vld [vmem:[#allocation10 + $0xd60] sm:$0xff]
    %v3026 = vld [vmem:[#allocation10 + $0xd68] sm:$0xff]
    %v3027 = vld [vmem:[#allocation10 + $0xd70] sm:$0xff]
    %v3028 = vld [vmem:[#allocation10 + $0xd78] sm:$0xff]
    %v3029 = vld [vmem:[#allocation10 + $0xd80] sm:$0xff]
    %v3030 = vld [vmem:[#allocation10 + $0xd88] sm:$0xff]
    %v3031 = vld [vmem:[#allocation10 + $0xd90] sm:$0xff]
    %v3032 = vld [vmem:[#allocation10 + $0xd98] sm:$0xff]
    %v3033 = vld [vmem:[#allocation10 + $0xda0] sm:$0xff]
    %v3034 = vld [vmem:[#allocation10 + $0xda8] sm:$0xff]
    %v3035 = vld [vmem:[#allocation10 + $0xdb0] sm:$0xff]
    %v3036 = vld [vmem:[#allocation10 + $0xdb8] sm:$0xff]
    %v3037 = vld [vmem:[#allocation10 + $0xdc0] sm:$0xff]
    %v3038 = vld [vmem:[#allocation10 + $0xdc8] sm:$0xff]
    %v3039 = vld [vmem:[#allocation10 + $0xdd0] sm:$0xff]
    %v3040 = vld [vmem:[#allocation10 + $0xdd8] sm:$0xff]
    %v3041 = vld [vmem:[#allocation10 + $0xde0] sm:$0xff]
    %v3042 = vld [vmem:[#allocation10 + $0xde8] sm:$0xff]
    %v3043 = vld [vmem:[#allocation10 + $0xdf0] sm:$0xff]
    %v3044 = vld [vmem:[#allocation10 + $0xdf8] sm:$0xff]
    %v3045 = vld [vmem:[#allocation10 + $0xe00] sm:$0xff]
    %v3046 = vld [vmem:[#allocation10 + $0xe08] sm:$0xff]
    %v3047 = vld [vmem:[#allocation10 + $0xe10] sm:$0xff]
    %v3048 = vld [vmem:[#allocation10 + $0xe18] sm:$0xff]
    %v3049 = vld [vmem:[#allocation10 + $0xe20] sm:$0xff]
    %v3050 = vld [vmem:[#allocation10 + $0xe28] sm:$0xff]
    %v3051 = vld [vmem:[#allocation10 + $0xe30] sm:$0xff]
    %v3052 = vld [vmem:[#allocation10 + $0xe38] sm:$0xff]
    %v3053 = vld [vmem:[#allocation10 + $0xe40] sm:$0xff]
    %v3054 = vld [vmem:[#allocation10 + $0xe48] sm:$0xff]
    %v3055 = vld [vmem:[#allocation10 + $0xe50] sm:$0xff]
    %v3056 = vld [vmem:[#allocation10 + $0xe58] sm:$0xff]
    %v3057 = vld [vmem:[#allocation10 + $0xe60] sm:$0xff]
    %v3058 = vld [vmem:[#allocation10 + $0xe68] sm:$0xff]
    %v3059 = vld [vmem:[#allocation10 + $0xe70] sm:$0xff]
    %v3060 = vld [vmem:[#allocation10 + $0xe78] sm:$0xff]
    %v3061 = vld [vmem:[#allocation10 + $0xe80] sm:$0xff]
    %v3062 = vld [vmem:[#allocation10 + $0xe88] sm:$0xff]
    %v3063 = vld [vmem:[#allocation10 + $0xe90] sm:$0xff]
    %v3064 = vld [vmem:[#allocation10 + $0xe98] sm:$0xff]
    %v3065 = vld [vmem:[#allocation10 + $0xea0] sm:$0xff]
    %v3066 = vld [vmem:[#allocation10 + $0xea8] sm:$0xff]
    %v3067 = vld [vmem:[#allocation10 + $0xeb0] sm:$0xff]
    %v3068 = vld [vmem:[#allocation10 + $0xeb8] sm:$0xff]
    %v3069 = vld [vmem:[#allocation10 + $0xec0] sm:$0xff]
    %v3070 = vld [vmem:[#allocation10 + $0xec8] sm:$0xff]
    %v3071 = vld [vmem:[#allocation10 + $0xed0] sm:$0xff]
    %v3072 = vld [vmem:[#allocation10 + $0xed8] sm:$0xff]
    %v3073 = vld [vmem:[#allocation10 + $0xee0] sm:$0xff]
    %v3074 = vld [vmem:[#allocation10 + $0xee8] sm:$0xff]
    %v3075 = vld [vmem:[#allocation10 + $0xef0] sm:$0xff]
    %v3076 = vld [vmem:[#allocation10 + $0xef8] sm:$0xff]
    %v3077 = vld [vmem:[#allocation10 + $0xf00] sm:$0xff]
    %v3078 = vld [vmem:[#allocation10 + $0xf08] sm:$0xff]
    %v3079 = vld [vmem:[#allocation10 + $0xf10] sm:$0xff]
    %v3080 = vld [vmem:[#allocation10 + $0xf18] sm:$0xff]
    %v3081 = vld [vmem:[#allocation10 + $0xf20] sm:$0xff]
    %v3082 = vld [vmem:[#allocation10 + $0xf28] sm:$0xff]
    %v3083 = vld [vmem:[#allocation10 + $0xf30] sm:$0xff]
    %v3084 = vld [vmem:[#allocation10 + $0xf38] sm:$0xff]
    %v3085 = vld [vmem:[#allocation10 + $0xf40] sm:$0xff]
    %v3086 = vld [vmem:[#allocation10 + $0xf48] sm:$0xff]
    %v3087 = vld [vmem:[#allocation10 + $0xf50] sm:$0xff]
    %v3088 = vld [vmem:[#allocation10 + $0xf58] sm:$0xff]
    %v3089 = vld [vmem:[#allocation10 + $0xf60] sm:$0xff]
    %v3090 = vld [vmem:[#allocation10 + $0xf68] sm:$0xff]
    %v3091 = vld [vmem:[#allocation10 + $0xf70] sm:$0xff]
    %v3092 = vld [vmem:[#allocation10 + $0xf78] sm:$0xff]
    %v3093 = vld [vmem:[#allocation10 + $0xf80] sm:$0xff]
    %v3094 = vld [vmem:[#allocation10 + $0xf88] sm:$0xff]
    %v3095 = vld [vmem:[#allocation10 + $0xf90] sm:$0xff]
    %v3096 = vld [vmem:[#allocation10 + $0xf98] sm:$0xff]
    %v3097 = vld [vmem:[#allocation10 + $0xfa0] sm:$0xff]
    %v3098 = vld [vmem:[#allocation10 + $0xfa8] sm:$0xff]
    %v3099 = vld [vmem:[#allocation10 + $0xfb0] sm:$0xff]
    %v3100 = vld [vmem:[#allocation10 + $0xfb8] sm:$0xff]
    %v3101 = vld [vmem:[#allocation10 + $0xfc0] sm:$0xff]
    %v3102 = vld [vmem:[#allocation10 + $0xfc8] sm:$0xff]
    %v3103 = vld [vmem:[#allocation10 + $0xfd0] sm:$0xff]
    %v3104 = vld [vmem:[#allocation10 + $0xfd8] sm:$0xff]
    %v3105 = vld [vmem:[#allocation10 + $0xfe0] sm:$0xff]
    %v3106 = vld [vmem:[#allocation10 + $0xfe8] sm:$0xff]
    %v3107 = vld [vmem:[#allocation10 + $0xff0] sm:$0xff]
    %v3108 = vld [vmem:[#allocation10 + $0xff8] sm:$0xff]
    %v3109 = vld [vmem:[#allocation11] sm:$0xff]
    %v3111 = vlaneseq
    %v3112 = vshrl.u32 %v3111, 7
    %v3113 = vsub.s32 0, %v3112
    %v3114 = vrot.slane %v3109, %v3113
    %v3115 = vlaneseq
    %v3116 = vshrl.u32 %v3115, 7
    %v3117 = vsub.s32 1, %v3116
    %v3118 = vrot.slane %v3109, %v3117
    %v3119 = vlaneseq
    %v3120 = vshrl.u32 %v3119, 7
    %v3121 = vsub.s32 2, %v3120
    %v3122 = vrot.slane %v3109, %v3121
    %v3123 = vlaneseq
    %v3124 = vshrl.u32 %v3123, 7
    %v3125 = vsub.s32 3, %v3124
    %v3126 = vrot.slane %v3109, %v3125
    %v3127 = vlaneseq
    %v3128 = vshrl.u32 %v3127, 7
    %v3129 = vsub.s32 4, %v3128
    %v3130 = vrot.slane %v3109, %v3129
    %v3131 = vlaneseq
    %v3132 = vshrl.u32 %v3131, 7
    %v3133 = vsub.s32 5, %v3132
    %v3134 = vrot.slane %v3109, %v3133
    %v3135 = vlaneseq
    %v3136 = vshrl.u32 %v3135, 7
    %v3137 = vsub.s32 6, %v3136
    %v3138 = vrot.slane %v3109, %v3137
    %v3139 = vlaneseq
    %v3140 = vshrl.u32 %v3139, 7
    %v3141 = vsub.s32 7, %v3140
    %v3142 = vrot.slane %v3109, %v3141
    %v3663 = vunpack.c.l.b16 %v2597
    %v3664 = vunpack.c.h.b16 %v2597
    %v3665 = vunpack.c.l.b16 %v2598
    %v3666 = vunpack.c.h.b16 %v2598
    %v3667 = vunpack.c.l.b16 %v2599
    %v3668 = vunpack.c.h.b16 %v2599
    %v3669 = vunpack.c.l.b16 %v2600
    %v3670 = vunpack.c.h.b16 %v2600
    %v3671 = vunpack.c.l.b16 %v2601
    %v3672 = vunpack.c.h.b16 %v2601
    %v3673 = vunpack.c.l.b16 %v2602
    %v3674 = vunpack.c.h.b16 %v2602
    %v3675 = vunpack.c.l.b16 %v2603
    %v3676 = vunpack.c.h.b16 %v2603
    %v3677 = vunpack.c.l.b16 %v2604
    %v3678 = vunpack.c.h.b16 %v2604
    %v3679 = vunpack.c.l.b16 %v2605
    %v3680 = vunpack.c.h.b16 %v2605
    %v3681 = vunpack.c.l.b16 %v2606
    %v3682 = vunpack.c.h.b16 %v2606
    %v3683 = vunpack.c.l.b16 %v2607
    %v3684 = vunpack.c.h.b16 %v2607
    %v3685 = vunpack.c.l.b16 %v2608
    %v3686 = vunpack.c.h.b16 %v2608
    %v3687 = vunpack.c.l.b16 %v2609
    %v3688 = vunpack.c.h.b16 %v2609
    %v3689 = vunpack.c.l.b16 %v2610
    %v3690 = vunpack.c.h.b16 %v2610
    %v3691 = vunpack.c.l.b16 %v2611
    %v3692 = vunpack.c.h.b16 %v2611
    %v3693 = vunpack.c.l.b16 %v2612
    %v3694 = vunpack.c.h.b16 %v2612
    %v3695 = vunpack.c.l.b16 %v2613
    %v3696 = vunpack.c.h.b16 %v2613
    %v3697 = vunpack.c.l.b16 %v2614
    %v3698 = vunpack.c.h.b16 %v2614
    %v3699 = vunpack.c.l.b16 %v2615
    %v3700 = vunpack.c.h.b16 %v2615
    %v3701 = vunpack.c.l.b16 %v2616
    %v3702 = vunpack.c.h.b16 %v2616
    %v3703 = vunpack.c.l.b16 %v2617
    %v3704 = vunpack.c.h.b16 %v2617
    %v3705 = vunpack.c.l.b16 %v2618
    %v3706 = vunpack.c.h.b16 %v2618
    %v3707 = vunpack.c.l.b16 %v2619
    %v3708 = vunpack.c.h.b16 %v2619
    %v3709 = vunpack.c.l.b16 %v2620
    %v3710 = vunpack.c.h.b16 %v2620
    %v3711 = vunpack.c.l.b16 %v2621
    %v3712 = vunpack.c.h.b16 %v2621
    %v3713 = vunpack.c.l.b16 %v2622
    %v3714 = vunpack.c.h.b16 %v2622
    %v3715 = vunpack.c.l.b16 %v2623
    %v3716 = vunpack.c.h.b16 %v2623
    %v3717 = vunpack.c.l.b16 %v2624
    %v3718 = vunpack.c.h.b16 %v2624
    %v3719 = vunpack.c.l.b16 %v2625
    %v3720 = vunpack.c.h.b16 %v2625
    %v3721 = vunpack.c.l.b16 %v2626
    %v3722 = vunpack.c.h.b16 %v2626
    %v3723 = vunpack.c.l.b16 %v2627
    %v3724 = vunpack.c.h.b16 %v2627
    %v3725 = vunpack.c.l.b16 %v2628
    %v3726 = vunpack.c.h.b16 %v2628
    %v3727 = vunpack.c.l.b16 %v2629
    %v3728 = vunpack.c.h.b16 %v2629
    %v3729 = vunpack.c.l.b16 %v2630
    %v3730 = vunpack.c.h.b16 %v2630
    %v3731 = vunpack.c.l.b16 %v2631
    %v3732 = vunpack.c.h.b16 %v2631
    %v3733 = vunpack.c.l.b16 %v2632
    %v3734 = vunpack.c.h.b16 %v2632
    %v3735 = vunpack.c.l.b16 %v2633
    %v3736 = vunpack.c.h.b16 %v2633
    %v3737 = vunpack.c.l.b16 %v2634
    %v3738 = vunpack.c.h.b16 %v2634
    %v3739 = vunpack.c.l.b16 %v2635
    %v3740 = vunpack.c.h.b16 %v2635
    %v3741 = vunpack.c.l.b16 %v2636
    %v3742 = vunpack.c.h.b16 %v2636
    %v3743 = vunpack.c.l.b16 %v2637
    %v3744 = vunpack.c.h.b16 %v2637
    %v3745 = vunpack.c.l.b16 %v2638
    %v3746 = vunpack.c.h.b16 %v2638
    %v3747 = vunpack.c.l.b16 %v2639
    %v3748 = vunpack.c.h.b16 %v2639
    %v3749 = vunpack.c.l.b16 %v2640
    %v3750 = vunpack.c.h.b16 %v2640
    %v3751 = vunpack.c.l.b16 %v2641
    %v3752 = vunpack.c.h.b16 %v2641
    %v3753 = vunpack.c.l.b16 %v2642
    %v3754 = vunpack.c.h.b16 %v2642
    %v3755 = vunpack.c.l.b16 %v2643
    %v3756 = vunpack.c.h.b16 %v2643
    %v3757 = vunpack.c.l.b16 %v2644
    %v3758 = vunpack.c.h.b16 %v2644
    %v3759 = vunpack.c.l.b16 %v2645
    %v3760 = vunpack.c.h.b16 %v2645
    %v3761 = vunpack.c.l.b16 %v2646
    %v3762 = vunpack.c.h.b16 %v2646
    %v3763 = vunpack.c.l.b16 %v2647
    %v3764 = vunpack.c.h.b16 %v2647
    %v3765 = vunpack.c.l.b16 %v2648
    %v3766 = vunpack.c.h.b16 %v2648
    %v3767 = vunpack.c.l.b16 %v2649
    %v3768 = vunpack.c.h.b16 %v2649
    %v3769 = vunpack.c.l.b16 %v2650
    %v3770 = vunpack.c.h.b16 %v2650
    %v3771 = vunpack.c.l.b16 %v2651
    %v3772 = vunpack.c.h.b16 %v2651
    %v3773 = vunpack.c.l.b16 %v2652
    %v3774 = vunpack.c.h.b16 %v2652
    %v3775 = vunpack.c.l.b16 %v2653
    %v3776 = vunpack.c.h.b16 %v2653
    %v3777 = vunpack.c.l.b16 %v2654
    %v3778 = vunpack.c.h.b16 %v2654
    %v3779 = vunpack.c.l.b16 %v2655
    %v3780 = vunpack.c.h.b16 %v2655
    %v3781 = vunpack.c.l.b16 %v2656
    %v3782 = vunpack.c.h.b16 %v2656
    %v3783 = vunpack.c.l.b16 %v2657
    %v3784 = vunpack.c.h.b16 %v2657
    %v3785 = vunpack.c.l.b16 %v2658
    %v3786 = vunpack.c.h.b16 %v2658
    %v3787 = vunpack.c.l.b16 %v2659
    %v3788 = vunpack.c.h.b16 %v2659
    %v3789 = vunpack.c.l.b16 %v2660
    %v3790 = vunpack.c.h.b16 %v2660
    %v3791 = vunpack.c.l.b16 %v2661
    %v3792 = vunpack.c.h.b16 %v2661
    %v3793 = vunpack.c.l.b16 %v2662
    %v3794 = vunpack.c.h.b16 %v2662
    %v3795 = vunpack.c.l.b16 %v2663
    %v3796 = vunpack.c.h.b16 %v2663
    %v3797 = vunpack.c.l.b16 %v2664
    %v3798 = vunpack.c.h.b16 %v2664
    %v3799 = vunpack.c.l.b16 %v2665
    %v3800 = vunpack.c.h.b16 %v2665
    %v3801 = vunpack.c.l.b16 %v2666
    %v3802 = vunpack.c.h.b16 %v2666
    %v3803 = vunpack.c.l.b16 %v2667
    %v3804 = vunpack.c.h.b16 %v2667
    %v3805 = vunpack.c.l.b16 %v2668
    %v3806 = vunpack.c.h.b16 %v2668
    %v3807 = vunpack.c.l.b16 %v2669
    %v3808 = vunpack.c.h.b16 %v2669
    %v3809 = vunpack.c.l.b16 %v2670
    %v3810 = vunpack.c.h.b16 %v2670
    %v3811 = vunpack.c.l.b16 %v2671
    %v3812 = vunpack.c.h.b16 %v2671
    %v3813 = vunpack.c.l.b16 %v2672
    %v3814 = vunpack.c.h.b16 %v2672
    %v3815 = vunpack.c.l.b16 %v2673
    %v3816 = vunpack.c.h.b16 %v2673
    %v3817 = vunpack.c.l.b16 %v2674
    %v3818 = vunpack.c.h.b16 %v2674
    %v3819 = vunpack.c.l.b16 %v2675
    %v3820 = vunpack.c.h.b16 %v2675
    %v3821 = vunpack.c.l.b16 %v2676
    %v3822 = vunpack.c.h.b16 %v2676
    %v3823 = vunpack.c.l.b16 %v2677
    %v3824 = vunpack.c.h.b16 %v2677
    %v3825 = vunpack.c.l.b16 %v2678
    %v3826 = vunpack.c.h.b16 %v2678
    %v3827 = vunpack.c.l.b16 %v2679
    %v3828 = vunpack.c.h.b16 %v2679
    %v3829 = vunpack.c.l.b16 %v2680
    %v3830 = vunpack.c.h.b16 %v2680
    %v3831 = vunpack.c.l.b16 %v2681
    %v3832 = vunpack.c.h.b16 %v2681
    %v3833 = vunpack.c.l.b16 %v2682
    %v3834 = vunpack.c.h.b16 %v2682
    %v3835 = vunpack.c.l.b16 %v2683
    %v3836 = vunpack.c.h.b16 %v2683
    %v3837 = vunpack.c.l.b16 %v2684
    %v3838 = vunpack.c.h.b16 %v2684
    %v3839 = vunpack.c.l.b16 %v2685
    %v3840 = vunpack.c.h.b16 %v2685
    %v3841 = vunpack.c.l.b16 %v2686
    %v3842 = vunpack.c.h.b16 %v2686
    %v3843 = vunpack.c.l.b16 %v2687
    %v3844 = vunpack.c.h.b16 %v2687
    %v3845 = vunpack.c.l.b16 %v2688
    %v3846 = vunpack.c.h.b16 %v2688
    %v3847 = vunpack.c.l.b16 %v2689
    %v3848 = vunpack.c.h.b16 %v2689
    %v3849 = vunpack.c.l.b16 %v2690
    %v3850 = vunpack.c.h.b16 %v2690
    %v3851 = vunpack.c.l.b16 %v2691
    %v3852 = vunpack.c.h.b16 %v2691
    %v3853 = vunpack.c.l.b16 %v2692
    %v3854 = vunpack.c.h.b16 %v2692
    %v3855 = vunpack.c.l.b16 %v2693
    %v3856 = vunpack.c.h.b16 %v2693
    %v3857 = vunpack.c.l.b16 %v2694
    %v3858 = vunpack.c.h.b16 %v2694
    %v3859 = vunpack.c.l.b16 %v2695
    %v3860 = vunpack.c.h.b16 %v2695
    %v3861 = vunpack.c.l.b16 %v2696
    %v3862 = vunpack.c.h.b16 %v2696
    %v3863 = vunpack.c.l.b16 %v2697
    %v3864 = vunpack.c.h.b16 %v2697
    %v3865 = vunpack.c.l.b16 %v2698
    %v3866 = vunpack.c.h.b16 %v2698
    %v3867 = vunpack.c.l.b16 %v2699
    %v3868 = vunpack.c.h.b16 %v2699
    %v3869 = vunpack.c.l.b16 %v2700
    %v3870 = vunpack.c.h.b16 %v2700
    %v3871 = vunpack.c.l.b16 %v2701
    %v3872 = vunpack.c.h.b16 %v2701
    %v3873 = vunpack.c.l.b16 %v2702
    %v3874 = vunpack.c.h.b16 %v2702
    %v3875 = vunpack.c.l.b16 %v2703
    %v3876 = vunpack.c.h.b16 %v2703
    %v3877 = vunpack.c.l.b16 %v2704
    %v3878 = vunpack.c.h.b16 %v2704
    %v3879 = vunpack.c.l.b16 %v2705
    %v3880 = vunpack.c.h.b16 %v2705
    %v3881 = vunpack.c.l.b16 %v2706
    %v3882 = vunpack.c.h.b16 %v2706
    %v3883 = vunpack.c.l.b16 %v2707
    %v3884 = vunpack.c.h.b16 %v2707
    %v3885 = vunpack.c.l.b16 %v2708
    %v3886 = vunpack.c.h.b16 %v2708
    %v3887 = vunpack.c.l.b16 %v2709
    %v3888 = vunpack.c.h.b16 %v2709
    %v3889 = vunpack.c.l.b16 %v2710
    %v3890 = vunpack.c.h.b16 %v2710
    %v3891 = vunpack.c.l.b16 %v2711
    %v3892 = vunpack.c.h.b16 %v2711
    %v3893 = vunpack.c.l.b16 %v2712
    %v3894 = vunpack.c.h.b16 %v2712
    %v3895 = vunpack.c.l.b16 %v2713
    %v3896 = vunpack.c.h.b16 %v2713
    %v3897 = vunpack.c.l.b16 %v2714
    %v3898 = vunpack.c.h.b16 %v2714
    %v3899 = vunpack.c.l.b16 %v2715
    %v3900 = vunpack.c.h.b16 %v2715
    %v3901 = vunpack.c.l.b16 %v2716
    %v3902 = vunpack.c.h.b16 %v2716
    %v3903 = vunpack.c.l.b16 %v2717
    %v3904 = vunpack.c.h.b16 %v2717
    %v3905 = vunpack.c.l.b16 %v2718
    %v3906 = vunpack.c.h.b16 %v2718
    %v3907 = vunpack.c.l.b16 %v2719
    %v3908 = vunpack.c.h.b16 %v2719
    %v3909 = vunpack.c.l.b16 %v2720
    %v3910 = vunpack.c.h.b16 %v2720
    %v3911 = vunpack.c.l.b16 %v2721
    %v3912 = vunpack.c.h.b16 %v2721
    %v3913 = vunpack.c.l.b16 %v2722
    %v3914 = vunpack.c.h.b16 %v2722
    %v3915 = vunpack.c.l.b16 %v2723
    %v3916 = vunpack.c.h.b16 %v2723
    %v3917 = vunpack.c.l.b16 %v2724
    %v3918 = vunpack.c.h.b16 %v2724
    %v3919 = vunpack.c.l.b16 %v2725
    %v3920 = vunpack.c.h.b16 %v2725
    %v3921 = vunpack.c.l.b16 %v2726
    %v3922 = vunpack.c.h.b16 %v2726
    %v3923 = vunpack.c.l.b16 %v2727
    %v3924 = vunpack.c.h.b16 %v2727
    %v3925 = vunpack.c.l.b16 %v2728
    %v3926 = vunpack.c.h.b16 %v2728
    %v3927 = vunpack.c.l.b16 %v2729
    %v3928 = vunpack.c.h.b16 %v2729
    %v3929 = vunpack.c.l.b16 %v2730
    %v3930 = vunpack.c.h.b16 %v2730
    %v3931 = vunpack.c.l.b16 %v2731
    %v3932 = vunpack.c.h.b16 %v2731
    %v3933 = vunpack.c.l.b16 %v2732
    %v3934 = vunpack.c.h.b16 %v2732
    %v3935 = vunpack.c.l.b16 %v2733
    %v3936 = vunpack.c.h.b16 %v2733
    %v3937 = vunpack.c.l.b16 %v2734
    %v3938 = vunpack.c.h.b16 %v2734
    %v3939 = vunpack.c.l.b16 %v2735
    %v3940 = vunpack.c.h.b16 %v2735
    %v3941 = vunpack.c.l.b16 %v2736
    %v3942 = vunpack.c.h.b16 %v2736
    %v3943 = vunpack.c.l.b16 %v2737
    %v3944 = vunpack.c.h.b16 %v2737
    %v3945 = vunpack.c.l.b16 %v2738
    %v3946 = vunpack.c.h.b16 %v2738
    %v3947 = vunpack.c.l.b16 %v2739
    %v3948 = vunpack.c.h.b16 %v2739
    %v3949 = vunpack.c.l.b16 %v2740
    %v3950 = vunpack.c.h.b16 %v2740
    %v3951 = vunpack.c.l.b16 %v2741
    %v3952 = vunpack.c.h.b16 %v2741
    %v3953 = vunpack.c.l.b16 %v2742
    %v3954 = vunpack.c.h.b16 %v2742
    %v3955 = vunpack.c.l.b16 %v2743
    %v3956 = vunpack.c.h.b16 %v2743
    %v3957 = vunpack.c.l.b16 %v2744
    %v3958 = vunpack.c.h.b16 %v2744
    %v3959 = vunpack.c.l.b16 %v2745
    %v3960 = vunpack.c.h.b16 %v2745
    %v3961 = vunpack.c.l.b16 %v2746
    %v3962 = vunpack.c.h.b16 %v2746
    %v3963 = vunpack.c.l.b16 %v2747
    %v3964 = vunpack.c.h.b16 %v2747
    %v3965 = vunpack.c.l.b16 %v2748
    %v3966 = vunpack.c.h.b16 %v2748
    %v3967 = vunpack.c.l.b16 %v2749
    %v3968 = vunpack.c.h.b16 %v2749
    %v3969 = vunpack.c.l.b16 %v2750
    %v3970 = vunpack.c.h.b16 %v2750
    %v3971 = vunpack.c.l.b16 %v2751
    %v3972 = vunpack.c.h.b16 %v2751
    %v3973 = vunpack.c.l.b16 %v2752
    %v3974 = vunpack.c.h.b16 %v2752
    %v3975 = vunpack.c.l.b16 %v2753
    %v3976 = vunpack.c.h.b16 %v2753
    %v3977 = vunpack.c.l.b16 %v2754
    %v3978 = vunpack.c.h.b16 %v2754
    %v3979 = vunpack.c.l.b16 %v2755
    %v3980 = vunpack.c.h.b16 %v2755
    %v3981 = vunpack.c.l.b16 %v2756
    %v3982 = vunpack.c.h.b16 %v2756
    %v3983 = vunpack.c.l.b16 %v2757
    %v3984 = vunpack.c.h.b16 %v2757
    %v3985 = vunpack.c.l.b16 %v2758
    %v3986 = vunpack.c.h.b16 %v2758
    %v3987 = vunpack.c.l.b16 %v2759
    %v3988 = vunpack.c.h.b16 %v2759
    %v3989 = vunpack.c.l.b16 %v2760
    %v3990 = vunpack.c.h.b16 %v2760
    %v3991 = vunpack.c.l.b16 %v2761
    %v3992 = vunpack.c.h.b16 %v2761
    %v3993 = vunpack.c.l.b16 %v2762
    %v3994 = vunpack.c.h.b16 %v2762
    %v3995 = vunpack.c.l.b16 %v2763
    %v3996 = vunpack.c.h.b16 %v2763
    %v3997 = vunpack.c.l.b16 %v2764
    %v3998 = vunpack.c.h.b16 %v2764
    %v3999 = vunpack.c.l.b16 %v2765
    %v4000 = vunpack.c.h.b16 %v2765
    %v4001 = vunpack.c.l.b16 %v2766
    %v4002 = vunpack.c.h.b16 %v2766
    %v4003 = vunpack.c.l.b16 %v2767
    %v4004 = vunpack.c.h.b16 %v2767
    %v4005 = vunpack.c.l.b16 %v2768
    %v4006 = vunpack.c.h.b16 %v2768
    %v4007 = vunpack.c.l.b16 %v2769
    %v4008 = vunpack.c.h.b16 %v2769
    %v4009 = vunpack.c.l.b16 %v2770
    %v4010 = vunpack.c.h.b16 %v2770
    %v4011 = vunpack.c.l.b16 %v2771
    %v4012 = vunpack.c.h.b16 %v2771
    %v4013 = vunpack.c.l.b16 %v2772
    %v4014 = vunpack.c.h.b16 %v2772
    %v4015 = vunpack.c.l.b16 %v2773
    %v4016 = vunpack.c.h.b16 %v2773
    %v4017 = vunpack.c.l.b16 %v2774
    %v4018 = vunpack.c.h.b16 %v2774
    %v4019 = vunpack.c.l.b16 %v2775
    %v4020 = vunpack.c.h.b16 %v2775
    %v4021 = vunpack.c.l.b16 %v2776
    %v4022 = vunpack.c.h.b16 %v2776
    %v4023 = vunpack.c.l.b16 %v2777
    %v4024 = vunpack.c.h.b16 %v2777
    %v4025 = vunpack.c.l.b16 %v2778
    %v4026 = vunpack.c.h.b16 %v2778
    %v4027 = vunpack.c.l.b16 %v2779
    %v4028 = vunpack.c.h.b16 %v2779
    %v4029 = vunpack.c.l.b16 %v2780
    %v4030 = vunpack.c.h.b16 %v2780
    %v4031 = vunpack.c.l.b16 %v2781
    %v4032 = vunpack.c.h.b16 %v2781
    %v4033 = vunpack.c.l.b16 %v2782
    %v4034 = vunpack.c.h.b16 %v2782
    %v4035 = vunpack.c.l.b16 %v2783
    %v4036 = vunpack.c.h.b16 %v2783
    %v4037 = vunpack.c.l.b16 %v2784
    %v4038 = vunpack.c.h.b16 %v2784
    %v4039 = vunpack.c.l.b16 %v2785
    %v4040 = vunpack.c.h.b16 %v2785
    %v4041 = vunpack.c.l.b16 %v2786
    %v4042 = vunpack.c.h.b16 %v2786
    %v4043 = vunpack.c.l.b16 %v2787
    %v4044 = vunpack.c.h.b16 %v2787
    %v4045 = vunpack.c.l.b16 %v2788
    %v4046 = vunpack.c.h.b16 %v2788
    %v4047 = vunpack.c.l.b16 %v2789
    %v4048 = vunpack.c.h.b16 %v2789
    %v4049 = vunpack.c.l.b16 %v2790
    %v4050 = vunpack.c.h.b16 %v2790
    %v4051 = vunpack.c.l.b16 %v2791
    %v4052 = vunpack.c.h.b16 %v2791
    %v4053 = vunpack.c.l.b16 %v2792
    %v4054 = vunpack.c.h.b16 %v2792
    %v4055 = vunpack.c.l.b16 %v2793
    %v4056 = vunpack.c.h.b16 %v2793
    %v4057 = vunpack.c.l.b16 %v2794
    %v4058 = vunpack.c.h.b16 %v2794
    %v4059 = vunpack.c.l.b16 %v2795
    %v4060 = vunpack.c.h.b16 %v2795
    %v4061 = vunpack.c.l.b16 %v2796
    %v4062 = vunpack.c.h.b16 %v2796
    %v4063 = vunpack.c.l.b16 %v2797
    %v4064 = vunpack.c.h.b16 %v2797
    %v4065 = vunpack.c.l.b16 %v2798
    %v4066 = vunpack.c.h.b16 %v2798
    %v4067 = vunpack.c.l.b16 %v2799
    %v4068 = vunpack.c.h.b16 %v2799
    %v4069 = vunpack.c.l.b16 %v2800
    %v4070 = vunpack.c.h.b16 %v2800
    %v4071 = vunpack.c.l.b16 %v2801
    %v4072 = vunpack.c.h.b16 %v2801
    %v4073 = vunpack.c.l.b16 %v2802
    %v4074 = vunpack.c.h.b16 %v2802
    %v4075 = vunpack.c.l.b16 %v2803
    %v4076 = vunpack.c.h.b16 %v2803
    %v4077 = vunpack.c.l.b16 %v2804
    %v4078 = vunpack.c.h.b16 %v2804
    %v4079 = vunpack.c.l.b16 %v2805
    %v4080 = vunpack.c.h.b16 %v2805
    %v4081 = vunpack.c.l.b16 %v2806
    %v4082 = vunpack.c.h.b16 %v2806
    %v4083 = vunpack.c.l.b16 %v2807
    %v4084 = vunpack.c.h.b16 %v2807
    %v4085 = vunpack.c.l.b16 %v2808
    %v4086 = vunpack.c.h.b16 %v2808
    %v4087 = vunpack.c.l.b16 %v2809
    %v4088 = vunpack.c.h.b16 %v2809
    %v4089 = vunpack.c.l.b16 %v2810
    %v4090 = vunpack.c.h.b16 %v2810
    %v4091 = vunpack.c.l.b16 %v2811
    %v4092 = vunpack.c.h.b16 %v2811
    %v4093 = vunpack.c.l.b16 %v2812
    %v4094 = vunpack.c.h.b16 %v2812
    %v4095 = vunpack.c.l.b16 %v2813
    %v4096 = vunpack.c.h.b16 %v2813
    %v4097 = vunpack.c.l.b16 %v2814
    %v4098 = vunpack.c.h.b16 %v2814
    %v4099 = vunpack.c.l.b16 %v2815
    %v4100 = vunpack.c.h.b16 %v2815
    %v4101 = vunpack.c.l.b16 %v2816
    %v4102 = vunpack.c.h.b16 %v2816
    %v4103 = vunpack.c.l.b16 %v2817
    %v4104 = vunpack.c.h.b16 %v2817
    %v4105 = vunpack.c.l.b16 %v2818
    %v4106 = vunpack.c.h.b16 %v2818
    %v4107 = vunpack.c.l.b16 %v2819
    %v4108 = vunpack.c.h.b16 %v2819
    %v4109 = vunpack.c.l.b16 %v2820
    %v4110 = vunpack.c.h.b16 %v2820
    %v4111 = vunpack.c.l.b16 %v2821
    %v4112 = vunpack.c.h.b16 %v2821
    %v4113 = vunpack.c.l.b16 %v2822
    %v4114 = vunpack.c.h.b16 %v2822
    %v4115 = vunpack.c.l.b16 %v2823
    %v4116 = vunpack.c.h.b16 %v2823
    %v4117 = vunpack.c.l.b16 %v2824
    %v4118 = vunpack.c.h.b16 %v2824
    %v4119 = vunpack.c.l.b16 %v2825
    %v4120 = vunpack.c.h.b16 %v2825
    %v4121 = vunpack.c.l.b16 %v2826
    %v4122 = vunpack.c.h.b16 %v2826
    %v4123 = vunpack.c.l.b16 %v2827
    %v4124 = vunpack.c.h.b16 %v2827
    %v4125 = vunpack.c.l.b16 %v2828
    %v4126 = vunpack.c.h.b16 %v2828
    %v4127 = vunpack.c.l.b16 %v2829
    %v4128 = vunpack.c.h.b16 %v2829
    %v4129 = vunpack.c.l.b16 %v2830
    %v4130 = vunpack.c.h.b16 %v2830
    %v4131 = vunpack.c.l.b16 %v2831
    %v4132 = vunpack.c.h.b16 %v2831
    %v4133 = vunpack.c.l.b16 %v2832
    %v4134 = vunpack.c.h.b16 %v2832
    %v4135 = vunpack.c.l.b16 %v2833
    %v4136 = vunpack.c.h.b16 %v2833
    %v4137 = vunpack.c.l.b16 %v2834
    %v4138 = vunpack.c.h.b16 %v2834
    %v4139 = vunpack.c.l.b16 %v2835
    %v4140 = vunpack.c.h.b16 %v2835
    %v4141 = vunpack.c.l.b16 %v2836
    %v4142 = vunpack.c.h.b16 %v2836
    %v4143 = vunpack.c.l.b16 %v2837
    %v4144 = vunpack.c.h.b16 %v2837
    %v4145 = vunpack.c.l.b16 %v2838
    %v4146 = vunpack.c.h.b16 %v2838
    %v4147 = vunpack.c.l.b16 %v2839
    %v4148 = vunpack.c.h.b16 %v2839
    %v4149 = vunpack.c.l.b16 %v2840
    %v4150 = vunpack.c.h.b16 %v2840
    %v4151 = vunpack.c.l.b16 %v2841
    %v4152 = vunpack.c.h.b16 %v2841
    %v4153 = vunpack.c.l.b16 %v2842
    %v4154 = vunpack.c.h.b16 %v2842
    %v4155 = vunpack.c.l.b16 %v2843
    %v4156 = vunpack.c.h.b16 %v2843
    %v4157 = vunpack.c.l.b16 %v2844
    %v4158 = vunpack.c.h.b16 %v2844
    %v4159 = vunpack.c.l.b16 %v2845
    %v4160 = vunpack.c.h.b16 %v2845
    %v4161 = vunpack.c.l.b16 %v2846
    %v4162 = vunpack.c.h.b16 %v2846
    %v4163 = vunpack.c.l.b16 %v2847
    %v4164 = vunpack.c.h.b16 %v2847
    %v4165 = vunpack.c.l.b16 %v2848
    %v4166 = vunpack.c.h.b16 %v2848
    %v4167 = vunpack.c.l.b16 %v2849
    %v4168 = vunpack.c.h.b16 %v2849
    %v4169 = vunpack.c.l.b16 %v2850
    %v4170 = vunpack.c.h.b16 %v2850
    %v4171 = vunpack.c.l.b16 %v2851
    %v4172 = vunpack.c.h.b16 %v2851
    %v4173 = vunpack.c.l.b16 %v2852
    %v4174 = vunpack.c.h.b16 %v2852
    %v4175 = vunpack.c.l.b16 %v2853
    %v4176 = vunpack.c.h.b16 %v2853
    %v4177 = vunpack.c.l.b16 %v2854
    %v4178 = vunpack.c.h.b16 %v2854
    %v4179 = vunpack.c.l.b16 %v2855
    %v4180 = vunpack.c.h.b16 %v2855
    %v4181 = vunpack.c.l.b16 %v2856
    %v4182 = vunpack.c.h.b16 %v2856
    %v4183 = vunpack.c.l.b16 %v2857
    %v4184 = vunpack.c.h.b16 %v2857
    %v4185 = vunpack.c.l.b16 %v2858
    %v4186 = vunpack.c.h.b16 %v2858
    %v4187 = vunpack.c.l.b16 %v2859
    %v4188 = vunpack.c.h.b16 %v2859
    %v4189 = vunpack.c.l.b16 %v2860
    %v4190 = vunpack.c.h.b16 %v2860
    %v4191 = vunpack.c.l.b16 %v2861
    %v4192 = vunpack.c.h.b16 %v2861
    %v4193 = vunpack.c.l.b16 %v2862
    %v4194 = vunpack.c.h.b16 %v2862
    %v4195 = vunpack.c.l.b16 %v2863
    %v4196 = vunpack.c.h.b16 %v2863
    %v4197 = vunpack.c.l.b16 %v2864
    %v4198 = vunpack.c.h.b16 %v2864
    %v4199 = vunpack.c.l.b16 %v2865
    %v4200 = vunpack.c.h.b16 %v2865
    %v4201 = vunpack.c.l.b16 %v2866
    %v4202 = vunpack.c.h.b16 %v2866
    %v4203 = vunpack.c.l.b16 %v2867
    %v4204 = vunpack.c.h.b16 %v2867
    %v4205 = vunpack.c.l.b16 %v2868
    %v4206 = vunpack.c.h.b16 %v2868
    %v4207 = vunpack.c.l.b16 %v2869
    %v4208 = vunpack.c.h.b16 %v2869
    %v4209 = vunpack.c.l.b16 %v2870
    %v4210 = vunpack.c.h.b16 %v2870
    %v4211 = vunpack.c.l.b16 %v2871
    %v4212 = vunpack.c.h.b16 %v2871
    %v4213 = vunpack.c.l.b16 %v2872
    %v4214 = vunpack.c.h.b16 %v2872
    %v4215 = vunpack.c.l.b16 %v2873
    %v4216 = vunpack.c.h.b16 %v2873
    %v4217 = vunpack.c.l.b16 %v2874
    %v4218 = vunpack.c.h.b16 %v2874
    %v4219 = vunpack.c.l.b16 %v2875
    %v4220 = vunpack.c.h.b16 %v2875
    %v4221 = vunpack.c.l.b16 %v2876
    %v4222 = vunpack.c.h.b16 %v2876
    %v4223 = vunpack.c.l.b16 %v2877
    %v4224 = vunpack.c.h.b16 %v2877
    %v4225 = vunpack.c.l.b16 %v2878
    %v4226 = vunpack.c.h.b16 %v2878
    %v4227 = vunpack.c.l.b16 %v2879
    %v4228 = vunpack.c.h.b16 %v2879
    %v4229 = vunpack.c.l.b16 %v2880
    %v4230 = vunpack.c.h.b16 %v2880
    %v4231 = vunpack.c.l.b16 %v2881
    %v4232 = vunpack.c.h.b16 %v2881
    %v4233 = vunpack.c.l.b16 %v2882
    %v4234 = vunpack.c.h.b16 %v2882
    %v4235 = vunpack.c.l.b16 %v2883
    %v4236 = vunpack.c.h.b16 %v2883
    %v4237 = vunpack.c.l.b16 %v2884
    %v4238 = vunpack.c.h.b16 %v2884
    %v4239 = vunpack.c.l.b16 %v2885
    %v4240 = vunpack.c.h.b16 %v2885
    %v4241 = vunpack.c.l.b16 %v2886
    %v4242 = vunpack.c.h.b16 %v2886
    %v4243 = vunpack.c.l.b16 %v2887
    %v4244 = vunpack.c.h.b16 %v2887
    %v4245 = vunpack.c.l.b16 %v2888
    %v4246 = vunpack.c.h.b16 %v2888
    %v4247 = vunpack.c.l.b16 %v2889
    %v4248 = vunpack.c.h.b16 %v2889
    %v4249 = vunpack.c.l.b16 %v2890
    %v4250 = vunpack.c.h.b16 %v2890
    %v4251 = vunpack.c.l.b16 %v2891
    %v4252 = vunpack.c.h.b16 %v2891
    %v4253 = vunpack.c.l.b16 %v2892
    %v4254 = vunpack.c.h.b16 %v2892
    %v4255 = vunpack.c.l.b16 %v2893
    %v4256 = vunpack.c.h.b16 %v2893
    %v4257 = vunpack.c.l.b16 %v2894
    %v4258 = vunpack.c.h.b16 %v2894
    %v4259 = vunpack.c.l.b16 %v2895
    %v4260 = vunpack.c.h.b16 %v2895
    %v4261 = vunpack.c.l.b16 %v2896
    %v4262 = vunpack.c.h.b16 %v2896
    %v4263 = vunpack.c.l.b16 %v2897
    %v4264 = vunpack.c.h.b16 %v2897
    %v4265 = vunpack.c.l.b16 %v2898
    %v4266 = vunpack.c.h.b16 %v2898
    %v4267 = vunpack.c.l.b16 %v2899
    %v4268 = vunpack.c.h.b16 %v2899
    %v4269 = vunpack.c.l.b16 %v2900
    %v4270 = vunpack.c.h.b16 %v2900
    %v4271 = vunpack.c.l.b16 %v2901
    %v4272 = vunpack.c.h.b16 %v2901
    %v4273 = vunpack.c.l.b16 %v2902
    %v4274 = vunpack.c.h.b16 %v2902
    %v4275 = vunpack.c.l.b16 %v2903
    %v4276 = vunpack.c.h.b16 %v2903
    %v4277 = vunpack.c.l.b16 %v2904
    %v4278 = vunpack.c.h.b16 %v2904
    %v4279 = vunpack.c.l.b16 %v2905
    %v4280 = vunpack.c.h.b16 %v2905
    %v4281 = vunpack.c.l.b16 %v2906
    %v4282 = vunpack.c.h.b16 %v2906
    %v4283 = vunpack.c.l.b16 %v2907
    %v4284 = vunpack.c.h.b16 %v2907
    %v4285 = vunpack.c.l.b16 %v2908
    %v4286 = vunpack.c.h.b16 %v2908
    %v4287 = vunpack.c.l.b16 %v2909
    %v4288 = vunpack.c.h.b16 %v2909
    %v4289 = vunpack.c.l.b16 %v2910
    %v4290 = vunpack.c.h.b16 %v2910
    %v4291 = vunpack.c.l.b16 %v2911
    %v4292 = vunpack.c.h.b16 %v2911
    %v4293 = vunpack.c.l.b16 %v2912
    %v4294 = vunpack.c.h.b16 %v2912
    %v4295 = vunpack.c.l.b16 %v2913
    %v4296 = vunpack.c.h.b16 %v2913
    %v4297 = vunpack.c.l.b16 %v2914
    %v4298 = vunpack.c.h.b16 %v2914
    %v4299 = vunpack.c.l.b16 %v2915
    %v4300 = vunpack.c.h.b16 %v2915
    %v4301 = vunpack.c.l.b16 %v2916
    %v4302 = vunpack.c.h.b16 %v2916
    %v4303 = vunpack.c.l.b16 %v2917
    %v4304 = vunpack.c.h.b16 %v2917
    %v4305 = vunpack.c.l.b16 %v2918
    %v4306 = vunpack.c.h.b16 %v2918
    %v4307 = vunpack.c.l.b16 %v2919
    %v4308 = vunpack.c.h.b16 %v2919
    %v4309 = vunpack.c.l.b16 %v2920
    %v4310 = vunpack.c.h.b16 %v2920
    %v4311 = vunpack.c.l.b16 %v2921
    %v4312 = vunpack.c.h.b16 %v2921
    %v4313 = vunpack.c.l.b16 %v2922
    %v4314 = vunpack.c.h.b16 %v2922
    %v4315 = vunpack.c.l.b16 %v2923
    %v4316 = vunpack.c.h.b16 %v2923
    %v4317 = vunpack.c.l.b16 %v2924
    %v4318 = vunpack.c.h.b16 %v2924
    %v4319 = vunpack.c.l.b16 %v2925
    %v4320 = vunpack.c.h.b16 %v2925
    %v4321 = vunpack.c.l.b16 %v2926
    %v4322 = vunpack.c.h.b16 %v2926
    %v4323 = vunpack.c.l.b16 %v2927
    %v4324 = vunpack.c.h.b16 %v2927
    %v4325 = vunpack.c.l.b16 %v2928
    %v4326 = vunpack.c.h.b16 %v2928
    %v4327 = vunpack.c.l.b16 %v2929
    %v4328 = vunpack.c.h.b16 %v2929
    %v4329 = vunpack.c.l.b16 %v2930
    %v4330 = vunpack.c.h.b16 %v2930
    %v4331 = vunpack.c.l.b16 %v2931
    %v4332 = vunpack.c.h.b16 %v2931
    %v4333 = vunpack.c.l.b16 %v2932
    %v4334 = vunpack.c.h.b16 %v2932
    %v4335 = vunpack.c.l.b16 %v2933
    %v4336 = vunpack.c.h.b16 %v2933
    %v4337 = vunpack.c.l.b16 %v2934
    %v4338 = vunpack.c.h.b16 %v2934
    %v4339 = vunpack.c.l.b16 %v2935
    %v4340 = vunpack.c.h.b16 %v2935
    %v4341 = vunpack.c.l.b16 %v2936
    %v4342 = vunpack.c.h.b16 %v2936
    %v4343 = vunpack.c.l.b16 %v2937
    %v4344 = vunpack.c.h.b16 %v2937
    %v4345 = vunpack.c.l.b16 %v2938
    %v4346 = vunpack.c.h.b16 %v2938
    %v4347 = vunpack.c.l.b16 %v2939
    %v4348 = vunpack.c.h.b16 %v2939
    %v4349 = vunpack.c.l.b16 %v2940
    %v4350 = vunpack.c.h.b16 %v2940
    %v4351 = vunpack.c.l.b16 %v2941
    %v4352 = vunpack.c.h.b16 %v2941
    %v4353 = vunpack.c.l.b16 %v2942
    %v4354 = vunpack.c.h.b16 %v2942
    %v4355 = vunpack.c.l.b16 %v2943
    %v4356 = vunpack.c.h.b16 %v2943
    %v4357 = vunpack.c.l.b16 %v2944
    %v4358 = vunpack.c.h.b16 %v2944
    %v4359 = vunpack.c.l.b16 %v2945
    %v4360 = vunpack.c.h.b16 %v2945
    %v4361 = vunpack.c.l.b16 %v2946
    %v4362 = vunpack.c.h.b16 %v2946
    %v4363 = vunpack.c.l.b16 %v2947
    %v4364 = vunpack.c.h.b16 %v2947
    %v4365 = vunpack.c.l.b16 %v2948
    %v4366 = vunpack.c.h.b16 %v2948
    %v4367 = vunpack.c.l.b16 %v2949
    %v4368 = vunpack.c.h.b16 %v2949
    %v4369 = vunpack.c.l.b16 %v2950
    %v4370 = vunpack.c.h.b16 %v2950
    %v4371 = vunpack.c.l.b16 %v2951
    %v4372 = vunpack.c.h.b16 %v2951
    %v4373 = vunpack.c.l.b16 %v2952
    %v4374 = vunpack.c.h.b16 %v2952
    %v4375 = vunpack.c.l.b16 %v2953
    %v4376 = vunpack.c.h.b16 %v2953
    %v4377 = vunpack.c.l.b16 %v2954
    %v4378 = vunpack.c.h.b16 %v2954
    %v4379 = vunpack.c.l.b16 %v2955
    %v4380 = vunpack.c.h.b16 %v2955
    %v4381 = vunpack.c.l.b16 %v2956
    %v4382 = vunpack.c.h.b16 %v2956
    %v4383 = vunpack.c.l.b16 %v2957
    %v4384 = vunpack.c.h.b16 %v2957
    %v4385 = vunpack.c.l.b16 %v2958
    %v4386 = vunpack.c.h.b16 %v2958
    %v4387 = vunpack.c.l.b16 %v2959
    %v4388 = vunpack.c.h.b16 %v2959
    %v4389 = vunpack.c.l.b16 %v2960
    %v4390 = vunpack.c.h.b16 %v2960
    %v4391 = vunpack.c.l.b16 %v2961
    %v4392 = vunpack.c.h.b16 %v2961
    %v4393 = vunpack.c.l.b16 %v2962
    %v4394 = vunpack.c.h.b16 %v2962
    %v4395 = vunpack.c.l.b16 %v2963
    %v4396 = vunpack.c.h.b16 %v2963
    %v4397 = vunpack.c.l.b16 %v2964
    %v4398 = vunpack.c.h.b16 %v2964
    %v4399 = vunpack.c.l.b16 %v2965
    %v4400 = vunpack.c.h.b16 %v2965
    %v4401 = vunpack.c.l.b16 %v2966
    %v4402 = vunpack.c.h.b16 %v2966
    %v4403 = vunpack.c.l.b16 %v2967
    %v4404 = vunpack.c.h.b16 %v2967
    %v4405 = vunpack.c.l.b16 %v2968
    %v4406 = vunpack.c.h.b16 %v2968
    %v4407 = vunpack.c.l.b16 %v2969
    %v4408 = vunpack.c.h.b16 %v2969
    %v4409 = vunpack.c.l.b16 %v2970
    %v4410 = vunpack.c.h.b16 %v2970
    %v4411 = vunpack.c.l.b16 %v2971
    %v4412 = vunpack.c.h.b16 %v2971
    %v4413 = vunpack.c.l.b16 %v2972
    %v4414 = vunpack.c.h.b16 %v2972
    %v4415 = vunpack.c.l.b16 %v2973
    %v4416 = vunpack.c.h.b16 %v2973
    %v4417 = vunpack.c.l.b16 %v2974
    %v4418 = vunpack.c.h.b16 %v2974
    %v4419 = vunpack.c.l.b16 %v2975
    %v4420 = vunpack.c.h.b16 %v2975
    %v4421 = vunpack.c.l.b16 %v2976
    %v4422 = vunpack.c.h.b16 %v2976
    %v4423 = vunpack.c.l.b16 %v2977
    %v4424 = vunpack.c.h.b16 %v2977
    %v4425 = vunpack.c.l.b16 %v2978
    %v4426 = vunpack.c.h.b16 %v2978
    %v4427 = vunpack.c.l.b16 %v2979
    %v4428 = vunpack.c.h.b16 %v2979
    %v4429 = vunpack.c.l.b16 %v2980
    %v4430 = vunpack.c.h.b16 %v2980
    %v4431 = vunpack.c.l.b16 %v2981
    %v4432 = vunpack.c.h.b16 %v2981
    %v4433 = vunpack.c.l.b16 %v2982
    %v4434 = vunpack.c.h.b16 %v2982
    %v4435 = vunpack.c.l.b16 %v2983
    %v4436 = vunpack.c.h.b16 %v2983
    %v4437 = vunpack.c.l.b16 %v2984
    %v4438 = vunpack.c.h.b16 %v2984
    %v4439 = vunpack.c.l.b16 %v2985
    %v4440 = vunpack.c.h.b16 %v2985
    %v4441 = vunpack.c.l.b16 %v2986
    %v4442 = vunpack.c.h.b16 %v2986
    %v4443 = vunpack.c.l.b16 %v2987
    %v4444 = vunpack.c.h.b16 %v2987
    %v4445 = vunpack.c.l.b16 %v2988
    %v4446 = vunpack.c.h.b16 %v2988
    %v4447 = vunpack.c.l.b16 %v2989
    %v4448 = vunpack.c.h.b16 %v2989
    %v4449 = vunpack.c.l.b16 %v2990
    %v4450 = vunpack.c.h.b16 %v2990
    %v4451 = vunpack.c.l.b16 %v2991
    %v4452 = vunpack.c.h.b16 %v2991
    %v4453 = vunpack.c.l.b16 %v2992
    %v4454 = vunpack.c.h.b16 %v2992
    %v4455 = vunpack.c.l.b16 %v2993
    %v4456 = vunpack.c.h.b16 %v2993
    %v4457 = vunpack.c.l.b16 %v2994
    %v4458 = vunpack.c.h.b16 %v2994
    %v4459 = vunpack.c.l.b16 %v2995
    %v4460 = vunpack.c.h.b16 %v2995
    %v4461 = vunpack.c.l.b16 %v2996
    %v4462 = vunpack.c.h.b16 %v2996
    %v4463 = vunpack.c.l.b16 %v2997
    %v4464 = vunpack.c.h.b16 %v2997
    %v4465 = vunpack.c.l.b16 %v2998
    %v4466 = vunpack.c.h.b16 %v2998
    %v4467 = vunpack.c.l.b16 %v2999
    %v4468 = vunpack.c.h.b16 %v2999
    %v4469 = vunpack.c.l.b16 %v3000
    %v4470 = vunpack.c.h.b16 %v3000
    %v4471 = vunpack.c.l.b16 %v3001
    %v4472 = vunpack.c.h.b16 %v3001
    %v4473 = vunpack.c.l.b16 %v3002
    %v4474 = vunpack.c.h.b16 %v3002
    %v4475 = vunpack.c.l.b16 %v3003
    %v4476 = vunpack.c.h.b16 %v3003
    %v4477 = vunpack.c.l.b16 %v3004
    %v4478 = vunpack.c.h.b16 %v3004
    %v4479 = vunpack.c.l.b16 %v3005
    %v4480 = vunpack.c.h.b16 %v3005
    %v4481 = vunpack.c.l.b16 %v3006
    %v4482 = vunpack.c.h.b16 %v3006
    %v4483 = vunpack.c.l.b16 %v3007
    %v4484 = vunpack.c.h.b16 %v3007
    %v4485 = vunpack.c.l.b16 %v3008
    %v4486 = vunpack.c.h.b16 %v3008
    %v4487 = vunpack.c.l.b16 %v3009
    %v4488 = vunpack.c.h.b16 %v3009
    %v4489 = vunpack.c.l.b16 %v3010
    %v4490 = vunpack.c.h.b16 %v3010
    %v4491 = vunpack.c.l.b16 %v3011
    %v4492 = vunpack.c.h.b16 %v3011
    %v4493 = vunpack.c.l.b16 %v3012
    %v4494 = vunpack.c.h.b16 %v3012
    %v4495 = vunpack.c.l.b16 %v3013
    %v4496 = vunpack.c.h.b16 %v3013
    %v4497 = vunpack.c.l.b16 %v3014
    %v4498 = vunpack.c.h.b16 %v3014
    %v4499 = vunpack.c.l.b16 %v3015
    %v4500 = vunpack.c.h.b16 %v3015
    %v4501 = vunpack.c.l.b16 %v3016
    %v4502 = vunpack.c.h.b16 %v3016
    %v4503 = vunpack.c.l.b16 %v3017
    %v4504 = vunpack.c.h.b16 %v3017
    %v4505 = vunpack.c.l.b16 %v3018
    %v4506 = vunpack.c.h.b16 %v3018
    %v4507 = vunpack.c.l.b16 %v3019
    %v4508 = vunpack.c.h.b16 %v3019
    %v4509 = vunpack.c.l.b16 %v3020
    %v4510 = vunpack.c.h.b16 %v3020
    %v4511 = vunpack.c.l.b16 %v3021
    %v4512 = vunpack.c.h.b16 %v3021
    %v4513 = vunpack.c.l.b16 %v3022
    %v4514 = vunpack.c.h.b16 %v3022
    %v4515 = vunpack.c.l.b16 %v3023
    %v4516 = vunpack.c.h.b16 %v3023
    %v4517 = vunpack.c.l.b16 %v3024
    %v4518 = vunpack.c.h.b16 %v3024
    %v4519 = vunpack.c.l.b16 %v3025
    %v4520 = vunpack.c.h.b16 %v3025
    %v4521 = vunpack.c.l.b16 %v3026
    %v4522 = vunpack.c.h.b16 %v3026
    %v4523 = vunpack.c.l.b16 %v3027
    %v4524 = vunpack.c.h.b16 %v3027
    %v4525 = vunpack.c.l.b16 %v3028
    %v4526 = vunpack.c.h.b16 %v3028
    %v4527 = vunpack.c.l.b16 %v3029
    %v4528 = vunpack.c.h.b16 %v3029
    %v4529 = vunpack.c.l.b16 %v3030
    %v4530 = vunpack.c.h.b16 %v3030
    %v4531 = vunpack.c.l.b16 %v3031
    %v4532 = vunpack.c.h.b16 %v3031
    %v4533 = vunpack.c.l.b16 %v3032
    %v4534 = vunpack.c.h.b16 %v3032
    %v4535 = vunpack.c.l.b16 %v3033
    %v4536 = vunpack.c.h.b16 %v3033
    %v4537 = vunpack.c.l.b16 %v3034
    %v4538 = vunpack.c.h.b16 %v3034
    %v4539 = vunpack.c.l.b16 %v3035
    %v4540 = vunpack.c.h.b16 %v3035
    %v4541 = vunpack.c.l.b16 %v3036
    %v4542 = vunpack.c.h.b16 %v3036
    %v4543 = vunpack.c.l.b16 %v3037
    %v4544 = vunpack.c.h.b16 %v3037
    %v4545 = vunpack.c.l.b16 %v3038
    %v4546 = vunpack.c.h.b16 %v3038
    %v4547 = vunpack.c.l.b16 %v3039
    %v4548 = vunpack.c.h.b16 %v3039
    %v4549 = vunpack.c.l.b16 %v3040
    %v4550 = vunpack.c.h.b16 %v3040
    %v4551 = vunpack.c.l.b16 %v3041
    %v4552 = vunpack.c.h.b16 %v3041
    %v4553 = vunpack.c.l.b16 %v3042
    %v4554 = vunpack.c.h.b16 %v3042
    %v4555 = vunpack.c.l.b16 %v3043
    %v4556 = vunpack.c.h.b16 %v3043
    %v4557 = vunpack.c.l.b16 %v3044
    %v4558 = vunpack.c.h.b16 %v3044
    %v4559 = vunpack.c.l.b16 %v3045
    %v4560 = vunpack.c.h.b16 %v3045
    %v4561 = vunpack.c.l.b16 %v3046
    %v4562 = vunpack.c.h.b16 %v3046
    %v4563 = vunpack.c.l.b16 %v3047
    %v4564 = vunpack.c.h.b16 %v3047
    %v4565 = vunpack.c.l.b16 %v3048
    %v4566 = vunpack.c.h.b16 %v3048
    %v4567 = vunpack.c.l.b16 %v3049
    %v4568 = vunpack.c.h.b16 %v3049
    %v4569 = vunpack.c.l.b16 %v3050
    %v4570 = vunpack.c.h.b16 %v3050
    %v4571 = vunpack.c.l.b16 %v3051
    %v4572 = vunpack.c.h.b16 %v3051
    %v4573 = vunpack.c.l.b16 %v3052
    %v4574 = vunpack.c.h.b16 %v3052
    %v4575 = vunpack.c.l.b16 %v3053
    %v4576 = vunpack.c.h.b16 %v3053
    %v4577 = vunpack.c.l.b16 %v3054
    %v4578 = vunpack.c.h.b16 %v3054
    %v4579 = vunpack.c.l.b16 %v3055
    %v4580 = vunpack.c.h.b16 %v3055
    %v4581 = vunpack.c.l.b16 %v3056
    %v4582 = vunpack.c.h.b16 %v3056
    %v4583 = vunpack.c.l.b16 %v3057
    %v4584 = vunpack.c.h.b16 %v3057
    %v4585 = vunpack.c.l.b16 %v3058
    %v4586 = vunpack.c.h.b16 %v3058
    %v4587 = vunpack.c.l.b16 %v3059
    %v4588 = vunpack.c.h.b16 %v3059
    %v4589 = vunpack.c.l.b16 %v3060
    %v4590 = vunpack.c.h.b16 %v3060
    %v4591 = vunpack.c.l.b16 %v3061
    %v4592 = vunpack.c.h.b16 %v3061
    %v4593 = vunpack.c.l.b16 %v3062
    %v4594 = vunpack.c.h.b16 %v3062
    %v4595 = vunpack.c.l.b16 %v3063
    %v4596 = vunpack.c.h.b16 %v3063
    %v4597 = vunpack.c.l.b16 %v3064
    %v4598 = vunpack.c.h.b16 %v3064
    %v4599 = vunpack.c.l.b16 %v3065
    %v4600 = vunpack.c.h.b16 %v3065
    %v4601 = vunpack.c.l.b16 %v3066
    %v4602 = vunpack.c.h.b16 %v3066
    %v4603 = vunpack.c.l.b16 %v3067
    %v4604 = vunpack.c.h.b16 %v3067
    %v4605 = vunpack.c.l.b16 %v3068
    %v4606 = vunpack.c.h.b16 %v3068
    %v4607 = vunpack.c.l.b16 %v3069
    %v4608 = vunpack.c.h.b16 %v3069
    %v4609 = vunpack.c.l.b16 %v3070
    %v4610 = vunpack.c.h.b16 %v3070
    %v4611 = vunpack.c.l.b16 %v3071
    %v4612 = vunpack.c.h.b16 %v3071
    %v4613 = vunpack.c.l.b16 %v3072
    %v4614 = vunpack.c.h.b16 %v3072
    %v4615 = vunpack.c.l.b16 %v3073
    %v4616 = vunpack.c.h.b16 %v3073
    %v4617 = vunpack.c.l.b16 %v3074
    %v4618 = vunpack.c.h.b16 %v3074
    %v4619 = vunpack.c.l.b16 %v3075
    %v4620 = vunpack.c.h.b16 %v3075
    %v4621 = vunpack.c.l.b16 %v3076
    %v4622 = vunpack.c.h.b16 %v3076
    %v4623 = vunpack.c.l.b16 %v3077
    %v4624 = vunpack.c.h.b16 %v3077
    %v4625 = vunpack.c.l.b16 %v3078
    %v4626 = vunpack.c.h.b16 %v3078
    %v4627 = vunpack.c.l.b16 %v3079
    %v4628 = vunpack.c.h.b16 %v3079
    %v4629 = vunpack.c.l.b16 %v3080
    %v4630 = vunpack.c.h.b16 %v3080
    %v4631 = vunpack.c.l.b16 %v3081
    %v4632 = vunpack.c.h.b16 %v3081
    %v4633 = vunpack.c.l.b16 %v3082
    %v4634 = vunpack.c.h.b16 %v3082
    %v4635 = vunpack.c.l.b16 %v3083
    %v4636 = vunpack.c.h.b16 %v3083
    %v4637 = vunpack.c.l.b16 %v3084
    %v4638 = vunpack.c.h.b16 %v3084
    %v4639 = vunpack.c.l.b16 %v3085
    %v4640 = vunpack.c.h.b16 %v3085
    %v4641 = vunpack.c.l.b16 %v3086
    %v4642 = vunpack.c.h.b16 %v3086
    %v4643 = vunpack.c.l.b16 %v3087
    %v4644 = vunpack.c.h.b16 %v3087
    %v4645 = vunpack.c.l.b16 %v3088
    %v4646 = vunpack.c.h.b16 %v3088
    %v4647 = vunpack.c.l.b16 %v3089
    %v4648 = vunpack.c.h.b16 %v3089
    %v4649 = vunpack.c.l.b16 %v3090
    %v4650 = vunpack.c.h.b16 %v3090
    %v4651 = vunpack.c.l.b16 %v3091
    %v4652 = vunpack.c.h.b16 %v3091
    %v4653 = vunpack.c.l.b16 %v3092
    %v4654 = vunpack.c.h.b16 %v3092
    %v4655 = vunpack.c.l.b16 %v3093
    %v4656 = vunpack.c.h.b16 %v3093
    %v4657 = vunpack.c.l.b16 %v3094
    %v4658 = vunpack.c.h.b16 %v3094
    %v4659 = vunpack.c.l.b16 %v3095
    %v4660 = vunpack.c.h.b16 %v3095
    %v4661 = vunpack.c.l.b16 %v3096
    %v4662 = vunpack.c.h.b16 %v3096
    %v4663 = vunpack.c.l.b16 %v3097
    %v4664 = vunpack.c.h.b16 %v3097
    %v4665 = vunpack.c.l.b16 %v3098
    %v4666 = vunpack.c.h.b16 %v3098
    %v4667 = vunpack.c.l.b16 %v3099
    %v4668 = vunpack.c.h.b16 %v3099
    %v4669 = vunpack.c.l.b16 %v3100
    %v4670 = vunpack.c.h.b16 %v3100
    %v4671 = vunpack.c.l.b16 %v3101
    %v4672 = vunpack.c.h.b16 %v3101
    %v4673 = vunpack.c.l.b16 %v3102
    %v4674 = vunpack.c.h.b16 %v3102
    %v4675 = vunpack.c.l.b16 %v3103
    %v4676 = vunpack.c.h.b16 %v3103
    %v4677 = vunpack.c.l.b16 %v3104
    %v4678 = vunpack.c.h.b16 %v3104
    %v4679 = vunpack.c.l.b16 %v3105
    %v4680 = vunpack.c.h.b16 %v3105
    %v4681 = vunpack.c.l.b16 %v3106
    %v4682 = vunpack.c.h.b16 %v3106
    %v4683 = vunpack.c.l.b16 %v3107
    %v4684 = vunpack.c.h.b16 %v3107
    %v4685 = vunpack.c.l.b16 %v3108
    %v4686 = vunpack.c.h.b16 %v3108
    %v4687 = vpack.c.b16 %v3671, %v3663
    %v4688 = vpack.c.b16 %v3672, %v3664
    %v4689 = vpack.c.b16 %v3673, %v3665
    %v4690 = vpack.c.b16 %v3674, %v3666
    %v4691 = vpack.c.b16 %v3675, %v3667
    %v4692 = vpack.c.b16 %v3676, %v3668
    %v4693 = vpack.c.b16 %v3677, %v3669
    %v4694 = vpack.c.b16 %v3678, %v3670
    %v4695 = vpack.c.b16 %v3687, %v3679
    %v4696 = vpack.c.b16 %v3688, %v3680
    %v4697 = vpack.c.b16 %v3689, %v3681
    %v4698 = vpack.c.b16 %v3690, %v3682
    %v4699 = vpack.c.b16 %v3691, %v3683
    %v4700 = vpack.c.b16 %v3692, %v3684
    %v4701 = vpack.c.b16 %v3693, %v3685
    %v4702 = vpack.c.b16 %v3694, %v3686
    %v4703 = vpack.c.b16 %v3703, %v3695
    %v4704 = vpack.c.b16 %v3704, %v3696
    %v4705 = vpack.c.b16 %v3705, %v3697
    %v4706 = vpack.c.b16 %v3706, %v3698
    %v4707 = vpack.c.b16 %v3707, %v3699
    %v4708 = vpack.c.b16 %v3708, %v3700
    %v4709 = vpack.c.b16 %v3709, %v3701
    %v4710 = vpack.c.b16 %v3710, %v3702
    %v4711 = vpack.c.b16 %v3719, %v3711
    %v4712 = vpack.c.b16 %v3720, %v3712
    %v4713 = vpack.c.b16 %v3721, %v3713
    %v4714 = vpack.c.b16 %v3722, %v3714
    %v4715 = vpack.c.b16 %v3723, %v3715
    %v4716 = vpack.c.b16 %v3724, %v3716
    %v4717 = vpack.c.b16 %v3725, %v3717
    %v4718 = vpack.c.b16 %v3726, %v3718
    %v4719 = vpack.c.b16 %v3735, %v3727
    %v4720 = vpack.c.b16 %v3736, %v3728
    %v4721 = vpack.c.b16 %v3737, %v3729
    %v4722 = vpack.c.b16 %v3738, %v3730
    %v4723 = vpack.c.b16 %v3739, %v3731
    %v4724 = vpack.c.b16 %v3740, %v3732
    %v4725 = vpack.c.b16 %v3741, %v3733
    %v4726 = vpack.c.b16 %v3742, %v3734
    %v4727 = vpack.c.b16 %v3751, %v3743
    %v4728 = vpack.c.b16 %v3752, %v3744
    %v4729 = vpack.c.b16 %v3753, %v3745
    %v4730 = vpack.c.b16 %v3754, %v3746
    %v4731 = vpack.c.b16 %v3755, %v3747
    %v4732 = vpack.c.b16 %v3756, %v3748
    %v4733 = vpack.c.b16 %v3757, %v3749
    %v4734 = vpack.c.b16 %v3758, %v3750
    %v4735 = vpack.c.b16 %v3767, %v3759
    %v4736 = vpack.c.b16 %v3768, %v3760
    %v4737 = vpack.c.b16 %v3769, %v3761
    %v4738 = vpack.c.b16 %v3770, %v3762
    %v4739 = vpack.c.b16 %v3771, %v3763
    %v4740 = vpack.c.b16 %v3772, %v3764
    %v4741 = vpack.c.b16 %v3773, %v3765
    %v4742 = vpack.c.b16 %v3774, %v3766
    %v4743 = vpack.c.b16 %v3783, %v3775
    %v4744 = vpack.c.b16 %v3784, %v3776
    %v4745 = vpack.c.b16 %v3785, %v3777
    %v4746 = vpack.c.b16 %v3786, %v3778
    %v4747 = vpack.c.b16 %v3787, %v3779
    %v4748 = vpack.c.b16 %v3788, %v3780
    %v4749 = vpack.c.b16 %v3789, %v3781
    %v4750 = vpack.c.b16 %v3790, %v3782
    %v4751 = vpack.c.b16 %v3799, %v3791
    %v4752 = vpack.c.b16 %v3800, %v3792
    %v4753 = vpack.c.b16 %v3801, %v3793
    %v4754 = vpack.c.b16 %v3802, %v3794
    %v4755 = vpack.c.b16 %v3803, %v3795
    %v4756 = vpack.c.b16 %v3804, %v3796
    %v4757 = vpack.c.b16 %v3805, %v3797
    %v4758 = vpack.c.b16 %v3806, %v3798
    %v4759 = vpack.c.b16 %v3815, %v3807
    %v4760 = vpack.c.b16 %v3816, %v3808
    %v4761 = vpack.c.b16 %v3817, %v3809
    %v4762 = vpack.c.b16 %v3818, %v3810
    %v4763 = vpack.c.b16 %v3819, %v3811
    %v4764 = vpack.c.b16 %v3820, %v3812
    %v4765 = vpack.c.b16 %v3821, %v3813
    %v4766 = vpack.c.b16 %v3822, %v3814
    %v4767 = vpack.c.b16 %v3831, %v3823
    %v4768 = vpack.c.b16 %v3832, %v3824
    %v4769 = vpack.c.b16 %v3833, %v3825
    %v4770 = vpack.c.b16 %v3834, %v3826
    %v4771 = vpack.c.b16 %v3835, %v3827
    %v4772 = vpack.c.b16 %v3836, %v3828
    %v4773 = vpack.c.b16 %v3837, %v3829
    %v4774 = vpack.c.b16 %v3838, %v3830
    %v4775 = vpack.c.b16 %v3847, %v3839
    %v4776 = vpack.c.b16 %v3848, %v3840
    %v4777 = vpack.c.b16 %v3849, %v3841
    %v4778 = vpack.c.b16 %v3850, %v3842
    %v4779 = vpack.c.b16 %v3851, %v3843
    %v4780 = vpack.c.b16 %v3852, %v3844
    %v4781 = vpack.c.b16 %v3853, %v3845
    %v4782 = vpack.c.b16 %v3854, %v3846
    %v4783 = vpack.c.b16 %v3863, %v3855
    %v4784 = vpack.c.b16 %v3864, %v3856
    %v4785 = vpack.c.b16 %v3865, %v3857
    %v4786 = vpack.c.b16 %v3866, %v3858
    %v4787 = vpack.c.b16 %v3867, %v3859
    %v4788 = vpack.c.b16 %v3868, %v3860
    %v4789 = vpack.c.b16 %v3869, %v3861
    %v4790 = vpack.c.b16 %v3870, %v3862
    %v4791 = vpack.c.b16 %v3879, %v3871
    %v4792 = vpack.c.b16 %v3880, %v3872
    %v4793 = vpack.c.b16 %v3881, %v3873
    %v4794 = vpack.c.b16 %v3882, %v3874
    %v4795 = vpack.c.b16 %v3883, %v3875
    %v4796 = vpack.c.b16 %v3884, %v3876
    %v4797 = vpack.c.b16 %v3885, %v3877
    %v4798 = vpack.c.b16 %v3886, %v3878
    %v4799 = vpack.c.b16 %v3895, %v3887
    %v4800 = vpack.c.b16 %v3896, %v3888
    %v4801 = vpack.c.b16 %v3897, %v3889
    %v4802 = vpack.c.b16 %v3898, %v3890
    %v4803 = vpack.c.b16 %v3899, %v3891
    %v4804 = vpack.c.b16 %v3900, %v3892
    %v4805 = vpack.c.b16 %v3901, %v3893
    %v4806 = vpack.c.b16 %v3902, %v3894
    %v4807 = vpack.c.b16 %v3911, %v3903
    %v4808 = vpack.c.b16 %v3912, %v3904
    %v4809 = vpack.c.b16 %v3913, %v3905
    %v4810 = vpack.c.b16 %v3914, %v3906
    %v4811 = vpack.c.b16 %v3915, %v3907
    %v4812 = vpack.c.b16 %v3916, %v3908
    %v4813 = vpack.c.b16 %v3917, %v3909
    %v4814 = vpack.c.b16 %v3918, %v3910
    %v4815 = vpack.c.b16 %v3927, %v3919
    %v4816 = vpack.c.b16 %v3928, %v3920
    %v4817 = vpack.c.b16 %v3929, %v3921
    %v4818 = vpack.c.b16 %v3930, %v3922
    %v4819 = vpack.c.b16 %v3931, %v3923
    %v4820 = vpack.c.b16 %v3932, %v3924
    %v4821 = vpack.c.b16 %v3933, %v3925
    %v4822 = vpack.c.b16 %v3934, %v3926
    %v4823 = vpack.c.b16 %v3943, %v3935
    %v4824 = vpack.c.b16 %v3944, %v3936
    %v4825 = vpack.c.b16 %v3945, %v3937
    %v4826 = vpack.c.b16 %v3946, %v3938
    %v4827 = vpack.c.b16 %v3947, %v3939
    %v4828 = vpack.c.b16 %v3948, %v3940
    %v4829 = vpack.c.b16 %v3949, %v3941
    %v4830 = vpack.c.b16 %v3950, %v3942
    %v4831 = vpack.c.b16 %v3959, %v3951
    %v4832 = vpack.c.b16 %v3960, %v3952
    %v4833 = vpack.c.b16 %v3961, %v3953
    %v4834 = vpack.c.b16 %v3962, %v3954
    %v4835 = vpack.c.b16 %v3963, %v3955
    %v4836 = vpack.c.b16 %v3964, %v3956
    %v4837 = vpack.c.b16 %v3965, %v3957
    %v4838 = vpack.c.b16 %v3966, %v3958
    %v4839 = vpack.c.b16 %v3975, %v3967
    %v4840 = vpack.c.b16 %v3976, %v3968
    %v4841 = vpack.c.b16 %v3977, %v3969
    %v4842 = vpack.c.b16 %v3978, %v3970
    %v4843 = vpack.c.b16 %v3979, %v3971
    %v4844 = vpack.c.b16 %v3980, %v3972
    %v4845 = vpack.c.b16 %v3981, %v3973
    %v4846 = vpack.c.b16 %v3982, %v3974
    %v4847 = vpack.c.b16 %v3991, %v3983
    %v4848 = vpack.c.b16 %v3992, %v3984
    %v4849 = vpack.c.b16 %v3993, %v3985
    %v4850 = vpack.c.b16 %v3994, %v3986
    %v4851 = vpack.c.b16 %v3995, %v3987
    %v4852 = vpack.c.b16 %v3996, %v3988
    %v4853 = vpack.c.b16 %v3997, %v3989
    %v4854 = vpack.c.b16 %v3998, %v3990
    %v4855 = vpack.c.b16 %v4007, %v3999
    %v4856 = vpack.c.b16 %v4008, %v4000
    %v4857 = vpack.c.b16 %v4009, %v4001
    %v4858 = vpack.c.b16 %v4010, %v4002
    %v4859 = vpack.c.b16 %v4011, %v4003
    %v4860 = vpack.c.b16 %v4012, %v4004
    %v4861 = vpack.c.b16 %v4013, %v4005
    %v4862 = vpack.c.b16 %v4014, %v4006
    %v4863 = vpack.c.b16 %v4023, %v4015
    %v4864 = vpack.c.b16 %v4024, %v4016
    %v4865 = vpack.c.b16 %v4025, %v4017
    %v4866 = vpack.c.b16 %v4026, %v4018
    %v4867 = vpack.c.b16 %v4027, %v4019
    %v4868 = vpack.c.b16 %v4028, %v4020
    %v4869 = vpack.c.b16 %v4029, %v4021
    %v4870 = vpack.c.b16 %v4030, %v4022
    %v4871 = vpack.c.b16 %v4039, %v4031
    %v4872 = vpack.c.b16 %v4040, %v4032
    %v4873 = vpack.c.b16 %v4041, %v4033
    %v4874 = vpack.c.b16 %v4042, %v4034
    %v4875 = vpack.c.b16 %v4043, %v4035
    %v4876 = vpack.c.b16 %v4044, %v4036
    %v4877 = vpack.c.b16 %v4045, %v4037
    %v4878 = vpack.c.b16 %v4046, %v4038
    %v4879 = vpack.c.b16 %v4055, %v4047
    %v4880 = vpack.c.b16 %v4056, %v4048
    %v4881 = vpack.c.b16 %v4057, %v4049
    %v4882 = vpack.c.b16 %v4058, %v4050
    %v4883 = vpack.c.b16 %v4059, %v4051
    %v4884 = vpack.c.b16 %v4060, %v4052
    %v4885 = vpack.c.b16 %v4061, %v4053
    %v4886 = vpack.c.b16 %v4062, %v4054
    %v4887 = vpack.c.b16 %v4071, %v4063
    %v4888 = vpack.c.b16 %v4072, %v4064
    %v4889 = vpack.c.b16 %v4073, %v4065
    %v4890 = vpack.c.b16 %v4074, %v4066
    %v4891 = vpack.c.b16 %v4075, %v4067
    %v4892 = vpack.c.b16 %v4076, %v4068
    %v4893 = vpack.c.b16 %v4077, %v4069
    %v4894 = vpack.c.b16 %v4078, %v4070
    %v4895 = vpack.c.b16 %v4087, %v4079
    %v4896 = vpack.c.b16 %v4088, %v4080
    %v4897 = vpack.c.b16 %v4089, %v4081
    %v4898 = vpack.c.b16 %v4090, %v4082
    %v4899 = vpack.c.b16 %v4091, %v4083
    %v4900 = vpack.c.b16 %v4092, %v4084
    %v4901 = vpack.c.b16 %v4093, %v4085
    %v4902 = vpack.c.b16 %v4094, %v4086
    %v4903 = vpack.c.b16 %v4103, %v4095
    %v4904 = vpack.c.b16 %v4104, %v4096
    %v4905 = vpack.c.b16 %v4105, %v4097
    %v4906 = vpack.c.b16 %v4106, %v4098
    %v4907 = vpack.c.b16 %v4107, %v4099
    %v4908 = vpack.c.b16 %v4108, %v4100
    %v4909 = vpack.c.b16 %v4109, %v4101
    %v4910 = vpack.c.b16 %v4110, %v4102
    %v4911 = vpack.c.b16 %v4119, %v4111
    %v4912 = vpack.c.b16 %v4120, %v4112
    %v4913 = vpack.c.b16 %v4121, %v4113
    %v4914 = vpack.c.b16 %v4122, %v4114
    %v4915 = vpack.c.b16 %v4123, %v4115
    %v4916 = vpack.c.b16 %v4124, %v4116
    %v4917 = vpack.c.b16 %v4125, %v4117
    %v4918 = vpack.c.b16 %v4126, %v4118
    %v4919 = vpack.c.b16 %v4135, %v4127
    %v4920 = vpack.c.b16 %v4136, %v4128
    %v4921 = vpack.c.b16 %v4137, %v4129
    %v4922 = vpack.c.b16 %v4138, %v4130
    %v4923 = vpack.c.b16 %v4139, %v4131
    %v4924 = vpack.c.b16 %v4140, %v4132
    %v4925 = vpack.c.b16 %v4141, %v4133
    %v4926 = vpack.c.b16 %v4142, %v4134
    %v4927 = vpack.c.b16 %v4151, %v4143
    %v4928 = vpack.c.b16 %v4152, %v4144
    %v4929 = vpack.c.b16 %v4153, %v4145
    %v4930 = vpack.c.b16 %v4154, %v4146
    %v4931 = vpack.c.b16 %v4155, %v4147
    %v4932 = vpack.c.b16 %v4156, %v4148
    %v4933 = vpack.c.b16 %v4157, %v4149
    %v4934 = vpack.c.b16 %v4158, %v4150
    %v4935 = vpack.c.b16 %v4167, %v4159
    %v4936 = vpack.c.b16 %v4168, %v4160
    %v4937 = vpack.c.b16 %v4169, %v4161
    %v4938 = vpack.c.b16 %v4170, %v4162
    %v4939 = vpack.c.b16 %v4171, %v4163
    %v4940 = vpack.c.b16 %v4172, %v4164
    %v4941 = vpack.c.b16 %v4173, %v4165
    %v4942 = vpack.c.b16 %v4174, %v4166
    %v4943 = vpack.c.b16 %v4183, %v4175
    %v4944 = vpack.c.b16 %v4184, %v4176
    %v4945 = vpack.c.b16 %v4185, %v4177
    %v4946 = vpack.c.b16 %v4186, %v4178
    %v4947 = vpack.c.b16 %v4187, %v4179
    %v4948 = vpack.c.b16 %v4188, %v4180
    %v4949 = vpack.c.b16 %v4189, %v4181
    %v4950 = vpack.c.b16 %v4190, %v4182
    %v4951 = vpack.c.b16 %v4199, %v4191
    %v4952 = vpack.c.b16 %v4200, %v4192
    %v4953 = vpack.c.b16 %v4201, %v4193
    %v4954 = vpack.c.b16 %v4202, %v4194
    %v4955 = vpack.c.b16 %v4203, %v4195
    %v4956 = vpack.c.b16 %v4204, %v4196
    %v4957 = vpack.c.b16 %v4205, %v4197
    %v4958 = vpack.c.b16 %v4206, %v4198
    %v4959 = vpack.c.b16 %v4215, %v4207
    %v4960 = vpack.c.b16 %v4216, %v4208
    %v4961 = vpack.c.b16 %v4217, %v4209
    %v4962 = vpack.c.b16 %v4218, %v4210
    %v4963 = vpack.c.b16 %v4219, %v4211
    %v4964 = vpack.c.b16 %v4220, %v4212
    %v4965 = vpack.c.b16 %v4221, %v4213
    %v4966 = vpack.c.b16 %v4222, %v4214
    %v4967 = vpack.c.b16 %v4231, %v4223
    %v4968 = vpack.c.b16 %v4232, %v4224
    %v4969 = vpack.c.b16 %v4233, %v4225
    %v4970 = vpack.c.b16 %v4234, %v4226
    %v4971 = vpack.c.b16 %v4235, %v4227
    %v4972 = vpack.c.b16 %v4236, %v4228
    %v4973 = vpack.c.b16 %v4237, %v4229
    %v4974 = vpack.c.b16 %v4238, %v4230
    %v4975 = vpack.c.b16 %v4247, %v4239
    %v4976 = vpack.c.b16 %v4248, %v4240
    %v4977 = vpack.c.b16 %v4249, %v4241
    %v4978 = vpack.c.b16 %v4250, %v4242
    %v4979 = vpack.c.b16 %v4251, %v4243
    %v4980 = vpack.c.b16 %v4252, %v4244
    %v4981 = vpack.c.b16 %v4253, %v4245
    %v4982 = vpack.c.b16 %v4254, %v4246
    %v4983 = vpack.c.b16 %v4263, %v4255
    %v4984 = vpack.c.b16 %v4264, %v4256
    %v4985 = vpack.c.b16 %v4265, %v4257
    %v4986 = vpack.c.b16 %v4266, %v4258
    %v4987 = vpack.c.b16 %v4267, %v4259
    %v4988 = vpack.c.b16 %v4268, %v4260
    %v4989 = vpack.c.b16 %v4269, %v4261
    %v4990 = vpack.c.b16 %v4270, %v4262
    %v4991 = vpack.c.b16 %v4279, %v4271
    %v4992 = vpack.c.b16 %v4280, %v4272
    %v4993 = vpack.c.b16 %v4281, %v4273
    %v4994 = vpack.c.b16 %v4282, %v4274
    %v4995 = vpack.c.b16 %v4283, %v4275
    %v4996 = vpack.c.b16 %v4284, %v4276
    %v4997 = vpack.c.b16 %v4285, %v4277
    %v4998 = vpack.c.b16 %v4286, %v4278
    %v4999 = vpack.c.b16 %v4295, %v4287
    %v5000 = vpack.c.b16 %v4296, %v4288
    %v5001 = vpack.c.b16 %v4297, %v4289
    %v5002 = vpack.c.b16 %v4298, %v4290
    %v5003 = vpack.c.b16 %v4299, %v4291
    %v5004 = vpack.c.b16 %v4300, %v4292
    %v5005 = vpack.c.b16 %v4301, %v4293
    %v5006 = vpack.c.b16 %v4302, %v4294
    %v5007 = vpack.c.b16 %v4311, %v4303
    %v5008 = vpack.c.b16 %v4312, %v4304
    %v5009 = vpack.c.b16 %v4313, %v4305
    %v5010 = vpack.c.b16 %v4314, %v4306
    %v5011 = vpack.c.b16 %v4315, %v4307
    %v5012 = vpack.c.b16 %v4316, %v4308
    %v5013 = vpack.c.b16 %v4317, %v4309
    %v5014 = vpack.c.b16 %v4318, %v4310
    %v5015 = vpack.c.b16 %v4327, %v4319
    %v5016 = vpack.c.b16 %v4328, %v4320
    %v5017 = vpack.c.b16 %v4329, %v4321
    %v5018 = vpack.c.b16 %v4330, %v4322
    %v5019 = vpack.c.b16 %v4331, %v4323
    %v5020 = vpack.c.b16 %v4332, %v4324
    %v5021 = vpack.c.b16 %v4333, %v4325
    %v5022 = vpack.c.b16 %v4334, %v4326
    %v5023 = vpack.c.b16 %v4343, %v4335
    %v5024 = vpack.c.b16 %v4344, %v4336
    %v5025 = vpack.c.b16 %v4345, %v4337
    %v5026 = vpack.c.b16 %v4346, %v4338
    %v5027 = vpack.c.b16 %v4347, %v4339
    %v5028 = vpack.c.b16 %v4348, %v4340
    %v5029 = vpack.c.b16 %v4349, %v4341
    %v5030 = vpack.c.b16 %v4350, %v4342
    %v5031 = vpack.c.b16 %v4359, %v4351
    %v5032 = vpack.c.b16 %v4360, %v4352
    %v5033 = vpack.c.b16 %v4361, %v4353
    %v5034 = vpack.c.b16 %v4362, %v4354
    %v5035 = vpack.c.b16 %v4363, %v4355
    %v5036 = vpack.c.b16 %v4364, %v4356
    %v5037 = vpack.c.b16 %v4365, %v4357
    %v5038 = vpack.c.b16 %v4366, %v4358
    %v5039 = vpack.c.b16 %v4375, %v4367
    %v5040 = vpack.c.b16 %v4376, %v4368
    %v5041 = vpack.c.b16 %v4377, %v4369
    %v5042 = vpack.c.b16 %v4378, %v4370
    %v5043 = vpack.c.b16 %v4379, %v4371
    %v5044 = vpack.c.b16 %v4380, %v4372
    %v5045 = vpack.c.b16 %v4381, %v4373
    %v5046 = vpack.c.b16 %v4382, %v4374
    %v5047 = vpack.c.b16 %v4391, %v4383
    %v5048 = vpack.c.b16 %v4392, %v4384
    %v5049 = vpack.c.b16 %v4393, %v4385
    %v5050 = vpack.c.b16 %v4394, %v4386
    %v5051 = vpack.c.b16 %v4395, %v4387
    %v5052 = vpack.c.b16 %v4396, %v4388
    %v5053 = vpack.c.b16 %v4397, %v4389
    %v5054 = vpack.c.b16 %v4398, %v4390
    %v5055 = vpack.c.b16 %v4407, %v4399
    %v5056 = vpack.c.b16 %v4408, %v4400
    %v5057 = vpack.c.b16 %v4409, %v4401
    %v5058 = vpack.c.b16 %v4410, %v4402
    %v5059 = vpack.c.b16 %v4411, %v4403
    %v5060 = vpack.c.b16 %v4412, %v4404
    %v5061 = vpack.c.b16 %v4413, %v4405
    %v5062 = vpack.c.b16 %v4414, %v4406
    %v5063 = vpack.c.b16 %v4423, %v4415
    %v5064 = vpack.c.b16 %v4424, %v4416
    %v5065 = vpack.c.b16 %v4425, %v4417
    %v5066 = vpack.c.b16 %v4426, %v4418
    %v5067 = vpack.c.b16 %v4427, %v4419
    %v5068 = vpack.c.b16 %v4428, %v4420
    %v5069 = vpack.c.b16 %v4429, %v4421
    %v5070 = vpack.c.b16 %v4430, %v4422
    %v5071 = vpack.c.b16 %v4439, %v4431
    %v5072 = vpack.c.b16 %v4440, %v4432
    %v5073 = vpack.c.b16 %v4441, %v4433
    %v5074 = vpack.c.b16 %v4442, %v4434
    %v5075 = vpack.c.b16 %v4443, %v4435
    %v5076 = vpack.c.b16 %v4444, %v4436
    %v5077 = vpack.c.b16 %v4445, %v4437
    %v5078 = vpack.c.b16 %v4446, %v4438
    %v5079 = vpack.c.b16 %v4455, %v4447
    %v5080 = vpack.c.b16 %v4456, %v4448
    %v5081 = vpack.c.b16 %v4457, %v4449
    %v5082 = vpack.c.b16 %v4458, %v4450
    %v5083 = vpack.c.b16 %v4459, %v4451
    %v5084 = vpack.c.b16 %v4460, %v4452
    %v5085 = vpack.c.b16 %v4461, %v4453
    %v5086 = vpack.c.b16 %v4462, %v4454
    %v5087 = vpack.c.b16 %v4471, %v4463
    %v5088 = vpack.c.b16 %v4472, %v4464
    %v5089 = vpack.c.b16 %v4473, %v4465
    %v5090 = vpack.c.b16 %v4474, %v4466
    %v5091 = vpack.c.b16 %v4475, %v4467
    %v5092 = vpack.c.b16 %v4476, %v4468
    %v5093 = vpack.c.b16 %v4477, %v4469
    %v5094 = vpack.c.b16 %v4478, %v4470
    %v5095 = vpack.c.b16 %v4487, %v4479
    %v5096 = vpack.c.b16 %v4488, %v4480
    %v5097 = vpack.c.b16 %v4489, %v4481
    %v5098 = vpack.c.b16 %v4490, %v4482
    %v5099 = vpack.c.b16 %v4491, %v4483
    %v5100 = vpack.c.b16 %v4492, %v4484
    %v5101 = vpack.c.b16 %v4493, %v4485
    %v5102 = vpack.c.b16 %v4494, %v4486
    %v5103 = vpack.c.b16 %v4503, %v4495
    %v5104 = vpack.c.b16 %v4504, %v4496
    %v5105 = vpack.c.b16 %v4505, %v4497
    %v5106 = vpack.c.b16 %v4506, %v4498
    %v5107 = vpack.c.b16 %v4507, %v4499
    %v5108 = vpack.c.b16 %v4508, %v4500
    %v5109 = vpack.c.b16 %v4509, %v4501
    %v5110 = vpack.c.b16 %v4510, %v4502
    %v5111 = vpack.c.b16 %v4519, %v4511
    %v5112 = vpack.c.b16 %v4520, %v4512
    %v5113 = vpack.c.b16 %v4521, %v4513
    %v5114 = vpack.c.b16 %v4522, %v4514
    %v5115 = vpack.c.b16 %v4523, %v4515
    %v5116 = vpack.c.b16 %v4524, %v4516
    %v5117 = vpack.c.b16 %v4525, %v4517
    %v5118 = vpack.c.b16 %v4526, %v4518
    %v5119 = vpack.c.b16 %v4535, %v4527
    %v5120 = vpack.c.b16 %v4536, %v4528
    %v5121 = vpack.c.b16 %v4537, %v4529
    %v5122 = vpack.c.b16 %v4538, %v4530
    %v5123 = vpack.c.b16 %v4539, %v4531
    %v5124 = vpack.c.b16 %v4540, %v4532
    %v5125 = vpack.c.b16 %v4541, %v4533
    %v5126 = vpack.c.b16 %v4542, %v4534
    %v5127 = vpack.c.b16 %v4551, %v4543
    %v5128 = vpack.c.b16 %v4552, %v4544
    %v5129 = vpack.c.b16 %v4553, %v4545
    %v5130 = vpack.c.b16 %v4554, %v4546
    %v5131 = vpack.c.b16 %v4555, %v4547
    %v5132 = vpack.c.b16 %v4556, %v4548
    %v5133 = vpack.c.b16 %v4557, %v4549
    %v5134 = vpack.c.b16 %v4558, %v4550
    %v5135 = vpack.c.b16 %v4567, %v4559
    %v5136 = vpack.c.b16 %v4568, %v4560
    %v5137 = vpack.c.b16 %v4569, %v4561
    %v5138 = vpack.c.b16 %v4570, %v4562
    %v5139 = vpack.c.b16 %v4571, %v4563
    %v5140 = vpack.c.b16 %v4572, %v4564
    %v5141 = vpack.c.b16 %v4573, %v4565
    %v5142 = vpack.c.b16 %v4574, %v4566
    %v5143 = vpack.c.b16 %v4583, %v4575
    %v5144 = vpack.c.b16 %v4584, %v4576
    %v5145 = vpack.c.b16 %v4585, %v4577
    %v5146 = vpack.c.b16 %v4586, %v4578
    %v5147 = vpack.c.b16 %v4587, %v4579
    %v5148 = vpack.c.b16 %v4588, %v4580
    %v5149 = vpack.c.b16 %v4589, %v4581
    %v5150 = vpack.c.b16 %v4590, %v4582
    %v5151 = vpack.c.b16 %v4599, %v4591
    %v5152 = vpack.c.b16 %v4600, %v4592
    %v5153 = vpack.c.b16 %v4601, %v4593
    %v5154 = vpack.c.b16 %v4602, %v4594
    %v5155 = vpack.c.b16 %v4603, %v4595
    %v5156 = vpack.c.b16 %v4604, %v4596
    %v5157 = vpack.c.b16 %v4605, %v4597
    %v5158 = vpack.c.b16 %v4606, %v4598
    %v5159 = vpack.c.b16 %v4615, %v4607
    %v5160 = vpack.c.b16 %v4616, %v4608
    %v5161 = vpack.c.b16 %v4617, %v4609
    %v5162 = vpack.c.b16 %v4618, %v4610
    %v5163 = vpack.c.b16 %v4619, %v4611
    %v5164 = vpack.c.b16 %v4620, %v4612
    %v5165 = vpack.c.b16 %v4621, %v4613
    %v5166 = vpack.c.b16 %v4622, %v4614
    %v5167 = vpack.c.b16 %v4631, %v4623
    %v5168 = vpack.c.b16 %v4632, %v4624
    %v5169 = vpack.c.b16 %v4633, %v4625
    %v5170 = vpack.c.b16 %v4634, %v4626
    %v5171 = vpack.c.b16 %v4635, %v4627
    %v5172 = vpack.c.b16 %v4636, %v4628
    %v5173 = vpack.c.b16 %v4637, %v4629
    %v5174 = vpack.c.b16 %v4638, %v4630
    %v5175 = vpack.c.b16 %v4647, %v4639
    %v5176 = vpack.c.b16 %v4648, %v4640
    %v5177 = vpack.c.b16 %v4649, %v4641
    %v5178 = vpack.c.b16 %v4650, %v4642
    %v5179 = vpack.c.b16 %v4651, %v4643
    %v5180 = vpack.c.b16 %v4652, %v4644
    %v5181 = vpack.c.b16 %v4653, %v4645
    %v5182 = vpack.c.b16 %v4654, %v4646
    %v5183 = vpack.c.b16 %v4663, %v4655
    %v5184 = vpack.c.b16 %v4664, %v4656
    %v5185 = vpack.c.b16 %v4665, %v4657
    %v5186 = vpack.c.b16 %v4666, %v4658
    %v5187 = vpack.c.b16 %v4667, %v4659
    %v5188 = vpack.c.b16 %v4668, %v4660
    %v5189 = vpack.c.b16 %v4669, %v4661
    %v5190 = vpack.c.b16 %v4670, %v4662
    %v5191 = vpack.c.b16 %v4679, %v4671
    %v5192 = vpack.c.b16 %v4680, %v4672
    %v5193 = vpack.c.b16 %v4681, %v4673
    %v5194 = vpack.c.b16 %v4682, %v4674
    %v5195 = vpack.c.b16 %v4683, %v4675
    %v5196 = vpack.c.b16 %v4684, %v4676
    %v5197 = vpack.c.b16 %v4685, %v4677
    %v5198 = vpack.c.b16 %v4686, %v4678
    %5711 = vmatprep.subr.bf16.mxu0 %v4744
    %5712 = vmatpush1.bf16.msra.mxu0 %v4743
    %5713 = vmatprep.subr.bf16.mxu0 %v4736
    %5714 = vmatpush1.bf16.msra.mxu0 %v4735
    %5715 = vmatprep.subr.bf16.mxu0 %v4728
    %5716 = vmatpush1.bf16.msra.mxu0 %v4727
    %5717 = vmatprep.subr.bf16.mxu0 %v4720
    %5718 = vmatpush1.bf16.msra.mxu0 %v4719
    %5719 = vmatprep.subr.bf16.mxu0 %v4712
    %5720 = vmatpush1.bf16.msra.mxu0 %v4711
    %5721 = vmatprep.subr.bf16.mxu0 %v4704
    %5722 = vmatpush1.bf16.msra.mxu0 %v4703
    %5723 = vmatprep.subr.bf16.mxu0 %v4696
    %5724 = vmatpush1.bf16.msra.mxu0 %v4695
    %5725 = vmatprep.subr.bf16.mxu0 %v4688
    %5726 = vmatpush1.bf16.msra.mxu0 %v4687
    %5727 = vmatprep.subr.bf16.mxu0 %v4808
    %5728 = vmatpush2.bf16.msra.mxu0 %v4807
    %5729 = vmatprep.subr.bf16.mxu0 %v4800
    %5730 = vmatpush2.bf16.msra.mxu0 %v4799
    %5731 = vmatprep.subr.bf16.mxu0 %v4792
    %5732 = vmatpush2.bf16.msra.mxu0 %v4791
    %5733 = vmatprep.subr.bf16.mxu0 %v4784
    %5734 = vmatpush2.bf16.msra.mxu0 %v4783
    %5735 = vmatprep.subr.bf16.mxu0 %v4776
    %5736 = vmatpush2.bf16.msra.mxu0 %v4775
    %5737 = vmatprep.subr.bf16.mxu0 %v4768
    %5738 = vmatpush2.bf16.msra.mxu0 %v4767
    %5739 = vmatprep.subr.bf16.mxu0 %v4760
    %5740 = vmatpush2.bf16.msra.mxu0 %v4759
    %5741 = vmatprep.subr.bf16.mxu0 %v4752
    %5742 = vmatpush2.bf16.msra.mxu0 %v4751
    %5743 = vmatprep.mubr.bf16.mxu0 %v2590
    %5744 = vmatmul.mubr.bf16.gmra.mxu0 %v2589
    %v5745 = vpop.f32.mrf.mxu0
    %v5746 = vadd.f32 %v3114, %v5745
    %v5747 = vpop.f32.mrf.mxu0
    %v5748 = vadd.f32 %v3118, %v5747
    %v5749 = vpop.f32.mrf.mxu0
    %v5750 = vpop.f32.mrf.mxu0
    %5751 = vdwg.mxu0
    %5752 = vmatprep.subr.bf16.mxu0 %v4872
    %5753 = vmatpush1.bf16.msra.mxu0 %v4871
    %5754 = vmatprep.subr.bf16.mxu0 %v4864
    %5755 = vmatpush1.bf16.msra.mxu0 %v4863
    %5756 = vmatprep.subr.bf16.mxu0 %v4856
    %5757 = vmatpush1.bf16.msra.mxu0 %v4855
    %5758 = vmatprep.subr.bf16.mxu0 %v4848
    %5759 = vmatpush1.bf16.msra.mxu0 %v4847
    %5760 = vmatprep.subr.bf16.mxu0 %v4840
    %5761 = vmatpush1.bf16.msra.mxu0 %v4839
    %5762 = vmatprep.subr.bf16.mxu0 %v4832
    %5763 = vmatpush1.bf16.msra.mxu0 %v4831
    %5764 = vmatprep.subr.bf16.mxu0 %v4824
    %5765 = vmatpush1.bf16.msra.mxu0 %v4823
    %5766 = vmatprep.subr.bf16.mxu0 %v4816
    %5767 = vmatpush1.bf16.msra.mxu0 %v4815
    %5768 = vmatprep.subr.bf16.mxu0 %v4936
    %5769 = vmatpush2.bf16.msra.mxu0 %v4935
    %5770 = vmatprep.subr.bf16.mxu0 %v4928
    %5771 = vmatpush2.bf16.msra.mxu0 %v4927
    %5772 = vmatprep.subr.bf16.mxu0 %v4920
    %5773 = vmatpush2.bf16.msra.mxu0 %v4919
    %5774 = vmatprep.subr.bf16.mxu0 %v4912
    %5775 = vmatpush2.bf16.msra.mxu0 %v4911
    %5776 = vmatprep.subr.bf16.mxu0 %v4904
    %5777 = vmatpush2.bf16.msra.mxu0 %v4903
    %5778 = vmatprep.subr.bf16.mxu0 %v4896
    %5779 = vmatpush2.bf16.msra.mxu0 %v4895
    %5780 = vmatprep.subr.bf16.mxu0 %v4888
    %5781 = vmatpush2.bf16.msra.mxu0 %v4887
    %5782 = vmatprep.subr.bf16.mxu0 %v4880
    %5783 = vmatpush2.bf16.msra.mxu0 %v4879
    %5784 = vmatprep.mubr.bf16.mxu0 %v2592
    %5785 = vmatmul.mubr.bf16.gmra.mxu0 %v2591
    %v5786 = vpop.f32.mrf.mxu0
    %v5787 = vadd.f32 %v5746, %v5786
    %v5788 = vpop.f32.mrf.mxu0
    %v5789 = vadd.f32 %v5748, %v5788
    %v5790 = vpop.f32.mrf.mxu0
    %v5791 = vpop.f32.mrf.mxu0
    %5792 = vdwg.mxu0
    %5793 = vmatprep.subr.bf16.mxu0 %v5000
    %5794 = vmatpush1.bf16.msra.mxu0 %v4999
    %5795 = vmatprep.subr.bf16.mxu0 %v4992
    %5796 = vmatpush1.bf16.msra.mxu0 %v4991
    %5797 = vmatprep.subr.bf16.mxu0 %v4984
    %5798 = vmatpush1.bf16.msra.mxu0 %v4983
    %5799 = vmatprep.subr.bf16.mxu0 %v4976
    %5800 = vmatpush1.bf16.msra.mxu0 %v4975
    %5801 = vmatprep.subr.bf16.mxu0 %v4968
    %5802 = vmatpush1.bf16.msra.mxu0 %v4967
    %5803 = vmatprep.subr.bf16.mxu0 %v4960
    %5804 = vmatpush1.bf16.msra.mxu0 %v4959
    %5805 = vmatprep.subr.bf16.mxu0 %v4952
    %5806 = vmatpush1.bf16.msra.mxu0 %v4951
    %5807 = vmatprep.subr.bf16.mxu0 %v4944
    %5808 = vmatpush1.bf16.msra.mxu0 %v4943
    %5809 = vmatprep.subr.bf16.mxu0 %v5064
    %5810 = vmatpush2.bf16.msra.mxu0 %v5063
    %5811 = vmatprep.subr.bf16.mxu0 %v5056
    %5812 = vmatpush2.bf16.msra.mxu0 %v5055
    %5813 = vmatprep.subr.bf16.mxu0 %v5048
    %5814 = vmatpush2.bf16.msra.mxu0 %v5047
    %5815 = vmatprep.subr.bf16.mxu0 %v5040
    %5816 = vmatpush2.bf16.msra.mxu0 %v5039
    %5817 = vmatprep.subr.bf16.mxu0 %v5032
    %5818 = vmatpush2.bf16.msra.mxu0 %v5031
    %5819 = vmatprep.subr.bf16.mxu0 %v5024
    %5820 = vmatpush2.bf16.msra.mxu0 %v5023
    %5821 = vmatprep.subr.bf16.mxu0 %v5016
    %5822 = vmatpush2.bf16.msra.mxu0 %v5015
    %5823 = vmatprep.subr.bf16.mxu0 %v5008
    %5824 = vmatpush2.bf16.msra.mxu0 %v5007
    %5825 = vmatprep.mubr.bf16.mxu0 %v2594
    %5826 = vmatmul.mubr.bf16.gmra.mxu0 %v2593
    %v5827 = vpop.f32.mrf.mxu0
    %v5828 = vadd.f32 %v5787, %v5827
    %v5829 = vpop.f32.mrf.mxu0
    %v5830 = vadd.f32 %v5789, %v5829
    %v5831 = vpop.f32.mrf.mxu0
    %v5832 = vpop.f32.mrf.mxu0
    %5833 = vdwg.mxu0
    %5834 = vmatprep.subr.bf16.mxu0 %v5128
    %5835 = vmatpush1.bf16.msra.mxu0 %v5127
    %5836 = vmatprep.subr.bf16.mxu0 %v5120
    %5837 = vmatpush1.bf16.msra.mxu0 %v5119
    %5838 = vmatprep.subr.bf16.mxu0 %v5112
    %5839 = vmatpush1.bf16.msra.mxu0 %v5111
    %5840 = vmatprep.subr.bf16.mxu0 %v5104
    %5841 = vmatpush1.bf16.msra.mxu0 %v5103
    %5842 = vmatprep.subr.bf16.mxu0 %v5096
    %5843 = vmatpush1.bf16.msra.mxu0 %v5095
    %5844 = vmatprep.subr.bf16.mxu0 %v5088
    %5845 = vmatpush1.bf16.msra.mxu0 %v5087
    %5846 = vmatprep.subr.bf16.mxu0 %v5080
    %5847 = vmatpush1.bf16.msra.mxu0 %v5079
    %5848 = vmatprep.subr.bf16.mxu0 %v5072
    %5849 = vmatpush1.bf16.msra.mxu0 %v5071
    %5850 = vmatprep.subr.bf16.mxu0 %v5192
    %5851 = vmatpush2.bf16.msra.mxu0 %v5191
    %5852 = vmatprep.subr.bf16.mxu0 %v5184
    %5853 = vmatpush2.bf16.msra.mxu0 %v5183
    %5854 = vmatprep.subr.bf16.mxu0 %v5176
    %5855 = vmatpush2.bf16.msra.mxu0 %v5175
    %5856 = vmatprep.subr.bf16.mxu0 %v5168
    %5857 = vmatpush2.bf16.msra.mxu0 %v5167
    %5858 = vmatprep.subr.bf16.mxu0 %v5160
    %5859 = vmatpush2.bf16.msra.mxu0 %v5159
    %5860 = vmatprep.subr.bf16.mxu0 %v5152
    %5861 = vmatpush2.bf16.msra.mxu0 %v5151
    %5862 = vmatprep.subr.bf16.mxu0 %v5144
    %5863 = vmatpush2.bf16.msra.mxu0 %v5143
    %5864 = vmatprep.subr.bf16.mxu0 %v5136
    %5865 = vmatpush2.bf16.msra.mxu0 %v5135
    %5866 = vmatprep.mubr.bf16.mxu0 %v2596
    %5867 = vmatmul.mubr.bf16.gmra.mxu0 %v2595
    %v5868 = vpop.f32.mrf.mxu0
    %v5869 = vadd.f32 %v5828, %v5868
    %v5870 = vpop.f32.mrf.mxu0
    %v5871 = vadd.f32 %v5830, %v5870
    %v5872 = vpop.f32.mrf.mxu0
    %v5873 = vpop.f32.mrf.mxu0
    %5874 = vdwg.mxu0
    %5875 = vmatprep.subr.bf16.mxu0 %v4746
    %5876 = vmatpush1.bf16.msra.mxu0 %v4745
    %5877 = vmatprep.subr.bf16.mxu0 %v4738
    %5878 = vmatpush1.bf16.msra.mxu0 %v4737
    %5879 = vmatprep.subr.bf16.mxu0 %v4730
    %5880 = vmatpush1.bf16.msra.mxu0 %v4729
    %5881 = vmatprep.subr.bf16.mxu0 %v4722
    %5882 = vmatpush1.bf16.msra.mxu0 %v4721
    %5883 = vmatprep.subr.bf16.mxu0 %v4714
    %5884 = vmatpush1.bf16.msra.mxu0 %v4713
    %5885 = vmatprep.subr.bf16.mxu0 %v4706
    %5886 = vmatpush1.bf16.msra.mxu0 %v4705
    %5887 = vmatprep.subr.bf16.mxu0 %v4698
    %5888 = vmatpush1.bf16.msra.mxu0 %v4697
    %5889 = vmatprep.subr.bf16.mxu0 %v4690
    %5890 = vmatpush1.bf16.msra.mxu0 %v4689
    %5891 = vmatprep.subr.bf16.mxu0 %v4810
    %5892 = vmatpush2.bf16.msra.mxu0 %v4809
    %5893 = vmatprep.subr.bf16.mxu0 %v4802
    %5894 = vmatpush2.bf16.msra.mxu0 %v4801
    %5895 = vmatprep.subr.bf16.mxu0 %v4794
    %5896 = vmatpush2.bf16.msra.mxu0 %v4793
    %5897 = vmatprep.subr.bf16.mxu0 %v4786
    %5898 = vmatpush2.bf16.msra.mxu0 %v4785
    %5899 = vmatprep.subr.bf16.mxu0 %v4778
    %5900 = vmatpush2.bf16.msra.mxu0 %v4777
    %5901 = vmatprep.subr.bf16.mxu0 %v4770
    %5902 = vmatpush2.bf16.msra.mxu0 %v4769
    %5903 = vmatprep.subr.bf16.mxu0 %v4762
    %5904 = vmatpush2.bf16.msra.mxu0 %v4761
    %5905 = vmatprep.subr.bf16.mxu0 %v4754
    %5906 = vmatpush2.bf16.msra.mxu0 %v4753
    %5907 = vmatprep.mubr.bf16.mxu0 %v2590
    %5908 = vmatmul.mubr.bf16.gmra.mxu0 %v2589
    %v5909 = vpop.f32.mrf.mxu0
    %v5910 = vadd.f32 %v3122, %v5909
    %v5911 = vpop.f32.mrf.mxu0
    %v5912 = vadd.f32 %v3126, %v5911
    %v5913 = vpop.f32.mrf.mxu0
    %v5914 = vpop.f32.mrf.mxu0
    %5915 = vdwg.mxu0
    %5916 = vmatprep.subr.bf16.mxu0 %v4874
    %5917 = vmatpush1.bf16.msra.mxu0 %v4873
    %5918 = vmatprep.subr.bf16.mxu0 %v4866
    %5919 = vmatpush1.bf16.msra.mxu0 %v4865
    %5920 = vmatprep.subr.bf16.mxu0 %v4858
    %5921 = vmatpush1.bf16.msra.mxu0 %v4857
    %5922 = vmatprep.subr.bf16.mxu0 %v4850
    %5923 = vmatpush1.bf16.msra.mxu0 %v4849
    %5924 = vmatprep.subr.bf16.mxu0 %v4842
    %5925 = vmatpush1.bf16.msra.mxu0 %v4841
    %5926 = vmatprep.subr.bf16.mxu0 %v4834
    %5927 = vmatpush1.bf16.msra.mxu0 %v4833
    %5928 = vmatprep.subr.bf16.mxu0 %v4826
    %5929 = vmatpush1.bf16.msra.mxu0 %v4825
    %5930 = vmatprep.subr.bf16.mxu0 %v4818
    %5931 = vmatpush1.bf16.msra.mxu0 %v4817
    %5932 = vmatprep.subr.bf16.mxu0 %v4938
    %5933 = vmatpush2.bf16.msra.mxu0 %v4937
    %5934 = vmatprep.subr.bf16.mxu0 %v4930
    %5935 = vmatpush2.bf16.msra.mxu0 %v4929
    %5936 = vmatprep.subr.bf16.mxu0 %v4922
    %5937 = vmatpush2.bf16.msra.mxu0 %v4921
    %5938 = vmatprep.subr.bf16.mxu0 %v4914
    %5939 = vmatpush2.bf16.msra.mxu0 %v4913
    %5940 = vmatprep.subr.bf16.mxu0 %v4906
    %5941 = vmatpush2.bf16.msra.mxu0 %v4905
    %5942 = vmatprep.subr.bf16.mxu0 %v4898
    %5943 = vmatpush2.bf16.msra.mxu0 %v4897
    %5944 = vmatprep.subr.bf16.mxu0 %v4890
    %5945 = vmatpush2.bf16.msra.mxu0 %v4889
    %5946 = vmatprep.subr.bf16.mxu0 %v4882
    %5947 = vmatpush2.bf16.msra.mxu0 %v4881
    %5948 = vmatprep.mubr.bf16.mxu0 %v2592
    %5949 = vmatmul.mubr.bf16.gmra.mxu0 %v2591
    %v5950 = vpop.f32.mrf.mxu0
    %v5951 = vadd.f32 %v5910, %v5950
    %v5952 = vpop.f32.mrf.mxu0
    %v5953 = vadd.f32 %v5912, %v5952
    %v5954 = vpop.f32.mrf.mxu0
    %v5955 = vpop.f32.mrf.mxu0
    %5956 = vdwg.mxu0
    %5957 = vmatprep.subr.bf16.mxu0 %v5002
    %5958 = vmatpush1.bf16.msra.mxu0 %v5001
    %5959 = vmatprep.subr.bf16.mxu0 %v4994
    %5960 = vmatpush1.bf16.msra.mxu0 %v4993
    %5961 = vmatprep.subr.bf16.mxu0 %v4986
    %5962 = vmatpush1.bf16.msra.mxu0 %v4985
    %5963 = vmatprep.subr.bf16.mxu0 %v4978
    %5964 = vmatpush1.bf16.msra.mxu0 %v4977
    %5965 = vmatprep.subr.bf16.mxu0 %v4970
    %5966 = vmatpush1.bf16.msra.mxu0 %v4969
    %5967 = vmatprep.subr.bf16.mxu0 %v4962
    %5968 = vmatpush1.bf16.msra.mxu0 %v4961
    %5969 = vmatprep.subr.bf16.mxu0 %v4954
    %5970 = vmatpush1.bf16.msra.mxu0 %v4953
    %5971 = vmatprep.subr.bf16.mxu0 %v4946
    %5972 = vmatpush1.bf16.msra.mxu0 %v4945
    %5973 = vmatprep.subr.bf16.mxu0 %v5066
    %5974 = vmatpush2.bf16.msra.mxu0 %v5065
    %5975 = vmatprep.subr.bf16.mxu0 %v5058
    %5976 = vmatpush2.bf16.msra.mxu0 %v5057
    %5977 = vmatprep.subr.bf16.mxu0 %v5050
    %5978 = vmatpush2.bf16.msra.mxu0 %v5049
    %5979 = vmatprep.subr.bf16.mxu0 %v5042
    %5980 = vmatpush2.bf16.msra.mxu0 %v5041
    %5981 = vmatprep.subr.bf16.mxu0 %v5034
    %5982 = vmatpush2.bf16.msra.mxu0 %v5033
    %5983 = vmatprep.subr.bf16.mxu0 %v5026
    %5984 = vmatpush2.bf16.msra.mxu0 %v5025
    %5985 = vmatprep.subr.bf16.mxu0 %v5018
    %5986 = vmatpush2.bf16.msra.mxu0 %v5017
    %5987 = vmatprep.subr.bf16.mxu0 %v5010
    %5988 = vmatpush2.bf16.msra.mxu0 %v5009
    %5989 = vmatprep.mubr.bf16.mxu0 %v2594
    %5990 = vmatmul.mubr.bf16.gmra.mxu0 %v2593
    %v5991 = vpop.f32.mrf.mxu0
    %v5992 = vadd.f32 %v5951, %v5991
    %v5993 = vpop.f32.mrf.mxu0
    %v5994 = vadd.f32 %v5953, %v5993
    %v5995 = vpop.f32.mrf.mxu0
    %v5996 = vpop.f32.mrf.mxu0
    %5997 = vdwg.mxu0
    %5998 = vmatprep.subr.bf16.mxu0 %v5130
    %5999 = vmatpush1.bf16.msra.mxu0 %v5129
    %6000 = vmatprep.subr.bf16.mxu0 %v5122
    %6001 = vmatpush1.bf16.msra.mxu0 %v5121
    %6002 = vmatprep.subr.bf16.mxu0 %v5114
    %6003 = vmatpush1.bf16.msra.mxu0 %v5113
    %6004 = vmatprep.subr.bf16.mxu0 %v5106
    %6005 = vmatpush1.bf16.msra.mxu0 %v5105
    %6006 = vmatprep.subr.bf16.mxu0 %v5098
    %6007 = vmatpush1.bf16.msra.mxu0 %v5097
    %6008 = vmatprep.subr.bf16.mxu0 %v5090
    %6009 = vmatpush1.bf16.msra.mxu0 %v5089
    %6010 = vmatprep.subr.bf16.mxu0 %v5082
    %6011 = vmatpush1.bf16.msra.mxu0 %v5081
    %6012 = vmatprep.subr.bf16.mxu0 %v5074
    %6013 = vmatpush1.bf16.msra.mxu0 %v5073
    %6014 = vmatprep.subr.bf16.mxu0 %v5194
    %6015 = vmatpush2.bf16.msra.mxu0 %v5193
    %6016 = vmatprep.subr.bf16.mxu0 %v5186
    %6017 = vmatpush2.bf16.msra.mxu0 %v5185
    %6018 = vmatprep.subr.bf16.mxu0 %v5178
    %6019 = vmatpush2.bf16.msra.mxu0 %v5177
    %6020 = vmatprep.subr.bf16.mxu0 %v5170
    %6021 = vmatpush2.bf16.msra.mxu0 %v5169
    %6022 = vmatprep.subr.bf16.mxu0 %v5162
    %6023 = vmatpush2.bf16.msra.mxu0 %v5161
    %6024 = vmatprep.subr.bf16.mxu0 %v5154
    %6025 = vmatpush2.bf16.msra.mxu0 %v5153
    %6026 = vmatprep.subr.bf16.mxu0 %v5146
    %6027 = vmatpush2.bf16.msra.mxu0 %v5145
    %6028 = vmatprep.subr.bf16.mxu0 %v5138
    %6029 = vmatpush2.bf16.msra.mxu0 %v5137
    %6030 = vmatprep.mubr.bf16.mxu0 %v2596
    %6031 = vmatmul.mubr.bf16.gmra.mxu0 %v2595
    %v6032 = vpop.f32.mrf.mxu0
    %v6033 = vadd.f32 %v5992, %v6032
    %v6034 = vpop.f32.mrf.mxu0
    %v6035 = vadd.f32 %v5994, %v6034
    %v6036 = vpop.f32.mrf.mxu0
    %v6037 = vpop.f32.mrf.mxu0
    %6038 = vdwg.mxu0
    %6039 = vmatprep.subr.bf16.mxu0 %v4748
    %6040 = vmatpush1.bf16.msra.mxu0 %v4747
    %6041 = vmatprep.subr.bf16.mxu0 %v4740
    %6042 = vmatpush1.bf16.msra.mxu0 %v4739
    %6043 = vmatprep.subr.bf16.mxu0 %v4732
    %6044 = vmatpush1.bf16.msra.mxu0 %v4731
    %6045 = vmatprep.subr.bf16.mxu0 %v4724
    %6046 = vmatpush1.bf16.msra.mxu0 %v4723
    %6047 = vmatprep.subr.bf16.mxu0 %v4716
    %6048 = vmatpush1.bf16.msra.mxu0 %v4715
    %6049 = vmatprep.subr.bf16.mxu0 %v4708
    %6050 = vmatpush1.bf16.msra.mxu0 %v4707
    %6051 = vmatprep.subr.bf16.mxu0 %v4700
    %6052 = vmatpush1.bf16.msra.mxu0 %v4699
    %6053 = vmatprep.subr.bf16.mxu0 %v4692
    %6054 = vmatpush1.bf16.msra.mxu0 %v4691
    %6055 = vmatprep.subr.bf16.mxu0 %v4812
    %6056 = vmatpush2.bf16.msra.mxu0 %v4811
    %6057 = vmatprep.subr.bf16.mxu0 %v4804
    %6058 = vmatpush2.bf16.msra.mxu0 %v4803
    %6059 = vmatprep.subr.bf16.mxu0 %v4796
    %6060 = vmatpush2.bf16.msra.mxu0 %v4795
    %6061 = vmatprep.subr.bf16.mxu0 %v4788
    %6062 = vmatpush2.bf16.msra.mxu0 %v4787
    %6063 = vmatprep.subr.bf16.mxu0 %v4780
    %6064 = vmatpush2.bf16.msra.mxu0 %v4779
    %6065 = vmatprep.subr.bf16.mxu0 %v4772
    %6066 = vmatpush2.bf16.msra.mxu0 %v4771
    %6067 = vmatprep.subr.bf16.mxu0 %v4764
    %6068 = vmatpush2.bf16.msra.mxu0 %v4763
    %6069 = vmatprep.subr.bf16.mxu0 %v4756
    %6070 = vmatpush2.bf16.msra.mxu0 %v4755
    %6071 = vmatprep.mubr.bf16.mxu0 %v2590
    %6072 = vmatmul.mubr.bf16.gmra.mxu0 %v2589
    %v6073 = vpop.f32.mrf.mxu0
    %v6074 = vadd.f32 %v3130, %v6073
    %v6075 = vpop.f32.mrf.mxu0
    %v6076 = vadd.f32 %v3134, %v6075
    %v6077 = vpop.f32.mrf.mxu0
    %v6078 = vpop.f32.mrf.mxu0
    %6079 = vdwg.mxu0
    %6080 = vmatprep.subr.bf16.mxu0 %v4876
    %6081 = vmatpush1.bf16.msra.mxu0 %v4875
    %6082 = vmatprep.subr.bf16.mxu0 %v4868
    %6083 = vmatpush1.bf16.msra.mxu0 %v4867
    %6084 = vmatprep.subr.bf16.mxu0 %v4860
    %6085 = vmatpush1.bf16.msra.mxu0 %v4859
    %6086 = vmatprep.subr.bf16.mxu0 %v4852
    %6087 = vmatpush1.bf16.msra.mxu0 %v4851
    %6088 = vmatprep.subr.bf16.mxu0 %v4844
    %6089 = vmatpush1.bf16.msra.mxu0 %v4843
    %6090 = vmatprep.subr.bf16.mxu0 %v4836
    %6091 = vmatpush1.bf16.msra.mxu0 %v4835
    %6092 = vmatprep.subr.bf16.mxu0 %v4828
    %6093 = vmatpush1.bf16.msra.mxu0 %v4827
    %6094 = vmatprep.subr.bf16.mxu0 %v4820
    %6095 = vmatpush1.bf16.msra.mxu0 %v4819
    %6096 = vmatprep.subr.bf16.mxu0 %v4940
    %6097 = vmatpush2.bf16.msra.mxu0 %v4939
    %6098 = vmatprep.subr.bf16.mxu0 %v4932
    %6099 = vmatpush2.bf16.msra.mxu0 %v4931
    %6100 = vmatprep.subr.bf16.mxu0 %v4924
    %6101 = vmatpush2.bf16.msra.mxu0 %v4923
    %6102 = vmatprep.subr.bf16.mxu0 %v4916
    %6103 = vmatpush2.bf16.msra.mxu0 %v4915
    %6104 = vmatprep.subr.bf16.mxu0 %v4908
    %6105 = vmatpush2.bf16.msra.mxu0 %v4907
    %6106 = vmatprep.subr.bf16.mxu0 %v4900
    %6107 = vmatpush2.bf16.msra.mxu0 %v4899
    %6108 = vmatprep.subr.bf16.mxu0 %v4892
    %6109 = vmatpush2.bf16.msra.mxu0 %v4891
    %6110 = vmatprep.subr.bf16.mxu0 %v4884
    %6111 = vmatpush2.bf16.msra.mxu0 %v4883
    %6112 = vmatprep.mubr.bf16.mxu0 %v2592
    %6113 = vmatmul.mubr.bf16.gmra.mxu0 %v2591
    %v6114 = vpop.f32.mrf.mxu0
    %v6115 = vadd.f32 %v6074, %v6114
    %v6116 = vpop.f32.mrf.mxu0
    %v6117 = vadd.f32 %v6076, %v6116
    %v6118 = vpop.f32.mrf.mxu0
    %v6119 = vpop.f32.mrf.mxu0
    %6120 = vdwg.mxu0
    %6121 = vmatprep.subr.bf16.mxu0 %v5004
    %6122 = vmatpush1.bf16.msra.mxu0 %v5003
    %6123 = vmatprep.subr.bf16.mxu0 %v4996
    %6124 = vmatpush1.bf16.msra.mxu0 %v4995
    %6125 = vmatprep.subr.bf16.mxu0 %v4988
    %6126 = vmatpush1.bf16.msra.mxu0 %v4987
    %6127 = vmatprep.subr.bf16.mxu0 %v4980
    %6128 = vmatpush1.bf16.msra.mxu0 %v4979
    %6129 = vmatprep.subr.bf16.mxu0 %v4972
    %6130 = vmatpush1.bf16.msra.mxu0 %v4971
    %6131 = vmatprep.subr.bf16.mxu0 %v4964
    %6132 = vmatpush1.bf16.msra.mxu0 %v4963
    %6133 = vmatprep.subr.bf16.mxu0 %v4956
    %6134 = vmatpush1.bf16.msra.mxu0 %v4955
    %6135 = vmatprep.subr.bf16.mxu0 %v4948
    %6136 = vmatpush1.bf16.msra.mxu0 %v4947
    %6137 = vmatprep.subr.bf16.mxu0 %v5068
    %6138 = vmatpush2.bf16.msra.mxu0 %v5067
    %6139 = vmatprep.subr.bf16.mxu0 %v5060
    %6140 = vmatpush2.bf16.msra.mxu0 %v5059
    %6141 = vmatprep.subr.bf16.mxu0 %v5052
    %6142 = vmatpush2.bf16.msra.mxu0 %v5051
    %6143 = vmatprep.subr.bf16.mxu0 %v5044
    %6144 = vmatpush2.bf16.msra.mxu0 %v5043
    %6145 = vmatprep.subr.bf16.mxu0 %v5036
    %6146 = vmatpush2.bf16.msra.mxu0 %v5035
    %6147 = vmatprep.subr.bf16.mxu0 %v5028
    %6148 = vmatpush2.bf16.msra.mxu0 %v5027
    %6149 = vmatprep.subr.bf16.mxu0 %v5020
    %6150 = vmatpush2.bf16.msra.mxu0 %v5019
    %6151 = vmatprep.subr.bf16.mxu0 %v5012
    %6152 = vmatpush2.bf16.msra.mxu0 %v5011
    %6153 = vmatprep.mubr.bf16.mxu0 %v2594
    %6154 = vmatmul.mubr.bf16.gmra.mxu0 %v2593
    %v6155 = vpop.f32.mrf.mxu0
    %v6156 = vadd.f32 %v6115, %v6155
    %v6157 = vpop.f32.mrf.mxu0
    %v6158 = vadd.f32 %v6117, %v6157
    %v6159 = vpop.f32.mrf.mxu0
    %v6160 = vpop.f32.mrf.mxu0
    %6161 = vdwg.mxu0
    %6162 = vmatprep.subr.bf16.mxu0 %v5132
    %6163 = vmatpush1.bf16.msra.mxu0 %v5131
    %6164 = vmatprep.subr.bf16.mxu0 %v5124
    %6165 = vmatpush1.bf16.msra.mxu0 %v5123
    %6166 = vmatprep.subr.bf16.mxu0 %v5116
    %6167 = vmatpush1.bf16.msra.mxu0 %v5115
    %6168 = vmatprep.subr.bf16.mxu0 %v5108
    %6169 = vmatpush1.bf16.msra.mxu0 %v5107
    %6170 = vmatprep.subr.bf16.mxu0 %v5100
    %6171 = vmatpush1.bf16.msra.mxu0 %v5099
    %6172 = vmatprep.subr.bf16.mxu0 %v5092
    %6173 = vmatpush1.bf16.msra.mxu0 %v5091
    %6174 = vmatprep.subr.bf16.mxu0 %v5084
    %6175 = vmatpush1.bf16.msra.mxu0 %v5083
    %6176 = vmatprep.subr.bf16.mxu0 %v5076
    %6177 = vmatpush1.bf16.msra.mxu0 %v5075
    %6178 = vmatprep.subr.bf16.mxu0 %v5196
    %6179 = vmatpush2.bf16.msra.mxu0 %v5195
    %6180 = vmatprep.subr.bf16.mxu0 %v5188
    %6181 = vmatpush2.bf16.msra.mxu0 %v5187
    %6182 = vmatprep.subr.bf16.mxu0 %v5180
    %6183 = vmatpush2.bf16.msra.mxu0 %v5179
    %6184 = vmatprep.subr.bf16.mxu0 %v5172
    %6185 = vmatpush2.bf16.msra.mxu0 %v5171
    %6186 = vmatprep.subr.bf16.mxu0 %v5164
    %6187 = vmatpush2.bf16.msra.mxu0 %v5163
    %6188 = vmatprep.subr.bf16.mxu0 %v5156
    %6189 = vmatpush2.bf16.msra.mxu0 %v5155
    %6190 = vmatprep.subr.bf16.mxu0 %v5148
    %6191 = vmatpush2.bf16.msra.mxu0 %v5147
    %6192 = vmatprep.subr.bf16.mxu0 %v5140
    %6193 = vmatpush2.bf16.msra.mxu0 %v5139
    %6194 = vmatprep.mubr.bf16.mxu0 %v2596
    %6195 = vmatmul.mubr.bf16.gmra.mxu0 %v2595
    %v6196 = vpop.f32.mrf.mxu0
    %v6197 = vadd.f32 %v6156, %v6196
    %v6198 = vpop.f32.mrf.mxu0
    %v6199 = vadd.f32 %v6158, %v6198
    %v6200 = vpop.f32.mrf.mxu0
    %v6201 = vpop.f32.mrf.mxu0
    %6202 = vdwg.mxu0
    %6203 = vmatprep.subr.bf16.mxu0 %v4750
    %6204 = vmatpush1.bf16.msra.mxu0 %v4749
    %6205 = vmatprep.subr.bf16.mxu0 %v4742
    %6206 = vmatpush1.bf16.msra.mxu0 %v4741
    %6207 = vmatprep.subr.bf16.mxu0 %v4734
    %6208 = vmatpush1.bf16.msra.mxu0 %v4733
    %6209 = vmatprep.subr.bf16.mxu0 %v4726
    %6210 = vmatpush1.bf16.msra.mxu0 %v4725
    %6211 = vmatprep.subr.bf16.mxu0 %v4718
    %6212 = vmatpush1.bf16.msra.mxu0 %v4717
    %6213 = vmatprep.subr.bf16.mxu0 %v4710
    %6214 = vmatpush1.bf16.msra.mxu0 %v4709
    %6215 = vmatprep.subr.bf16.mxu0 %v4702
    %6216 = vmatpush1.bf16.msra.mxu0 %v4701
    %6217 = vmatprep.subr.bf16.mxu0 %v4694
    %6218 = vmatpush1.bf16.msra.mxu0 %v4693
    %6219 = vmatprep.subr.bf16.mxu0 %v4814
    %6220 = vmatpush2.bf16.msra.mxu0 %v4813
    %6221 = vmatprep.subr.bf16.mxu0 %v4806
    %6222 = vmatpush2.bf16.msra.mxu0 %v4805
    %6223 = vmatprep.subr.bf16.mxu0 %v4798
    %6224 = vmatpush2.bf16.msra.mxu0 %v4797
    %6225 = vmatprep.subr.bf16.mxu0 %v4790
    %6226 = vmatpush2.bf16.msra.mxu0 %v4789
    %6227 = vmatprep.subr.bf16.mxu0 %v4782
    %6228 = vmatpush2.bf16.msra.mxu0 %v4781
    %6229 = vmatprep.subr.bf16.mxu0 %v4774
    %6230 = vmatpush2.bf16.msra.mxu0 %v4773
    %6231 = vmatprep.subr.bf16.mxu0 %v4766
    %6232 = vmatpush2.bf16.msra.mxu0 %v4765
    %6233 = vmatprep.subr.bf16.mxu0 %v4758
    %6234 = vmatpush2.bf16.msra.mxu0 %v4757
    %6235 = vmatprep.mubr.bf16.mxu0 %v2590
    %6236 = vmatmul.mubr.bf16.gmra.mxu0 %v2589
    %v6237 = vpop.f32.mrf.mxu0
    %v6238 = vadd.f32 %v3138, %v6237
    %v6239 = vpop.f32.mrf.mxu0
    %v6240 = vadd.f32 %v3142, %v6239
    %v6241 = vpop.f32.mrf.mxu0
    %v6242 = vpop.f32.mrf.mxu0
    %6243 = vdwg.mxu0
    %6244 = vmatprep.subr.bf16.mxu0 %v4878
    %6245 = vmatpush1.bf16.msra.mxu0 %v4877
    %6246 = vmatprep.subr.bf16.mxu0 %v4870
    %6247 = vmatpush1.bf16.msra.mxu0 %v4869
    %6248 = vmatprep.subr.bf16.mxu0 %v4862
    %6249 = vmatpush1.bf16.msra.mxu0 %v4861
    %6250 = vmatprep.subr.bf16.mxu0 %v4854
    %6251 = vmatpush1.bf16.msra.mxu0 %v4853
    %6252 = vmatprep.subr.bf16.mxu0 %v4846
    %6253 = vmatpush1.bf16.msra.mxu0 %v4845
    %6254 = vmatprep.subr.bf16.mxu0 %v4838
    %6255 = vmatpush1.bf16.msra.mxu0 %v4837
    %6256 = vmatprep.subr.bf16.mxu0 %v4830
    %6257 = vmatpush1.bf16.msra.mxu0 %v4829
    %6258 = vmatprep.subr.bf16.mxu0 %v4822
    %6259 = vmatpush1.bf16.msra.mxu0 %v4821
    %6260 = vmatprep.subr.bf16.mxu0 %v4942
    %6261 = vmatpush2.bf16.msra.mxu0 %v4941
    %6262 = vmatprep.subr.bf16.mxu0 %v4934
    %6263 = vmatpush2.bf16.msra.mxu0 %v4933
    %6264 = vmatprep.subr.bf16.mxu0 %v4926
    %6265 = vmatpush2.bf16.msra.mxu0 %v4925
    %6266 = vmatprep.subr.bf16.mxu0 %v4918
    %6267 = vmatpush2.bf16.msra.mxu0 %v4917
    %6268 = vmatprep.subr.bf16.mxu0 %v4910
    %6269 = vmatpush2.bf16.msra.mxu0 %v4909
    %6270 = vmatprep.subr.bf16.mxu0 %v4902
    %6271 = vmatpush2.bf16.msra.mxu0 %v4901
    %6272 = vmatprep.subr.bf16.mxu0 %v4894
    %6273 = vmatpush2.bf16.msra.mxu0 %v4893
    %6274 = vmatprep.subr.bf16.mxu0 %v4886
    %6275 = vmatpush2.bf16.msra.mxu0 %v4885
    %6276 = vmatprep.mubr.bf16.mxu0 %v2592
    %6277 = vmatmul.mubr.bf16.gmra.mxu0 %v2591
    %v6278 = vpop.f32.mrf.mxu0
    %v6279 = vadd.f32 %v6238, %v6278
    %v6280 = vpop.f32.mrf.mxu0
    %v6281 = vadd.f32 %v6240, %v6280
    %v6282 = vpop.f32.mrf.mxu0
    %v6283 = vpop.f32.mrf.mxu0
    %6284 = vdwg.mxu0
    %6285 = vmatprep.subr.bf16.mxu0 %v5006
    %6286 = vmatpush1.bf16.msra.mxu0 %v5005
    %6287 = vmatprep.subr.bf16.mxu0 %v4998
    %6288 = vmatpush1.bf16.msra.mxu0 %v4997
    %6289 = vmatprep.subr.bf16.mxu0 %v4990
    %6290 = vmatpush1.bf16.msra.mxu0 %v4989
    %6291 = vmatprep.subr.bf16.mxu0 %v4982
    %6292 = vmatpush1.bf16.msra.mxu0 %v4981
    %6293 = vmatprep.subr.bf16.mxu0 %v4974
    %6294 = vmatpush1.bf16.msra.mxu0 %v4973
    %6295 = vmatprep.subr.bf16.mxu0 %v4966
    %6296 = vmatpush1.bf16.msra.mxu0 %v4965
    %6297 = vmatprep.subr.bf16.mxu0 %v4958
    %6298 = vmatpush1.bf16.msra.mxu0 %v4957
    %6299 = vmatprep.subr.bf16.mxu0 %v4950
    %6300 = vmatpush1.bf16.msra.mxu0 %v4949
    %6301 = vmatprep.subr.bf16.mxu0 %v5070
    %6302 = vmatpush2.bf16.msra.mxu0 %v5069
    %6303 = vmatprep.subr.bf16.mxu0 %v5062
    %6304 = vmatpush2.bf16.msra.mxu0 %v5061
    %6305 = vmatprep.subr.bf16.mxu0 %v5054
    %6306 = vmatpush2.bf16.msra.mxu0 %v5053
    %6307 = vmatprep.subr.bf16.mxu0 %v5046
    %6308 = vmatpush2.bf16.msra.mxu0 %v5045
    %6309 = vmatprep.subr.bf16.mxu0 %v5038
    %6310 = vmatpush2.bf16.msra.mxu0 %v5037
    %6311 = vmatprep.subr.bf16.mxu0 %v5030
    %6312 = vmatpush2.bf16.msra.mxu0 %v5029
    %6313 = vmatprep.subr.bf16.mxu0 %v5022
    %6314 = vmatpush2.bf16.msra.mxu0 %v5021
    %6315 = vmatprep.subr.bf16.mxu0 %v5014
    %6316 = vmatpush2.bf16.msra.mxu0 %v5013
    %6317 = vmatprep.mubr.bf16.mxu0 %v2594
    %6318 = vmatmul.mubr.bf16.gmra.mxu0 %v2593
    %v6319 = vpop.f32.mrf.mxu0
    %v6320 = vadd.f32 %v6279, %v6319
    %v6321 = vpop.f32.mrf.mxu0
    %v6322 = vadd.f32 %v6281, %v6321
    %v6323 = vpop.f32.mrf.mxu0
    %v6324 = vpop.f32.mrf.mxu0
    %6325 = vdwg.mxu0
    %6326 = vmatprep.subr.bf16.mxu0 %v5134
    %6327 = vmatpush1.bf16.msra.mxu0 %v5133
    %6328 = vmatprep.subr.bf16.mxu0 %v5126
    %6329 = vmatpush1.bf16.msra.mxu0 %v5125
    %6330 = vmatprep.subr.bf16.mxu0 %v5118
    %6331 = vmatpush1.bf16.msra.mxu0 %v5117
    %6332 = vmatprep.subr.bf16.mxu0 %v5110
    %6333 = vmatpush1.bf16.msra.mxu0 %v5109
    %6334 = vmatprep.subr.bf16.mxu0 %v5102
    %6335 = vmatpush1.bf16.msra.mxu0 %v5101
    %6336 = vmatprep.subr.bf16.mxu0 %v5094
    %6337 = vmatpush1.bf16.msra.mxu0 %v5093
    %6338 = vmatprep.subr.bf16.mxu0 %v5086
    %6339 = vmatpush1.bf16.msra.mxu0 %v5085
    %6340 = vmatprep.subr.bf16.mxu0 %v5078
    %6341 = vmatpush1.bf16.msra.mxu0 %v5077
    %6342 = vmatprep.subr.bf16.mxu0 %v5198
    %6343 = vmatpush2.bf16.msra.mxu0 %v5197
    %6344 = vmatprep.subr.bf16.mxu0 %v5190
    %6345 = vmatpush2.bf16.msra.mxu0 %v5189
    %6346 = vmatprep.subr.bf16.mxu0 %v5182
    %6347 = vmatpush2.bf16.msra.mxu0 %v5181
    %6348 = vmatprep.subr.bf16.mxu0 %v5174
    %6349 = vmatpush2.bf16.msra.mxu0 %v5173
    %6350 = vmatprep.subr.bf16.mxu0 %v5166
    %6351 = vmatpush2.bf16.msra.mxu0 %v5165
    %6352 = vmatprep.subr.bf16.mxu0 %v5158
    %6353 = vmatpush2.bf16.msra.mxu0 %v5157
    %6354 = vmatprep.subr.bf16.mxu0 %v5150
    %6355 = vmatpush2.bf16.msra.mxu0 %v5149
    %6356 = vmatprep.subr.bf16.mxu0 %v5142
    %6357 = vmatpush2.bf16.msra.mxu0 %v5141
    %6358 = vmatprep.mubr.bf16.mxu0 %v2596
    %6359 = vmatmul.mubr.bf16.gmra.mxu0 %v2595
    %v6360 = vpop.f32.mrf.mxu0
    %v6361 = vadd.f32 %v6320, %v6360
    %v6362 = vpop.f32.mrf.mxu0
    %v6363 = vadd.f32 %v6322, %v6362
    %v6364 = vpop.f32.mrf.mxu0
    %v6365 = vpop.f32.mrf.mxu0
    %6366 = vdwg.mxu0
    %v6367 = vmax.f32 %v5869, 0.0
    %v6368 = vmax.f32 %v5871, 0.0
    %v6369 = vmax.f32 %v6033, 0.0
    %v6370 = vmax.f32 %v6035, 0.0
    %v6371 = vmax.f32 %v6197, 0.0
    %v6372 = vmax.f32 %v6199, 0.0
    %v6373 = vmax.f32 %v6361, 0.0
    %v6374 = vmax.f32 %v6363, 0.0
    %v6375 = vpack.c.bf16 %v6367, %v6367
    %v6376 = vpack.c.bf16 %v6368, %v6368
    %v6377 = vpack.c.bf16 %v6369, %v6369
    %v6378 = vpack.c.bf16 %v6370, %v6370
    %v6379 = vpack.c.bf16 %v6371, %v6371
    %v6380 = vpack.c.bf16 %v6372, %v6372
    %v6381 = vpack.c.bf16 %v6373, %v6373
    %v6382 = vpack.c.bf16 %v6374, %v6374
    %v6383 = vld [vmem:[#allocation13] sm:$0xff]
    %v6384 = vld [vmem:[#allocation13 + $0x8] sm:$0xff]
    %v6385 = vld [vmem:[#allocation13 + $0x10] sm:$0xff]
    %v6386 = vld [vmem:[#allocation13 + $0x18] sm:$0xff]
    %v6387 = vld [vmem:[#allocation13 + $0x20] sm:$0xff]
    %v6388 = vld [vmem:[#allocation13 + $0x28] sm:$0xff]
    %v6389 = vld [vmem:[#allocation13 + $0x30] sm:$0xff]
    %v6390 = vld [vmem:[#allocation13 + $0x38] sm:$0xff]
    %v6391 = vld [vmem:[#allocation13 + $0x40] sm:$0xff]
    %v6392 = vld [vmem:[#allocation13 + $0x48] sm:$0xff]
    %v6393 = vld [vmem:[#allocation13 + $0x50] sm:$0xff]
    %v6394 = vld [vmem:[#allocation13 + $0x58] sm:$0xff]
    %v6395 = vld [vmem:[#allocation13 + $0x60] sm:$0xff]
    %v6396 = vld [vmem:[#allocation13 + $0x68] sm:$0xff]
    %v6397 = vld [vmem:[#allocation13 + $0x70] sm:$0xff]
    %v6398 = vld [vmem:[#allocation13 + $0x78] sm:$0xff]
    %v6399 = vld [vmem:[#allocation13 + $0x80] sm:$0xff]
    %v6400 = vld [vmem:[#allocation13 + $0x88] sm:$0xff]
    %v6401 = vld [vmem:[#allocation13 + $0x90] sm:$0xff]
    %v6402 = vld [vmem:[#allocation13 + $0x98] sm:$0xff]
    %v6403 = vld [vmem:[#allocation13 + $0xa0] sm:$0xff]
    %v6404 = vld [vmem:[#allocation13 + $0xa8] sm:$0xff]
    %v6405 = vld [vmem:[#allocation13 + $0xb0] sm:$0xff]
    %v6406 = vld [vmem:[#allocation13 + $0xb8] sm:$0xff]
    %v6407 = vld [vmem:[#allocation13 + $0xc0] sm:$0xff]
    %v6408 = vld [vmem:[#allocation13 + $0xc8] sm:$0xff]
    %v6409 = vld [vmem:[#allocation13 + $0xd0] sm:$0xff]
    %v6410 = vld [vmem:[#allocation13 + $0xd8] sm:$0xff]
    %v6411 = vld [vmem:[#allocation13 + $0xe0] sm:$0xff]
    %v6412 = vld [vmem:[#allocation13 + $0xe8] sm:$0xff]
    %v6413 = vld [vmem:[#allocation13 + $0xf0] sm:$0xff]
    %v6414 = vld [vmem:[#allocation13 + $0xf8] sm:$0xff]
    %v6415 = vld [vmem:[#allocation13 + $0x100] sm:$0xff]
    %v6416 = vld [vmem:[#allocation13 + $0x108] sm:$0xff]
    %v6417 = vld [vmem:[#allocation13 + $0x110] sm:$0xff]
    %v6418 = vld [vmem:[#allocation13 + $0x118] sm:$0xff]
    %v6419 = vld [vmem:[#allocation13 + $0x120] sm:$0xff]
    %v6420 = vld [vmem:[#allocation13 + $0x128] sm:$0xff]
    %v6421 = vld [vmem:[#allocation13 + $0x130] sm:$0xff]
    %v6422 = vld [vmem:[#allocation13 + $0x138] sm:$0xff]
    %v6423 = vld [vmem:[#allocation13 + $0x140] sm:$0xff]
    %v6424 = vld [vmem:[#allocation13 + $0x148] sm:$0xff]
    %v6425 = vld [vmem:[#allocation13 + $0x150] sm:$0xff]
    %v6426 = vld [vmem:[#allocation13 + $0x158] sm:$0xff]
    %v6427 = vld [vmem:[#allocation13 + $0x160] sm:$0xff]
    %v6428 = vld [vmem:[#allocation13 + $0x168] sm:$0xff]
    %v6429 = vld [vmem:[#allocation13 + $0x170] sm:$0xff]
    %v6430 = vld [vmem:[#allocation13 + $0x178] sm:$0xff]
    %v6431 = vld [vmem:[#allocation13 + $0x180] sm:$0xff]
    %v6432 = vld [vmem:[#allocation13 + $0x188] sm:$0xff]
    %v6433 = vld [vmem:[#allocation13 + $0x190] sm:$0xff]
    %v6434 = vld [vmem:[#allocation13 + $0x198] sm:$0xff]
    %v6435 = vld [vmem:[#allocation13 + $0x1a0] sm:$0xff]
    %v6436 = vld [vmem:[#allocation13 + $0x1a8] sm:$0xff]
    %v6437 = vld [vmem:[#allocation13 + $0x1b0] sm:$0xff]
    %v6438 = vld [vmem:[#allocation13 + $0x1b8] sm:$0xff]
    %v6439 = vld [vmem:[#allocation13 + $0x1c0] sm:$0xff]
    %v6440 = vld [vmem:[#allocation13 + $0x1c8] sm:$0xff]
    %v6441 = vld [vmem:[#allocation13 + $0x1d0] sm:$0xff]
    %v6442 = vld [vmem:[#allocation13 + $0x1d8] sm:$0xff]
    %v6443 = vld [vmem:[#allocation13 + $0x1e0] sm:$0xff]
    %v6444 = vld [vmem:[#allocation13 + $0x1e8] sm:$0xff]
    %v6445 = vld [vmem:[#allocation13 + $0x1f0] sm:$0xff]
    %v6446 = vld [vmem:[#allocation13 + $0x1f8] sm:$0xff]
    %v6447 = vld [vmem:[#allocation13 + $0x200] sm:$0xff]
    %v6448 = vld [vmem:[#allocation13 + $0x208] sm:$0xff]
    %v6449 = vld [vmem:[#allocation13 + $0x210] sm:$0xff]
    %v6450 = vld [vmem:[#allocation13 + $0x218] sm:$0xff]
    %v6451 = vld [vmem:[#allocation13 + $0x220] sm:$0xff]
    %v6452 = vld [vmem:[#allocation13 + $0x228] sm:$0xff]
    %v6453 = vld [vmem:[#allocation13 + $0x230] sm:$0xff]
    %v6454 = vld [vmem:[#allocation13 + $0x238] sm:$0xff]
    %v6455 = vld [vmem:[#allocation13 + $0x240] sm:$0xff]
    %v6456 = vld [vmem:[#allocation13 + $0x248] sm:$0xff]
    %v6457 = vld [vmem:[#allocation13 + $0x250] sm:$0xff]
    %v6458 = vld [vmem:[#allocation13 + $0x258] sm:$0xff]
    %v6459 = vld [vmem:[#allocation13 + $0x260] sm:$0xff]
    %v6460 = vld [vmem:[#allocation13 + $0x268] sm:$0xff]
    %v6461 = vld [vmem:[#allocation13 + $0x270] sm:$0xff]
    %v6462 = vld [vmem:[#allocation13 + $0x278] sm:$0xff]
    %v6463 = vld [vmem:[#allocation13 + $0x280] sm:$0xff]
    %v6464 = vld [vmem:[#allocation13 + $0x288] sm:$0xff]
    %v6465 = vld [vmem:[#allocation13 + $0x290] sm:$0xff]
    %v6466 = vld [vmem:[#allocation13 + $0x298] sm:$0xff]
    %v6467 = vld [vmem:[#allocation13 + $0x2a0] sm:$0xff]
    %v6468 = vld [vmem:[#allocation13 + $0x2a8] sm:$0xff]
    %v6469 = vld [vmem:[#allocation13 + $0x2b0] sm:$0xff]
    %v6470 = vld [vmem:[#allocation13 + $0x2b8] sm:$0xff]
    %v6471 = vld [vmem:[#allocation13 + $0x2c0] sm:$0xff]
    %v6472 = vld [vmem:[#allocation13 + $0x2c8] sm:$0xff]
    %v6473 = vld [vmem:[#allocation13 + $0x2d0] sm:$0xff]
    %v6474 = vld [vmem:[#allocation13 + $0x2d8] sm:$0xff]
    %v6475 = vld [vmem:[#allocation13 + $0x2e0] sm:$0xff]
    %v6476 = vld [vmem:[#allocation13 + $0x2e8] sm:$0xff]
    %v6477 = vld [vmem:[#allocation13 + $0x2f0] sm:$0xff]
    %v6478 = vld [vmem:[#allocation13 + $0x2f8] sm:$0xff]
    %v6479 = vld [vmem:[#allocation13 + $0x300] sm:$0xff]
    %v6480 = vld [vmem:[#allocation13 + $0x308] sm:$0xff]
    %v6481 = vld [vmem:[#allocation13 + $0x310] sm:$0xff]
    %v6482 = vld [vmem:[#allocation13 + $0x318] sm:$0xff]
    %v6483 = vld [vmem:[#allocation13 + $0x320] sm:$0xff]
    %v6484 = vld [vmem:[#allocation13 + $0x328] sm:$0xff]
    %v6485 = vld [vmem:[#allocation13 + $0x330] sm:$0xff]
    %v6486 = vld [vmem:[#allocation13 + $0x338] sm:$0xff]
    %v6487 = vld [vmem:[#allocation13 + $0x340] sm:$0xff]
    %v6488 = vld [vmem:[#allocation13 + $0x348] sm:$0xff]
    %v6489 = vld [vmem:[#allocation13 + $0x350] sm:$0xff]
    %v6490 = vld [vmem:[#allocation13 + $0x358] sm:$0xff]
    %v6491 = vld [vmem:[#allocation13 + $0x360] sm:$0xff]
    %v6492 = vld [vmem:[#allocation13 + $0x368] sm:$0xff]
    %v6493 = vld [vmem:[#allocation13 + $0x370] sm:$0xff]
    %v6494 = vld [vmem:[#allocation13 + $0x378] sm:$0xff]
    %v6495 = vld [vmem:[#allocation13 + $0x380] sm:$0xff]
    %v6496 = vld [vmem:[#allocation13 + $0x388] sm:$0xff]
    %v6497 = vld [vmem:[#allocation13 + $0x390] sm:$0xff]
    %v6498 = vld [vmem:[#allocation13 + $0x398] sm:$0xff]
    %v6499 = vld [vmem:[#allocation13 + $0x3a0] sm:$0xff]
    %v6500 = vld [vmem:[#allocation13 + $0x3a8] sm:$0xff]
    %v6501 = vld [vmem:[#allocation13 + $0x3b0] sm:$0xff]
    %v6502 = vld [vmem:[#allocation13 + $0x3b8] sm:$0xff]
    %v6503 = vld [vmem:[#allocation13 + $0x3c0] sm:$0xff]
    %v6504 = vld [vmem:[#allocation13 + $0x3c8] sm:$0xff]
    %v6505 = vld [vmem:[#allocation13 + $0x3d0] sm:$0xff]
    %v6506 = vld [vmem:[#allocation13 + $0x3d8] sm:$0xff]
    %v6507 = vld [vmem:[#allocation13 + $0x3e0] sm:$0xff]
    %v6508 = vld [vmem:[#allocation13 + $0x3e8] sm:$0xff]
    %v6509 = vld [vmem:[#allocation13 + $0x3f0] sm:$0xff]
    %v6510 = vld [vmem:[#allocation13 + $0x3f8] sm:$0xff]
    %v6511 = vld [vmem:[#allocation13 + $0x400] sm:$0xff]
    %v6512 = vld [vmem:[#allocation13 + $0x408] sm:$0xff]
    %v6513 = vld [vmem:[#allocation13 + $0x410] sm:$0xff]
    %v6514 = vld [vmem:[#allocation13 + $0x418] sm:$0xff]
    %v6515 = vld [vmem:[#allocation13 + $0x420] sm:$0xff]
    %v6516 = vld [vmem:[#allocation13 + $0x428] sm:$0xff]
    %v6517 = vld [vmem:[#allocation13 + $0x430] sm:$0xff]
    %v6518 = vld [vmem:[#allocation13 + $0x438] sm:$0xff]
    %v6519 = vld [vmem:[#allocation13 + $0x440] sm:$0xff]
    %v6520 = vld [vmem:[#allocation13 + $0x448] sm:$0xff]
    %v6521 = vld [vmem:[#allocation13 + $0x450] sm:$0xff]
    %v6522 = vld [vmem:[#allocation13 + $0x458] sm:$0xff]
    %v6523 = vld [vmem:[#allocation13 + $0x460] sm:$0xff]
    %v6524 = vld [vmem:[#allocation13 + $0x468] sm:$0xff]
    %v6525 = vld [vmem:[#allocation13 + $0x470] sm:$0xff]
    %v6526 = vld [vmem:[#allocation13 + $0x478] sm:$0xff]
    %v6527 = vld [vmem:[#allocation13 + $0x480] sm:$0xff]
    %v6528 = vld [vmem:[#allocation13 + $0x488] sm:$0xff]
    %v6529 = vld [vmem:[#allocation13 + $0x490] sm:$0xff]
    %v6530 = vld [vmem:[#allocation13 + $0x498] sm:$0xff]
    %v6531 = vld [vmem:[#allocation13 + $0x4a0] sm:$0xff]
    %v6532 = vld [vmem:[#allocation13 + $0x4a8] sm:$0xff]
    %v6533 = vld [vmem:[#allocation13 + $0x4b0] sm:$0xff]
    %v6534 = vld [vmem:[#allocation13 + $0x4b8] sm:$0xff]
    %v6535 = vld [vmem:[#allocation13 + $0x4c0] sm:$0xff]
    %v6536 = vld [vmem:[#allocation13 + $0x4c8] sm:$0xff]
    %v6537 = vld [vmem:[#allocation13 + $0x4d0] sm:$0xff]
    %v6538 = vld [vmem:[#allocation13 + $0x4d8] sm:$0xff]
    %v6539 = vld [vmem:[#allocation13 + $0x4e0] sm:$0xff]
    %v6540 = vld [vmem:[#allocation13 + $0x4e8] sm:$0xff]
    %v6541 = vld [vmem:[#allocation13 + $0x4f0] sm:$0xff]
    %v6542 = vld [vmem:[#allocation13 + $0x4f8] sm:$0xff]
    %v6543 = vld [vmem:[#allocation13 + $0x500] sm:$0xff]
    %v6544 = vld [vmem:[#allocation13 + $0x508] sm:$0xff]
    %v6545 = vld [vmem:[#allocation13 + $0x510] sm:$0xff]
    %v6546 = vld [vmem:[#allocation13 + $0x518] sm:$0xff]
    %v6547 = vld [vmem:[#allocation13 + $0x520] sm:$0xff]
    %v6548 = vld [vmem:[#allocation13 + $0x528] sm:$0xff]
    %v6549 = vld [vmem:[#allocation13 + $0x530] sm:$0xff]
    %v6550 = vld [vmem:[#allocation13 + $0x538] sm:$0xff]
    %v6551 = vld [vmem:[#allocation13 + $0x540] sm:$0xff]
    %v6552 = vld [vmem:[#allocation13 + $0x548] sm:$0xff]
    %v6553 = vld [vmem:[#allocation13 + $0x550] sm:$0xff]
    %v6554 = vld [vmem:[#allocation13 + $0x558] sm:$0xff]
    %v6555 = vld [vmem:[#allocation13 + $0x560] sm:$0xff]
    %v6556 = vld [vmem:[#allocation13 + $0x568] sm:$0xff]
    %v6557 = vld [vmem:[#allocation13 + $0x570] sm:$0xff]
    %v6558 = vld [vmem:[#allocation13 + $0x578] sm:$0xff]
    %v6559 = vld [vmem:[#allocation13 + $0x580] sm:$0xff]
    %v6560 = vld [vmem:[#allocation13 + $0x588] sm:$0xff]
    %v6561 = vld [vmem:[#allocation13 + $0x590] sm:$0xff]
    %v6562 = vld [vmem:[#allocation13 + $0x598] sm:$0xff]
    %v6563 = vld [vmem:[#allocation13 + $0x5a0] sm:$0xff]
    %v6564 = vld [vmem:[#allocation13 + $0x5a8] sm:$0xff]
    %v6565 = vld [vmem:[#allocation13 + $0x5b0] sm:$0xff]
    %v6566 = vld [vmem:[#allocation13 + $0x5b8] sm:$0xff]
    %v6567 = vld [vmem:[#allocation13 + $0x5c0] sm:$0xff]
    %v6568 = vld [vmem:[#allocation13 + $0x5c8] sm:$0xff]
    %v6569 = vld [vmem:[#allocation13 + $0x5d0] sm:$0xff]
    %v6570 = vld [vmem:[#allocation13 + $0x5d8] sm:$0xff]
    %v6571 = vld [vmem:[#allocation13 + $0x5e0] sm:$0xff]
    %v6572 = vld [vmem:[#allocation13 + $0x5e8] sm:$0xff]
    %v6573 = vld [vmem:[#allocation13 + $0x5f0] sm:$0xff]
    %v6574 = vld [vmem:[#allocation13 + $0x5f8] sm:$0xff]
    %v6575 = vld [vmem:[#allocation13 + $0x600] sm:$0xff]
    %v6576 = vld [vmem:[#allocation13 + $0x608] sm:$0xff]
    %v6577 = vld [vmem:[#allocation13 + $0x610] sm:$0xff]
    %v6578 = vld [vmem:[#allocation13 + $0x618] sm:$0xff]
    %v6579 = vld [vmem:[#allocation13 + $0x620] sm:$0xff]
    %v6580 = vld [vmem:[#allocation13 + $0x628] sm:$0xff]
    %v6581 = vld [vmem:[#allocation13 + $0x630] sm:$0xff]
    %v6582 = vld [vmem:[#allocation13 + $0x638] sm:$0xff]
    %v6583 = vld [vmem:[#allocation13 + $0x640] sm:$0xff]
    %v6584 = vld [vmem:[#allocation13 + $0x648] sm:$0xff]
    %v6585 = vld [vmem:[#allocation13 + $0x650] sm:$0xff]
    %v6586 = vld [vmem:[#allocation13 + $0x658] sm:$0xff]
    %v6587 = vld [vmem:[#allocation13 + $0x660] sm:$0xff]
    %v6588 = vld [vmem:[#allocation13 + $0x668] sm:$0xff]
    %v6589 = vld [vmem:[#allocation13 + $0x670] sm:$0xff]
    %v6590 = vld [vmem:[#allocation13 + $0x678] sm:$0xff]
    %v6591 = vld [vmem:[#allocation13 + $0x680] sm:$0xff]
    %v6592 = vld [vmem:[#allocation13 + $0x688] sm:$0xff]
    %v6593 = vld [vmem:[#allocation13 + $0x690] sm:$0xff]
    %v6594 = vld [vmem:[#allocation13 + $0x698] sm:$0xff]
    %v6595 = vld [vmem:[#allocation13 + $0x6a0] sm:$0xff]
    %v6596 = vld [vmem:[#allocation13 + $0x6a8] sm:$0xff]
    %v6597 = vld [vmem:[#allocation13 + $0x6b0] sm:$0xff]
    %v6598 = vld [vmem:[#allocation13 + $0x6b8] sm:$0xff]
    %v6599 = vld [vmem:[#allocation13 + $0x6c0] sm:$0xff]
    %v6600 = vld [vmem:[#allocation13 + $0x6c8] sm:$0xff]
    %v6601 = vld [vmem:[#allocation13 + $0x6d0] sm:$0xff]
    %v6602 = vld [vmem:[#allocation13 + $0x6d8] sm:$0xff]
    %v6603 = vld [vmem:[#allocation13 + $0x6e0] sm:$0xff]
    %v6604 = vld [vmem:[#allocation13 + $0x6e8] sm:$0xff]
    %v6605 = vld [vmem:[#allocation13 + $0x6f0] sm:$0xff]
    %v6606 = vld [vmem:[#allocation13 + $0x6f8] sm:$0xff]
    %v6607 = vld [vmem:[#allocation13 + $0x700] sm:$0xff]
    %v6608 = vld [vmem:[#allocation13 + $0x708] sm:$0xff]
    %v6609 = vld [vmem:[#allocation13 + $0x710] sm:$0xff]
    %v6610 = vld [vmem:[#allocation13 + $0x718] sm:$0xff]
    %v6611 = vld [vmem:[#allocation13 + $0x720] sm:$0xff]
    %v6612 = vld [vmem:[#allocation13 + $0x728] sm:$0xff]
    %v6613 = vld [vmem:[#allocation13 + $0x730] sm:$0xff]
    %v6614 = vld [vmem:[#allocation13 + $0x738] sm:$0xff]
    %v6615 = vld [vmem:[#allocation13 + $0x740] sm:$0xff]
    %v6616 = vld [vmem:[#allocation13 + $0x748] sm:$0xff]
    %v6617 = vld [vmem:[#allocation13 + $0x750] sm:$0xff]
    %v6618 = vld [vmem:[#allocation13 + $0x758] sm:$0xff]
    %v6619 = vld [vmem:[#allocation13 + $0x760] sm:$0xff]
    %v6620 = vld [vmem:[#allocation13 + $0x768] sm:$0xff]
    %v6621 = vld [vmem:[#allocation13 + $0x770] sm:$0xff]
    %v6622 = vld [vmem:[#allocation13 + $0x778] sm:$0xff]
    %v6623 = vld [vmem:[#allocation13 + $0x780] sm:$0xff]
    %v6624 = vld [vmem:[#allocation13 + $0x788] sm:$0xff]
    %v6625 = vld [vmem:[#allocation13 + $0x790] sm:$0xff]
    %v6626 = vld [vmem:[#allocation13 + $0x798] sm:$0xff]
    %v6627 = vld [vmem:[#allocation13 + $0x7a0] sm:$0xff]
    %v6628 = vld [vmem:[#allocation13 + $0x7a8] sm:$0xff]
    %v6629 = vld [vmem:[#allocation13 + $0x7b0] sm:$0xff]
    %v6630 = vld [vmem:[#allocation13 + $0x7b8] sm:$0xff]
    %v6631 = vld [vmem:[#allocation13 + $0x7c0] sm:$0xff]
    %v6632 = vld [vmem:[#allocation13 + $0x7c8] sm:$0xff]
    %v6633 = vld [vmem:[#allocation13 + $0x7d0] sm:$0xff]
    %v6634 = vld [vmem:[#allocation13 + $0x7d8] sm:$0xff]
    %v6635 = vld [vmem:[#allocation13 + $0x7e0] sm:$0xff]
    %v6636 = vld [vmem:[#allocation13 + $0x7e8] sm:$0xff]
    %v6637 = vld [vmem:[#allocation13 + $0x7f0] sm:$0xff]
    %v6638 = vld [vmem:[#allocation13 + $0x7f8] sm:$0xff]
    %v6639 = vld [vmem:[#allocation13 + $0x800] sm:$0xff]
    %v6640 = vld [vmem:[#allocation13 + $0x808] sm:$0xff]
    %v6641 = vld [vmem:[#allocation13 + $0x810] sm:$0xff]
    %v6642 = vld [vmem:[#allocation13 + $0x818] sm:$0xff]
    %v6643 = vld [vmem:[#allocation13 + $0x820] sm:$0xff]
    %v6644 = vld [vmem:[#allocation13 + $0x828] sm:$0xff]
    %v6645 = vld [vmem:[#allocation13 + $0x830] sm:$0xff]
    %v6646 = vld [vmem:[#allocation13 + $0x838] sm:$0xff]
    %v6647 = vld [vmem:[#allocation13 + $0x840] sm:$0xff]
    %v6648 = vld [vmem:[#allocation13 + $0x848] sm:$0xff]
    %v6649 = vld [vmem:[#allocation13 + $0x850] sm:$0xff]
    %v6650 = vld [vmem:[#allocation13 + $0x858] sm:$0xff]
    %v6651 = vld [vmem:[#allocation13 + $0x860] sm:$0xff]
    %v6652 = vld [vmem:[#allocation13 + $0x868] sm:$0xff]
    %v6653 = vld [vmem:[#allocation13 + $0x870] sm:$0xff]
    %v6654 = vld [vmem:[#allocation13 + $0x878] sm:$0xff]
    %v6655 = vld [vmem:[#allocation13 + $0x880] sm:$0xff]
    %v6656 = vld [vmem:[#allocation13 + $0x888] sm:$0xff]
    %v6657 = vld [vmem:[#allocation13 + $0x890] sm:$0xff]
    %v6658 = vld [vmem:[#allocation13 + $0x898] sm:$0xff]
    %v6659 = vld [vmem:[#allocation13 + $0x8a0] sm:$0xff]
    %v6660 = vld [vmem:[#allocation13 + $0x8a8] sm:$0xff]
    %v6661 = vld [vmem:[#allocation13 + $0x8b0] sm:$0xff]
    %v6662 = vld [vmem:[#allocation13 + $0x8b8] sm:$0xff]
    %v6663 = vld [vmem:[#allocation13 + $0x8c0] sm:$0xff]
    %v6664 = vld [vmem:[#allocation13 + $0x8c8] sm:$0xff]
    %v6665 = vld [vmem:[#allocation13 + $0x8d0] sm:$0xff]
    %v6666 = vld [vmem:[#allocation13 + $0x8d8] sm:$0xff]
    %v6667 = vld [vmem:[#allocation13 + $0x8e0] sm:$0xff]
    %v6668 = vld [vmem:[#allocation13 + $0x8e8] sm:$0xff]
    %v6669 = vld [vmem:[#allocation13 + $0x8f0] sm:$0xff]
    %v6670 = vld [vmem:[#allocation13 + $0x8f8] sm:$0xff]
    %v6671 = vld [vmem:[#allocation13 + $0x900] sm:$0xff]
    %v6672 = vld [vmem:[#allocation13 + $0x908] sm:$0xff]
    %v6673 = vld [vmem:[#allocation13 + $0x910] sm:$0xff]
    %v6674 = vld [vmem:[#allocation13 + $0x918] sm:$0xff]
    %v6675 = vld [vmem:[#allocation13 + $0x920] sm:$0xff]
    %v6676 = vld [vmem:[#allocation13 + $0x928] sm:$0xff]
    %v6677 = vld [vmem:[#allocation13 + $0x930] sm:$0xff]
    %v6678 = vld [vmem:[#allocation13 + $0x938] sm:$0xff]
    %v6679 = vld [vmem:[#allocation13 + $0x940] sm:$0xff]
    %v6680 = vld [vmem:[#allocation13 + $0x948] sm:$0xff]
    %v6681 = vld [vmem:[#allocation13 + $0x950] sm:$0xff]
    %v6682 = vld [vmem:[#allocation13 + $0x958] sm:$0xff]
    %v6683 = vld [vmem:[#allocation13 + $0x960] sm:$0xff]
    %v6684 = vld [vmem:[#allocation13 + $0x968] sm:$0xff]
    %v6685 = vld [vmem:[#allocation13 + $0x970] sm:$0xff]
    %v6686 = vld [vmem:[#allocation13 + $0x978] sm:$0xff]
    %v6687 = vld [vmem:[#allocation13 + $0x980] sm:$0xff]
    %v6688 = vld [vmem:[#allocation13 + $0x988] sm:$0xff]
    %v6689 = vld [vmem:[#allocation13 + $0x990] sm:$0xff]
    %v6690 = vld [vmem:[#allocation13 + $0x998] sm:$0xff]
    %v6691 = vld [vmem:[#allocation13 + $0x9a0] sm:$0xff]
    %v6692 = vld [vmem:[#allocation13 + $0x9a8] sm:$0xff]
    %v6693 = vld [vmem:[#allocation13 + $0x9b0] sm:$0xff]
    %v6694 = vld [vmem:[#allocation13 + $0x9b8] sm:$0xff]
    %v6695 = vld [vmem:[#allocation13 + $0x9c0] sm:$0xff]
    %v6696 = vld [vmem:[#allocation13 + $0x9c8] sm:$0xff]
    %v6697 = vld [vmem:[#allocation13 + $0x9d0] sm:$0xff]
    %v6698 = vld [vmem:[#allocation13 + $0x9d8] sm:$0xff]
    %v6699 = vld [vmem:[#allocation13 + $0x9e0] sm:$0xff]
    %v6700 = vld [vmem:[#allocation13 + $0x9e8] sm:$0xff]
    %v6701 = vld [vmem:[#allocation13 + $0x9f0] sm:$0xff]
    %v6702 = vld [vmem:[#allocation13 + $0x9f8] sm:$0xff]
    %v6703 = vld [vmem:[#allocation13 + $0xa00] sm:$0xff]
    %v6704 = vld [vmem:[#allocation13 + $0xa08] sm:$0xff]
    %v6705 = vld [vmem:[#allocation13 + $0xa10] sm:$0xff]
    %v6706 = vld [vmem:[#allocation13 + $0xa18] sm:$0xff]
    %v6707 = vld [vmem:[#allocation13 + $0xa20] sm:$0xff]
    %v6708 = vld [vmem:[#allocation13 + $0xa28] sm:$0xff]
    %v6709 = vld [vmem:[#allocation13 + $0xa30] sm:$0xff]
    %v6710 = vld [vmem:[#allocation13 + $0xa38] sm:$0xff]
    %v6711 = vld [vmem:[#allocation13 + $0xa40] sm:$0xff]
    %v6712 = vld [vmem:[#allocation13 + $0xa48] sm:$0xff]
    %v6713 = vld [vmem:[#allocation13 + $0xa50] sm:$0xff]
    %v6714 = vld [vmem:[#allocation13 + $0xa58] sm:$0xff]
    %v6715 = vld [vmem:[#allocation13 + $0xa60] sm:$0xff]
    %v6716 = vld [vmem:[#allocation13 + $0xa68] sm:$0xff]
    %v6717 = vld [vmem:[#allocation13 + $0xa70] sm:$0xff]
    %v6718 = vld [vmem:[#allocation13 + $0xa78] sm:$0xff]
    %v6719 = vld [vmem:[#allocation13 + $0xa80] sm:$0xff]
    %v6720 = vld [vmem:[#allocation13 + $0xa88] sm:$0xff]
    %v6721 = vld [vmem:[#allocation13 + $0xa90] sm:$0xff]
    %v6722 = vld [vmem:[#allocation13 + $0xa98] sm:$0xff]
    %v6723 = vld [vmem:[#allocation13 + $0xaa0] sm:$0xff]
    %v6724 = vld [vmem:[#allocation13 + $0xaa8] sm:$0xff]
    %v6725 = vld [vmem:[#allocation13 + $0xab0] sm:$0xff]
    %v6726 = vld [vmem:[#allocation13 + $0xab8] sm:$0xff]
    %v6727 = vld [vmem:[#allocation13 + $0xac0] sm:$0xff]
    %v6728 = vld [vmem:[#allocation13 + $0xac8] sm:$0xff]
    %v6729 = vld [vmem:[#allocation13 + $0xad0] sm:$0xff]
    %v6730 = vld [vmem:[#allocation13 + $0xad8] sm:$0xff]
    %v6731 = vld [vmem:[#allocation13 + $0xae0] sm:$0xff]
    %v6732 = vld [vmem:[#allocation13 + $0xae8] sm:$0xff]
    %v6733 = vld [vmem:[#allocation13 + $0xaf0] sm:$0xff]
    %v6734 = vld [vmem:[#allocation13 + $0xaf8] sm:$0xff]
    %v6735 = vld [vmem:[#allocation13 + $0xb00] sm:$0xff]
    %v6736 = vld [vmem:[#allocation13 + $0xb08] sm:$0xff]
    %v6737 = vld [vmem:[#allocation13 + $0xb10] sm:$0xff]
    %v6738 = vld [vmem:[#allocation13 + $0xb18] sm:$0xff]
    %v6739 = vld [vmem:[#allocation13 + $0xb20] sm:$0xff]
    %v6740 = vld [vmem:[#allocation13 + $0xb28] sm:$0xff]
    %v6741 = vld [vmem:[#allocation13 + $0xb30] sm:$0xff]
    %v6742 = vld [vmem:[#allocation13 + $0xb38] sm:$0xff]
    %v6743 = vld [vmem:[#allocation13 + $0xb40] sm:$0xff]
    %v6744 = vld [vmem:[#allocation13 + $0xb48] sm:$0xff]
    %v6745 = vld [vmem:[#allocation13 + $0xb50] sm:$0xff]
    %v6746 = vld [vmem:[#allocation13 + $0xb58] sm:$0xff]
    %v6747 = vld [vmem:[#allocation13 + $0xb60] sm:$0xff]
    %v6748 = vld [vmem:[#allocation13 + $0xb68] sm:$0xff]
    %v6749 = vld [vmem:[#allocation13 + $0xb70] sm:$0xff]
    %v6750 = vld [vmem:[#allocation13 + $0xb78] sm:$0xff]
    %v6751 = vld [vmem:[#allocation13 + $0xb80] sm:$0xff]
    %v6752 = vld [vmem:[#allocation13 + $0xb88] sm:$0xff]
    %v6753 = vld [vmem:[#allocation13 + $0xb90] sm:$0xff]
    %v6754 = vld [vmem:[#allocation13 + $0xb98] sm:$0xff]
    %v6755 = vld [vmem:[#allocation13 + $0xba0] sm:$0xff]
    %v6756 = vld [vmem:[#allocation13 + $0xba8] sm:$0xff]
    %v6757 = vld [vmem:[#allocation13 + $0xbb0] sm:$0xff]
    %v6758 = vld [vmem:[#allocation13 + $0xbb8] sm:$0xff]
    %v6759 = vld [vmem:[#allocation13 + $0xbc0] sm:$0xff]
    %v6760 = vld [vmem:[#allocation13 + $0xbc8] sm:$0xff]
    %v6761 = vld [vmem:[#allocation13 + $0xbd0] sm:$0xff]
    %v6762 = vld [vmem:[#allocation13 + $0xbd8] sm:$0xff]
    %v6763 = vld [vmem:[#allocation13 + $0xbe0] sm:$0xff]
    %v6764 = vld [vmem:[#allocation13 + $0xbe8] sm:$0xff]
    %v6765 = vld [vmem:[#allocation13 + $0xbf0] sm:$0xff]
    %v6766 = vld [vmem:[#allocation13 + $0xbf8] sm:$0xff]
    %v6767 = vld [vmem:[#allocation13 + $0xc00] sm:$0xff]
    %v6768 = vld [vmem:[#allocation13 + $0xc08] sm:$0xff]
    %v6769 = vld [vmem:[#allocation13 + $0xc10] sm:$0xff]
    %v6770 = vld [vmem:[#allocation13 + $0xc18] sm:$0xff]
    %v6771 = vld [vmem:[#allocation13 + $0xc20] sm:$0xff]
    %v6772 = vld [vmem:[#allocation13 + $0xc28] sm:$0xff]
    %v6773 = vld [vmem:[#allocation13 + $0xc30] sm:$0xff]
    %v6774 = vld [vmem:[#allocation13 + $0xc38] sm:$0xff]
    %v6775 = vld [vmem:[#allocation13 + $0xc40] sm:$0xff]
    %v6776 = vld [vmem:[#allocation13 + $0xc48] sm:$0xff]
    %v6777 = vld [vmem:[#allocation13 + $0xc50] sm:$0xff]
    %v6778 = vld [vmem:[#allocation13 + $0xc58] sm:$0xff]
    %v6779 = vld [vmem:[#allocation13 + $0xc60] sm:$0xff]
    %v6780 = vld [vmem:[#allocation13 + $0xc68] sm:$0xff]
    %v6781 = vld [vmem:[#allocation13 + $0xc70] sm:$0xff]
    %v6782 = vld [vmem:[#allocation13 + $0xc78] sm:$0xff]
    %v6783 = vld [vmem:[#allocation13 + $0xc80] sm:$0xff]
    %v6784 = vld [vmem:[#allocation13 + $0xc88] sm:$0xff]
    %v6785 = vld [vmem:[#allocation13 + $0xc90] sm:$0xff]
    %v6786 = vld [vmem:[#allocation13 + $0xc98] sm:$0xff]
    %v6787 = vld [vmem:[#allocation13 + $0xca0] sm:$0xff]
    %v6788 = vld [vmem:[#allocation13 + $0xca8] sm:$0xff]
    %v6789 = vld [vmem:[#allocation13 + $0xcb0] sm:$0xff]
    %v6790 = vld [vmem:[#allocation13 + $0xcb8] sm:$0xff]
    %v6791 = vld [vmem:[#allocation13 + $0xcc0] sm:$0xff]
    %v6792 = vld [vmem:[#allocation13 + $0xcc8] sm:$0xff]
    %v6793 = vld [vmem:[#allocation13 + $0xcd0] sm:$0xff]
    %v6794 = vld [vmem:[#allocation13 + $0xcd8] sm:$0xff]
    %v6795 = vld [vmem:[#allocation13 + $0xce0] sm:$0xff]
    %v6796 = vld [vmem:[#allocation13 + $0xce8] sm:$0xff]
    %v6797 = vld [vmem:[#allocation13 + $0xcf0] sm:$0xff]
    %v6798 = vld [vmem:[#allocation13 + $0xcf8] sm:$0xff]
    %v6799 = vld [vmem:[#allocation13 + $0xd00] sm:$0xff]
    %v6800 = vld [vmem:[#allocation13 + $0xd08] sm:$0xff]
    %v6801 = vld [vmem:[#allocation13 + $0xd10] sm:$0xff]
    %v6802 = vld [vmem:[#allocation13 + $0xd18] sm:$0xff]
    %v6803 = vld [vmem:[#allocation13 + $0xd20] sm:$0xff]
    %v6804 = vld [vmem:[#allocation13 + $0xd28] sm:$0xff]
    %v6805 = vld [vmem:[#allocation13 + $0xd30] sm:$0xff]
    %v6806 = vld [vmem:[#allocation13 + $0xd38] sm:$0xff]
    %v6807 = vld [vmem:[#allocation13 + $0xd40] sm:$0xff]
    %v6808 = vld [vmem:[#allocation13 + $0xd48] sm:$0xff]
    %v6809 = vld [vmem:[#allocation13 + $0xd50] sm:$0xff]
    %v6810 = vld [vmem:[#allocation13 + $0xd58] sm:$0xff]
    %v6811 = vld [vmem:[#allocation13 + $0xd60] sm:$0xff]
    %v6812 = vld [vmem:[#allocation13 + $0xd68] sm:$0xff]
    %v6813 = vld [vmem:[#allocation13 + $0xd70] sm:$0xff]
    %v6814 = vld [vmem:[#allocation13 + $0xd78] sm:$0xff]
    %v6815 = vld [vmem:[#allocation13 + $0xd80] sm:$0xff]
    %v6816 = vld [vmem:[#allocation13 + $0xd88] sm:$0xff]
    %v6817 = vld [vmem:[#allocation13 + $0xd90] sm:$0xff]
    %v6818 = vld [vmem:[#allocation13 + $0xd98] sm:$0xff]
    %v6819 = vld [vmem:[#allocation13 + $0xda0] sm:$0xff]
    %v6820 = vld [vmem:[#allocation13 + $0xda8] sm:$0xff]
    %v6821 = vld [vmem:[#allocation13 + $0xdb0] sm:$0xff]
    %v6822 = vld [vmem:[#allocation13 + $0xdb8] sm:$0xff]
    %v6823 = vld [vmem:[#allocation13 + $0xdc0] sm:$0xff]
    %v6824 = vld [vmem:[#allocation13 + $0xdc8] sm:$0xff]
    %v6825 = vld [vmem:[#allocation13 + $0xdd0] sm:$0xff]
    %v6826 = vld [vmem:[#allocation13 + $0xdd8] sm:$0xff]
    %v6827 = vld [vmem:[#allocation13 + $0xde0] sm:$0xff]
    %v6828 = vld [vmem:[#allocation13 + $0xde8] sm:$0xff]
    %v6829 = vld [vmem:[#allocation13 + $0xdf0] sm:$0xff]
    %v6830 = vld [vmem:[#allocation13 + $0xdf8] sm:$0xff]
    %v6831 = vld [vmem:[#allocation13 + $0xe00] sm:$0xff]
    %v6832 = vld [vmem:[#allocation13 + $0xe08] sm:$0xff]
    %v6833 = vld [vmem:[#allocation13 + $0xe10] sm:$0xff]
    %v6834 = vld [vmem:[#allocation13 + $0xe18] sm:$0xff]
    %v6835 = vld [vmem:[#allocation13 + $0xe20] sm:$0xff]
    %v6836 = vld [vmem:[#allocation13 + $0xe28] sm:$0xff]
    %v6837 = vld [vmem:[#allocation13 + $0xe30] sm:$0xff]
    %v6838 = vld [vmem:[#allocation13 + $0xe38] sm:$0xff]
    %v6839 = vld [vmem:[#allocation13 + $0xe40] sm:$0xff]
    %v6840 = vld [vmem:[#allocation13 + $0xe48] sm:$0xff]
    %v6841 = vld [vmem:[#allocation13 + $0xe50] sm:$0xff]
    %v6842 = vld [vmem:[#allocation13 + $0xe58] sm:$0xff]
    %v6843 = vld [vmem:[#allocation13 + $0xe60] sm:$0xff]
    %v6844 = vld [vmem:[#allocation13 + $0xe68] sm:$0xff]
    %v6845 = vld [vmem:[#allocation13 + $0xe70] sm:$0xff]
    %v6846 = vld [vmem:[#allocation13 + $0xe78] sm:$0xff]
    %v6847 = vld [vmem:[#allocation13 + $0xe80] sm:$0xff]
    %v6848 = vld [vmem:[#allocation13 + $0xe88] sm:$0xff]
    %v6849 = vld [vmem:[#allocation13 + $0xe90] sm:$0xff]
    %v6850 = vld [vmem:[#allocation13 + $0xe98] sm:$0xff]
    %v6851 = vld [vmem:[#allocation13 + $0xea0] sm:$0xff]
    %v6852 = vld [vmem:[#allocation13 + $0xea8] sm:$0xff]
    %v6853 = vld [vmem:[#allocation13 + $0xeb0] sm:$0xff]
    %v6854 = vld [vmem:[#allocation13 + $0xeb8] sm:$0xff]
    %v6855 = vld [vmem:[#allocation13 + $0xec0] sm:$0xff]
    %v6856 = vld [vmem:[#allocation13 + $0xec8] sm:$0xff]
    %v6857 = vld [vmem:[#allocation13 + $0xed0] sm:$0xff]
    %v6858 = vld [vmem:[#allocation13 + $0xed8] sm:$0xff]
    %v6859 = vld [vmem:[#allocation13 + $0xee0] sm:$0xff]
    %v6860 = vld [vmem:[#allocation13 + $0xee8] sm:$0xff]
    %v6861 = vld [vmem:[#allocation13 + $0xef0] sm:$0xff]
    %v6862 = vld [vmem:[#allocation13 + $0xef8] sm:$0xff]
    %v6863 = vld [vmem:[#allocation13 + $0xf00] sm:$0xff]
    %v6864 = vld [vmem:[#allocation13 + $0xf08] sm:$0xff]
    %v6865 = vld [vmem:[#allocation13 + $0xf10] sm:$0xff]
    %v6866 = vld [vmem:[#allocation13 + $0xf18] sm:$0xff]
    %v6867 = vld [vmem:[#allocation13 + $0xf20] sm:$0xff]
    %v6868 = vld [vmem:[#allocation13 + $0xf28] sm:$0xff]
    %v6869 = vld [vmem:[#allocation13 + $0xf30] sm:$0xff]
    %v6870 = vld [vmem:[#allocation13 + $0xf38] sm:$0xff]
    %v6871 = vld [vmem:[#allocation13 + $0xf40] sm:$0xff]
    %v6872 = vld [vmem:[#allocation13 + $0xf48] sm:$0xff]
    %v6873 = vld [vmem:[#allocation13 + $0xf50] sm:$0xff]
    %v6874 = vld [vmem:[#allocation13 + $0xf58] sm:$0xff]
    %v6875 = vld [vmem:[#allocation13 + $0xf60] sm:$0xff]
    %v6876 = vld [vmem:[#allocation13 + $0xf68] sm:$0xff]
    %v6877 = vld [vmem:[#allocation13 + $0xf70] sm:$0xff]
    %v6878 = vld [vmem:[#allocation13 + $0xf78] sm:$0xff]
    %v6879 = vld [vmem:[#allocation13 + $0xf80] sm:$0xff]
    %v6880 = vld [vmem:[#allocation13 + $0xf88] sm:$0xff]
    %v6881 = vld [vmem:[#allocation13 + $0xf90] sm:$0xff]
    %v6882 = vld [vmem:[#allocation13 + $0xf98] sm:$0xff]
    %v6883 = vld [vmem:[#allocation13 + $0xfa0] sm:$0xff]
    %v6884 = vld [vmem:[#allocation13 + $0xfa8] sm:$0xff]
    %v6885 = vld [vmem:[#allocation13 + $0xfb0] sm:$0xff]
    %v6886 = vld [vmem:[#allocation13 + $0xfb8] sm:$0xff]
    %v6887 = vld [vmem:[#allocation13 + $0xfc0] sm:$0xff]
    %v6888 = vld [vmem:[#allocation13 + $0xfc8] sm:$0xff]
    %v6889 = vld [vmem:[#allocation13 + $0xfd0] sm:$0xff]
    %v6890 = vld [vmem:[#allocation13 + $0xfd8] sm:$0xff]
    %v6891 = vld [vmem:[#allocation13 + $0xfe0] sm:$0xff]
    %v6892 = vld [vmem:[#allocation13 + $0xfe8] sm:$0xff]
    %v6893 = vld [vmem:[#allocation13 + $0xff0] sm:$0xff]
    %v6894 = vld [vmem:[#allocation13 + $0xff8] sm:$0xff]
    %v6895 = vld [vmem:[#allocation14] sm:$0xff]
    %v6897 = vlaneseq
    %v6898 = vshrl.u32 %v6897, 7
    %v6899 = vsub.s32 0, %v6898
    %v6900 = vrot.slane %v6895, %v6899
    %v6901 = vlaneseq
    %v6902 = vshrl.u32 %v6901, 7
    %v6903 = vsub.s32 1, %v6902
    %v6904 = vrot.slane %v6895, %v6903
    %v6905 = vlaneseq
    %v6906 = vshrl.u32 %v6905, 7
    %v6907 = vsub.s32 2, %v6906
    %v6908 = vrot.slane %v6895, %v6907
    %v6909 = vlaneseq
    %v6910 = vshrl.u32 %v6909, 7
    %v6911 = vsub.s32 3, %v6910
    %v6912 = vrot.slane %v6895, %v6911
    %v6913 = vlaneseq
    %v6914 = vshrl.u32 %v6913, 7
    %v6915 = vsub.s32 4, %v6914
    %v6916 = vrot.slane %v6895, %v6915
    %v6917 = vlaneseq
    %v6918 = vshrl.u32 %v6917, 7
    %v6919 = vsub.s32 5, %v6918
    %v6920 = vrot.slane %v6895, %v6919
    %v6921 = vlaneseq
    %v6922 = vshrl.u32 %v6921, 7
    %v6923 = vsub.s32 6, %v6922
    %v6924 = vrot.slane %v6895, %v6923
    %v6925 = vlaneseq
    %v6926 = vshrl.u32 %v6925, 7
    %v6927 = vsub.s32 7, %v6926
    %v6928 = vrot.slane %v6895, %v6927
    %v7449 = vunpack.c.l.b16 %v6383
    %v7450 = vunpack.c.h.b16 %v6383
    %v7451 = vunpack.c.l.b16 %v6384
    %v7452 = vunpack.c.h.b16 %v6384
    %v7453 = vunpack.c.l.b16 %v6385
    %v7454 = vunpack.c.h.b16 %v6385
    %v7455 = vunpack.c.l.b16 %v6386
    %v7456 = vunpack.c.h.b16 %v6386
    %v7457 = vunpack.c.l.b16 %v6387
    %v7458 = vunpack.c.h.b16 %v6387
    %v7459 = vunpack.c.l.b16 %v6388
    %v7460 = vunpack.c.h.b16 %v6388
    %v7461 = vunpack.c.l.b16 %v6389
    %v7462 = vunpack.c.h.b16 %v6389
    %v7463 = vunpack.c.l.b16 %v6390
    %v7464 = vunpack.c.h.b16 %v6390
    %v7465 = vunpack.c.l.b16 %v6391
    %v7466 = vunpack.c.h.b16 %v6391
    %v7467 = vunpack.c.l.b16 %v6392
    %v7468 = vunpack.c.h.b16 %v6392
    %v7469 = vunpack.c.l.b16 %v6393
    %v7470 = vunpack.c.h.b16 %v6393
    %v7471 = vunpack.c.l.b16 %v6394
    %v7472 = vunpack.c.h.b16 %v6394
    %v7473 = vunpack.c.l.b16 %v6395
    %v7474 = vunpack.c.h.b16 %v6395
    %v7475 = vunpack.c.l.b16 %v6396
    %v7476 = vunpack.c.h.b16 %v6396
    %v7477 = vunpack.c.l.b16 %v6397
    %v7478 = vunpack.c.h.b16 %v6397
    %v7479 = vunpack.c.l.b16 %v6398
    %v7480 = vunpack.c.h.b16 %v6398
    %v7481 = vunpack.c.l.b16 %v6399
    %v7482 = vunpack.c.h.b16 %v6399
    %v7483 = vunpack.c.l.b16 %v6400
    %v7484 = vunpack.c.h.b16 %v6400
    %v7485 = vunpack.c.l.b16 %v6401
    %v7486 = vunpack.c.h.b16 %v6401
    %v7487 = vunpack.c.l.b16 %v6402
    %v7488 = vunpack.c.h.b16 %v6402
    %v7489 = vunpack.c.l.b16 %v6403
    %v7490 = vunpack.c.h.b16 %v6403
    %v7491 = vunpack.c.l.b16 %v6404
    %v7492 = vunpack.c.h.b16 %v6404
    %v7493 = vunpack.c.l.b16 %v6405
    %v7494 = vunpack.c.h.b16 %v6405
    %v7495 = vunpack.c.l.b16 %v6406
    %v7496 = vunpack.c.h.b16 %v6406
    %v7497 = vunpack.c.l.b16 %v6407
    %v7498 = vunpack.c.h.b16 %v6407
    %v7499 = vunpack.c.l.b16 %v6408
    %v7500 = vunpack.c.h.b16 %v6408
    %v7501 = vunpack.c.l.b16 %v6409
    %v7502 = vunpack.c.h.b16 %v6409
    %v7503 = vunpack.c.l.b16 %v6410
    %v7504 = vunpack.c.h.b16 %v6410
    %v7505 = vunpack.c.l.b16 %v6411
    %v7506 = vunpack.c.h.b16 %v6411
    %v7507 = vunpack.c.l.b16 %v6412
    %v7508 = vunpack.c.h.b16 %v6412
    %v7509 = vunpack.c.l.b16 %v6413
    %v7510 = vunpack.c.h.b16 %v6413
    %v7511 = vunpack.c.l.b16 %v6414
    %v7512 = vunpack.c.h.b16 %v6414
    %v7513 = vunpack.c.l.b16 %v6415
    %v7514 = vunpack.c.h.b16 %v6415
    %v7515 = vunpack.c.l.b16 %v6416
    %v7516 = vunpack.c.h.b16 %v6416
    %v7517 = vunpack.c.l.b16 %v6417
    %v7518 = vunpack.c.h.b16 %v6417
    %v7519 = vunpack.c.l.b16 %v6418
    %v7520 = vunpack.c.h.b16 %v6418
    %v7521 = vunpack.c.l.b16 %v6419
    %v7522 = vunpack.c.h.b16 %v6419
    %v7523 = vunpack.c.l.b16 %v6420
    %v7524 = vunpack.c.h.b16 %v6420
    %v7525 = vunpack.c.l.b16 %v6421
    %v7526 = vunpack.c.h.b16 %v6421
    %v7527 = vunpack.c.l.b16 %v6422
    %v7528 = vunpack.c.h.b16 %v6422
    %v7529 = vunpack.c.l.b16 %v6423
    %v7530 = vunpack.c.h.b16 %v6423
    %v7531 = vunpack.c.l.b16 %v6424
    %v7532 = vunpack.c.h.b16 %v6424
    %v7533 = vunpack.c.l.b16 %v6425
    %v7534 = vunpack.c.h.b16 %v6425
    %v7535 = vunpack.c.l.b16 %v6426
    %v7536 = vunpack.c.h.b16 %v6426
    %v7537 = vunpack.c.l.b16 %v6427
    %v7538 = vunpack.c.h.b16 %v6427
    %v7539 = vunpack.c.l.b16 %v6428
    %v7540 = vunpack.c.h.b16 %v6428
    %v7541 = vunpack.c.l.b16 %v6429
    %v7542 = vunpack.c.h.b16 %v6429
    %v7543 = vunpack.c.l.b16 %v6430
    %v7544 = vunpack.c.h.b16 %v6430
    %v7545 = vunpack.c.l.b16 %v6431
    %v7546 = vunpack.c.h.b16 %v6431
    %v7547 = vunpack.c.l.b16 %v6432
    %v7548 = vunpack.c.h.b16 %v6432
    %v7549 = vunpack.c.l.b16 %v6433
    %v7550 = vunpack.c.h.b16 %v6433
    %v7551 = vunpack.c.l.b16 %v6434
    %v7552 = vunpack.c.h.b16 %v6434
    %v7553 = vunpack.c.l.b16 %v6435
    %v7554 = vunpack.c.h.b16 %v6435
    %v7555 = vunpack.c.l.b16 %v6436
    %v7556 = vunpack.c.h.b16 %v6436
    %v7557 = vunpack.c.l.b16 %v6437
    %v7558 = vunpack.c.h.b16 %v6437
    %v7559 = vunpack.c.l.b16 %v6438
    %v7560 = vunpack.c.h.b16 %v6438
    %v7561 = vunpack.c.l.b16 %v6439
    %v7562 = vunpack.c.h.b16 %v6439
    %v7563 = vunpack.c.l.b16 %v6440
    %v7564 = vunpack.c.h.b16 %v6440
    %v7565 = vunpack.c.l.b16 %v6441
    %v7566 = vunpack.c.h.b16 %v6441
    %v7567 = vunpack.c.l.b16 %v6442
    %v7568 = vunpack.c.h.b16 %v6442
    %v7569 = vunpack.c.l.b16 %v6443
    %v7570 = vunpack.c.h.b16 %v6443
    %v7571 = vunpack.c.l.b16 %v6444
    %v7572 = vunpack.c.h.b16 %v6444
    %v7573 = vunpack.c.l.b16 %v6445
    %v7574 = vunpack.c.h.b16 %v6445
    %v7575 = vunpack.c.l.b16 %v6446
    %v7576 = vunpack.c.h.b16 %v6446
    %v7577 = vunpack.c.l.b16 %v6447
    %v7578 = vunpack.c.h.b16 %v6447
    %v7579 = vunpack.c.l.b16 %v6448
    %v7580 = vunpack.c.h.b16 %v6448
    %v7581 = vunpack.c.l.b16 %v6449
    %v7582 = vunpack.c.h.b16 %v6449
    %v7583 = vunpack.c.l.b16 %v6450
    %v7584 = vunpack.c.h.b16 %v6450
    %v7585 = vunpack.c.l.b16 %v6451
    %v7586 = vunpack.c.h.b16 %v6451
    %v7587 = vunpack.c.l.b16 %v6452
    %v7588 = vunpack.c.h.b16 %v6452
    %v7589 = vunpack.c.l.b16 %v6453
    %v7590 = vunpack.c.h.b16 %v6453
    %v7591 = vunpack.c.l.b16 %v6454
    %v7592 = vunpack.c.h.b16 %v6454
    %v7593 = vunpack.c.l.b16 %v6455
    %v7594 = vunpack.c.h.b16 %v6455
    %v7595 = vunpack.c.l.b16 %v6456
    %v7596 = vunpack.c.h.b16 %v6456
    %v7597 = vunpack.c.l.b16 %v6457
    %v7598 = vunpack.c.h.b16 %v6457
    %v7599 = vunpack.c.l.b16 %v6458
    %v7600 = vunpack.c.h.b16 %v6458
    %v7601 = vunpack.c.l.b16 %v6459
    %v7602 = vunpack.c.h.b16 %v6459
    %v7603 = vunpack.c.l.b16 %v6460
    %v7604 = vunpack.c.h.b16 %v6460
    %v7605 = vunpack.c.l.b16 %v6461
    %v7606 = vunpack.c.h.b16 %v6461
    %v7607 = vunpack.c.l.b16 %v6462
    %v7608 = vunpack.c.h.b16 %v6462
    %v7609 = vunpack.c.l.b16 %v6463
    %v7610 = vunpack.c.h.b16 %v6463
    %v7611 = vunpack.c.l.b16 %v6464
    %v7612 = vunpack.c.h.b16 %v6464
    %v7613 = vunpack.c.l.b16 %v6465
    %v7614 = vunpack.c.h.b16 %v6465
    %v7615 = vunpack.c.l.b16 %v6466
    %v7616 = vunpack.c.h.b16 %v6466
    %v7617 = vunpack.c.l.b16 %v6467
    %v7618 = vunpack.c.h.b16 %v6467
    %v7619 = vunpack.c.l.b16 %v6468
    %v7620 = vunpack.c.h.b16 %v6468
    %v7621 = vunpack.c.l.b16 %v6469
    %v7622 = vunpack.c.h.b16 %v6469
    %v7623 = vunpack.c.l.b16 %v6470
    %v7624 = vunpack.c.h.b16 %v6470
    %v7625 = vunpack.c.l.b16 %v6471
    %v7626 = vunpack.c.h.b16 %v6471
    %v7627 = vunpack.c.l.b16 %v6472
    %v7628 = vunpack.c.h.b16 %v6472
    %v7629 = vunpack.c.l.b16 %v6473
    %v7630 = vunpack.c.h.b16 %v6473
    %v7631 = vunpack.c.l.b16 %v6474
    %v7632 = vunpack.c.h.b16 %v6474
    %v7633 = vunpack.c.l.b16 %v6475
    %v7634 = vunpack.c.h.b16 %v6475
    %v7635 = vunpack.c.l.b16 %v6476
    %v7636 = vunpack.c.h.b16 %v6476
    %v7637 = vunpack.c.l.b16 %v6477
    %v7638 = vunpack.c.h.b16 %v6477
    %v7639 = vunpack.c.l.b16 %v6478
    %v7640 = vunpack.c.h.b16 %v6478
    %v7641 = vunpack.c.l.b16 %v6479
    %v7642 = vunpack.c.h.b16 %v6479
    %v7643 = vunpack.c.l.b16 %v6480
    %v7644 = vunpack.c.h.b16 %v6480
    %v7645 = vunpack.c.l.b16 %v6481
    %v7646 = vunpack.c.h.b16 %v6481
    %v7647 = vunpack.c.l.b16 %v6482
    %v7648 = vunpack.c.h.b16 %v6482
    %v7649 = vunpack.c.l.b16 %v6483
    %v7650 = vunpack.c.h.b16 %v6483
    %v7651 = vunpack.c.l.b16 %v6484
    %v7652 = vunpack.c.h.b16 %v6484
    %v7653 = vunpack.c.l.b16 %v6485
    %v7654 = vunpack.c.h.b16 %v6485
    %v7655 = vunpack.c.l.b16 %v6486
    %v7656 = vunpack.c.h.b16 %v6486
    %v7657 = vunpack.c.l.b16 %v6487
    %v7658 = vunpack.c.h.b16 %v6487
    %v7659 = vunpack.c.l.b16 %v6488
    %v7660 = vunpack.c.h.b16 %v6488
    %v7661 = vunpack.c.l.b16 %v6489
    %v7662 = vunpack.c.h.b16 %v6489
    %v7663 = vunpack.c.l.b16 %v6490
    %v7664 = vunpack.c.h.b16 %v6490
    %v7665 = vunpack.c.l.b16 %v6491
    %v7666 = vunpack.c.h.b16 %v6491
    %v7667 = vunpack.c.l.b16 %v6492
    %v7668 = vunpack.c.h.b16 %v6492
    %v7669 = vunpack.c.l.b16 %v6493
    %v7670 = vunpack.c.h.b16 %v6493
    %v7671 = vunpack.c.l.b16 %v6494
    %v7672 = vunpack.c.h.b16 %v6494
    %v7673 = vunpack.c.l.b16 %v6495
    %v7674 = vunpack.c.h.b16 %v6495
    %v7675 = vunpack.c.l.b16 %v6496
    %v7676 = vunpack.c.h.b16 %v6496
    %v7677 = vunpack.c.l.b16 %v6497
    %v7678 = vunpack.c.h.b16 %v6497
    %v7679 = vunpack.c.l.b16 %v6498
    %v7680 = vunpack.c.h.b16 %v6498
    %v7681 = vunpack.c.l.b16 %v6499
    %v7682 = vunpack.c.h.b16 %v6499
    %v7683 = vunpack.c.l.b16 %v6500
    %v7684 = vunpack.c.h.b16 %v6500
    %v7685 = vunpack.c.l.b16 %v6501
    %v7686 = vunpack.c.h.b16 %v6501
    %v7687 = vunpack.c.l.b16 %v6502
    %v7688 = vunpack.c.h.b16 %v6502
    %v7689 = vunpack.c.l.b16 %v6503
    %v7690 = vunpack.c.h.b16 %v6503
    %v7691 = vunpack.c.l.b16 %v6504
    %v7692 = vunpack.c.h.b16 %v6504
    %v7693 = vunpack.c.l.b16 %v6505
    %v7694 = vunpack.c.h.b16 %v6505
    %v7695 = vunpack.c.l.b16 %v6506
    %v7696 = vunpack.c.h.b16 %v6506
    %v7697 = vunpack.c.l.b16 %v6507
    %v7698 = vunpack.c.h.b16 %v6507
    %v7699 = vunpack.c.l.b16 %v6508
    %v7700 = vunpack.c.h.b16 %v6508
    %v7701 = vunpack.c.l.b16 %v6509
    %v7702 = vunpack.c.h.b16 %v6509
    %v7703 = vunpack.c.l.b16 %v6510
    %v7704 = vunpack.c.h.b16 %v6510
    %v7705 = vunpack.c.l.b16 %v6511
    %v7706 = vunpack.c.h.b16 %v6511
    %v7707 = vunpack.c.l.b16 %v6512
    %v7708 = vunpack.c.h.b16 %v6512
    %v7709 = vunpack.c.l.b16 %v6513
    %v7710 = vunpack.c.h.b16 %v6513
    %v7711 = vunpack.c.l.b16 %v6514
    %v7712 = vunpack.c.h.b16 %v6514
    %v7713 = vunpack.c.l.b16 %v6515
    %v7714 = vunpack.c.h.b16 %v6515
    %v7715 = vunpack.c.l.b16 %v6516
    %v7716 = vunpack.c.h.b16 %v6516
    %v7717 = vunpack.c.l.b16 %v6517
    %v7718 = vunpack.c.h.b16 %v6517
    %v7719 = vunpack.c.l.b16 %v6518
    %v7720 = vunpack.c.h.b16 %v6518
    %v7721 = vunpack.c.l.b16 %v6519
    %v7722 = vunpack.c.h.b16 %v6519
    %v7723 = vunpack.c.l.b16 %v6520
    %v7724 = vunpack.c.h.b16 %v6520
    %v7725 = vunpack.c.l.b16 %v6521
    %v7726 = vunpack.c.h.b16 %v6521
    %v7727 = vunpack.c.l.b16 %v6522
    %v7728 = vunpack.c.h.b16 %v6522
    %v7729 = vunpack.c.l.b16 %v6523
    %v7730 = vunpack.c.h.b16 %v6523
    %v7731 = vunpack.c.l.b16 %v6524
    %v7732 = vunpack.c.h.b16 %v6524
    %v7733 = vunpack.c.l.b16 %v6525
    %v7734 = vunpack.c.h.b16 %v6525
    %v7735 = vunpack.c.l.b16 %v6526
    %v7736 = vunpack.c.h.b16 %v6526
    %v7737 = vunpack.c.l.b16 %v6527
    %v7738 = vunpack.c.h.b16 %v6527
    %v7739 = vunpack.c.l.b16 %v6528
    %v7740 = vunpack.c.h.b16 %v6528
    %v7741 = vunpack.c.l.b16 %v6529
    %v7742 = vunpack.c.h.b16 %v6529
    %v7743 = vunpack.c.l.b16 %v6530
    %v7744 = vunpack.c.h.b16 %v6530
    %v7745 = vunpack.c.l.b16 %v6531
    %v7746 = vunpack.c.h.b16 %v6531
    %v7747 = vunpack.c.l.b16 %v6532
    %v7748 = vunpack.c.h.b16 %v6532
    %v7749 = vunpack.c.l.b16 %v6533
    %v7750 = vunpack.c.h.b16 %v6533
    %v7751 = vunpack.c.l.b16 %v6534
    %v7752 = vunpack.c.h.b16 %v6534
    %v7753 = vunpack.c.l.b16 %v6535
    %v7754 = vunpack.c.h.b16 %v6535
    %v7755 = vunpack.c.l.b16 %v6536
    %v7756 = vunpack.c.h.b16 %v6536
    %v7757 = vunpack.c.l.b16 %v6537
    %v7758 = vunpack.c.h.b16 %v6537
    %v7759 = vunpack.c.l.b16 %v6538
    %v7760 = vunpack.c.h.b16 %v6538
    %v7761 = vunpack.c.l.b16 %v6539
    %v7762 = vunpack.c.h.b16 %v6539
    %v7763 = vunpack.c.l.b16 %v6540
    %v7764 = vunpack.c.h.b16 %v6540
    %v7765 = vunpack.c.l.b16 %v6541
    %v7766 = vunpack.c.h.b16 %v6541
    %v7767 = vunpack.c.l.b16 %v6542
    %v7768 = vunpack.c.h.b16 %v6542
    %v7769 = vunpack.c.l.b16 %v6543
    %v7770 = vunpack.c.h.b16 %v6543
    %v7771 = vunpack.c.l.b16 %v6544
    %v7772 = vunpack.c.h.b16 %v6544
    %v7773 = vunpack.c.l.b16 %v6545
    %v7774 = vunpack.c.h.b16 %v6545
    %v7775 = vunpack.c.l.b16 %v6546
    %v7776 = vunpack.c.h.b16 %v6546
    %v7777 = vunpack.c.l.b16 %v6547
    %v7778 = vunpack.c.h.b16 %v6547
    %v7779 = vunpack.c.l.b16 %v6548
    %v7780 = vunpack.c.h.b16 %v6548
    %v7781 = vunpack.c.l.b16 %v6549
    %v7782 = vunpack.c.h.b16 %v6549
    %v7783 = vunpack.c.l.b16 %v6550
    %v7784 = vunpack.c.h.b16 %v6550
    %v7785 = vunpack.c.l.b16 %v6551
    %v7786 = vunpack.c.h.b16 %v6551
    %v7787 = vunpack.c.l.b16 %v6552
    %v7788 = vunpack.c.h.b16 %v6552
    %v7789 = vunpack.c.l.b16 %v6553
    %v7790 = vunpack.c.h.b16 %v6553
    %v7791 = vunpack.c.l.b16 %v6554
    %v7792 = vunpack.c.h.b16 %v6554
    %v7793 = vunpack.c.l.b16 %v6555
    %v7794 = vunpack.c.h.b16 %v6555
    %v7795 = vunpack.c.l.b16 %v6556
    %v7796 = vunpack.c.h.b16 %v6556
    %v7797 = vunpack.c.l.b16 %v6557
    %v7798 = vunpack.c.h.b16 %v6557
    %v7799 = vunpack.c.l.b16 %v6558
    %v7800 = vunpack.c.h.b16 %v6558
    %v7801 = vunpack.c.l.b16 %v6559
    %v7802 = vunpack.c.h.b16 %v6559
    %v7803 = vunpack.c.l.b16 %v6560
    %v7804 = vunpack.c.h.b16 %v6560
    %v7805 = vunpack.c.l.b16 %v6561
    %v7806 = vunpack.c.h.b16 %v6561
    %v7807 = vunpack.c.l.b16 %v6562
    %v7808 = vunpack.c.h.b16 %v6562
    %v7809 = vunpack.c.l.b16 %v6563
    %v7810 = vunpack.c.h.b16 %v6563
    %v7811 = vunpack.c.l.b16 %v6564
    %v7812 = vunpack.c.h.b16 %v6564
    %v7813 = vunpack.c.l.b16 %v6565
    %v7814 = vunpack.c.h.b16 %v6565
    %v7815 = vunpack.c.l.b16 %v6566
    %v7816 = vunpack.c.h.b16 %v6566
    %v7817 = vunpack.c.l.b16 %v6567
    %v7818 = vunpack.c.h.b16 %v6567
    %v7819 = vunpack.c.l.b16 %v6568
    %v7820 = vunpack.c.h.b16 %v6568
    %v7821 = vunpack.c.l.b16 %v6569
    %v7822 = vunpack.c.h.b16 %v6569
    %v7823 = vunpack.c.l.b16 %v6570
    %v7824 = vunpack.c.h.b16 %v6570
    %v7825 = vunpack.c.l.b16 %v6571
    %v7826 = vunpack.c.h.b16 %v6571
    %v7827 = vunpack.c.l.b16 %v6572
    %v7828 = vunpack.c.h.b16 %v6572
    %v7829 = vunpack.c.l.b16 %v6573
    %v7830 = vunpack.c.h.b16 %v6573
    %v7831 = vunpack.c.l.b16 %v6574
    %v7832 = vunpack.c.h.b16 %v6574
    %v7833 = vunpack.c.l.b16 %v6575
    %v7834 = vunpack.c.h.b16 %v6575
    %v7835 = vunpack.c.l.b16 %v6576
    %v7836 = vunpack.c.h.b16 %v6576
    %v7837 = vunpack.c.l.b16 %v6577
    %v7838 = vunpack.c.h.b16 %v6577
    %v7839 = vunpack.c.l.b16 %v6578
    %v7840 = vunpack.c.h.b16 %v6578
    %v7841 = vunpack.c.l.b16 %v6579
    %v7842 = vunpack.c.h.b16 %v6579
    %v7843 = vunpack.c.l.b16 %v6580
    %v7844 = vunpack.c.h.b16 %v6580
    %v7845 = vunpack.c.l.b16 %v6581
    %v7846 = vunpack.c.h.b16 %v6581
    %v7847 = vunpack.c.l.b16 %v6582
    %v7848 = vunpack.c.h.b16 %v6582
    %v7849 = vunpack.c.l.b16 %v6583
    %v7850 = vunpack.c.h.b16 %v6583
    %v7851 = vunpack.c.l.b16 %v6584
    %v7852 = vunpack.c.h.b16 %v6584
    %v7853 = vunpack.c.l.b16 %v6585
    %v7854 = vunpack.c.h.b16 %v6585
    %v7855 = vunpack.c.l.b16 %v6586
    %v7856 = vunpack.c.h.b16 %v6586
    %v7857 = vunpack.c.l.b16 %v6587
    %v7858 = vunpack.c.h.b16 %v6587
    %v7859 = vunpack.c.l.b16 %v6588
    %v7860 = vunpack.c.h.b16 %v6588
    %v7861 = vunpack.c.l.b16 %v6589
    %v7862 = vunpack.c.h.b16 %v6589
    %v7863 = vunpack.c.l.b16 %v6590
    %v7864 = vunpack.c.h.b16 %v6590
    %v7865 = vunpack.c.l.b16 %v6591
    %v7866 = vunpack.c.h.b16 %v6591
    %v7867 = vunpack.c.l.b16 %v6592
    %v7868 = vunpack.c.h.b16 %v6592
    %v7869 = vunpack.c.l.b16 %v6593
    %v7870 = vunpack.c.h.b16 %v6593
    %v7871 = vunpack.c.l.b16 %v6594
    %v7872 = vunpack.c.h.b16 %v6594
    %v7873 = vunpack.c.l.b16 %v6595
    %v7874 = vunpack.c.h.b16 %v6595
    %v7875 = vunpack.c.l.b16 %v6596
    %v7876 = vunpack.c.h.b16 %v6596
    %v7877 = vunpack.c.l.b16 %v6597
    %v7878 = vunpack.c.h.b16 %v6597
    %v7879 = vunpack.c.l.b16 %v6598
    %v7880 = vunpack.c.h.b16 %v6598
    %v7881 = vunpack.c.l.b16 %v6599
    %v7882 = vunpack.c.h.b16 %v6599
    %v7883 = vunpack.c.l.b16 %v6600
    %v7884 = vunpack.c.h.b16 %v6600
    %v7885 = vunpack.c.l.b16 %v6601
    %v7886 = vunpack.c.h.b16 %v6601
    %v7887 = vunpack.c.l.b16 %v6602
    %v7888 = vunpack.c.h.b16 %v6602
    %v7889 = vunpack.c.l.b16 %v6603
    %v7890 = vunpack.c.h.b16 %v6603
    %v7891 = vunpack.c.l.b16 %v6604
    %v7892 = vunpack.c.h.b16 %v6604
    %v7893 = vunpack.c.l.b16 %v6605
    %v7894 = vunpack.c.h.b16 %v6605
    %v7895 = vunpack.c.l.b16 %v6606
    %v7896 = vunpack.c.h.b16 %v6606
    %v7897 = vunpack.c.l.b16 %v6607
    %v7898 = vunpack.c.h.b16 %v6607
    %v7899 = vunpack.c.l.b16 %v6608
    %v7900 = vunpack.c.h.b16 %v6608
    %v7901 = vunpack.c.l.b16 %v6609
    %v7902 = vunpack.c.h.b16 %v6609
    %v7903 = vunpack.c.l.b16 %v6610
    %v7904 = vunpack.c.h.b16 %v6610
    %v7905 = vunpack.c.l.b16 %v6611
    %v7906 = vunpack.c.h.b16 %v6611
    %v7907 = vunpack.c.l.b16 %v6612
    %v7908 = vunpack.c.h.b16 %v6612
    %v7909 = vunpack.c.l.b16 %v6613
    %v7910 = vunpack.c.h.b16 %v6613
    %v7911 = vunpack.c.l.b16 %v6614
    %v7912 = vunpack.c.h.b16 %v6614
    %v7913 = vunpack.c.l.b16 %v6615
    %v7914 = vunpack.c.h.b16 %v6615
    %v7915 = vunpack.c.l.b16 %v6616
    %v7916 = vunpack.c.h.b16 %v6616
    %v7917 = vunpack.c.l.b16 %v6617
    %v7918 = vunpack.c.h.b16 %v6617
    %v7919 = vunpack.c.l.b16 %v6618
    %v7920 = vunpack.c.h.b16 %v6618
    %v7921 = vunpack.c.l.b16 %v6619
    %v7922 = vunpack.c.h.b16 %v6619
    %v7923 = vunpack.c.l.b16 %v6620
    %v7924 = vunpack.c.h.b16 %v6620
    %v7925 = vunpack.c.l.b16 %v6621
    %v7926 = vunpack.c.h.b16 %v6621
    %v7927 = vunpack.c.l.b16 %v6622
    %v7928 = vunpack.c.h.b16 %v6622
    %v7929 = vunpack.c.l.b16 %v6623
    %v7930 = vunpack.c.h.b16 %v6623
    %v7931 = vunpack.c.l.b16 %v6624
    %v7932 = vunpack.c.h.b16 %v6624
    %v7933 = vunpack.c.l.b16 %v6625
    %v7934 = vunpack.c.h.b16 %v6625
    %v7935 = vunpack.c.l.b16 %v6626
    %v7936 = vunpack.c.h.b16 %v6626
    %v7937 = vunpack.c.l.b16 %v6627
    %v7938 = vunpack.c.h.b16 %v6627
    %v7939 = vunpack.c.l.b16 %v6628
    %v7940 = vunpack.c.h.b16 %v6628
    %v7941 = vunpack.c.l.b16 %v6629
    %v7942 = vunpack.c.h.b16 %v6629
    %v7943 = vunpack.c.l.b16 %v6630
    %v7944 = vunpack.c.h.b16 %v6630
    %v7945 = vunpack.c.l.b16 %v6631
    %v7946 = vunpack.c.h.b16 %v6631
    %v7947 = vunpack.c.l.b16 %v6632
    %v7948 = vunpack.c.h.b16 %v6632
    %v7949 = vunpack.c.l.b16 %v6633
    %v7950 = vunpack.c.h.b16 %v6633
    %v7951 = vunpack.c.l.b16 %v6634
    %v7952 = vunpack.c.h.b16 %v6634
    %v7953 = vunpack.c.l.b16 %v6635
    %v7954 = vunpack.c.h.b16 %v6635
    %v7955 = vunpack.c.l.b16 %v6636
    %v7956 = vunpack.c.h.b16 %v6636
    %v7957 = vunpack.c.l.b16 %v6637
    %v7958 = vunpack.c.h.b16 %v6637
    %v7959 = vunpack.c.l.b16 %v6638
    %v7960 = vunpack.c.h.b16 %v6638
    %v7961 = vunpack.c.l.b16 %v6639
    %v7962 = vunpack.c.h.b16 %v6639
    %v7963 = vunpack.c.l.b16 %v6640
    %v7964 = vunpack.c.h.b16 %v6640
    %v7965 = vunpack.c.l.b16 %v6641
    %v7966 = vunpack.c.h.b16 %v6641
    %v7967 = vunpack.c.l.b16 %v6642
    %v7968 = vunpack.c.h.b16 %v6642
    %v7969 = vunpack.c.l.b16 %v6643
    %v7970 = vunpack.c.h.b16 %v6643
    %v7971 = vunpack.c.l.b16 %v6644
    %v7972 = vunpack.c.h.b16 %v6644
    %v7973 = vunpack.c.l.b16 %v6645
    %v7974 = vunpack.c.h.b16 %v6645
    %v7975 = vunpack.c.l.b16 %v6646
    %v7976 = vunpack.c.h.b16 %v6646
    %v7977 = vunpack.c.l.b16 %v6647
    %v7978 = vunpack.c.h.b16 %v6647
    %v7979 = vunpack.c.l.b16 %v6648
    %v7980 = vunpack.c.h.b16 %v6648
    %v7981 = vunpack.c.l.b16 %v6649
    %v7982 = vunpack.c.h.b16 %v6649
    %v7983 = vunpack.c.l.b16 %v6650
    %v7984 = vunpack.c.h.b16 %v6650
    %v7985 = vunpack.c.l.b16 %v6651
    %v7986 = vunpack.c.h.b16 %v6651
    %v7987 = vunpack.c.l.b16 %v6652
    %v7988 = vunpack.c.h.b16 %v6652
    %v7989 = vunpack.c.l.b16 %v6653
    %v7990 = vunpack.c.h.b16 %v6653
    %v7991 = vunpack.c.l.b16 %v6654
    %v7992 = vunpack.c.h.b16 %v6654
    %v7993 = vunpack.c.l.b16 %v6655
    %v7994 = vunpack.c.h.b16 %v6655
    %v7995 = vunpack.c.l.b16 %v6656
    %v7996 = vunpack.c.h.b16 %v6656
    %v7997 = vunpack.c.l.b16 %v6657
    %v7998 = vunpack.c.h.b16 %v6657
    %v7999 = vunpack.c.l.b16 %v6658
    %v8000 = vunpack.c.h.b16 %v6658
    %v8001 = vunpack.c.l.b16 %v6659
    %v8002 = vunpack.c.h.b16 %v6659
    %v8003 = vunpack.c.l.b16 %v6660
    %v8004 = vunpack.c.h.b16 %v6660
    %v8005 = vunpack.c.l.b16 %v6661
    %v8006 = vunpack.c.h.b16 %v6661
    %v8007 = vunpack.c.l.b16 %v6662
    %v8008 = vunpack.c.h.b16 %v6662
    %v8009 = vunpack.c.l.b16 %v6663
    %v8010 = vunpack.c.h.b16 %v6663
    %v8011 = vunpack.c.l.b16 %v6664
    %v8012 = vunpack.c.h.b16 %v6664
    %v8013 = vunpack.c.l.b16 %v6665
    %v8014 = vunpack.c.h.b16 %v6665
    %v8015 = vunpack.c.l.b16 %v6666
    %v8016 = vunpack.c.h.b16 %v6666
    %v8017 = vunpack.c.l.b16 %v6667
    %v8018 = vunpack.c.h.b16 %v6667
    %v8019 = vunpack.c.l.b16 %v6668
    %v8020 = vunpack.c.h.b16 %v6668
    %v8021 = vunpack.c.l.b16 %v6669
    %v8022 = vunpack.c.h.b16 %v6669
    %v8023 = vunpack.c.l.b16 %v6670
    %v8024 = vunpack.c.h.b16 %v6670
    %v8025 = vunpack.c.l.b16 %v6671
    %v8026 = vunpack.c.h.b16 %v6671
    %v8027 = vunpack.c.l.b16 %v6672
    %v8028 = vunpack.c.h.b16 %v6672
    %v8029 = vunpack.c.l.b16 %v6673
    %v8030 = vunpack.c.h.b16 %v6673
    %v8031 = vunpack.c.l.b16 %v6674
    %v8032 = vunpack.c.h.b16 %v6674
    %v8033 = vunpack.c.l.b16 %v6675
    %v8034 = vunpack.c.h.b16 %v6675
    %v8035 = vunpack.c.l.b16 %v6676
    %v8036 = vunpack.c.h.b16 %v6676
    %v8037 = vunpack.c.l.b16 %v6677
    %v8038 = vunpack.c.h.b16 %v6677
    %v8039 = vunpack.c.l.b16 %v6678
    %v8040 = vunpack.c.h.b16 %v6678
    %v8041 = vunpack.c.l.b16 %v6679
    %v8042 = vunpack.c.h.b16 %v6679
    %v8043 = vunpack.c.l.b16 %v6680
    %v8044 = vunpack.c.h.b16 %v6680
    %v8045 = vunpack.c.l.b16 %v6681
    %v8046 = vunpack.c.h.b16 %v6681
    %v8047 = vunpack.c.l.b16 %v6682
    %v8048 = vunpack.c.h.b16 %v6682
    %v8049 = vunpack.c.l.b16 %v6683
    %v8050 = vunpack.c.h.b16 %v6683
    %v8051 = vunpack.c.l.b16 %v6684
    %v8052 = vunpack.c.h.b16 %v6684
    %v8053 = vunpack.c.l.b16 %v6685
    %v8054 = vunpack.c.h.b16 %v6685
    %v8055 = vunpack.c.l.b16 %v6686
    %v8056 = vunpack.c.h.b16 %v6686
    %v8057 = vunpack.c.l.b16 %v6687
    %v8058 = vunpack.c.h.b16 %v6687
    %v8059 = vunpack.c.l.b16 %v6688
    %v8060 = vunpack.c.h.b16 %v6688
    %v8061 = vunpack.c.l.b16 %v6689
    %v8062 = vunpack.c.h.b16 %v6689
    %v8063 = vunpack.c.l.b16 %v6690
    %v8064 = vunpack.c.h.b16 %v6690
    %v8065 = vunpack.c.l.b16 %v6691
    %v8066 = vunpack.c.h.b16 %v6691
    %v8067 = vunpack.c.l.b16 %v6692
    %v8068 = vunpack.c.h.b16 %v6692
    %v8069 = vunpack.c.l.b16 %v6693
    %v8070 = vunpack.c.h.b16 %v6693
    %v8071 = vunpack.c.l.b16 %v6694
    %v8072 = vunpack.c.h.b16 %v6694
    %v8073 = vunpack.c.l.b16 %v6695
    %v8074 = vunpack.c.h.b16 %v6695
    %v8075 = vunpack.c.l.b16 %v6696
    %v8076 = vunpack.c.h.b16 %v6696
    %v8077 = vunpack.c.l.b16 %v6697
    %v8078 = vunpack.c.h.b16 %v6697
    %v8079 = vunpack.c.l.b16 %v6698
    %v8080 = vunpack.c.h.b16 %v6698
    %v8081 = vunpack.c.l.b16 %v6699
    %v8082 = vunpack.c.h.b16 %v6699
    %v8083 = vunpack.c.l.b16 %v6700
    %v8084 = vunpack.c.h.b16 %v6700
    %v8085 = vunpack.c.l.b16 %v6701
    %v8086 = vunpack.c.h.b16 %v6701
    %v8087 = vunpack.c.l.b16 %v6702
    %v8088 = vunpack.c.h.b16 %v6702
    %v8089 = vunpack.c.l.b16 %v6703
    %v8090 = vunpack.c.h.b16 %v6703
    %v8091 = vunpack.c.l.b16 %v6704
    %v8092 = vunpack.c.h.b16 %v6704
    %v8093 = vunpack.c.l.b16 %v6705
    %v8094 = vunpack.c.h.b16 %v6705
    %v8095 = vunpack.c.l.b16 %v6706
    %v8096 = vunpack.c.h.b16 %v6706
    %v8097 = vunpack.c.l.b16 %v6707
    %v8098 = vunpack.c.h.b16 %v6707
    %v8099 = vunpack.c.l.b16 %v6708
    %v8100 = vunpack.c.h.b16 %v6708
    %v8101 = vunpack.c.l.b16 %v6709
    %v8102 = vunpack.c.h.b16 %v6709
    %v8103 = vunpack.c.l.b16 %v6710
    %v8104 = vunpack.c.h.b16 %v6710
    %v8105 = vunpack.c.l.b16 %v6711
    %v8106 = vunpack.c.h.b16 %v6711
    %v8107 = vunpack.c.l.b16 %v6712
    %v8108 = vunpack.c.h.b16 %v6712
    %v8109 = vunpack.c.l.b16 %v6713
    %v8110 = vunpack.c.h.b16 %v6713
    %v8111 = vunpack.c.l.b16 %v6714
    %v8112 = vunpack.c.h.b16 %v6714
    %v8113 = vunpack.c.l.b16 %v6715
    %v8114 = vunpack.c.h.b16 %v6715
    %v8115 = vunpack.c.l.b16 %v6716
    %v8116 = vunpack.c.h.b16 %v6716
    %v8117 = vunpack.c.l.b16 %v6717
    %v8118 = vunpack.c.h.b16 %v6717
    %v8119 = vunpack.c.l.b16 %v6718
    %v8120 = vunpack.c.h.b16 %v6718
    %v8121 = vunpack.c.l.b16 %v6719
    %v8122 = vunpack.c.h.b16 %v6719
    %v8123 = vunpack.c.l.b16 %v6720
    %v8124 = vunpack.c.h.b16 %v6720
    %v8125 = vunpack.c.l.b16 %v6721
    %v8126 = vunpack.c.h.b16 %v6721
    %v8127 = vunpack.c.l.b16 %v6722
    %v8128 = vunpack.c.h.b16 %v6722
    %v8129 = vunpack.c.l.b16 %v6723
    %v8130 = vunpack.c.h.b16 %v6723
    %v8131 = vunpack.c.l.b16 %v6724
    %v8132 = vunpack.c.h.b16 %v6724
    %v8133 = vunpack.c.l.b16 %v6725
    %v8134 = vunpack.c.h.b16 %v6725
    %v8135 = vunpack.c.l.b16 %v6726
    %v8136 = vunpack.c.h.b16 %v6726
    %v8137 = vunpack.c.l.b16 %v6727
    %v8138 = vunpack.c.h.b16 %v6727
    %v8139 = vunpack.c.l.b16 %v6728
    %v8140 = vunpack.c.h.b16 %v6728
    %v8141 = vunpack.c.l.b16 %v6729
    %v8142 = vunpack.c.h.b16 %v6729
    %v8143 = vunpack.c.l.b16 %v6730
    %v8144 = vunpack.c.h.b16 %v6730
    %v8145 = vunpack.c.l.b16 %v6731
    %v8146 = vunpack.c.h.b16 %v6731
    %v8147 = vunpack.c.l.b16 %v6732
    %v8148 = vunpack.c.h.b16 %v6732
    %v8149 = vunpack.c.l.b16 %v6733
    %v8150 = vunpack.c.h.b16 %v6733
    %v8151 = vunpack.c.l.b16 %v6734
    %v8152 = vunpack.c.h.b16 %v6734
    %v8153 = vunpack.c.l.b16 %v6735
    %v8154 = vunpack.c.h.b16 %v6735
    %v8155 = vunpack.c.l.b16 %v6736
    %v8156 = vunpack.c.h.b16 %v6736
    %v8157 = vunpack.c.l.b16 %v6737
    %v8158 = vunpack.c.h.b16 %v6737
    %v8159 = vunpack.c.l.b16 %v6738
    %v8160 = vunpack.c.h.b16 %v6738
    %v8161 = vunpack.c.l.b16 %v6739
    %v8162 = vunpack.c.h.b16 %v6739
    %v8163 = vunpack.c.l.b16 %v6740
    %v8164 = vunpack.c.h.b16 %v6740
    %v8165 = vunpack.c.l.b16 %v6741
    %v8166 = vunpack.c.h.b16 %v6741
    %v8167 = vunpack.c.l.b16 %v6742
    %v8168 = vunpack.c.h.b16 %v6742
    %v8169 = vunpack.c.l.b16 %v6743
    %v8170 = vunpack.c.h.b16 %v6743
    %v8171 = vunpack.c.l.b16 %v6744
    %v8172 = vunpack.c.h.b16 %v6744
    %v8173 = vunpack.c.l.b16 %v6745
    %v8174 = vunpack.c.h.b16 %v6745
    %v8175 = vunpack.c.l.b16 %v6746
    %v8176 = vunpack.c.h.b16 %v6746
    %v8177 = vunpack.c.l.b16 %v6747
    %v8178 = vunpack.c.h.b16 %v6747
    %v8179 = vunpack.c.l.b16 %v6748
    %v8180 = vunpack.c.h.b16 %v6748
    %v8181 = vunpack.c.l.b16 %v6749
    %v8182 = vunpack.c.h.b16 %v6749
    %v8183 = vunpack.c.l.b16 %v6750
    %v8184 = vunpack.c.h.b16 %v6750
    %v8185 = vunpack.c.l.b16 %v6751
    %v8186 = vunpack.c.h.b16 %v6751
    %v8187 = vunpack.c.l.b16 %v6752
    %v8188 = vunpack.c.h.b16 %v6752
    %v8189 = vunpack.c.l.b16 %v6753
    %v8190 = vunpack.c.h.b16 %v6753
    %v8191 = vunpack.c.l.b16 %v6754
    %v8192 = vunpack.c.h.b16 %v6754
    %v8193 = vunpack.c.l.b16 %v6755
    %v8194 = vunpack.c.h.b16 %v6755
    %v8195 = vunpack.c.l.b16 %v6756
    %v8196 = vunpack.c.h.b16 %v6756
    %v8197 = vunpack.c.l.b16 %v6757
    %v8198 = vunpack.c.h.b16 %v6757
    %v8199 = vunpack.c.l.b16 %v6758
    %v8200 = vunpack.c.h.b16 %v6758
    %v8201 = vunpack.c.l.b16 %v6759
    %v8202 = vunpack.c.h.b16 %v6759
    %v8203 = vunpack.c.l.b16 %v6760
    %v8204 = vunpack.c.h.b16 %v6760
    %v8205 = vunpack.c.l.b16 %v6761
    %v8206 = vunpack.c.h.b16 %v6761
    %v8207 = vunpack.c.l.b16 %v6762
    %v8208 = vunpack.c.h.b16 %v6762
    %v8209 = vunpack.c.l.b16 %v6763
    %v8210 = vunpack.c.h.b16 %v6763
    %v8211 = vunpack.c.l.b16 %v6764
    %v8212 = vunpack.c.h.b16 %v6764
    %v8213 = vunpack.c.l.b16 %v6765
    %v8214 = vunpack.c.h.b16 %v6765
    %v8215 = vunpack.c.l.b16 %v6766
    %v8216 = vunpack.c.h.b16 %v6766
    %v8217 = vunpack.c.l.b16 %v6767
    %v8218 = vunpack.c.h.b16 %v6767
    %v8219 = vunpack.c.l.b16 %v6768
    %v8220 = vunpack.c.h.b16 %v6768
    %v8221 = vunpack.c.l.b16 %v6769
    %v8222 = vunpack.c.h.b16 %v6769
    %v8223 = vunpack.c.l.b16 %v6770
    %v8224 = vunpack.c.h.b16 %v6770
    %v8225 = vunpack.c.l.b16 %v6771
    %v8226 = vunpack.c.h.b16 %v6771
    %v8227 = vunpack.c.l.b16 %v6772
    %v8228 = vunpack.c.h.b16 %v6772
    %v8229 = vunpack.c.l.b16 %v6773
    %v8230 = vunpack.c.h.b16 %v6773
    %v8231 = vunpack.c.l.b16 %v6774
    %v8232 = vunpack.c.h.b16 %v6774
    %v8233 = vunpack.c.l.b16 %v6775
    %v8234 = vunpack.c.h.b16 %v6775
    %v8235 = vunpack.c.l.b16 %v6776
    %v8236 = vunpack.c.h.b16 %v6776
    %v8237 = vunpack.c.l.b16 %v6777
    %v8238 = vunpack.c.h.b16 %v6777
    %v8239 = vunpack.c.l.b16 %v6778
    %v8240 = vunpack.c.h.b16 %v6778
    %v8241 = vunpack.c.l.b16 %v6779
    %v8242 = vunpack.c.h.b16 %v6779
    %v8243 = vunpack.c.l.b16 %v6780
    %v8244 = vunpack.c.h.b16 %v6780
    %v8245 = vunpack.c.l.b16 %v6781
    %v8246 = vunpack.c.h.b16 %v6781
    %v8247 = vunpack.c.l.b16 %v6782
    %v8248 = vunpack.c.h.b16 %v6782
    %v8249 = vunpack.c.l.b16 %v6783
    %v8250 = vunpack.c.h.b16 %v6783
    %v8251 = vunpack.c.l.b16 %v6784
    %v8252 = vunpack.c.h.b16 %v6784
    %v8253 = vunpack.c.l.b16 %v6785
    %v8254 = vunpack.c.h.b16 %v6785
    %v8255 = vunpack.c.l.b16 %v6786
    %v8256 = vunpack.c.h.b16 %v6786
    %v8257 = vunpack.c.l.b16 %v6787
    %v8258 = vunpack.c.h.b16 %v6787
    %v8259 = vunpack.c.l.b16 %v6788
    %v8260 = vunpack.c.h.b16 %v6788
    %v8261 = vunpack.c.l.b16 %v6789
    %v8262 = vunpack.c.h.b16 %v6789
    %v8263 = vunpack.c.l.b16 %v6790
    %v8264 = vunpack.c.h.b16 %v6790
    %v8265 = vunpack.c.l.b16 %v6791
    %v8266 = vunpack.c.h.b16 %v6791
    %v8267 = vunpack.c.l.b16 %v6792
    %v8268 = vunpack.c.h.b16 %v6792
    %v8269 = vunpack.c.l.b16 %v6793
    %v8270 = vunpack.c.h.b16 %v6793
    %v8271 = vunpack.c.l.b16 %v6794
    %v8272 = vunpack.c.h.b16 %v6794
    %v8273 = vunpack.c.l.b16 %v6795
    %v8274 = vunpack.c.h.b16 %v6795
    %v8275 = vunpack.c.l.b16 %v6796
    %v8276 = vunpack.c.h.b16 %v6796
    %v8277 = vunpack.c.l.b16 %v6797
    %v8278 = vunpack.c.h.b16 %v6797
    %v8279 = vunpack.c.l.b16 %v6798
    %v8280 = vunpack.c.h.b16 %v6798
    %v8281 = vunpack.c.l.b16 %v6799
    %v8282 = vunpack.c.h.b16 %v6799
    %v8283 = vunpack.c.l.b16 %v6800
    %v8284 = vunpack.c.h.b16 %v6800
    %v8285 = vunpack.c.l.b16 %v6801
    %v8286 = vunpack.c.h.b16 %v6801
    %v8287 = vunpack.c.l.b16 %v6802
    %v8288 = vunpack.c.h.b16 %v6802
    %v8289 = vunpack.c.l.b16 %v6803
    %v8290 = vunpack.c.h.b16 %v6803
    %v8291 = vunpack.c.l.b16 %v6804
    %v8292 = vunpack.c.h.b16 %v6804
    %v8293 = vunpack.c.l.b16 %v6805
    %v8294 = vunpack.c.h.b16 %v6805
    %v8295 = vunpack.c.l.b16 %v6806
    %v8296 = vunpack.c.h.b16 %v6806
    %v8297 = vunpack.c.l.b16 %v6807
    %v8298 = vunpack.c.h.b16 %v6807
    %v8299 = vunpack.c.l.b16 %v6808
    %v8300 = vunpack.c.h.b16 %v6808
    %v8301 = vunpack.c.l.b16 %v6809
    %v8302 = vunpack.c.h.b16 %v6809
    %v8303 = vunpack.c.l.b16 %v6810
    %v8304 = vunpack.c.h.b16 %v6810
    %v8305 = vunpack.c.l.b16 %v6811
    %v8306 = vunpack.c.h.b16 %v6811
    %v8307 = vunpack.c.l.b16 %v6812
    %v8308 = vunpack.c.h.b16 %v6812
    %v8309 = vunpack.c.l.b16 %v6813
    %v8310 = vunpack.c.h.b16 %v6813
    %v8311 = vunpack.c.l.b16 %v6814
    %v8312 = vunpack.c.h.b16 %v6814
    %v8313 = vunpack.c.l.b16 %v6815
    %v8314 = vunpack.c.h.b16 %v6815
    %v8315 = vunpack.c.l.b16 %v6816
    %v8316 = vunpack.c.h.b16 %v6816
    %v8317 = vunpack.c.l.b16 %v6817
    %v8318 = vunpack.c.h.b16 %v6817
    %v8319 = vunpack.c.l.b16 %v6818
    %v8320 = vunpack.c.h.b16 %v6818
    %v8321 = vunpack.c.l.b16 %v6819
    %v8322 = vunpack.c.h.b16 %v6819
    %v8323 = vunpack.c.l.b16 %v6820
    %v8324 = vunpack.c.h.b16 %v6820
    %v8325 = vunpack.c.l.b16 %v6821
    %v8326 = vunpack.c.h.b16 %v6821
    %v8327 = vunpack.c.l.b16 %v6822
    %v8328 = vunpack.c.h.b16 %v6822
    %v8329 = vunpack.c.l.b16 %v6823
    %v8330 = vunpack.c.h.b16 %v6823
    %v8331 = vunpack.c.l.b16 %v6824
    %v8332 = vunpack.c.h.b16 %v6824
    %v8333 = vunpack.c.l.b16 %v6825
    %v8334 = vunpack.c.h.b16 %v6825
    %v8335 = vunpack.c.l.b16 %v6826
    %v8336 = vunpack.c.h.b16 %v6826
    %v8337 = vunpack.c.l.b16 %v6827
    %v8338 = vunpack.c.h.b16 %v6827
    %v8339 = vunpack.c.l.b16 %v6828
    %v8340 = vunpack.c.h.b16 %v6828
    %v8341 = vunpack.c.l.b16 %v6829
    %v8342 = vunpack.c.h.b16 %v6829
    %v8343 = vunpack.c.l.b16 %v6830
    %v8344 = vunpack.c.h.b16 %v6830
    %v8345 = vunpack.c.l.b16 %v6831
    %v8346 = vunpack.c.h.b16 %v6831
    %v8347 = vunpack.c.l.b16 %v6832
    %v8348 = vunpack.c.h.b16 %v6832
    %v8349 = vunpack.c.l.b16 %v6833
    %v8350 = vunpack.c.h.b16 %v6833
    %v8351 = vunpack.c.l.b16 %v6834
    %v8352 = vunpack.c.h.b16 %v6834
    %v8353 = vunpack.c.l.b16 %v6835
    %v8354 = vunpack.c.h.b16 %v6835
    %v8355 = vunpack.c.l.b16 %v6836
    %v8356 = vunpack.c.h.b16 %v6836
    %v8357 = vunpack.c.l.b16 %v6837
    %v8358 = vunpack.c.h.b16 %v6837
    %v8359 = vunpack.c.l.b16 %v6838
    %v8360 = vunpack.c.h.b16 %v6838
    %v8361 = vunpack.c.l.b16 %v6839
    %v8362 = vunpack.c.h.b16 %v6839
    %v8363 = vunpack.c.l.b16 %v6840
    %v8364 = vunpack.c.h.b16 %v6840
    %v8365 = vunpack.c.l.b16 %v6841
    %v8366 = vunpack.c.h.b16 %v6841
    %v8367 = vunpack.c.l.b16 %v6842
    %v8368 = vunpack.c.h.b16 %v6842
    %v8369 = vunpack.c.l.b16 %v6843
    %v8370 = vunpack.c.h.b16 %v6843
    %v8371 = vunpack.c.l.b16 %v6844
    %v8372 = vunpack.c.h.b16 %v6844
    %v8373 = vunpack.c.l.b16 %v6845
    %v8374 = vunpack.c.h.b16 %v6845
    %v8375 = vunpack.c.l.b16 %v6846
    %v8376 = vunpack.c.h.b16 %v6846
    %v8377 = vunpack.c.l.b16 %v6847
    %v8378 = vunpack.c.h.b16 %v6847
    %v8379 = vunpack.c.l.b16 %v6848
    %v8380 = vunpack.c.h.b16 %v6848
    %v8381 = vunpack.c.l.b16 %v6849
    %v8382 = vunpack.c.h.b16 %v6849
    %v8383 = vunpack.c.l.b16 %v6850
    %v8384 = vunpack.c.h.b16 %v6850
    %v8385 = vunpack.c.l.b16 %v6851
    %v8386 = vunpack.c.h.b16 %v6851
    %v8387 = vunpack.c.l.b16 %v6852
    %v8388 = vunpack.c.h.b16 %v6852
    %v8389 = vunpack.c.l.b16 %v6853
    %v8390 = vunpack.c.h.b16 %v6853
    %v8391 = vunpack.c.l.b16 %v6854
    %v8392 = vunpack.c.h.b16 %v6854
    %v8393 = vunpack.c.l.b16 %v6855
    %v8394 = vunpack.c.h.b16 %v6855
    %v8395 = vunpack.c.l.b16 %v6856
    %v8396 = vunpack.c.h.b16 %v6856
    %v8397 = vunpack.c.l.b16 %v6857
    %v8398 = vunpack.c.h.b16 %v6857
    %v8399 = vunpack.c.l.b16 %v6858
    %v8400 = vunpack.c.h.b16 %v6858
    %v8401 = vunpack.c.l.b16 %v6859
    %v8402 = vunpack.c.h.b16 %v6859
    %v8403 = vunpack.c.l.b16 %v6860
    %v8404 = vunpack.c.h.b16 %v6860
    %v8405 = vunpack.c.l.b16 %v6861
    %v8406 = vunpack.c.h.b16 %v6861
    %v8407 = vunpack.c.l.b16 %v6862
    %v8408 = vunpack.c.h.b16 %v6862
    %v8409 = vunpack.c.l.b16 %v6863
    %v8410 = vunpack.c.h.b16 %v6863
    %v8411 = vunpack.c.l.b16 %v6864
    %v8412 = vunpack.c.h.b16 %v6864
    %v8413 = vunpack.c.l.b16 %v6865
    %v8414 = vunpack.c.h.b16 %v6865
    %v8415 = vunpack.c.l.b16 %v6866
    %v8416 = vunpack.c.h.b16 %v6866
    %v8417 = vunpack.c.l.b16 %v6867
    %v8418 = vunpack.c.h.b16 %v6867
    %v8419 = vunpack.c.l.b16 %v6868
    %v8420 = vunpack.c.h.b16 %v6868
    %v8421 = vunpack.c.l.b16 %v6869
    %v8422 = vunpack.c.h.b16 %v6869
    %v8423 = vunpack.c.l.b16 %v6870
    %v8424 = vunpack.c.h.b16 %v6870
    %v8425 = vunpack.c.l.b16 %v6871
    %v8426 = vunpack.c.h.b16 %v6871
    %v8427 = vunpack.c.l.b16 %v6872
    %v8428 = vunpack.c.h.b16 %v6872
    %v8429 = vunpack.c.l.b16 %v6873
    %v8430 = vunpack.c.h.b16 %v6873
    %v8431 = vunpack.c.l.b16 %v6874
    %v8432 = vunpack.c.h.b16 %v6874
    %v8433 = vunpack.c.l.b16 %v6875
    %v8434 = vunpack.c.h.b16 %v6875
    %v8435 = vunpack.c.l.b16 %v6876
    %v8436 = vunpack.c.h.b16 %v6876
    %v8437 = vunpack.c.l.b16 %v6877
    %v8438 = vunpack.c.h.b16 %v6877
    %v8439 = vunpack.c.l.b16 %v6878
    %v8440 = vunpack.c.h.b16 %v6878
    %v8441 = vunpack.c.l.b16 %v6879
    %v8442 = vunpack.c.h.b16 %v6879
    %v8443 = vunpack.c.l.b16 %v6880
    %v8444 = vunpack.c.h.b16 %v6880
    %v8445 = vunpack.c.l.b16 %v6881
    %v8446 = vunpack.c.h.b16 %v6881
    %v8447 = vunpack.c.l.b16 %v6882
    %v8448 = vunpack.c.h.b16 %v6882
    %v8449 = vunpack.c.l.b16 %v6883
    %v8450 = vunpack.c.h.b16 %v6883
    %v8451 = vunpack.c.l.b16 %v6884
    %v8452 = vunpack.c.h.b16 %v6884
    %v8453 = vunpack.c.l.b16 %v6885
    %v8454 = vunpack.c.h.b16 %v6885
    %v8455 = vunpack.c.l.b16 %v6886
    %v8456 = vunpack.c.h.b16 %v6886
    %v8457 = vunpack.c.l.b16 %v6887
    %v8458 = vunpack.c.h.b16 %v6887
    %v8459 = vunpack.c.l.b16 %v6888
    %v8460 = vunpack.c.h.b16 %v6888
    %v8461 = vunpack.c.l.b16 %v6889
    %v8462 = vunpack.c.h.b16 %v6889
    %v8463 = vunpack.c.l.b16 %v6890
    %v8464 = vunpack.c.h.b16 %v6890
    %v8465 = vunpack.c.l.b16 %v6891
    %v8466 = vunpack.c.h.b16 %v6891
    %v8467 = vunpack.c.l.b16 %v6892
    %v8468 = vunpack.c.h.b16 %v6892
    %v8469 = vunpack.c.l.b16 %v6893
    %v8470 = vunpack.c.h.b16 %v6893
    %v8471 = vunpack.c.l.b16 %v6894
    %v8472 = vunpack.c.h.b16 %v6894
    %v8473 = vpack.c.b16 %v7457, %v7449
    %v8474 = vpack.c.b16 %v7458, %v7450
    %v8475 = vpack.c.b16 %v7459, %v7451
    %v8476 = vpack.c.b16 %v7460, %v7452
    %v8477 = vpack.c.b16 %v7461, %v7453
    %v8478 = vpack.c.b16 %v7462, %v7454
    %v8479 = vpack.c.b16 %v7463, %v7455
    %v8480 = vpack.c.b16 %v7464, %v7456
    %v8481 = vpack.c.b16 %v7473, %v7465
    %v8482 = vpack.c.b16 %v7474, %v7466
    %v8483 = vpack.c.b16 %v7475, %v7467
    %v8484 = vpack.c.b16 %v7476, %v7468
    %v8485 = vpack.c.b16 %v7477, %v7469
    %v8486 = vpack.c.b16 %v7478, %v7470
    %v8487 = vpack.c.b16 %v7479, %v7471
    %v8488 = vpack.c.b16 %v7480, %v7472
    %v8489 = vpack.c.b16 %v7489, %v7481
    %v8490 = vpack.c.b16 %v7490, %v7482
    %v8491 = vpack.c.b16 %v7491, %v7483
    %v8492 = vpack.c.b16 %v7492, %v7484
    %v8493 = vpack.c.b16 %v7493, %v7485
    %v8494 = vpack.c.b16 %v7494, %v7486
    %v8495 = vpack.c.b16 %v7495, %v7487
    %v8496 = vpack.c.b16 %v7496, %v7488
    %v8497 = vpack.c.b16 %v7505, %v7497
    %v8498 = vpack.c.b16 %v7506, %v7498
    %v8499 = vpack.c.b16 %v7507, %v7499
    %v8500 = vpack.c.b16 %v7508, %v7500
    %v8501 = vpack.c.b16 %v7509, %v7501
    %v8502 = vpack.c.b16 %v7510, %v7502
    %v8503 = vpack.c.b16 %v7511, %v7503
    %v8504 = vpack.c.b16 %v7512, %v7504
    %v8505 = vpack.c.b16 %v7521, %v7513
    %v8506 = vpack.c.b16 %v7522, %v7514
    %v8507 = vpack.c.b16 %v7523, %v7515
    %v8508 = vpack.c.b16 %v7524, %v7516
    %v8509 = vpack.c.b16 %v7525, %v7517
    %v8510 = vpack.c.b16 %v7526, %v7518
    %v8511 = vpack.c.b16 %v7527, %v7519
    %v8512 = vpack.c.b16 %v7528, %v7520
    %v8513 = vpack.c.b16 %v7537, %v7529
    %v8514 = vpack.c.b16 %v7538, %v7530
    %v8515 = vpack.c.b16 %v7539, %v7531
    %v8516 = vpack.c.b16 %v7540, %v7532
    %v8517 = vpack.c.b16 %v7541, %v7533
    %v8518 = vpack.c.b16 %v7542, %v7534
    %v8519 = vpack.c.b16 %v7543, %v7535
    %v8520 = vpack.c.b16 %v7544, %v7536
    %v8521 = vpack.c.b16 %v7553, %v7545
    %v8522 = vpack.c.b16 %v7554, %v7546
    %v8523 = vpack.c.b16 %v7555, %v7547
    %v8524 = vpack.c.b16 %v7556, %v7548
    %v8525 = vpack.c.b16 %v7557, %v7549
    %v8526 = vpack.c.b16 %v7558, %v7550
    %v8527 = vpack.c.b16 %v7559, %v7551
    %v8528 = vpack.c.b16 %v7560, %v7552
    %v8529 = vpack.c.b16 %v7569, %v7561
    %v8530 = vpack.c.b16 %v7570, %v7562
    %v8531 = vpack.c.b16 %v7571, %v7563
    %v8532 = vpack.c.b16 %v7572, %v7564
    %v8533 = vpack.c.b16 %v7573, %v7565
    %v8534 = vpack.c.b16 %v7574, %v7566
    %v8535 = vpack.c.b16 %v7575, %v7567
    %v8536 = vpack.c.b16 %v7576, %v7568
    %v8537 = vpack.c.b16 %v7585, %v7577
    %v8538 = vpack.c.b16 %v7586, %v7578
    %v8539 = vpack.c.b16 %v7587, %v7579
    %v8540 = vpack.c.b16 %v7588, %v7580
    %v8541 = vpack.c.b16 %v7589, %v7581
    %v8542 = vpack.c.b16 %v7590, %v7582
    %v8543 = vpack.c.b16 %v7591, %v7583
    %v8544 = vpack.c.b16 %v7592, %v7584
    %v8545 = vpack.c.b16 %v7601, %v7593
    %v8546 = vpack.c.b16 %v7602, %v7594
    %v8547 = vpack.c.b16 %v7603, %v7595
    %v8548 = vpack.c.b16 %v7604, %v7596
    %v8549 = vpack.c.b16 %v7605, %v7597
    %v8550 = vpack.c.b16 %v7606, %v7598
    %v8551 = vpack.c.b16 %v7607, %v7599
    %v8552 = vpack.c.b16 %v7608, %v7600
    %v8553 = vpack.c.b16 %v7617, %v7609
    %v8554 = vpack.c.b16 %v7618, %v7610
    %v8555 = vpack.c.b16 %v7619, %v7611
    %v8556 = vpack.c.b16 %v7620, %v7612
    %v8557 = vpack.c.b16 %v7621, %v7613
    %v8558 = vpack.c.b16 %v7622, %v7614
    %v8559 = vpack.c.b16 %v7623, %v7615
    %v8560 = vpack.c.b16 %v7624, %v7616
    %v8561 = vpack.c.b16 %v7633, %v7625
    %v8562 = vpack.c.b16 %v7634, %v7626
    %v8563 = vpack.c.b16 %v7635, %v7627
    %v8564 = vpack.c.b16 %v7636, %v7628
    %v8565 = vpack.c.b16 %v7637, %v7629
    %v8566 = vpack.c.b16 %v7638, %v7630
    %v8567 = vpack.c.b16 %v7639, %v7631
    %v8568 = vpack.c.b16 %v7640, %v7632
    %v8569 = vpack.c.b16 %v7649, %v7641
    %v8570 = vpack.c.b16 %v7650, %v7642
    %v8571 = vpack.c.b16 %v7651, %v7643
    %v8572 = vpack.c.b16 %v7652, %v7644
    %v8573 = vpack.c.b16 %v7653, %v7645
    %v8574 = vpack.c.b16 %v7654, %v7646
    %v8575 = vpack.c.b16 %v7655, %v7647
    %v8576 = vpack.c.b16 %v7656, %v7648
    %v8577 = vpack.c.b16 %v7665, %v7657
    %v8578 = vpack.c.b16 %v7666, %v7658
    %v8579 = vpack.c.b16 %v7667, %v7659
    %v8580 = vpack.c.b16 %v7668, %v7660
    %v8581 = vpack.c.b16 %v7669, %v7661
    %v8582 = vpack.c.b16 %v7670, %v7662
    %v8583 = vpack.c.b16 %v7671, %v7663
    %v8584 = vpack.c.b16 %v7672, %v7664
    %v8585 = vpack.c.b16 %v7681, %v7673
    %v8586 = vpack.c.b16 %v7682, %v7674
    %v8587 = vpack.c.b16 %v7683, %v7675
    %v8588 = vpack.c.b16 %v7684, %v7676
    %v8589 = vpack.c.b16 %v7685, %v7677
    %v8590 = vpack.c.b16 %v7686, %v7678
    %v8591 = vpack.c.b16 %v7687, %v7679
    %v8592 = vpack.c.b16 %v7688, %v7680
    %v8593 = vpack.c.b16 %v7697, %v7689
    %v8594 = vpack.c.b16 %v7698, %v7690
    %v8595 = vpack.c.b16 %v7699, %v7691
    %v8596 = vpack.c.b16 %v7700, %v7692
    %v8597 = vpack.c.b16 %v7701, %v7693
    %v8598 = vpack.c.b16 %v7702, %v7694
    %v8599 = vpack.c.b16 %v7703, %v7695
    %v8600 = vpack.c.b16 %v7704, %v7696
    %v8601 = vpack.c.b16 %v7713, %v7705
    %v8602 = vpack.c.b16 %v7714, %v7706
    %v8603 = vpack.c.b16 %v7715, %v7707
    %v8604 = vpack.c.b16 %v7716, %v7708
    %v8605 = vpack.c.b16 %v7717, %v7709
    %v8606 = vpack.c.b16 %v7718, %v7710
    %v8607 = vpack.c.b16 %v7719, %v7711
    %v8608 = vpack.c.b16 %v7720, %v7712
    %v8609 = vpack.c.b16 %v7729, %v7721
    %v8610 = vpack.c.b16 %v7730, %v7722
    %v8611 = vpack.c.b16 %v7731, %v7723
    %v8612 = vpack.c.b16 %v7732, %v7724
    %v8613 = vpack.c.b16 %v7733, %v7725
    %v8614 = vpack.c.b16 %v7734, %v7726
    %v8615 = vpack.c.b16 %v7735, %v7727
    %v8616 = vpack.c.b16 %v7736, %v7728
    %v8617 = vpack.c.b16 %v7745, %v7737
    %v8618 = vpack.c.b16 %v7746, %v7738
    %v8619 = vpack.c.b16 %v7747, %v7739
    %v8620 = vpack.c.b16 %v7748, %v7740
    %v8621 = vpack.c.b16 %v7749, %v7741
    %v8622 = vpack.c.b16 %v7750, %v7742
    %v8623 = vpack.c.b16 %v7751, %v7743
    %v8624 = vpack.c.b16 %v7752, %v7744
    %v8625 = vpack.c.b16 %v7761, %v7753
    %v8626 = vpack.c.b16 %v7762, %v7754
    %v8627 = vpack.c.b16 %v7763, %v7755
    %v8628 = vpack.c.b16 %v7764, %v7756
    %v8629 = vpack.c.b16 %v7765, %v7757
    %v8630 = vpack.c.b16 %v7766, %v7758
    %v8631 = vpack.c.b16 %v7767, %v7759
    %v8632 = vpack.c.b16 %v7768, %v7760
    %v8633 = vpack.c.b16 %v7777, %v7769
    %v8634 = vpack.c.b16 %v7778, %v7770
    %v8635 = vpack.c.b16 %v7779, %v7771
    %v8636 = vpack.c.b16 %v7780, %v7772
    %v8637 = vpack.c.b16 %v7781, %v7773
    %v8638 = vpack.c.b16 %v7782, %v7774
    %v8639 = vpack.c.b16 %v7783, %v7775
    %v8640 = vpack.c.b16 %v7784, %v7776
    %v8641 = vpack.c.b16 %v7793, %v7785
    %v8642 = vpack.c.b16 %v7794, %v7786
    %v8643 = vpack.c.b16 %v7795, %v7787
    %v8644 = vpack.c.b16 %v7796, %v7788
    %v8645 = vpack.c.b16 %v7797, %v7789
    %v8646 = vpack.c.b16 %v7798, %v7790
    %v8647 = vpack.c.b16 %v7799, %v7791
    %v8648 = vpack.c.b16 %v7800, %v7792
    %v8649 = vpack.c.b16 %v7809, %v7801
    %v8650 = vpack.c.b16 %v7810, %v7802
    %v8651 = vpack.c.b16 %v7811, %v7803
    %v8652 = vpack.c.b16 %v7812, %v7804
    %v8653 = vpack.c.b16 %v7813, %v7805
    %v8654 = vpack.c.b16 %v7814, %v7806
    %v8655 = vpack.c.b16 %v7815, %v7807
    %v8656 = vpack.c.b16 %v7816, %v7808
    %v8657 = vpack.c.b16 %v7825, %v7817
    %v8658 = vpack.c.b16 %v7826, %v7818
    %v8659 = vpack.c.b16 %v7827, %v7819
    %v8660 = vpack.c.b16 %v7828, %v7820
    %v8661 = vpack.c.b16 %v7829, %v7821
    %v8662 = vpack.c.b16 %v7830, %v7822
    %v8663 = vpack.c.b16 %v7831, %v7823
    %v8664 = vpack.c.b16 %v7832, %v7824
    %v8665 = vpack.c.b16 %v7841, %v7833
    %v8666 = vpack.c.b16 %v7842, %v7834
    %v8667 = vpack.c.b16 %v7843, %v7835
    %v8668 = vpack.c.b16 %v7844, %v7836
    %v8669 = vpack.c.b16 %v7845, %v7837
    %v8670 = vpack.c.b16 %v7846, %v7838
    %v8671 = vpack.c.b16 %v7847, %v7839
    %v8672 = vpack.c.b16 %v7848, %v7840
    %v8673 = vpack.c.b16 %v7857, %v7849
    %v8674 = vpack.c.b16 %v7858, %v7850
    %v8675 = vpack.c.b16 %v7859, %v7851
    %v8676 = vpack.c.b16 %v7860, %v7852
    %v8677 = vpack.c.b16 %v7861, %v7853
    %v8678 = vpack.c.b16 %v7862, %v7854
    %v8679 = vpack.c.b16 %v7863, %v7855
    %v8680 = vpack.c.b16 %v7864, %v7856
    %v8681 = vpack.c.b16 %v7873, %v7865
    %v8682 = vpack.c.b16 %v7874, %v7866
    %v8683 = vpack.c.b16 %v7875, %v7867
    %v8684 = vpack.c.b16 %v7876, %v7868
    %v8685 = vpack.c.b16 %v7877, %v7869
    %v8686 = vpack.c.b16 %v7878, %v7870
    %v8687 = vpack.c.b16 %v7879, %v7871
    %v8688 = vpack.c.b16 %v7880, %v7872
    %v8689 = vpack.c.b16 %v7889, %v7881
    %v8690 = vpack.c.b16 %v7890, %v7882
    %v8691 = vpack.c.b16 %v7891, %v7883
    %v8692 = vpack.c.b16 %v7892, %v7884
    %v8693 = vpack.c.b16 %v7893, %v7885
    %v8694 = vpack.c.b16 %v7894, %v7886
    %v8695 = vpack.c.b16 %v7895, %v7887
    %v8696 = vpack.c.b16 %v7896, %v7888
    %v8697 = vpack.c.b16 %v7905, %v7897
    %v8698 = vpack.c.b16 %v7906, %v7898
    %v8699 = vpack.c.b16 %v7907, %v7899
    %v8700 = vpack.c.b16 %v7908, %v7900
    %v8701 = vpack.c.b16 %v7909, %v7901
    %v8702 = vpack.c.b16 %v7910, %v7902
    %v8703 = vpack.c.b16 %v7911, %v7903
    %v8704 = vpack.c.b16 %v7912, %v7904
    %v8705 = vpack.c.b16 %v7921, %v7913
    %v8706 = vpack.c.b16 %v7922, %v7914
    %v8707 = vpack.c.b16 %v7923, %v7915
    %v8708 = vpack.c.b16 %v7924, %v7916
    %v8709 = vpack.c.b16 %v7925, %v7917
    %v8710 = vpack.c.b16 %v7926, %v7918
    %v8711 = vpack.c.b16 %v7927, %v7919
    %v8712 = vpack.c.b16 %v7928, %v7920
    %v8713 = vpack.c.b16 %v7937, %v7929
    %v8714 = vpack.c.b16 %v7938, %v7930
    %v8715 = vpack.c.b16 %v7939, %v7931
    %v8716 = vpack.c.b16 %v7940, %v7932
    %v8717 = vpack.c.b16 %v7941, %v7933
    %v8718 = vpack.c.b16 %v7942, %v7934
    %v8719 = vpack.c.b16 %v7943, %v7935
    %v8720 = vpack.c.b16 %v7944, %v7936
    %v8721 = vpack.c.b16 %v7953, %v7945
    %v8722 = vpack.c.b16 %v7954, %v7946
    %v8723 = vpack.c.b16 %v7955, %v7947
    %v8724 = vpack.c.b16 %v7956, %v7948
    %v8725 = vpack.c.b16 %v7957, %v7949
    %v8726 = vpack.c.b16 %v7958, %v7950
    %v8727 = vpack.c.b16 %v7959, %v7951
    %v8728 = vpack.c.b16 %v7960, %v7952
    %v8729 = vpack.c.b16 %v7969, %v7961
    %v8730 = vpack.c.b16 %v7970, %v7962
    %v8731 = vpack.c.b16 %v7971, %v7963
    %v8732 = vpack.c.b16 %v7972, %v7964
    %v8733 = vpack.c.b16 %v7973, %v7965
    %v8734 = vpack.c.b16 %v7974, %v7966
    %v8735 = vpack.c.b16 %v7975, %v7967
    %v8736 = vpack.c.b16 %v7976, %v7968
    %v8737 = vpack.c.b16 %v7985, %v7977
    %v8738 = vpack.c.b16 %v7986, %v7978
    %v8739 = vpack.c.b16 %v7987, %v7979
    %v8740 = vpack.c.b16 %v7988, %v7980
    %v8741 = vpack.c.b16 %v7989, %v7981
    %v8742 = vpack.c.b16 %v7990, %v7982
    %v8743 = vpack.c.b16 %v7991, %v7983
    %v8744 = vpack.c.b16 %v7992, %v7984
    %v8745 = vpack.c.b16 %v8001, %v7993
    %v8746 = vpack.c.b16 %v8002, %v7994
    %v8747 = vpack.c.b16 %v8003, %v7995
    %v8748 = vpack.c.b16 %v8004, %v7996
    %v8749 = vpack.c.b16 %v8005, %v7997
    %v8750 = vpack.c.b16 %v8006, %v7998
    %v8751 = vpack.c.b16 %v8007, %v7999
    %v8752 = vpack.c.b16 %v8008, %v8000
    %v8753 = vpack.c.b16 %v8017, %v8009
    %v8754 = vpack.c.b16 %v8018, %v8010
    %v8755 = vpack.c.b16 %v8019, %v8011
    %v8756 = vpack.c.b16 %v8020, %v8012
    %v8757 = vpack.c.b16 %v8021, %v8013
    %v8758 = vpack.c.b16 %v8022, %v8014
    %v8759 = vpack.c.b16 %v8023, %v8015
    %v8760 = vpack.c.b16 %v8024, %v8016
    %v8761 = vpack.c.b16 %v8033, %v8025
    %v8762 = vpack.c.b16 %v8034, %v8026
    %v8763 = vpack.c.b16 %v8035, %v8027
    %v8764 = vpack.c.b16 %v8036, %v8028
    %v8765 = vpack.c.b16 %v8037, %v8029
    %v8766 = vpack.c.b16 %v8038, %v8030
    %v8767 = vpack.c.b16 %v8039, %v8031
    %v8768 = vpack.c.b16 %v8040, %v8032
    %v8769 = vpack.c.b16 %v8049, %v8041
    %v8770 = vpack.c.b16 %v8050, %v8042
    %v8771 = vpack.c.b16 %v8051, %v8043
    %v8772 = vpack.c.b16 %v8052, %v8044
    %v8773 = vpack.c.b16 %v8053, %v8045
    %v8774 = vpack.c.b16 %v8054, %v8046
    %v8775 = vpack.c.b16 %v8055, %v8047
    %v8776 = vpack.c.b16 %v8056, %v8048
    %v8777 = vpack.c.b16 %v8065, %v8057
    %v8778 = vpack.c.b16 %v8066, %v8058
    %v8779 = vpack.c.b16 %v8067, %v8059
    %v8780 = vpack.c.b16 %v8068, %v8060
    %v8781 = vpack.c.b16 %v8069, %v8061
    %v8782 = vpack.c.b16 %v8070, %v8062
    %v8783 = vpack.c.b16 %v8071, %v8063
    %v8784 = vpack.c.b16 %v8072, %v8064
    %v8785 = vpack.c.b16 %v8081, %v8073
    %v8786 = vpack.c.b16 %v8082, %v8074
    %v8787 = vpack.c.b16 %v8083, %v8075
    %v8788 = vpack.c.b16 %v8084, %v8076
    %v8789 = vpack.c.b16 %v8085, %v8077
    %v8790 = vpack.c.b16 %v8086, %v8078
    %v8791 = vpack.c.b16 %v8087, %v8079
    %v8792 = vpack.c.b16 %v8088, %v8080
    %v8793 = vpack.c.b16 %v8097, %v8089
    %v8794 = vpack.c.b16 %v8098, %v8090
    %v8795 = vpack.c.b16 %v8099, %v8091
    %v8796 = vpack.c.b16 %v8100, %v8092
    %v8797 = vpack.c.b16 %v8101, %v8093
    %v8798 = vpack.c.b16 %v8102, %v8094
    %v8799 = vpack.c.b16 %v8103, %v8095
    %v8800 = vpack.c.b16 %v8104, %v8096
    %v8801 = vpack.c.b16 %v8113, %v8105
    %v8802 = vpack.c.b16 %v8114, %v8106
    %v8803 = vpack.c.b16 %v8115, %v8107
    %v8804 = vpack.c.b16 %v8116, %v8108
    %v8805 = vpack.c.b16 %v8117, %v8109
    %v8806 = vpack.c.b16 %v8118, %v8110
    %v8807 = vpack.c.b16 %v8119, %v8111
    %v8808 = vpack.c.b16 %v8120, %v8112
    %v8809 = vpack.c.b16 %v8129, %v8121
    %v8810 = vpack.c.b16 %v8130, %v8122
    %v8811 = vpack.c.b16 %v8131, %v8123
    %v8812 = vpack.c.b16 %v8132, %v8124
    %v8813 = vpack.c.b16 %v8133, %v8125
    %v8814 = vpack.c.b16 %v8134, %v8126
    %v8815 = vpack.c.b16 %v8135, %v8127
    %v8816 = vpack.c.b16 %v8136, %v8128
    %v8817 = vpack.c.b16 %v8145, %v8137
    %v8818 = vpack.c.b16 %v8146, %v8138
    %v8819 = vpack.c.b16 %v8147, %v8139
    %v8820 = vpack.c.b16 %v8148, %v8140
    %v8821 = vpack.c.b16 %v8149, %v8141
    %v8822 = vpack.c.b16 %v8150, %v8142
    %v8823 = vpack.c.b16 %v8151, %v8143
    %v8824 = vpack.c.b16 %v8152, %v8144
    %v8825 = vpack.c.b16 %v8161, %v8153
    %v8826 = vpack.c.b16 %v8162, %v8154
    %v8827 = vpack.c.b16 %v8163, %v8155
    %v8828 = vpack.c.b16 %v8164, %v8156
    %v8829 = vpack.c.b16 %v8165, %v8157
    %v8830 = vpack.c.b16 %v8166, %v8158
    %v8831 = vpack.c.b16 %v8167, %v8159
    %v8832 = vpack.c.b16 %v8168, %v8160
    %v8833 = vpack.c.b16 %v8177, %v8169
    %v8834 = vpack.c.b16 %v8178, %v8170
    %v8835 = vpack.c.b16 %v8179, %v8171
    %v8836 = vpack.c.b16 %v8180, %v8172
    %v8837 = vpack.c.b16 %v8181, %v8173
    %v8838 = vpack.c.b16 %v8182, %v8174
    %v8839 = vpack.c.b16 %v8183, %v8175
    %v8840 = vpack.c.b16 %v8184, %v8176
    %v8841 = vpack.c.b16 %v8193, %v8185
    %v8842 = vpack.c.b16 %v8194, %v8186
    %v8843 = vpack.c.b16 %v8195, %v8187
    %v8844 = vpack.c.b16 %v8196, %v8188
    %v8845 = vpack.c.b16 %v8197, %v8189
    %v8846 = vpack.c.b16 %v8198, %v8190
    %v8847 = vpack.c.b16 %v8199, %v8191
    %v8848 = vpack.c.b16 %v8200, %v8192
    %v8849 = vpack.c.b16 %v8209, %v8201
    %v8850 = vpack.c.b16 %v8210, %v8202
    %v8851 = vpack.c.b16 %v8211, %v8203
    %v8852 = vpack.c.b16 %v8212, %v8204
    %v8853 = vpack.c.b16 %v8213, %v8205
    %v8854 = vpack.c.b16 %v8214, %v8206
    %v8855 = vpack.c.b16 %v8215, %v8207
    %v8856 = vpack.c.b16 %v8216, %v8208
    %v8857 = vpack.c.b16 %v8225, %v8217
    %v8858 = vpack.c.b16 %v8226, %v8218
    %v8859 = vpack.c.b16 %v8227, %v8219
    %v8860 = vpack.c.b16 %v8228, %v8220
    %v8861 = vpack.c.b16 %v8229, %v8221
    %v8862 = vpack.c.b16 %v8230, %v8222
    %v8863 = vpack.c.b16 %v8231, %v8223
    %v8864 = vpack.c.b16 %v8232, %v8224
    %v8865 = vpack.c.b16 %v8241, %v8233
    %v8866 = vpack.c.b16 %v8242, %v8234
    %v8867 = vpack.c.b16 %v8243, %v8235
    %v8868 = vpack.c.b16 %v8244, %v8236
    %v8869 = vpack.c.b16 %v8245, %v8237
    %v8870 = vpack.c.b16 %v8246, %v8238
    %v8871 = vpack.c.b16 %v8247, %v8239
    %v8872 = vpack.c.b16 %v8248, %v8240
    %v8873 = vpack.c.b16 %v8257, %v8249
    %v8874 = vpack.c.b16 %v8258, %v8250
    %v8875 = vpack.c.b16 %v8259, %v8251
    %v8876 = vpack.c.b16 %v8260, %v8252
    %v8877 = vpack.c.b16 %v8261, %v8253
    %v8878 = vpack.c.b16 %v8262, %v8254
    %v8879 = vpack.c.b16 %v8263, %v8255
    %v8880 = vpack.c.b16 %v8264, %v8256
    %v8881 = vpack.c.b16 %v8273, %v8265
    %v8882 = vpack.c.b16 %v8274, %v8266
    %v8883 = vpack.c.b16 %v8275, %v8267
    %v8884 = vpack.c.b16 %v8276, %v8268
    %v8885 = vpack.c.b16 %v8277, %v8269
    %v8886 = vpack.c.b16 %v8278, %v8270
    %v8887 = vpack.c.b16 %v8279, %v8271
    %v8888 = vpack.c.b16 %v8280, %v8272
    %v8889 = vpack.c.b16 %v8289, %v8281
    %v8890 = vpack.c.b16 %v8290, %v8282
    %v8891 = vpack.c.b16 %v8291, %v8283
    %v8892 = vpack.c.b16 %v8292, %v8284
    %v8893 = vpack.c.b16 %v8293, %v8285
    %v8894 = vpack.c.b16 %v8294, %v8286
    %v8895 = vpack.c.b16 %v8295, %v8287
    %v8896 = vpack.c.b16 %v8296, %v8288
    %v8897 = vpack.c.b16 %v8305, %v8297
    %v8898 = vpack.c.b16 %v8306, %v8298
    %v8899 = vpack.c.b16 %v8307, %v8299
    %v8900 = vpack.c.b16 %v8308, %v8300
    %v8901 = vpack.c.b16 %v8309, %v8301
    %v8902 = vpack.c.b16 %v8310, %v8302
    %v8903 = vpack.c.b16 %v8311, %v8303
    %v8904 = vpack.c.b16 %v8312, %v8304
    %v8905 = vpack.c.b16 %v8321, %v8313
    %v8906 = vpack.c.b16 %v8322, %v8314
    %v8907 = vpack.c.b16 %v8323, %v8315
    %v8908 = vpack.c.b16 %v8324, %v8316
    %v8909 = vpack.c.b16 %v8325, %v8317
    %v8910 = vpack.c.b16 %v8326, %v8318
    %v8911 = vpack.c.b16 %v8327, %v8319
    %v8912 = vpack.c.b16 %v8328, %v8320
    %v8913 = vpack.c.b16 %v8337, %v8329
    %v8914 = vpack.c.b16 %v8338, %v8330
    %v8915 = vpack.c.b16 %v8339, %v8331
    %v8916 = vpack.c.b16 %v8340, %v8332
    %v8917 = vpack.c.b16 %v8341, %v8333
    %v8918 = vpack.c.b16 %v8342, %v8334
    %v8919 = vpack.c.b16 %v8343, %v8335
    %v8920 = vpack.c.b16 %v8344, %v8336
    %v8921 = vpack.c.b16 %v8353, %v8345
    %v8922 = vpack.c.b16 %v8354, %v8346
    %v8923 = vpack.c.b16 %v8355, %v8347
    %v8924 = vpack.c.b16 %v8356, %v8348
    %v8925 = vpack.c.b16 %v8357, %v8349
    %v8926 = vpack.c.b16 %v8358, %v8350
    %v8927 = vpack.c.b16 %v8359, %v8351
    %v8928 = vpack.c.b16 %v8360, %v8352
    %v8929 = vpack.c.b16 %v8369, %v8361
    %v8930 = vpack.c.b16 %v8370, %v8362
    %v8931 = vpack.c.b16 %v8371, %v8363
    %v8932 = vpack.c.b16 %v8372, %v8364
    %v8933 = vpack.c.b16 %v8373, %v8365
    %v8934 = vpack.c.b16 %v8374, %v8366
    %v8935 = vpack.c.b16 %v8375, %v8367
    %v8936 = vpack.c.b16 %v8376, %v8368
    %v8937 = vpack.c.b16 %v8385, %v8377
    %v8938 = vpack.c.b16 %v8386, %v8378
    %v8939 = vpack.c.b16 %v8387, %v8379
    %v8940 = vpack.c.b16 %v8388, %v8380
    %v8941 = vpack.c.b16 %v8389, %v8381
    %v8942 = vpack.c.b16 %v8390, %v8382
    %v8943 = vpack.c.b16 %v8391, %v8383
    %v8944 = vpack.c.b16 %v8392, %v8384
    %v8945 = vpack.c.b16 %v8401, %v8393
    %v8946 = vpack.c.b16 %v8402, %v8394
    %v8947 = vpack.c.b16 %v8403, %v8395
    %v8948 = vpack.c.b16 %v8404, %v8396
    %v8949 = vpack.c.b16 %v8405, %v8397
    %v8950 = vpack.c.b16 %v8406, %v8398
    %v8951 = vpack.c.b16 %v8407, %v8399
    %v8952 = vpack.c.b16 %v8408, %v8400
    %v8953 = vpack.c.b16 %v8417, %v8409
    %v8954 = vpack.c.b16 %v8418, %v8410
    %v8955 = vpack.c.b16 %v8419, %v8411
    %v8956 = vpack.c.b16 %v8420, %v8412
    %v8957 = vpack.c.b16 %v8421, %v8413
    %v8958 = vpack.c.b16 %v8422, %v8414
    %v8959 = vpack.c.b16 %v8423, %v8415
    %v8960 = vpack.c.b16 %v8424, %v8416
    %v8961 = vpack.c.b16 %v8433, %v8425
    %v8962 = vpack.c.b16 %v8434, %v8426
    %v8963 = vpack.c.b16 %v8435, %v8427
    %v8964 = vpack.c.b16 %v8436, %v8428
    %v8965 = vpack.c.b16 %v8437, %v8429
    %v8966 = vpack.c.b16 %v8438, %v8430
    %v8967 = vpack.c.b16 %v8439, %v8431
    %v8968 = vpack.c.b16 %v8440, %v8432
    %v8969 = vpack.c.b16 %v8449, %v8441
    %v8970 = vpack.c.b16 %v8450, %v8442
    %v8971 = vpack.c.b16 %v8451, %v8443
    %v8972 = vpack.c.b16 %v8452, %v8444
    %v8973 = vpack.c.b16 %v8453, %v8445
    %v8974 = vpack.c.b16 %v8454, %v8446
    %v8975 = vpack.c.b16 %v8455, %v8447
    %v8976 = vpack.c.b16 %v8456, %v8448
    %v8977 = vpack.c.b16 %v8465, %v8457
    %v8978 = vpack.c.b16 %v8466, %v8458
    %v8979 = vpack.c.b16 %v8467, %v8459
    %v8980 = vpack.c.b16 %v8468, %v8460
    %v8981 = vpack.c.b16 %v8469, %v8461
    %v8982 = vpack.c.b16 %v8470, %v8462
    %v8983 = vpack.c.b16 %v8471, %v8463
    %v8984 = vpack.c.b16 %v8472, %v8464
    %9497 = vmatprep.subr.bf16.mxu0 %v8530
    %9498 = vmatpush1.bf16.msra.mxu0 %v8529
    %9499 = vmatprep.subr.bf16.mxu0 %v8522
    %9500 = vmatpush1.bf16.msra.mxu0 %v8521
    %9501 = vmatprep.subr.bf16.mxu0 %v8514
    %9502 = vmatpush1.bf16.msra.mxu0 %v8513
    %9503 = vmatprep.subr.bf16.mxu0 %v8506
    %9504 = vmatpush1.bf16.msra.mxu0 %v8505
    %9505 = vmatprep.subr.bf16.mxu0 %v8498
    %9506 = vmatpush1.bf16.msra.mxu0 %v8497
    %9507 = vmatprep.subr.bf16.mxu0 %v8490
    %9508 = vmatpush1.bf16.msra.mxu0 %v8489
    %9509 = vmatprep.subr.bf16.mxu0 %v8482
    %9510 = vmatpush1.bf16.msra.mxu0 %v8481
    %9511 = vmatprep.subr.bf16.mxu0 %v8474
    %9512 = vmatpush1.bf16.msra.mxu0 %v8473
    %9513 = vmatprep.subr.bf16.mxu0 %v8594
    %9514 = vmatpush2.bf16.msra.mxu0 %v8593
    %9515 = vmatprep.subr.bf16.mxu0 %v8586
    %9516 = vmatpush2.bf16.msra.mxu0 %v8585
    %9517 = vmatprep.subr.bf16.mxu0 %v8578
    %9518 = vmatpush2.bf16.msra.mxu0 %v8577
    %9519 = vmatprep.subr.bf16.mxu0 %v8570
    %9520 = vmatpush2.bf16.msra.mxu0 %v8569
    %9521 = vmatprep.subr.bf16.mxu0 %v8562
    %9522 = vmatpush2.bf16.msra.mxu0 %v8561
    %9523 = vmatprep.subr.bf16.mxu0 %v8554
    %9524 = vmatpush2.bf16.msra.mxu0 %v8553
    %9525 = vmatprep.subr.bf16.mxu0 %v8546
    %9526 = vmatpush2.bf16.msra.mxu0 %v8545
    %9527 = vmatprep.subr.bf16.mxu0 %v8538
    %9528 = vmatpush2.bf16.msra.mxu0 %v8537
    %9529 = vmatprep.mubr.bf16.mxu0 %v6376
    %9530 = vmatmul.mubr.bf16.gmra.mxu0 %v6375
    %v9531 = vpop.f32.mrf.mxu0
    %v9532 = vadd.f32 %v6900, %v9531
    %v9533 = vpop.f32.mrf.mxu0
    %v9534 = vadd.f32 %v6904, %v9533
    %v9535 = vpop.f32.mrf.mxu0
    %v9536 = vpop.f32.mrf.mxu0
    %9537 = vdwg.mxu0
    %9538 = vmatprep.subr.bf16.mxu0 %v8658
    %9539 = vmatpush1.bf16.msra.mxu0 %v8657
    %9540 = vmatprep.subr.bf16.mxu0 %v8650
    %9541 = vmatpush1.bf16.msra.mxu0 %v8649
    %9542 = vmatprep.subr.bf16.mxu0 %v8642
    %9543 = vmatpush1.bf16.msra.mxu0 %v8641
    %9544 = vmatprep.subr.bf16.mxu0 %v8634
    %9545 = vmatpush1.bf16.msra.mxu0 %v8633
    %9546 = vmatprep.subr.bf16.mxu0 %v8626
    %9547 = vmatpush1.bf16.msra.mxu0 %v8625
    %9548 = vmatprep.subr.bf16.mxu0 %v8618
    %9549 = vmatpush1.bf16.msra.mxu0 %v8617
    %9550 = vmatprep.subr.bf16.mxu0 %v8610
    %9551 = vmatpush1.bf16.msra.mxu0 %v8609
    %9552 = vmatprep.subr.bf16.mxu0 %v8602
    %9553 = vmatpush1.bf16.msra.mxu0 %v8601
    %9554 = vmatprep.subr.bf16.mxu0 %v8722
    %9555 = vmatpush2.bf16.msra.mxu0 %v8721
    %9556 = vmatprep.subr.bf16.mxu0 %v8714
    %9557 = vmatpush2.bf16.msra.mxu0 %v8713
    %9558 = vmatprep.subr.bf16.mxu0 %v8706
    %9559 = vmatpush2.bf16.msra.mxu0 %v8705
    %9560 = vmatprep.subr.bf16.mxu0 %v8698
    %9561 = vmatpush2.bf16.msra.mxu0 %v8697
    %9562 = vmatprep.subr.bf16.mxu0 %v8690
    %9563 = vmatpush2.bf16.msra.mxu0 %v8689
    %9564 = vmatprep.subr.bf16.mxu0 %v8682
    %9565 = vmatpush2.bf16.msra.mxu0 %v8681
    %9566 = vmatprep.subr.bf16.mxu0 %v8674
    %9567 = vmatpush2.bf16.msra.mxu0 %v8673
    %9568 = vmatprep.subr.bf16.mxu0 %v8666
    %9569 = vmatpush2.bf16.msra.mxu0 %v8665
    %9570 = vmatprep.mubr.bf16.mxu0 %v6378
    %9571 = vmatmul.mubr.bf16.gmra.mxu0 %v6377
    %v9572 = vpop.f32.mrf.mxu0
    %v9573 = vadd.f32 %v9532, %v9572
    %v9574 = vpop.f32.mrf.mxu0
    %v9575 = vadd.f32 %v9534, %v9574
    %v9576 = vpop.f32.mrf.mxu0
    %v9577 = vpop.f32.mrf.mxu0
    %9578 = vdwg.mxu0
    %9579 = vmatprep.subr.bf16.mxu0 %v8786
    %9580 = vmatpush1.bf16.msra.mxu0 %v8785
    %9581 = vmatprep.subr.bf16.mxu0 %v8778
    %9582 = vmatpush1.bf16.msra.mxu0 %v8777
    %9583 = vmatprep.subr.bf16.mxu0 %v8770
    %9584 = vmatpush1.bf16.msra.mxu0 %v8769
    %9585 = vmatprep.subr.bf16.mxu0 %v8762
    %9586 = vmatpush1.bf16.msra.mxu0 %v8761
    %9587 = vmatprep.subr.bf16.mxu0 %v8754
    %9588 = vmatpush1.bf16.msra.mxu0 %v8753
    %9589 = vmatprep.subr.bf16.mxu0 %v8746
    %9590 = vmatpush1.bf16.msra.mxu0 %v8745
    %9591 = vmatprep.subr.bf16.mxu0 %v8738
    %9592 = vmatpush1.bf16.msra.mxu0 %v8737
    %9593 = vmatprep.subr.bf16.mxu0 %v8730
    %9594 = vmatpush1.bf16.msra.mxu0 %v8729
    %9595 = vmatprep.subr.bf16.mxu0 %v8850
    %9596 = vmatpush2.bf16.msra.mxu0 %v8849
    %9597 = vmatprep.subr.bf16.mxu0 %v8842
    %9598 = vmatpush2.bf16.msra.mxu0 %v8841
    %9599 = vmatprep.subr.bf16.mxu0 %v8834
    %9600 = vmatpush2.bf16.msra.mxu0 %v8833
    %9601 = vmatprep.subr.bf16.mxu0 %v8826
    %9602 = vmatpush2.bf16.msra.mxu0 %v8825
    %9603 = vmatprep.subr.bf16.mxu0 %v8818
    %9604 = vmatpush2.bf16.msra.mxu0 %v8817
    %9605 = vmatprep.subr.bf16.mxu0 %v8810
    %9606 = vmatpush2.bf16.msra.mxu0 %v8809
    %9607 = vmatprep.subr.bf16.mxu0 %v8802
    %9608 = vmatpush2.bf16.msra.mxu0 %v8801
    %9609 = vmatprep.subr.bf16.mxu0 %v8794
    %9610 = vmatpush2.bf16.msra.mxu0 %v8793
    %9611 = vmatprep.mubr.bf16.mxu0 %v6380
    %9612 = vmatmul.mubr.bf16.gmra.mxu0 %v6379
    %v9613 = vpop.f32.mrf.mxu0
    %v9614 = vadd.f32 %v9573, %v9613
    %v9615 = vpop.f32.mrf.mxu0
    %v9616 = vadd.f32 %v9575, %v9615
    %v9617 = vpop.f32.mrf.mxu0
    %v9618 = vpop.f32.mrf.mxu0
    %9619 = vdwg.mxu0
    %9620 = vmatprep.subr.bf16.mxu0 %v8914
    %9621 = vmatpush1.bf16.msra.mxu0 %v8913
    %9622 = vmatprep.subr.bf16.mxu0 %v8906
    %9623 = vmatpush1.bf16.msra.mxu0 %v8905
    %9624 = vmatprep.subr.bf16.mxu0 %v8898
    %9625 = vmatpush1.bf16.msra.mxu0 %v8897
    %9626 = vmatprep.subr.bf16.mxu0 %v8890
    %9627 = vmatpush1.bf16.msra.mxu0 %v8889
    %9628 = vmatprep.subr.bf16.mxu0 %v8882
    %9629 = vmatpush1.bf16.msra.mxu0 %v8881
    %9630 = vmatprep.subr.bf16.mxu0 %v8874
    %9631 = vmatpush1.bf16.msra.mxu0 %v8873
    %9632 = vmatprep.subr.bf16.mxu0 %v8866
    %9633 = vmatpush1.bf16.msra.mxu0 %v8865
    %9634 = vmatprep.subr.bf16.mxu0 %v8858
    %9635 = vmatpush1.bf16.msra.mxu0 %v8857
    %9636 = vmatprep.subr.bf16.mxu0 %v8978
    %9637 = vmatpush2.bf16.msra.mxu0 %v8977
    %9638 = vmatprep.subr.bf16.mxu0 %v8970
    %9639 = vmatpush2.bf16.msra.mxu0 %v8969
    %9640 = vmatprep.subr.bf16.mxu0 %v8962
    %9641 = vmatpush2.bf16.msra.mxu0 %v8961
    %9642 = vmatprep.subr.bf16.mxu0 %v8954
    %9643 = vmatpush2.bf16.msra.mxu0 %v8953
    %9644 = vmatprep.subr.bf16.mxu0 %v8946
    %9645 = vmatpush2.bf16.msra.mxu0 %v8945
    %9646 = vmatprep.subr.bf16.mxu0 %v8938
    %9647 = vmatpush2.bf16.msra.mxu0 %v8937
    %9648 = vmatprep.subr.bf16.mxu0 %v8930
    %9649 = vmatpush2.bf16.msra.mxu0 %v8929
    %9650 = vmatprep.subr.bf16.mxu0 %v8922
    %9651 = vmatpush2.bf16.msra.mxu0 %v8921
    %9652 = vmatprep.mubr.bf16.mxu0 %v6382
    %9653 = vmatmul.mubr.bf16.gmra.mxu0 %v6381
    %v9654 = vpop.f32.mrf.mxu0
    %v9655 = vadd.f32 %v9614, %v9654
    %v9656 = vpop.f32.mrf.mxu0
    %v9657 = vadd.f32 %v9616, %v9656
    %v9658 = vpop.f32.mrf.mxu0
    %v9659 = vpop.f32.mrf.mxu0
    %9660 = vdwg.mxu0
    %9661 = vmatprep.subr.bf16.mxu0 %v8532
    %9662 = vmatpush1.bf16.msra.mxu0 %v8531
    %9663 = vmatprep.subr.bf16.mxu0 %v8524
    %9664 = vmatpush1.bf16.msra.mxu0 %v8523
    %9665 = vmatprep.subr.bf16.mxu0 %v8516
    %9666 = vmatpush1.bf16.msra.mxu0 %v8515
    %9667 = vmatprep.subr.bf16.mxu0 %v8508
    %9668 = vmatpush1.bf16.msra.mxu0 %v8507
    %9669 = vmatprep.subr.bf16.mxu0 %v8500
    %9670 = vmatpush1.bf16.msra.mxu0 %v8499
    %9671 = vmatprep.subr.bf16.mxu0 %v8492
    %9672 = vmatpush1.bf16.msra.mxu0 %v8491
    %9673 = vmatprep.subr.bf16.mxu0 %v8484
    %9674 = vmatpush1.bf16.msra.mxu0 %v8483
    %9675 = vmatprep.subr.bf16.mxu0 %v8476
    %9676 = vmatpush1.bf16.msra.mxu0 %v8475
    %9677 = vmatprep.subr.bf16.mxu0 %v8596
    %9678 = vmatpush2.bf16.msra.mxu0 %v8595
    %9679 = vmatprep.subr.bf16.mxu0 %v8588
    %9680 = vmatpush2.bf16.msra.mxu0 %v8587
    %9681 = vmatprep.subr.bf16.mxu0 %v8580
    %9682 = vmatpush2.bf16.msra.mxu0 %v8579
    %9683 = vmatprep.subr.bf16.mxu0 %v8572
    %9684 = vmatpush2.bf16.msra.mxu0 %v8571
    %9685 = vmatprep.subr.bf16.mxu0 %v8564
    %9686 = vmatpush2.bf16.msra.mxu0 %v8563
    %9687 = vmatprep.subr.bf16.mxu0 %v8556
    %9688 = vmatpush2.bf16.msra.mxu0 %v8555
    %9689 = vmatprep.subr.bf16.mxu0 %v8548
    %9690 = vmatpush2.bf16.msra.mxu0 %v8547
    %9691 = vmatprep.subr.bf16.mxu0 %v8540
    %9692 = vmatpush2.bf16.msra.mxu0 %v8539
    %9693 = vmatprep.mubr.bf16.mxu0 %v6376
    %9694 = vmatmul.mubr.bf16.gmra.mxu0 %v6375
    %v9695 = vpop.f32.mrf.mxu0
    %v9696 = vadd.f32 %v6908, %v9695
    %v9697 = vpop.f32.mrf.mxu0
    %v9698 = vadd.f32 %v6912, %v9697
    %v9699 = vpop.f32.mrf.mxu0
    %v9700 = vpop.f32.mrf.mxu0
    %9701 = vdwg.mxu0
    %9702 = vmatprep.subr.bf16.mxu0 %v8660
    %9703 = vmatpush1.bf16.msra.mxu0 %v8659
    %9704 = vmatprep.subr.bf16.mxu0 %v8652
    %9705 = vmatpush1.bf16.msra.mxu0 %v8651
    %9706 = vmatprep.subr.bf16.mxu0 %v8644
    %9707 = vmatpush1.bf16.msra.mxu0 %v8643
    %9708 = vmatprep.subr.bf16.mxu0 %v8636
    %9709 = vmatpush1.bf16.msra.mxu0 %v8635
    %9710 = vmatprep.subr.bf16.mxu0 %v8628
    %9711 = vmatpush1.bf16.msra.mxu0 %v8627
    %9712 = vmatprep.subr.bf16.mxu0 %v8620
    %9713 = vmatpush1.bf16.msra.mxu0 %v8619
    %9714 = vmatprep.subr.bf16.mxu0 %v8612
    %9715 = vmatpush1.bf16.msra.mxu0 %v8611
    %9716 = vmatprep.subr.bf16.mxu0 %v8604
    %9717 = vmatpush1.bf16.msra.mxu0 %v8603
    %9718 = vmatprep.subr.bf16.mxu0 %v8724
    %9719 = vmatpush2.bf16.msra.mxu0 %v8723
    %9720 = vmatprep.subr.bf16.mxu0 %v8716
    %9721 = vmatpush2.bf16.msra.mxu0 %v8715
    %9722 = vmatprep.subr.bf16.mxu0 %v8708
    %9723 = vmatpush2.bf16.msra.mxu0 %v8707
    %9724 = vmatprep.subr.bf16.mxu0 %v8700
    %9725 = vmatpush2.bf16.msra.mxu0 %v8699
    %9726 = vmatprep.subr.bf16.mxu0 %v8692
    %9727 = vmatpush2.bf16.msra.mxu0 %v8691
    %9728 = vmatprep.subr.bf16.mxu0 %v8684
    %9729 = vmatpush2.bf16.msra.mxu0 %v8683
    %9730 = vmatprep.subr.bf16.mxu0 %v8676
    %9731 = vmatpush2.bf16.msra.mxu0 %v8675
    %9732 = vmatprep.subr.bf16.mxu0 %v8668
    %9733 = vmatpush2.bf16.msra.mxu0 %v8667
    %9734 = vmatprep.mubr.bf16.mxu0 %v6378
    %9735 = vmatmul.mubr.bf16.gmra.mxu0 %v6377
    %v9736 = vpop.f32.mrf.mxu0
    %v9737 = vadd.f32 %v9696, %v9736
    %v9738 = vpop.f32.mrf.mxu0
    %v9739 = vadd.f32 %v9698, %v9738
    %v9740 = vpop.f32.mrf.mxu0
    %v9741 = vpop.f32.mrf.mxu0
    %9742 = vdwg.mxu0
    %9743 = vmatprep.subr.bf16.mxu0 %v8788
    %9744 = vmatpush1.bf16.msra.mxu0 %v8787
    %9745 = vmatprep.subr.bf16.mxu0 %v8780
    %9746 = vmatpush1.bf16.msra.mxu0 %v8779
    %9747 = vmatprep.subr.bf16.mxu0 %v8772
    %9748 = vmatpush1.bf16.msra.mxu0 %v8771
    %9749 = vmatprep.subr.bf16.mxu0 %v8764
    %9750 = vmatpush1.bf16.msra.mxu0 %v8763
    %9751 = vmatprep.subr.bf16.mxu0 %v8756
    %9752 = vmatpush1.bf16.msra.mxu0 %v8755
    %9753 = vmatprep.subr.bf16.mxu0 %v8748
    %9754 = vmatpush1.bf16.msra.mxu0 %v8747
    %9755 = vmatprep.subr.bf16.mxu0 %v8740
    %9756 = vmatpush1.bf16.msra.mxu0 %v8739
    %9757 = vmatprep.subr.bf16.mxu0 %v8732
    %9758 = vmatpush1.bf16.msra.mxu0 %v8731
    %9759 = vmatprep.subr.bf16.mxu0 %v8852
    %9760 = vmatpush2.bf16.msra.mxu0 %v8851
    %9761 = vmatprep.subr.bf16.mxu0 %v8844
    %9762 = vmatpush2.bf16.msra.mxu0 %v8843
    %9763 = vmatprep.subr.bf16.mxu0 %v8836
    %9764 = vmatpush2.bf16.msra.mxu0 %v8835
    %9765 = vmatprep.subr.bf16.mxu0 %v8828
    %9766 = vmatpush2.bf16.msra.mxu0 %v8827
    %9767 = vmatprep.subr.bf16.mxu0 %v8820
    %9768 = vmatpush2.bf16.msra.mxu0 %v8819
    %9769 = vmatprep.subr.bf16.mxu0 %v8812
    %9770 = vmatpush2.bf16.msra.mxu0 %v8811
    %9771 = vmatprep.subr.bf16.mxu0 %v8804
    %9772 = vmatpush2.bf16.msra.mxu0 %v8803
    %9773 = vmatprep.subr.bf16.mxu0 %v8796
    %9774 = vmatpush2.bf16.msra.mxu0 %v8795
    %9775 = vmatprep.mubr.bf16.mxu0 %v6380
    %9776 = vmatmul.mubr.bf16.gmra.mxu0 %v6379
    %v9777 = vpop.f32.mrf.mxu0
    %v9778 = vadd.f32 %v9737, %v9777
    %v9779 = vpop.f32.mrf.mxu0
    %v9780 = vadd.f32 %v9739, %v9779
    %v9781 = vpop.f32.mrf.mxu0
    %v9782 = vpop.f32.mrf.mxu0
    %9783 = vdwg.mxu0
    %9784 = vmatprep.subr.bf16.mxu0 %v8916
    %9785 = vmatpush1.bf16.msra.mxu0 %v8915
    %9786 = vmatprep.subr.bf16.mxu0 %v8908
    %9787 = vmatpush1.bf16.msra.mxu0 %v8907
    %9788 = vmatprep.subr.bf16.mxu0 %v8900
    %9789 = vmatpush1.bf16.msra.mxu0 %v8899
    %9790 = vmatprep.subr.bf16.mxu0 %v8892
    %9791 = vmatpush1.bf16.msra.mxu0 %v8891
    %9792 = vmatprep.subr.bf16.mxu0 %v8884
    %9793 = vmatpush1.bf16.msra.mxu0 %v8883
    %9794 = vmatprep.subr.bf16.mxu0 %v8876
    %9795 = vmatpush1.bf16.msra.mxu0 %v8875
    %9796 = vmatprep.subr.bf16.mxu0 %v8868
    %9797 = vmatpush1.bf16.msra.mxu0 %v8867
    %9798 = vmatprep.subr.bf16.mxu0 %v8860
    %9799 = vmatpush1.bf16.msra.mxu0 %v8859
    %9800 = vmatprep.subr.bf16.mxu0 %v8980
    %9801 = vmatpush2.bf16.msra.mxu0 %v8979
    %9802 = vmatprep.subr.bf16.mxu0 %v8972
    %9803 = vmatpush2.bf16.msra.mxu0 %v8971
    %9804 = vmatprep.subr.bf16.mxu0 %v8964
    %9805 = vmatpush2.bf16.msra.mxu0 %v8963
    %9806 = vmatprep.subr.bf16.mxu0 %v8956
    %9807 = vmatpush2.bf16.msra.mxu0 %v8955
    %9808 = vmatprep.subr.bf16.mxu0 %v8948
    %9809 = vmatpush2.bf16.msra.mxu0 %v8947
    %9810 = vmatprep.subr.bf16.mxu0 %v8940
    %9811 = vmatpush2.bf16.msra.mxu0 %v8939
    %9812 = vmatprep.subr.bf16.mxu0 %v8932
    %9813 = vmatpush2.bf16.msra.mxu0 %v8931
    %9814 = vmatprep.subr.bf16.mxu0 %v8924
    %9815 = vmatpush2.bf16.msra.mxu0 %v8923
    %9816 = vmatprep.mubr.bf16.mxu0 %v6382
    %9817 = vmatmul.mubr.bf16.gmra.mxu0 %v6381
    %v9818 = vpop.f32.mrf.mxu0
    %v9819 = vadd.f32 %v9778, %v9818
    %v9820 = vpop.f32.mrf.mxu0
    %v9821 = vadd.f32 %v9780, %v9820
    %v9822 = vpop.f32.mrf.mxu0
    %v9823 = vpop.f32.mrf.mxu0
    %9824 = vdwg.mxu0
    %9825 = vmatprep.subr.bf16.mxu0 %v8534
    %9826 = vmatpush1.bf16.msra.mxu0 %v8533
    %9827 = vmatprep.subr.bf16.mxu0 %v8526
    %9828 = vmatpush1.bf16.msra.mxu0 %v8525
    %9829 = vmatprep.subr.bf16.mxu0 %v8518
    %9830 = vmatpush1.bf16.msra.mxu0 %v8517
    %9831 = vmatprep.subr.bf16.mxu0 %v8510
    %9832 = vmatpush1.bf16.msra.mxu0 %v8509
    %9833 = vmatprep.subr.bf16.mxu0 %v8502
    %9834 = vmatpush1.bf16.msra.mxu0 %v8501
    %9835 = vmatprep.subr.bf16.mxu0 %v8494
    %9836 = vmatpush1.bf16.msra.mxu0 %v8493
    %9837 = vmatprep.subr.bf16.mxu0 %v8486
    %9838 = vmatpush1.bf16.msra.mxu0 %v8485
    %9839 = vmatprep.subr.bf16.mxu0 %v8478
    %9840 = vmatpush1.bf16.msra.mxu0 %v8477
    %9841 = vmatprep.subr.bf16.mxu0 %v8598
    %9842 = vmatpush2.bf16.msra.mxu0 %v8597
    %9843 = vmatprep.subr.bf16.mxu0 %v8590
    %9844 = vmatpush2.bf16.msra.mxu0 %v8589
    %9845 = vmatprep.subr.bf16.mxu0 %v8582
    %9846 = vmatpush2.bf16.msra.mxu0 %v8581
    %9847 = vmatprep.subr.bf16.mxu0 %v8574
    %9848 = vmatpush2.bf16.msra.mxu0 %v8573
    %9849 = vmatprep.subr.bf16.mxu0 %v8566
    %9850 = vmatpush2.bf16.msra.mxu0 %v8565
    %9851 = vmatprep.subr.bf16.mxu0 %v8558
    %9852 = vmatpush2.bf16.msra.mxu0 %v8557
    %9853 = vmatprep.subr.bf16.mxu0 %v8550
    %9854 = vmatpush2.bf16.msra.mxu0 %v8549
    %9855 = vmatprep.subr.bf16.mxu0 %v8542
    %9856 = vmatpush2.bf16.msra.mxu0 %v8541
    %9857 = vmatprep.mubr.bf16.mxu0 %v6376
    %9858 = vmatmul.mubr.bf16.gmra.mxu0 %v6375
    %v9859 = vpop.f32.mrf.mxu0
    %v9860 = vadd.f32 %v6916, %v9859
    %v9861 = vpop.f32.mrf.mxu0
    %v9862 = vadd.f32 %v6920, %v9861
    %v9863 = vpop.f32.mrf.mxu0
    %v9864 = vpop.f32.mrf.mxu0
    %9865 = vdwg.mxu0
    %9866 = vmatprep.subr.bf16.mxu0 %v8662
    %9867 = vmatpush1.bf16.msra.mxu0 %v8661
    %9868 = vmatprep.subr.bf16.mxu0 %v8654
    %9869 = vmatpush1.bf16.msra.mxu0 %v8653
    %9870 = vmatprep.subr.bf16.mxu0 %v8646
    %9871 = vmatpush1.bf16.msra.mxu0 %v8645
    %9872 = vmatprep.subr.bf16.mxu0 %v8638
    %9873 = vmatpush1.bf16.msra.mxu0 %v8637
    %9874 = vmatprep.subr.bf16.mxu0 %v8630
    %9875 = vmatpush1.bf16.msra.mxu0 %v8629
    %9876 = vmatprep.subr.bf16.mxu0 %v8622
    %9877 = vmatpush1.bf16.msra.mxu0 %v8621
    %9878 = vmatprep.subr.bf16.mxu0 %v8614
    %9879 = vmatpush1.bf16.msra.mxu0 %v8613
    %9880 = vmatprep.subr.bf16.mxu0 %v8606
    %9881 = vmatpush1.bf16.msra.mxu0 %v8605
    %9882 = vmatprep.subr.bf16.mxu0 %v8726
    %9883 = vmatpush2.bf16.msra.mxu0 %v8725
    %9884 = vmatprep.subr.bf16.mxu0 %v8718
    %9885 = vmatpush2.bf16.msra.mxu0 %v8717
    %9886 = vmatprep.subr.bf16.mxu0 %v8710
    %9887 = vmatpush2.bf16.msra.mxu0 %v8709
    %9888 = vmatprep.subr.bf16.mxu0 %v8702
    %9889 = vmatpush2.bf16.msra.mxu0 %v8701
    %9890 = vmatprep.subr.bf16.mxu0 %v8694
    %9891 = vmatpush2.bf16.msra.mxu0 %v8693
    %9892 = vmatprep.subr.bf16.mxu0 %v8686
    %9893 = vmatpush2.bf16.msra.mxu0 %v8685
    %9894 = vmatprep.subr.bf16.mxu0 %v8678
    %9895 = vmatpush2.bf16.msra.mxu0 %v8677
    %9896 = vmatprep.subr.bf16.mxu0 %v8670
    %9897 = vmatpush2.bf16.msra.mxu0 %v8669
    %9898 = vmatprep.mubr.bf16.mxu0 %v6378
    %9899 = vmatmul.mubr.bf16.gmra.mxu0 %v6377
    %v9900 = vpop.f32.mrf.mxu0
    %v9901 = vadd.f32 %v9860, %v9900
    %v9902 = vpop.f32.mrf.mxu0
    %v9903 = vadd.f32 %v9862, %v9902
    %v9904 = vpop.f32.mrf.mxu0
    %v9905 = vpop.f32.mrf.mxu0
    %9906 = vdwg.mxu0
    %9907 = vmatprep.subr.bf16.mxu0 %v8790
    %9908 = vmatpush1.bf16.msra.mxu0 %v8789
    %9909 = vmatprep.subr.bf16.mxu0 %v8782
    %9910 = vmatpush1.bf16.msra.mxu0 %v8781
    %9911 = vmatprep.subr.bf16.mxu0 %v8774
    %9912 = vmatpush1.bf16.msra.mxu0 %v8773
    %9913 = vmatprep.subr.bf16.mxu0 %v8766
    %9914 = vmatpush1.bf16.msra.mxu0 %v8765
    %9915 = vmatprep.subr.bf16.mxu0 %v8758
    %9916 = vmatpush1.bf16.msra.mxu0 %v8757
    %9917 = vmatprep.subr.bf16.mxu0 %v8750
    %9918 = vmatpush1.bf16.msra.mxu0 %v8749
    %9919 = vmatprep.subr.bf16.mxu0 %v8742
    %9920 = vmatpush1.bf16.msra.mxu0 %v8741
    %9921 = vmatprep.subr.bf16.mxu0 %v8734
    %9922 = vmatpush1.bf16.msra.mxu0 %v8733
    %9923 = vmatprep.subr.bf16.mxu0 %v8854
    %9924 = vmatpush2.bf16.msra.mxu0 %v8853
    %9925 = vmatprep.subr.bf16.mxu0 %v8846
    %9926 = vmatpush2.bf16.msra.mxu0 %v8845
    %9927 = vmatprep.subr.bf16.mxu0 %v8838
    %9928 = vmatpush2.bf16.msra.mxu0 %v8837
    %9929 = vmatprep.subr.bf16.mxu0 %v8830
    %9930 = vmatpush2.bf16.msra.mxu0 %v8829
    %9931 = vmatprep.subr.bf16.mxu0 %v8822
    %9932 = vmatpush2.bf16.msra.mxu0 %v8821
    %9933 = vmatprep.subr.bf16.mxu0 %v8814
    %9934 = vmatpush2.bf16.msra.mxu0 %v8813
    %9935 = vmatprep.subr.bf16.mxu0 %v8806
    %9936 = vmatpush2.bf16.msra.mxu0 %v8805
    %9937 = vmatprep.subr.bf16.mxu0 %v8798
    %9938 = vmatpush2.bf16.msra.mxu0 %v8797
    %9939 = vmatprep.mubr.bf16.mxu0 %v6380
    %9940 = vmatmul.mubr.bf16.gmra.mxu0 %v6379
    %v9941 = vpop.f32.mrf.mxu0
    %v9942 = vadd.f32 %v9901, %v9941
    %v9943 = vpop.f32.mrf.mxu0
    %v9944 = vadd.f32 %v9903, %v9943
    %v9945 = vpop.f32.mrf.mxu0
    %v9946 = vpop.f32.mrf.mxu0
    %9947 = vdwg.mxu0
    %9948 = vmatprep.subr.bf16.mxu0 %v8918
    %9949 = vmatpush1.bf16.msra.mxu0 %v8917
    %9950 = vmatprep.subr.bf16.mxu0 %v8910
    %9951 = vmatpush1.bf16.msra.mxu0 %v8909
    %9952 = vmatprep.subr.bf16.mxu0 %v8902
    %9953 = vmatpush1.bf16.msra.mxu0 %v8901
    %9954 = vmatprep.subr.bf16.mxu0 %v8894
    %9955 = vmatpush1.bf16.msra.mxu0 %v8893
    %9956 = vmatprep.subr.bf16.mxu0 %v8886
    %9957 = vmatpush1.bf16.msra.mxu0 %v8885
    %9958 = vmatprep.subr.bf16.mxu0 %v8878
    %9959 = vmatpush1.bf16.msra.mxu0 %v8877
    %9960 = vmatprep.subr.bf16.mxu0 %v8870
    %9961 = vmatpush1.bf16.msra.mxu0 %v8869
    %9962 = vmatprep.subr.bf16.mxu0 %v8862
    %9963 = vmatpush1.bf16.msra.mxu0 %v8861
    %9964 = vmatprep.subr.bf16.mxu0 %v8982
    %9965 = vmatpush2.bf16.msra.mxu0 %v8981
    %9966 = vmatprep.subr.bf16.mxu0 %v8974
    %9967 = vmatpush2.bf16.msra.mxu0 %v8973
    %9968 = vmatprep.subr.bf16.mxu0 %v8966
    %9969 = vmatpush2.bf16.msra.mxu0 %v8965
    %9970 = vmatprep.subr.bf16.mxu0 %v8958
    %9971 = vmatpush2.bf16.msra.mxu0 %v8957
    %9972 = vmatprep.subr.bf16.mxu0 %v8950
    %9973 = vmatpush2.bf16.msra.mxu0 %v8949
    %9974 = vmatprep.subr.bf16.mxu0 %v8942
    %9975 = vmatpush2.bf16.msra.mxu0 %v8941
    %9976 = vmatprep.subr.bf16.mxu0 %v8934
    %9977 = vmatpush2.bf16.msra.mxu0 %v8933
    %9978 = vmatprep.subr.bf16.mxu0 %v8926
    %9979 = vmatpush2.bf16.msra.mxu0 %v8925
    %9980 = vmatprep.mubr.bf16.mxu0 %v6382
    %9981 = vmatmul.mubr.bf16.gmra.mxu0 %v6381
    %v9982 = vpop.f32.mrf.mxu0
    %v9983 = vadd.f32 %v9942, %v9982
    %v9984 = vpop.f32.mrf.mxu0
    %v9985 = vadd.f32 %v9944, %v9984
    %v9986 = vpop.f32.mrf.mxu0
    %v9987 = vpop.f32.mrf.mxu0
    %9988 = vdwg.mxu0
    %9989 = vmatprep.subr.bf16.mxu0 %v8536
    %9990 = vmatpush1.bf16.msra.mxu0 %v8535
    %9991 = vmatprep.subr.bf16.mxu0 %v8528
    %9992 = vmatpush1.bf16.msra.mxu0 %v8527
    %9993 = vmatprep.subr.bf16.mxu0 %v8520
    %9994 = vmatpush1.bf16.msra.mxu0 %v8519
    %9995 = vmatprep.subr.bf16.mxu0 %v8512
    %9996 = vmatpush1.bf16.msra.mxu0 %v8511
    %9997 = vmatprep.subr.bf16.mxu0 %v8504
    %9998 = vmatpush1.bf16.msra.mxu0 %v8503
    %9999 = vmatprep.subr.bf16.mxu0 %v8496
    %10000 = vmatpush1.bf16.msra.mxu0 %v8495
    %10001 = vmatprep.subr.bf16.mxu0 %v8488
    %10002 = vmatpush1.bf16.msra.mxu0 %v8487
    %10003 = vmatprep.subr.bf16.mxu0 %v8480
    %10004 = vmatpush1.bf16.msra.mxu0 %v8479
    %10005 = vmatprep.subr.bf16.mxu0 %v8600
    %10006 = vmatpush2.bf16.msra.mxu0 %v8599
    %10007 = vmatprep.subr.bf16.mxu0 %v8592
    %10008 = vmatpush2.bf16.msra.mxu0 %v8591
    %10009 = vmatprep.subr.bf16.mxu0 %v8584
    %10010 = vmatpush2.bf16.msra.mxu0 %v8583
    %10011 = vmatprep.subr.bf16.mxu0 %v8576
    %10012 = vmatpush2.bf16.msra.mxu0 %v8575
    %10013 = vmatprep.subr.bf16.mxu0 %v8568
    %10014 = vmatpush2.bf16.msra.mxu0 %v8567
    %10015 = vmatprep.subr.bf16.mxu0 %v8560
    %10016 = vmatpush2.bf16.msra.mxu0 %v8559
    %10017 = vmatprep.subr.bf16.mxu0 %v8552
    %10018 = vmatpush2.bf16.msra.mxu0 %v8551
    %10019 = vmatprep.subr.bf16.mxu0 %v8544
    %10020 = vmatpush2.bf16.msra.mxu0 %v8543
    %10021 = vmatprep.mubr.bf16.mxu0 %v6376
    %10022 = vmatmul.mubr.bf16.gmra.mxu0 %v6375
    %v10023 = vpop.f32.mrf.mxu0
    %v10024 = vadd.f32 %v6924, %v10023
    %v10025 = vpop.f32.mrf.mxu0
    %v10026 = vadd.f32 %v6928, %v10025
    %v10027 = vpop.f32.mrf.mxu0
    %v10028 = vpop.f32.mrf.mxu0
    %10029 = vdwg.mxu0
    %10030 = vmatprep.subr.bf16.mxu0 %v8664
    %10031 = vmatpush1.bf16.msra.mxu0 %v8663
    %10032 = vmatprep.subr.bf16.mxu0 %v8656
    %10033 = vmatpush1.bf16.msra.mxu0 %v8655
    %10034 = vmatprep.subr.bf16.mxu0 %v8648
    %10035 = vmatpush1.bf16.msra.mxu0 %v8647
    %10036 = vmatprep.subr.bf16.mxu0 %v8640
    %10037 = vmatpush1.bf16.msra.mxu0 %v8639
    %10038 = vmatprep.subr.bf16.mxu0 %v8632
    %10039 = vmatpush1.bf16.msra.mxu0 %v8631
    %10040 = vmatprep.subr.bf16.mxu0 %v8624
    %10041 = vmatpush1.bf16.msra.mxu0 %v8623
    %10042 = vmatprep.subr.bf16.mxu0 %v8616
    %10043 = vmatpush1.bf16.msra.mxu0 %v8615
    %10044 = vmatprep.subr.bf16.mxu0 %v8608
    %10045 = vmatpush1.bf16.msra.mxu0 %v8607
    %10046 = vmatprep.subr.bf16.mxu0 %v8728
    %10047 = vmatpush2.bf16.msra.mxu0 %v8727
    %10048 = vmatprep.subr.bf16.mxu0 %v8720
    %10049 = vmatpush2.bf16.msra.mxu0 %v8719
    %10050 = vmatprep.subr.bf16.mxu0 %v8712
    %10051 = vmatpush2.bf16.msra.mxu0 %v8711
    %10052 = vmatprep.subr.bf16.mxu0 %v8704
    %10053 = vmatpush2.bf16.msra.mxu0 %v8703
    %10054 = vmatprep.subr.bf16.mxu0 %v8696
    %10055 = vmatpush2.bf16.msra.mxu0 %v8695
    %10056 = vmatprep.subr.bf16.mxu0 %v8688
    %10057 = vmatpush2.bf16.msra.mxu0 %v8687
    %10058 = vmatprep.subr.bf16.mxu0 %v8680
    %10059 = vmatpush2.bf16.msra.mxu0 %v8679
    %10060 = vmatprep.subr.bf16.mxu0 %v8672
    %10061 = vmatpush2.bf16.msra.mxu0 %v8671
    %10062 = vmatprep.mubr.bf16.mxu0 %v6378
    %10063 = vmatmul.mubr.bf16.gmra.mxu0 %v6377
    %v10064 = vpop.f32.mrf.mxu0
    %v10065 = vadd.f32 %v10024, %v10064
    %v10066 = vpop.f32.mrf.mxu0
    %v10067 = vadd.f32 %v10026, %v10066
    %v10068 = vpop.f32.mrf.mxu0
    %v10069 = vpop.f32.mrf.mxu0
    %10070 = vdwg.mxu0
    %10071 = vmatprep.subr.bf16.mxu0 %v8792
    %10072 = vmatpush1.bf16.msra.mxu0 %v8791
    %10073 = vmatprep.subr.bf16.mxu0 %v8784
    %10074 = vmatpush1.bf16.msra.mxu0 %v8783
    %10075 = vmatprep.subr.bf16.mxu0 %v8776
    %10076 = vmatpush1.bf16.msra.mxu0 %v8775
    %10077 = vmatprep.subr.bf16.mxu0 %v8768
    %10078 = vmatpush1.bf16.msra.mxu0 %v8767
    %10079 = vmatprep.subr.bf16.mxu0 %v8760
    %10080 = vmatpush1.bf16.msra.mxu0 %v8759
    %10081 = vmatprep.subr.bf16.mxu0 %v8752
    %10082 = vmatpush1.bf16.msra.mxu0 %v8751
    %10083 = vmatprep.subr.bf16.mxu0 %v8744
    %10084 = vmatpush1.bf16.msra.mxu0 %v8743
    %10085 = vmatprep.subr.bf16.mxu0 %v8736
    %10086 = vmatpush1.bf16.msra.mxu0 %v8735
    %10087 = vmatprep.subr.bf16.mxu0 %v8856
    %10088 = vmatpush2.bf16.msra.mxu0 %v8855
    %10089 = vmatprep.subr.bf16.mxu0 %v8848
    %10090 = vmatpush2.bf16.msra.mxu0 %v8847
    %10091 = vmatprep.subr.bf16.mxu0 %v8840
    %10092 = vmatpush2.bf16.msra.mxu0 %v8839
    %10093 = vmatprep.subr.bf16.mxu0 %v8832
    %10094 = vmatpush2.bf16.msra.mxu0 %v8831
    %10095 = vmatprep.subr.bf16.mxu0 %v8824
    %10096 = vmatpush2.bf16.msra.mxu0 %v8823
    %10097 = vmatprep.subr.bf16.mxu0 %v8816
    %10098 = vmatpush2.bf16.msra.mxu0 %v8815
    %10099 = vmatprep.subr.bf16.mxu0 %v8808
    %10100 = vmatpush2.bf16.msra.mxu0 %v8807
    %10101 = vmatprep.subr.bf16.mxu0 %v8800
    %10102 = vmatpush2.bf16.msra.mxu0 %v8799
    %10103 = vmatprep.mubr.bf16.mxu0 %v6380
    %10104 = vmatmul.mubr.bf16.gmra.mxu0 %v6379
    %v10105 = vpop.f32.mrf.mxu0
    %v10106 = vadd.f32 %v10065, %v10105
    %v10107 = vpop.f32.mrf.mxu0
    %v10108 = vadd.f32 %v10067, %v10107
    %v10109 = vpop.f32.mrf.mxu0
    %v10110 = vpop.f32.mrf.mxu0
    %10111 = vdwg.mxu0
    %10112 = vmatprep.subr.bf16.mxu0 %v8920
    %10113 = vmatpush1.bf16.msra.mxu0 %v8919
    %10114 = vmatprep.subr.bf16.mxu0 %v8912
    %10115 = vmatpush1.bf16.msra.mxu0 %v8911
    %10116 = vmatprep.subr.bf16.mxu0 %v8904
    %10117 = vmatpush1.bf16.msra.mxu0 %v8903
    %10118 = vmatprep.subr.bf16.mxu0 %v8896
    %10119 = vmatpush1.bf16.msra.mxu0 %v8895
    %10120 = vmatprep.subr.bf16.mxu0 %v8888
    %10121 = vmatpush1.bf16.msra.mxu0 %v8887
    %10122 = vmatprep.subr.bf16.mxu0 %v8880
    %10123 = vmatpush1.bf16.msra.mxu0 %v8879
    %10124 = vmatprep.subr.bf16.mxu0 %v8872
    %10125 = vmatpush1.bf16.msra.mxu0 %v8871
    %10126 = vmatprep.subr.bf16.mxu0 %v8864
    %10127 = vmatpush1.bf16.msra.mxu0 %v8863
    %10128 = vmatprep.subr.bf16.mxu0 %v8984
    %10129 = vmatpush2.bf16.msra.mxu0 %v8983
    %10130 = vmatprep.subr.bf16.mxu0 %v8976
    %10131 = vmatpush2.bf16.msra.mxu0 %v8975
    %10132 = vmatprep.subr.bf16.mxu0 %v8968
    %10133 = vmatpush2.bf16.msra.mxu0 %v8967
    %10134 = vmatprep.subr.bf16.mxu0 %v8960
    %10135 = vmatpush2.bf16.msra.mxu0 %v8959
    %10136 = vmatprep.subr.bf16.mxu0 %v8952
    %10137 = vmatpush2.bf16.msra.mxu0 %v8951
    %10138 = vmatprep.subr.bf16.mxu0 %v8944
    %10139 = vmatpush2.bf16.msra.mxu0 %v8943
    %10140 = vmatprep.subr.bf16.mxu0 %v8936
    %10141 = vmatpush2.bf16.msra.mxu0 %v8935
    %10142 = vmatprep.subr.bf16.mxu0 %v8928
    %10143 = vmatpush2.bf16.msra.mxu0 %v8927
    %10144 = vmatprep.mubr.bf16.mxu0 %v6382
    %10145 = vmatmul.mubr.bf16.gmra.mxu0 %v6381
    %v10146 = vpop.f32.mrf.mxu0
    %v10147 = vadd.f32 %v10106, %v10146
    %v10148 = vpop.f32.mrf.mxu0
    %v10149 = vadd.f32 %v10108, %v10148
    %v10150 = vpop.f32.mrf.mxu0
    %v10151 = vpop.f32.mrf.mxu0
    %10152 = vdwg.mxu0
    %v10153 = vmax.f32 %v9655, 0.0
    %v10154 = vmax.f32 %v9657, 0.0
    %v10155 = vmax.f32 %v9819, 0.0
    %v10156 = vmax.f32 %v9821, 0.0
    %v10157 = vmax.f32 %v9983, 0.0
    %v10158 = vmax.f32 %v9985, 0.0
    %v10159 = vmax.f32 %v10147, 0.0
    %v10160 = vmax.f32 %v10149, 0.0
    %v10161 = vpack.c.bf16 %v10153, %v10153
    %v10162 = vpack.c.bf16 %v10154, %v10154
    %v10163 = vpack.c.bf16 %v10155, %v10155
    %v10164 = vpack.c.bf16 %v10156, %v10156
    %v10165 = vpack.c.bf16 %v10157, %v10157
    %v10166 = vpack.c.bf16 %v10158, %v10158
    %v10167 = vpack.c.bf16 %v10159, %v10159
    %v10168 = vpack.c.bf16 %v10160, %v10160
    %v10169 = vld [vmem:[#allocation16] sm:$0xff]
    %v10170 = vld [vmem:[#allocation16 + $0x8] sm:$0xff]
    %v10171 = vld [vmem:[#allocation16 + $0x10] sm:$0xff]
    %v10172 = vld [vmem:[#allocation16 + $0x18] sm:$0xff]
    %v10173 = vld [vmem:[#allocation16 + $0x20] sm:$0xff]
    %v10174 = vld [vmem:[#allocation16 + $0x28] sm:$0xff]
    %v10175 = vld [vmem:[#allocation16 + $0x30] sm:$0xff]
    %v10176 = vld [vmem:[#allocation16 + $0x38] sm:$0xff]
    %v10177 = vld [vmem:[#allocation16 + $0x40] sm:$0xff]
    %v10178 = vld [vmem:[#allocation16 + $0x48] sm:$0xff]
    %v10179 = vld [vmem:[#allocation16 + $0x50] sm:$0xff]
    %v10180 = vld [vmem:[#allocation16 + $0x58] sm:$0xff]
    %v10181 = vld [vmem:[#allocation16 + $0x60] sm:$0xff]
    %v10182 = vld [vmem:[#allocation16 + $0x68] sm:$0xff]
    %v10183 = vld [vmem:[#allocation16 + $0x70] sm:$0xff]
    %v10184 = vld [vmem:[#allocation16 + $0x78] sm:$0xff]
    %v10185 = vld [vmem:[#allocation16 + $0x80] sm:$0xff]
    %v10186 = vld [vmem:[#allocation16 + $0x88] sm:$0xff]
    %v10187 = vld [vmem:[#allocation16 + $0x90] sm:$0xff]
    %v10188 = vld [vmem:[#allocation16 + $0x98] sm:$0xff]
    %v10189 = vld [vmem:[#allocation16 + $0xa0] sm:$0xff]
    %v10190 = vld [vmem:[#allocation16 + $0xa8] sm:$0xff]
    %v10191 = vld [vmem:[#allocation16 + $0xb0] sm:$0xff]
    %v10192 = vld [vmem:[#allocation16 + $0xb8] sm:$0xff]
    %v10193 = vld [vmem:[#allocation16 + $0xc0] sm:$0xff]
    %v10194 = vld [vmem:[#allocation16 + $0xc8] sm:$0xff]
    %v10195 = vld [vmem:[#allocation16 + $0xd0] sm:$0xff]
    %v10196 = vld [vmem:[#allocation16 + $0xd8] sm:$0xff]
    %v10197 = vld [vmem:[#allocation16 + $0xe0] sm:$0xff]
    %v10198 = vld [vmem:[#allocation16 + $0xe8] sm:$0xff]
    %v10199 = vld [vmem:[#allocation16 + $0xf0] sm:$0xff]
    %v10200 = vld [vmem:[#allocation16 + $0xf8] sm:$0xff]
    %v10201 = vld [vmem:[#allocation16 + $0x100] sm:$0xff]
    %v10202 = vld [vmem:[#allocation16 + $0x108] sm:$0xff]
    %v10203 = vld [vmem:[#allocation16 + $0x110] sm:$0xff]
    %v10204 = vld [vmem:[#allocation16 + $0x118] sm:$0xff]
    %v10205 = vld [vmem:[#allocation16 + $0x120] sm:$0xff]
    %v10206 = vld [vmem:[#allocation16 + $0x128] sm:$0xff]
    %v10207 = vld [vmem:[#allocation16 + $0x130] sm:$0xff]
    %v10208 = vld [vmem:[#allocation16 + $0x138] sm:$0xff]
    %v10209 = vld [vmem:[#allocation16 + $0x140] sm:$0xff]
    %v10210 = vld [vmem:[#allocation16 + $0x148] sm:$0xff]
    %v10211 = vld [vmem:[#allocation16 + $0x150] sm:$0xff]
    %v10212 = vld [vmem:[#allocation16 + $0x158] sm:$0xff]
    %v10213 = vld [vmem:[#allocation16 + $0x160] sm:$0xff]
    %v10214 = vld [vmem:[#allocation16 + $0x168] sm:$0xff]
    %v10215 = vld [vmem:[#allocation16 + $0x170] sm:$0xff]
    %v10216 = vld [vmem:[#allocation16 + $0x178] sm:$0xff]
    %v10217 = vld [vmem:[#allocation16 + $0x180] sm:$0xff]
    %v10218 = vld [vmem:[#allocation16 + $0x188] sm:$0xff]
    %v10219 = vld [vmem:[#allocation16 + $0x190] sm:$0xff]
    %v10220 = vld [vmem:[#allocation16 + $0x198] sm:$0xff]
    %v10221 = vld [vmem:[#allocation16 + $0x1a0] sm:$0xff]
    %v10222 = vld [vmem:[#allocation16 + $0x1a8] sm:$0xff]
    %v10223 = vld [vmem:[#allocation16 + $0x1b0] sm:$0xff]
    %v10224 = vld [vmem:[#allocation16 + $0x1b8] sm:$0xff]
    %v10225 = vld [vmem:[#allocation16 + $0x1c0] sm:$0xff]
    %v10226 = vld [vmem:[#allocation16 + $0x1c8] sm:$0xff]
    %v10227 = vld [vmem:[#allocation16 + $0x1d0] sm:$0xff]
    %v10228 = vld [vmem:[#allocation16 + $0x1d8] sm:$0xff]
    %v10229 = vld [vmem:[#allocation16 + $0x1e0] sm:$0xff]
    %v10230 = vld [vmem:[#allocation16 + $0x1e8] sm:$0xff]
    %v10231 = vld [vmem:[#allocation16 + $0x1f0] sm:$0xff]
    %v10232 = vld [vmem:[#allocation16 + $0x1f8] sm:$0xff]
    %v10233 = vld [vmem:[#allocation16 + $0x200] sm:$0xff]
    %v10234 = vld [vmem:[#allocation16 + $0x208] sm:$0xff]
    %v10235 = vld [vmem:[#allocation16 + $0x210] sm:$0xff]
    %v10236 = vld [vmem:[#allocation16 + $0x218] sm:$0xff]
    %v10237 = vld [vmem:[#allocation16 + $0x220] sm:$0xff]
    %v10238 = vld [vmem:[#allocation16 + $0x228] sm:$0xff]
    %v10239 = vld [vmem:[#allocation16 + $0x230] sm:$0xff]
    %v10240 = vld [vmem:[#allocation16 + $0x238] sm:$0xff]
    %v10241 = vld [vmem:[#allocation16 + $0x240] sm:$0xff]
    %v10242 = vld [vmem:[#allocation16 + $0x248] sm:$0xff]
    %v10243 = vld [vmem:[#allocation16 + $0x250] sm:$0xff]
    %v10244 = vld [vmem:[#allocation16 + $0x258] sm:$0xff]
    %v10245 = vld [vmem:[#allocation16 + $0x260] sm:$0xff]
    %v10246 = vld [vmem:[#allocation16 + $0x268] sm:$0xff]
    %v10247 = vld [vmem:[#allocation16 + $0x270] sm:$0xff]
    %v10248 = vld [vmem:[#allocation16 + $0x278] sm:$0xff]
    %v10249 = vld [vmem:[#allocation16 + $0x280] sm:$0xff]
    %v10250 = vld [vmem:[#allocation16 + $0x288] sm:$0xff]
    %v10251 = vld [vmem:[#allocation16 + $0x290] sm:$0xff]
    %v10252 = vld [vmem:[#allocation16 + $0x298] sm:$0xff]
    %v10253 = vld [vmem:[#allocation16 + $0x2a0] sm:$0xff]
    %v10254 = vld [vmem:[#allocation16 + $0x2a8] sm:$0xff]
    %v10255 = vld [vmem:[#allocation16 + $0x2b0] sm:$0xff]
    %v10256 = vld [vmem:[#allocation16 + $0x2b8] sm:$0xff]
    %v10257 = vld [vmem:[#allocation16 + $0x2c0] sm:$0xff]
    %v10258 = vld [vmem:[#allocation16 + $0x2c8] sm:$0xff]
    %v10259 = vld [vmem:[#allocation16 + $0x2d0] sm:$0xff]
    %v10260 = vld [vmem:[#allocation16 + $0x2d8] sm:$0xff]
    %v10261 = vld [vmem:[#allocation16 + $0x2e0] sm:$0xff]
    %v10262 = vld [vmem:[#allocation16 + $0x2e8] sm:$0xff]
    %v10263 = vld [vmem:[#allocation16 + $0x2f0] sm:$0xff]
    %v10264 = vld [vmem:[#allocation16 + $0x2f8] sm:$0xff]
    %v10265 = vld [vmem:[#allocation16 + $0x300] sm:$0xff]
    %v10266 = vld [vmem:[#allocation16 + $0x308] sm:$0xff]
    %v10267 = vld [vmem:[#allocation16 + $0x310] sm:$0xff]
    %v10268 = vld [vmem:[#allocation16 + $0x318] sm:$0xff]
    %v10269 = vld [vmem:[#allocation16 + $0x320] sm:$0xff]
    %v10270 = vld [vmem:[#allocation16 + $0x328] sm:$0xff]
    %v10271 = vld [vmem:[#allocation16 + $0x330] sm:$0xff]
    %v10272 = vld [vmem:[#allocation16 + $0x338] sm:$0xff]
    %v10273 = vld [vmem:[#allocation16 + $0x340] sm:$0xff]
    %v10274 = vld [vmem:[#allocation16 + $0x348] sm:$0xff]
    %v10275 = vld [vmem:[#allocation16 + $0x350] sm:$0xff]
    %v10276 = vld [vmem:[#allocation16 + $0x358] sm:$0xff]
    %v10277 = vld [vmem:[#allocation16 + $0x360] sm:$0xff]
    %v10278 = vld [vmem:[#allocation16 + $0x368] sm:$0xff]
    %v10279 = vld [vmem:[#allocation16 + $0x370] sm:$0xff]
    %v10280 = vld [vmem:[#allocation16 + $0x378] sm:$0xff]
    %v10281 = vld [vmem:[#allocation16 + $0x380] sm:$0xff]
    %v10282 = vld [vmem:[#allocation16 + $0x388] sm:$0xff]
    %v10283 = vld [vmem:[#allocation16 + $0x390] sm:$0xff]
    %v10284 = vld [vmem:[#allocation16 + $0x398] sm:$0xff]
    %v10285 = vld [vmem:[#allocation16 + $0x3a0] sm:$0xff]
    %v10286 = vld [vmem:[#allocation16 + $0x3a8] sm:$0xff]
    %v10287 = vld [vmem:[#allocation16 + $0x3b0] sm:$0xff]
    %v10288 = vld [vmem:[#allocation16 + $0x3b8] sm:$0xff]
    %v10289 = vld [vmem:[#allocation16 + $0x3c0] sm:$0xff]
    %v10290 = vld [vmem:[#allocation16 + $0x3c8] sm:$0xff]
    %v10291 = vld [vmem:[#allocation16 + $0x3d0] sm:$0xff]
    %v10292 = vld [vmem:[#allocation16 + $0x3d8] sm:$0xff]
    %v10293 = vld [vmem:[#allocation16 + $0x3e0] sm:$0xff]
    %v10294 = vld [vmem:[#allocation16 + $0x3e8] sm:$0xff]
    %v10295 = vld [vmem:[#allocation16 + $0x3f0] sm:$0xff]
    %v10296 = vld [vmem:[#allocation16 + $0x3f8] sm:$0xff]
    %v10297 = vld [vmem:[#allocation16 + $0x400] sm:$0xff]
    %v10298 = vld [vmem:[#allocation16 + $0x408] sm:$0xff]
    %v10299 = vld [vmem:[#allocation16 + $0x410] sm:$0xff]
    %v10300 = vld [vmem:[#allocation16 + $0x418] sm:$0xff]
    %v10301 = vld [vmem:[#allocation16 + $0x420] sm:$0xff]
    %v10302 = vld [vmem:[#allocation16 + $0x428] sm:$0xff]
    %v10303 = vld [vmem:[#allocation16 + $0x430] sm:$0xff]
    %v10304 = vld [vmem:[#allocation16 + $0x438] sm:$0xff]
    %v10305 = vld [vmem:[#allocation16 + $0x440] sm:$0xff]
    %v10306 = vld [vmem:[#allocation16 + $0x448] sm:$0xff]
    %v10307 = vld [vmem:[#allocation16 + $0x450] sm:$0xff]
    %v10308 = vld [vmem:[#allocation16 + $0x458] sm:$0xff]
    %v10309 = vld [vmem:[#allocation16 + $0x460] sm:$0xff]
    %v10310 = vld [vmem:[#allocation16 + $0x468] sm:$0xff]
    %v10311 = vld [vmem:[#allocation16 + $0x470] sm:$0xff]
    %v10312 = vld [vmem:[#allocation16 + $0x478] sm:$0xff]
    %v10313 = vld [vmem:[#allocation16 + $0x480] sm:$0xff]
    %v10314 = vld [vmem:[#allocation16 + $0x488] sm:$0xff]
    %v10315 = vld [vmem:[#allocation16 + $0x490] sm:$0xff]
    %v10316 = vld [vmem:[#allocation16 + $0x498] sm:$0xff]
    %v10317 = vld [vmem:[#allocation16 + $0x4a0] sm:$0xff]
    %v10318 = vld [vmem:[#allocation16 + $0x4a8] sm:$0xff]
    %v10319 = vld [vmem:[#allocation16 + $0x4b0] sm:$0xff]
    %v10320 = vld [vmem:[#allocation16 + $0x4b8] sm:$0xff]
    %v10321 = vld [vmem:[#allocation16 + $0x4c0] sm:$0xff]
    %v10322 = vld [vmem:[#allocation16 + $0x4c8] sm:$0xff]
    %v10323 = vld [vmem:[#allocation16 + $0x4d0] sm:$0xff]
    %v10324 = vld [vmem:[#allocation16 + $0x4d8] sm:$0xff]
    %v10325 = vld [vmem:[#allocation16 + $0x4e0] sm:$0xff]
    %v10326 = vld [vmem:[#allocation16 + $0x4e8] sm:$0xff]
    %v10327 = vld [vmem:[#allocation16 + $0x4f0] sm:$0xff]
    %v10328 = vld [vmem:[#allocation16 + $0x4f8] sm:$0xff]
    %v10329 = vld [vmem:[#allocation16 + $0x500] sm:$0xff]
    %v10330 = vld [vmem:[#allocation16 + $0x508] sm:$0xff]
    %v10331 = vld [vmem:[#allocation16 + $0x510] sm:$0xff]
    %v10332 = vld [vmem:[#allocation16 + $0x518] sm:$0xff]
    %v10333 = vld [vmem:[#allocation16 + $0x520] sm:$0xff]
    %v10334 = vld [vmem:[#allocation16 + $0x528] sm:$0xff]
    %v10335 = vld [vmem:[#allocation16 + $0x530] sm:$0xff]
    %v10336 = vld [vmem:[#allocation16 + $0x538] sm:$0xff]
    %v10337 = vld [vmem:[#allocation16 + $0x540] sm:$0xff]
    %v10338 = vld [vmem:[#allocation16 + $0x548] sm:$0xff]
    %v10339 = vld [vmem:[#allocation16 + $0x550] sm:$0xff]
    %v10340 = vld [vmem:[#allocation16 + $0x558] sm:$0xff]
    %v10341 = vld [vmem:[#allocation16 + $0x560] sm:$0xff]
    %v10342 = vld [vmem:[#allocation16 + $0x568] sm:$0xff]
    %v10343 = vld [vmem:[#allocation16 + $0x570] sm:$0xff]
    %v10344 = vld [vmem:[#allocation16 + $0x578] sm:$0xff]
    %v10345 = vld [vmem:[#allocation16 + $0x580] sm:$0xff]
    %v10346 = vld [vmem:[#allocation16 + $0x588] sm:$0xff]
    %v10347 = vld [vmem:[#allocation16 + $0x590] sm:$0xff]
    %v10348 = vld [vmem:[#allocation16 + $0x598] sm:$0xff]
    %v10349 = vld [vmem:[#allocation16 + $0x5a0] sm:$0xff]
    %v10350 = vld [vmem:[#allocation16 + $0x5a8] sm:$0xff]
    %v10351 = vld [vmem:[#allocation16 + $0x5b0] sm:$0xff]
    %v10352 = vld [vmem:[#allocation16 + $0x5b8] sm:$0xff]
    %v10353 = vld [vmem:[#allocation16 + $0x5c0] sm:$0xff]
    %v10354 = vld [vmem:[#allocation16 + $0x5c8] sm:$0xff]
    %v10355 = vld [vmem:[#allocation16 + $0x5d0] sm:$0xff]
    %v10356 = vld [vmem:[#allocation16 + $0x5d8] sm:$0xff]
    %v10357 = vld [vmem:[#allocation16 + $0x5e0] sm:$0xff]
    %v10358 = vld [vmem:[#allocation16 + $0x5e8] sm:$0xff]
    %v10359 = vld [vmem:[#allocation16 + $0x5f0] sm:$0xff]
    %v10360 = vld [vmem:[#allocation16 + $0x5f8] sm:$0xff]
    %v10361 = vld [vmem:[#allocation16 + $0x600] sm:$0xff]
    %v10362 = vld [vmem:[#allocation16 + $0x608] sm:$0xff]
    %v10363 = vld [vmem:[#allocation16 + $0x610] sm:$0xff]
    %v10364 = vld [vmem:[#allocation16 + $0x618] sm:$0xff]
    %v10365 = vld [vmem:[#allocation16 + $0x620] sm:$0xff]
    %v10366 = vld [vmem:[#allocation16 + $0x628] sm:$0xff]
    %v10367 = vld [vmem:[#allocation16 + $0x630] sm:$0xff]
    %v10368 = vld [vmem:[#allocation16 + $0x638] sm:$0xff]
    %v10369 = vld [vmem:[#allocation16 + $0x640] sm:$0xff]
    %v10370 = vld [vmem:[#allocation16 + $0x648] sm:$0xff]
    %v10371 = vld [vmem:[#allocation16 + $0x650] sm:$0xff]
    %v10372 = vld [vmem:[#allocation16 + $0x658] sm:$0xff]
    %v10373 = vld [vmem:[#allocation16 + $0x660] sm:$0xff]
    %v10374 = vld [vmem:[#allocation16 + $0x668] sm:$0xff]
    %v10375 = vld [vmem:[#allocation16 + $0x670] sm:$0xff]
    %v10376 = vld [vmem:[#allocation16 + $0x678] sm:$0xff]
    %v10377 = vld [vmem:[#allocation16 + $0x680] sm:$0xff]
    %v10378 = vld [vmem:[#allocation16 + $0x688] sm:$0xff]
    %v10379 = vld [vmem:[#allocation16 + $0x690] sm:$0xff]
    %v10380 = vld [vmem:[#allocation16 + $0x698] sm:$0xff]
    %v10381 = vld [vmem:[#allocation16 + $0x6a0] sm:$0xff]
    %v10382 = vld [vmem:[#allocation16 + $0x6a8] sm:$0xff]
    %v10383 = vld [vmem:[#allocation16 + $0x6b0] sm:$0xff]
    %v10384 = vld [vmem:[#allocation16 + $0x6b8] sm:$0xff]
    %v10385 = vld [vmem:[#allocation16 + $0x6c0] sm:$0xff]
    %v10386 = vld [vmem:[#allocation16 + $0x6c8] sm:$0xff]
    %v10387 = vld [vmem:[#allocation16 + $0x6d0] sm:$0xff]
    %v10388 = vld [vmem:[#allocation16 + $0x6d8] sm:$0xff]
    %v10389 = vld [vmem:[#allocation16 + $0x6e0] sm:$0xff]
    %v10390 = vld [vmem:[#allocation16 + $0x6e8] sm:$0xff]
    %v10391 = vld [vmem:[#allocation16 + $0x6f0] sm:$0xff]
    %v10392 = vld [vmem:[#allocation16 + $0x6f8] sm:$0xff]
    %v10393 = vld [vmem:[#allocation16 + $0x700] sm:$0xff]
    %v10394 = vld [vmem:[#allocation16 + $0x708] sm:$0xff]
    %v10395 = vld [vmem:[#allocation16 + $0x710] sm:$0xff]
    %v10396 = vld [vmem:[#allocation16 + $0x718] sm:$0xff]
    %v10397 = vld [vmem:[#allocation16 + $0x720] sm:$0xff]
    %v10398 = vld [vmem:[#allocation16 + $0x728] sm:$0xff]
    %v10399 = vld [vmem:[#allocation16 + $0x730] sm:$0xff]
    %v10400 = vld [vmem:[#allocation16 + $0x738] sm:$0xff]
    %v10401 = vld [vmem:[#allocation16 + $0x740] sm:$0xff]
    %v10402 = vld [vmem:[#allocation16 + $0x748] sm:$0xff]
    %v10403 = vld [vmem:[#allocation16 + $0x750] sm:$0xff]
    %v10404 = vld [vmem:[#allocation16 + $0x758] sm:$0xff]
    %v10405 = vld [vmem:[#allocation16 + $0x760] sm:$0xff]
    %v10406 = vld [vmem:[#allocation16 + $0x768] sm:$0xff]
    %v10407 = vld [vmem:[#allocation16 + $0x770] sm:$0xff]
    %v10408 = vld [vmem:[#allocation16 + $0x778] sm:$0xff]
    %v10409 = vld [vmem:[#allocation16 + $0x780] sm:$0xff]
    %v10410 = vld [vmem:[#allocation16 + $0x788] sm:$0xff]
    %v10411 = vld [vmem:[#allocation16 + $0x790] sm:$0xff]
    %v10412 = vld [vmem:[#allocation16 + $0x798] sm:$0xff]
    %v10413 = vld [vmem:[#allocation16 + $0x7a0] sm:$0xff]
    %v10414 = vld [vmem:[#allocation16 + $0x7a8] sm:$0xff]
    %v10415 = vld [vmem:[#allocation16 + $0x7b0] sm:$0xff]
    %v10416 = vld [vmem:[#allocation16 + $0x7b8] sm:$0xff]
    %v10417 = vld [vmem:[#allocation16 + $0x7c0] sm:$0xff]
    %v10418 = vld [vmem:[#allocation16 + $0x7c8] sm:$0xff]
    %v10419 = vld [vmem:[#allocation16 + $0x7d0] sm:$0xff]
    %v10420 = vld [vmem:[#allocation16 + $0x7d8] sm:$0xff]
    %v10421 = vld [vmem:[#allocation16 + $0x7e0] sm:$0xff]
    %v10422 = vld [vmem:[#allocation16 + $0x7e8] sm:$0xff]
    %v10423 = vld [vmem:[#allocation16 + $0x7f0] sm:$0xff]
    %v10424 = vld [vmem:[#allocation16 + $0x7f8] sm:$0xff]
    %v10425 = vld [vmem:[#allocation17] sm:$0xf]
    %v10427 = vlaneseq
    %v10428 = vshrl.u32 %v10427, 7
    %v10429 = vsub.s32 0, %v10428
    %v10430 = vrot.slane %v10425, %v10429
    %v10431 = vlaneseq
    %v10432 = vshrl.u32 %v10431, 7
    %v10433 = vsub.s32 1, %v10432
    %v10434 = vrot.slane %v10425, %v10433
    %v10435 = vlaneseq
    %v10436 = vshrl.u32 %v10435, 7
    %v10437 = vsub.s32 2, %v10436
    %v10438 = vrot.slane %v10425, %v10437
    %v10439 = vlaneseq
    %v10440 = vshrl.u32 %v10439, 7
    %v10441 = vsub.s32 3, %v10440
    %v10442 = vrot.slane %v10425, %v10441
    %v10703 = vunpack.c.l.b16 %v10169
    %v10704 = vunpack.c.h.b16 %v10169
    %v10705 = vunpack.c.l.b16 %v10170
    %v10706 = vunpack.c.h.b16 %v10170
    %v10707 = vunpack.c.l.b16 %v10171
    %v10708 = vunpack.c.h.b16 %v10171
    %v10709 = vunpack.c.l.b16 %v10172
    %v10710 = vunpack.c.h.b16 %v10172
    %v10711 = vunpack.c.l.b16 %v10173
    %v10712 = vunpack.c.h.b16 %v10173
    %v10713 = vunpack.c.l.b16 %v10174
    %v10714 = vunpack.c.h.b16 %v10174
    %v10715 = vunpack.c.l.b16 %v10175
    %v10716 = vunpack.c.h.b16 %v10175
    %v10717 = vunpack.c.l.b16 %v10176
    %v10718 = vunpack.c.h.b16 %v10176
    %v10719 = vunpack.c.l.b16 %v10177
    %v10720 = vunpack.c.h.b16 %v10177
    %v10721 = vunpack.c.l.b16 %v10178
    %v10722 = vunpack.c.h.b16 %v10178
    %v10723 = vunpack.c.l.b16 %v10179
    %v10724 = vunpack.c.h.b16 %v10179
    %v10725 = vunpack.c.l.b16 %v10180
    %v10726 = vunpack.c.h.b16 %v10180
    %v10727 = vunpack.c.l.b16 %v10181
    %v10728 = vunpack.c.h.b16 %v10181
    %v10729 = vunpack.c.l.b16 %v10182
    %v10730 = vunpack.c.h.b16 %v10182
    %v10731 = vunpack.c.l.b16 %v10183
    %v10732 = vunpack.c.h.b16 %v10183
    %v10733 = vunpack.c.l.b16 %v10184
    %v10734 = vunpack.c.h.b16 %v10184
    %v10735 = vunpack.c.l.b16 %v10185
    %v10736 = vunpack.c.h.b16 %v10185
    %v10737 = vunpack.c.l.b16 %v10186
    %v10738 = vunpack.c.h.b16 %v10186
    %v10739 = vunpack.c.l.b16 %v10187
    %v10740 = vunpack.c.h.b16 %v10187
    %v10741 = vunpack.c.l.b16 %v10188
    %v10742 = vunpack.c.h.b16 %v10188
    %v10743 = vunpack.c.l.b16 %v10189
    %v10744 = vunpack.c.h.b16 %v10189
    %v10745 = vunpack.c.l.b16 %v10190
    %v10746 = vunpack.c.h.b16 %v10190
    %v10747 = vunpack.c.l.b16 %v10191
    %v10748 = vunpack.c.h.b16 %v10191
    %v10749 = vunpack.c.l.b16 %v10192
    %v10750 = vunpack.c.h.b16 %v10192
    %v10751 = vunpack.c.l.b16 %v10193
    %v10752 = vunpack.c.h.b16 %v10193
    %v10753 = vunpack.c.l.b16 %v10194
    %v10754 = vunpack.c.h.b16 %v10194
    %v10755 = vunpack.c.l.b16 %v10195
    %v10756 = vunpack.c.h.b16 %v10195
    %v10757 = vunpack.c.l.b16 %v10196
    %v10758 = vunpack.c.h.b16 %v10196
    %v10759 = vunpack.c.l.b16 %v10197
    %v10760 = vunpack.c.h.b16 %v10197
    %v10761 = vunpack.c.l.b16 %v10198
    %v10762 = vunpack.c.h.b16 %v10198
    %v10763 = vunpack.c.l.b16 %v10199
    %v10764 = vunpack.c.h.b16 %v10199
    %v10765 = vunpack.c.l.b16 %v10200
    %v10766 = vunpack.c.h.b16 %v10200
    %v10767 = vunpack.c.l.b16 %v10201
    %v10768 = vunpack.c.h.b16 %v10201
    %v10769 = vunpack.c.l.b16 %v10202
    %v10770 = vunpack.c.h.b16 %v10202
    %v10771 = vunpack.c.l.b16 %v10203
    %v10772 = vunpack.c.h.b16 %v10203
    %v10773 = vunpack.c.l.b16 %v10204
    %v10774 = vunpack.c.h.b16 %v10204
    %v10775 = vunpack.c.l.b16 %v10205
    %v10776 = vunpack.c.h.b16 %v10205
    %v10777 = vunpack.c.l.b16 %v10206
    %v10778 = vunpack.c.h.b16 %v10206
    %v10779 = vunpack.c.l.b16 %v10207
    %v10780 = vunpack.c.h.b16 %v10207
    %v10781 = vunpack.c.l.b16 %v10208
    %v10782 = vunpack.c.h.b16 %v10208
    %v10783 = vunpack.c.l.b16 %v10209
    %v10784 = vunpack.c.h.b16 %v10209
    %v10785 = vunpack.c.l.b16 %v10210
    %v10786 = vunpack.c.h.b16 %v10210
    %v10787 = vunpack.c.l.b16 %v10211
    %v10788 = vunpack.c.h.b16 %v10211
    %v10789 = vunpack.c.l.b16 %v10212
    %v10790 = vunpack.c.h.b16 %v10212
    %v10791 = vunpack.c.l.b16 %v10213
    %v10792 = vunpack.c.h.b16 %v10213
    %v10793 = vunpack.c.l.b16 %v10214
    %v10794 = vunpack.c.h.b16 %v10214
    %v10795 = vunpack.c.l.b16 %v10215
    %v10796 = vunpack.c.h.b16 %v10215
    %v10797 = vunpack.c.l.b16 %v10216
    %v10798 = vunpack.c.h.b16 %v10216
    %v10799 = vunpack.c.l.b16 %v10217
    %v10800 = vunpack.c.h.b16 %v10217
    %v10801 = vunpack.c.l.b16 %v10218
    %v10802 = vunpack.c.h.b16 %v10218
    %v10803 = vunpack.c.l.b16 %v10219
    %v10804 = vunpack.c.h.b16 %v10219
    %v10805 = vunpack.c.l.b16 %v10220
    %v10806 = vunpack.c.h.b16 %v10220
    %v10807 = vunpack.c.l.b16 %v10221
    %v10808 = vunpack.c.h.b16 %v10221
    %v10809 = vunpack.c.l.b16 %v10222
    %v10810 = vunpack.c.h.b16 %v10222
    %v10811 = vunpack.c.l.b16 %v10223
    %v10812 = vunpack.c.h.b16 %v10223
    %v10813 = vunpack.c.l.b16 %v10224
    %v10814 = vunpack.c.h.b16 %v10224
    %v10815 = vunpack.c.l.b16 %v10225
    %v10816 = vunpack.c.h.b16 %v10225
    %v10817 = vunpack.c.l.b16 %v10226
    %v10818 = vunpack.c.h.b16 %v10226
    %v10819 = vunpack.c.l.b16 %v10227
    %v10820 = vunpack.c.h.b16 %v10227
    %v10821 = vunpack.c.l.b16 %v10228
    %v10822 = vunpack.c.h.b16 %v10228
    %v10823 = vunpack.c.l.b16 %v10229
    %v10824 = vunpack.c.h.b16 %v10229
    %v10825 = vunpack.c.l.b16 %v10230
    %v10826 = vunpack.c.h.b16 %v10230
    %v10827 = vunpack.c.l.b16 %v10231
    %v10828 = vunpack.c.h.b16 %v10231
    %v10829 = vunpack.c.l.b16 %v10232
    %v10830 = vunpack.c.h.b16 %v10232
    %v10831 = vunpack.c.l.b16 %v10233
    %v10832 = vunpack.c.h.b16 %v10233
    %v10833 = vunpack.c.l.b16 %v10234
    %v10834 = vunpack.c.h.b16 %v10234
    %v10835 = vunpack.c.l.b16 %v10235
    %v10836 = vunpack.c.h.b16 %v10235
    %v10837 = vunpack.c.l.b16 %v10236
    %v10838 = vunpack.c.h.b16 %v10236
    %v10839 = vunpack.c.l.b16 %v10237
    %v10840 = vunpack.c.h.b16 %v10237
    %v10841 = vunpack.c.l.b16 %v10238
    %v10842 = vunpack.c.h.b16 %v10238
    %v10843 = vunpack.c.l.b16 %v10239
    %v10844 = vunpack.c.h.b16 %v10239
    %v10845 = vunpack.c.l.b16 %v10240
    %v10846 = vunpack.c.h.b16 %v10240
    %v10847 = vunpack.c.l.b16 %v10241
    %v10848 = vunpack.c.h.b16 %v10241
    %v10849 = vunpack.c.l.b16 %v10242
    %v10850 = vunpack.c.h.b16 %v10242
    %v10851 = vunpack.c.l.b16 %v10243
    %v10852 = vunpack.c.h.b16 %v10243
    %v10853 = vunpack.c.l.b16 %v10244
    %v10854 = vunpack.c.h.b16 %v10244
    %v10855 = vunpack.c.l.b16 %v10245
    %v10856 = vunpack.c.h.b16 %v10245
    %v10857 = vunpack.c.l.b16 %v10246
    %v10858 = vunpack.c.h.b16 %v10246
    %v10859 = vunpack.c.l.b16 %v10247
    %v10860 = vunpack.c.h.b16 %v10247
    %v10861 = vunpack.c.l.b16 %v10248
    %v10862 = vunpack.c.h.b16 %v10248
    %v10863 = vunpack.c.l.b16 %v10249
    %v10864 = vunpack.c.h.b16 %v10249
    %v10865 = vunpack.c.l.b16 %v10250
    %v10866 = vunpack.c.h.b16 %v10250
    %v10867 = vunpack.c.l.b16 %v10251
    %v10868 = vunpack.c.h.b16 %v10251
    %v10869 = vunpack.c.l.b16 %v10252
    %v10870 = vunpack.c.h.b16 %v10252
    %v10871 = vunpack.c.l.b16 %v10253
    %v10872 = vunpack.c.h.b16 %v10253
    %v10873 = vunpack.c.l.b16 %v10254
    %v10874 = vunpack.c.h.b16 %v10254
    %v10875 = vunpack.c.l.b16 %v10255
    %v10876 = vunpack.c.h.b16 %v10255
    %v10877 = vunpack.c.l.b16 %v10256
    %v10878 = vunpack.c.h.b16 %v10256
    %v10879 = vunpack.c.l.b16 %v10257
    %v10880 = vunpack.c.h.b16 %v10257
    %v10881 = vunpack.c.l.b16 %v10258
    %v10882 = vunpack.c.h.b16 %v10258
    %v10883 = vunpack.c.l.b16 %v10259
    %v10884 = vunpack.c.h.b16 %v10259
    %v10885 = vunpack.c.l.b16 %v10260
    %v10886 = vunpack.c.h.b16 %v10260
    %v10887 = vunpack.c.l.b16 %v10261
    %v10888 = vunpack.c.h.b16 %v10261
    %v10889 = vunpack.c.l.b16 %v10262
    %v10890 = vunpack.c.h.b16 %v10262
    %v10891 = vunpack.c.l.b16 %v10263
    %v10892 = vunpack.c.h.b16 %v10263
    %v10893 = vunpack.c.l.b16 %v10264
    %v10894 = vunpack.c.h.b16 %v10264
    %v10895 = vunpack.c.l.b16 %v10265
    %v10896 = vunpack.c.h.b16 %v10265
    %v10897 = vunpack.c.l.b16 %v10266
    %v10898 = vunpack.c.h.b16 %v10266
    %v10899 = vunpack.c.l.b16 %v10267
    %v10900 = vunpack.c.h.b16 %v10267
    %v10901 = vunpack.c.l.b16 %v10268
    %v10902 = vunpack.c.h.b16 %v10268
    %v10903 = vunpack.c.l.b16 %v10269
    %v10904 = vunpack.c.h.b16 %v10269
    %v10905 = vunpack.c.l.b16 %v10270
    %v10906 = vunpack.c.h.b16 %v10270
    %v10907 = vunpack.c.l.b16 %v10271
    %v10908 = vunpack.c.h.b16 %v10271
    %v10909 = vunpack.c.l.b16 %v10272
    %v10910 = vunpack.c.h.b16 %v10272
    %v10911 = vunpack.c.l.b16 %v10273
    %v10912 = vunpack.c.h.b16 %v10273
    %v10913 = vunpack.c.l.b16 %v10274
    %v10914 = vunpack.c.h.b16 %v10274
    %v10915 = vunpack.c.l.b16 %v10275
    %v10916 = vunpack.c.h.b16 %v10275
    %v10917 = vunpack.c.l.b16 %v10276
    %v10918 = vunpack.c.h.b16 %v10276
    %v10919 = vunpack.c.l.b16 %v10277
    %v10920 = vunpack.c.h.b16 %v10277
    %v10921 = vunpack.c.l.b16 %v10278
    %v10922 = vunpack.c.h.b16 %v10278
    %v10923 = vunpack.c.l.b16 %v10279
    %v10924 = vunpack.c.h.b16 %v10279
    %v10925 = vunpack.c.l.b16 %v10280
    %v10926 = vunpack.c.h.b16 %v10280
    %v10927 = vunpack.c.l.b16 %v10281
    %v10928 = vunpack.c.h.b16 %v10281
    %v10929 = vunpack.c.l.b16 %v10282
    %v10930 = vunpack.c.h.b16 %v10282
    %v10931 = vunpack.c.l.b16 %v10283
    %v10932 = vunpack.c.h.b16 %v10283
    %v10933 = vunpack.c.l.b16 %v10284
    %v10934 = vunpack.c.h.b16 %v10284
    %v10935 = vunpack.c.l.b16 %v10285
    %v10936 = vunpack.c.h.b16 %v10285
    %v10937 = vunpack.c.l.b16 %v10286
    %v10938 = vunpack.c.h.b16 %v10286
    %v10939 = vunpack.c.l.b16 %v10287
    %v10940 = vunpack.c.h.b16 %v10287
    %v10941 = vunpack.c.l.b16 %v10288
    %v10942 = vunpack.c.h.b16 %v10288
    %v10943 = vunpack.c.l.b16 %v10289
    %v10944 = vunpack.c.h.b16 %v10289
    %v10945 = vunpack.c.l.b16 %v10290
    %v10946 = vunpack.c.h.b16 %v10290
    %v10947 = vunpack.c.l.b16 %v10291
    %v10948 = vunpack.c.h.b16 %v10291
    %v10949 = vunpack.c.l.b16 %v10292
    %v10950 = vunpack.c.h.b16 %v10292
    %v10951 = vunpack.c.l.b16 %v10293
    %v10952 = vunpack.c.h.b16 %v10293
    %v10953 = vunpack.c.l.b16 %v10294
    %v10954 = vunpack.c.h.b16 %v10294
    %v10955 = vunpack.c.l.b16 %v10295
    %v10956 = vunpack.c.h.b16 %v10295
    %v10957 = vunpack.c.l.b16 %v10296
    %v10958 = vunpack.c.h.b16 %v10296
    %v10959 = vunpack.c.l.b16 %v10297
    %v10960 = vunpack.c.h.b16 %v10297
    %v10961 = vunpack.c.l.b16 %v10298
    %v10962 = vunpack.c.h.b16 %v10298
    %v10963 = vunpack.c.l.b16 %v10299
    %v10964 = vunpack.c.h.b16 %v10299
    %v10965 = vunpack.c.l.b16 %v10300
    %v10966 = vunpack.c.h.b16 %v10300
    %v10967 = vunpack.c.l.b16 %v10301
    %v10968 = vunpack.c.h.b16 %v10301
    %v10969 = vunpack.c.l.b16 %v10302
    %v10970 = vunpack.c.h.b16 %v10302
    %v10971 = vunpack.c.l.b16 %v10303
    %v10972 = vunpack.c.h.b16 %v10303
    %v10973 = vunpack.c.l.b16 %v10304
    %v10974 = vunpack.c.h.b16 %v10304
    %v10975 = vunpack.c.l.b16 %v10305
    %v10976 = vunpack.c.h.b16 %v10305
    %v10977 = vunpack.c.l.b16 %v10306
    %v10978 = vunpack.c.h.b16 %v10306
    %v10979 = vunpack.c.l.b16 %v10307
    %v10980 = vunpack.c.h.b16 %v10307
    %v10981 = vunpack.c.l.b16 %v10308
    %v10982 = vunpack.c.h.b16 %v10308
    %v10983 = vunpack.c.l.b16 %v10309
    %v10984 = vunpack.c.h.b16 %v10309
    %v10985 = vunpack.c.l.b16 %v10310
    %v10986 = vunpack.c.h.b16 %v10310
    %v10987 = vunpack.c.l.b16 %v10311
    %v10988 = vunpack.c.h.b16 %v10311
    %v10989 = vunpack.c.l.b16 %v10312
    %v10990 = vunpack.c.h.b16 %v10312
    %v10991 = vunpack.c.l.b16 %v10313
    %v10992 = vunpack.c.h.b16 %v10313
    %v10993 = vunpack.c.l.b16 %v10314
    %v10994 = vunpack.c.h.b16 %v10314
    %v10995 = vunpack.c.l.b16 %v10315
    %v10996 = vunpack.c.h.b16 %v10315
    %v10997 = vunpack.c.l.b16 %v10316
    %v10998 = vunpack.c.h.b16 %v10316
    %v10999 = vunpack.c.l.b16 %v10317
    %v11000 = vunpack.c.h.b16 %v10317
    %v11001 = vunpack.c.l.b16 %v10318
    %v11002 = vunpack.c.h.b16 %v10318
    %v11003 = vunpack.c.l.b16 %v10319
    %v11004 = vunpack.c.h.b16 %v10319
    %v11005 = vunpack.c.l.b16 %v10320
    %v11006 = vunpack.c.h.b16 %v10320
    %v11007 = vunpack.c.l.b16 %v10321
    %v11008 = vunpack.c.h.b16 %v10321
    %v11009 = vunpack.c.l.b16 %v10322
    %v11010 = vunpack.c.h.b16 %v10322
    %v11011 = vunpack.c.l.b16 %v10323
    %v11012 = vunpack.c.h.b16 %v10323
    %v11013 = vunpack.c.l.b16 %v10324
    %v11014 = vunpack.c.h.b16 %v10324
    %v11015 = vunpack.c.l.b16 %v10325
    %v11016 = vunpack.c.h.b16 %v10325
    %v11017 = vunpack.c.l.b16 %v10326
    %v11018 = vunpack.c.h.b16 %v10326
    %v11019 = vunpack.c.l.b16 %v10327
    %v11020 = vunpack.c.h.b16 %v10327
    %v11021 = vunpack.c.l.b16 %v10328
    %v11022 = vunpack.c.h.b16 %v10328
    %v11023 = vunpack.c.l.b16 %v10329
    %v11024 = vunpack.c.h.b16 %v10329
    %v11025 = vunpack.c.l.b16 %v10330
    %v11026 = vunpack.c.h.b16 %v10330
    %v11027 = vunpack.c.l.b16 %v10331
    %v11028 = vunpack.c.h.b16 %v10331
    %v11029 = vunpack.c.l.b16 %v10332
    %v11030 = vunpack.c.h.b16 %v10332
    %v11031 = vunpack.c.l.b16 %v10333
    %v11032 = vunpack.c.h.b16 %v10333
    %v11033 = vunpack.c.l.b16 %v10334
    %v11034 = vunpack.c.h.b16 %v10334
    %v11035 = vunpack.c.l.b16 %v10335
    %v11036 = vunpack.c.h.b16 %v10335
    %v11037 = vunpack.c.l.b16 %v10336
    %v11038 = vunpack.c.h.b16 %v10336
    %v11039 = vunpack.c.l.b16 %v10337
    %v11040 = vunpack.c.h.b16 %v10337
    %v11041 = vunpack.c.l.b16 %v10338
    %v11042 = vunpack.c.h.b16 %v10338
    %v11043 = vunpack.c.l.b16 %v10339
    %v11044 = vunpack.c.h.b16 %v10339
    %v11045 = vunpack.c.l.b16 %v10340
    %v11046 = vunpack.c.h.b16 %v10340
    %v11047 = vunpack.c.l.b16 %v10341
    %v11048 = vunpack.c.h.b16 %v10341
    %v11049 = vunpack.c.l.b16 %v10342
    %v11050 = vunpack.c.h.b16 %v10342
    %v11051 = vunpack.c.l.b16 %v10343
    %v11052 = vunpack.c.h.b16 %v10343
    %v11053 = vunpack.c.l.b16 %v10344
    %v11054 = vunpack.c.h.b16 %v10344
    %v11055 = vunpack.c.l.b16 %v10345
    %v11056 = vunpack.c.h.b16 %v10345
    %v11057 = vunpack.c.l.b16 %v10346
    %v11058 = vunpack.c.h.b16 %v10346
    %v11059 = vunpack.c.l.b16 %v10347
    %v11060 = vunpack.c.h.b16 %v10347
    %v11061 = vunpack.c.l.b16 %v10348
    %v11062 = vunpack.c.h.b16 %v10348
    %v11063 = vunpack.c.l.b16 %v10349
    %v11064 = vunpack.c.h.b16 %v10349
    %v11065 = vunpack.c.l.b16 %v10350
    %v11066 = vunpack.c.h.b16 %v10350
    %v11067 = vunpack.c.l.b16 %v10351
    %v11068 = vunpack.c.h.b16 %v10351
    %v11069 = vunpack.c.l.b16 %v10352
    %v11070 = vunpack.c.h.b16 %v10352
    %v11071 = vunpack.c.l.b16 %v10353
    %v11072 = vunpack.c.h.b16 %v10353
    %v11073 = vunpack.c.l.b16 %v10354
    %v11074 = vunpack.c.h.b16 %v10354
    %v11075 = vunpack.c.l.b16 %v10355
    %v11076 = vunpack.c.h.b16 %v10355
    %v11077 = vunpack.c.l.b16 %v10356
    %v11078 = vunpack.c.h.b16 %v10356
    %v11079 = vunpack.c.l.b16 %v10357
    %v11080 = vunpack.c.h.b16 %v10357
    %v11081 = vunpack.c.l.b16 %v10358
    %v11082 = vunpack.c.h.b16 %v10358
    %v11083 = vunpack.c.l.b16 %v10359
    %v11084 = vunpack.c.h.b16 %v10359
    %v11085 = vunpack.c.l.b16 %v10360
    %v11086 = vunpack.c.h.b16 %v10360
    %v11087 = vunpack.c.l.b16 %v10361
    %v11088 = vunpack.c.h.b16 %v10361
    %v11089 = vunpack.c.l.b16 %v10362
    %v11090 = vunpack.c.h.b16 %v10362
    %v11091 = vunpack.c.l.b16 %v10363
    %v11092 = vunpack.c.h.b16 %v10363
    %v11093 = vunpack.c.l.b16 %v10364
    %v11094 = vunpack.c.h.b16 %v10364
    %v11095 = vunpack.c.l.b16 %v10365
    %v11096 = vunpack.c.h.b16 %v10365
    %v11097 = vunpack.c.l.b16 %v10366
    %v11098 = vunpack.c.h.b16 %v10366
    %v11099 = vunpack.c.l.b16 %v10367
    %v11100 = vunpack.c.h.b16 %v10367
    %v11101 = vunpack.c.l.b16 %v10368
    %v11102 = vunpack.c.h.b16 %v10368
    %v11103 = vunpack.c.l.b16 %v10369
    %v11104 = vunpack.c.h.b16 %v10369
    %v11105 = vunpack.c.l.b16 %v10370
    %v11106 = vunpack.c.h.b16 %v10370
    %v11107 = vunpack.c.l.b16 %v10371
    %v11108 = vunpack.c.h.b16 %v10371
    %v11109 = vunpack.c.l.b16 %v10372
    %v11110 = vunpack.c.h.b16 %v10372
    %v11111 = vunpack.c.l.b16 %v10373
    %v11112 = vunpack.c.h.b16 %v10373
    %v11113 = vunpack.c.l.b16 %v10374
    %v11114 = vunpack.c.h.b16 %v10374
    %v11115 = vunpack.c.l.b16 %v10375
    %v11116 = vunpack.c.h.b16 %v10375
    %v11117 = vunpack.c.l.b16 %v10376
    %v11118 = vunpack.c.h.b16 %v10376
    %v11119 = vunpack.c.l.b16 %v10377
    %v11120 = vunpack.c.h.b16 %v10377
    %v11121 = vunpack.c.l.b16 %v10378
    %v11122 = vunpack.c.h.b16 %v10378
    %v11123 = vunpack.c.l.b16 %v10379
    %v11124 = vunpack.c.h.b16 %v10379
    %v11125 = vunpack.c.l.b16 %v10380
    %v11126 = vunpack.c.h.b16 %v10380
    %v11127 = vunpack.c.l.b16 %v10381
    %v11128 = vunpack.c.h.b16 %v10381
    %v11129 = vunpack.c.l.b16 %v10382
    %v11130 = vunpack.c.h.b16 %v10382
    %v11131 = vunpack.c.l.b16 %v10383
    %v11132 = vunpack.c.h.b16 %v10383
    %v11133 = vunpack.c.l.b16 %v10384
    %v11134 = vunpack.c.h.b16 %v10384
    %v11135 = vunpack.c.l.b16 %v10385
    %v11136 = vunpack.c.h.b16 %v10385
    %v11137 = vunpack.c.l.b16 %v10386
    %v11138 = vunpack.c.h.b16 %v10386
    %v11139 = vunpack.c.l.b16 %v10387
    %v11140 = vunpack.c.h.b16 %v10387
    %v11141 = vunpack.c.l.b16 %v10388
    %v11142 = vunpack.c.h.b16 %v10388
    %v11143 = vunpack.c.l.b16 %v10389
    %v11144 = vunpack.c.h.b16 %v10389
    %v11145 = vunpack.c.l.b16 %v10390
    %v11146 = vunpack.c.h.b16 %v10390
    %v11147 = vunpack.c.l.b16 %v10391
    %v11148 = vunpack.c.h.b16 %v10391
    %v11149 = vunpack.c.l.b16 %v10392
    %v11150 = vunpack.c.h.b16 %v10392
    %v11151 = vunpack.c.l.b16 %v10393
    %v11152 = vunpack.c.h.b16 %v10393
    %v11153 = vunpack.c.l.b16 %v10394
    %v11154 = vunpack.c.h.b16 %v10394
    %v11155 = vunpack.c.l.b16 %v10395
    %v11156 = vunpack.c.h.b16 %v10395
    %v11157 = vunpack.c.l.b16 %v10396
    %v11158 = vunpack.c.h.b16 %v10396
    %v11159 = vunpack.c.l.b16 %v10397
    %v11160 = vunpack.c.h.b16 %v10397
    %v11161 = vunpack.c.l.b16 %v10398
    %v11162 = vunpack.c.h.b16 %v10398
    %v11163 = vunpack.c.l.b16 %v10399
    %v11164 = vunpack.c.h.b16 %v10399
    %v11165 = vunpack.c.l.b16 %v10400
    %v11166 = vunpack.c.h.b16 %v10400
    %v11167 = vunpack.c.l.b16 %v10401
    %v11168 = vunpack.c.h.b16 %v10401
    %v11169 = vunpack.c.l.b16 %v10402
    %v11170 = vunpack.c.h.b16 %v10402
    %v11171 = vunpack.c.l.b16 %v10403
    %v11172 = vunpack.c.h.b16 %v10403
    %v11173 = vunpack.c.l.b16 %v10404
    %v11174 = vunpack.c.h.b16 %v10404
    %v11175 = vunpack.c.l.b16 %v10405
    %v11176 = vunpack.c.h.b16 %v10405
    %v11177 = vunpack.c.l.b16 %v10406
    %v11178 = vunpack.c.h.b16 %v10406
    %v11179 = vunpack.c.l.b16 %v10407
    %v11180 = vunpack.c.h.b16 %v10407
    %v11181 = vunpack.c.l.b16 %v10408
    %v11182 = vunpack.c.h.b16 %v10408
    %v11183 = vunpack.c.l.b16 %v10409
    %v11184 = vunpack.c.h.b16 %v10409
    %v11185 = vunpack.c.l.b16 %v10410
    %v11186 = vunpack.c.h.b16 %v10410
    %v11187 = vunpack.c.l.b16 %v10411
    %v11188 = vunpack.c.h.b16 %v10411
    %v11189 = vunpack.c.l.b16 %v10412
    %v11190 = vunpack.c.h.b16 %v10412
    %v11191 = vunpack.c.l.b16 %v10413
    %v11192 = vunpack.c.h.b16 %v10413
    %v11193 = vunpack.c.l.b16 %v10414
    %v11194 = vunpack.c.h.b16 %v10414
    %v11195 = vunpack.c.l.b16 %v10415
    %v11196 = vunpack.c.h.b16 %v10415
    %v11197 = vunpack.c.l.b16 %v10416
    %v11198 = vunpack.c.h.b16 %v10416
    %v11199 = vunpack.c.l.b16 %v10417
    %v11200 = vunpack.c.h.b16 %v10417
    %v11201 = vunpack.c.l.b16 %v10418
    %v11202 = vunpack.c.h.b16 %v10418
    %v11203 = vunpack.c.l.b16 %v10419
    %v11204 = vunpack.c.h.b16 %v10419
    %v11205 = vunpack.c.l.b16 %v10420
    %v11206 = vunpack.c.h.b16 %v10420
    %v11207 = vunpack.c.l.b16 %v10421
    %v11208 = vunpack.c.h.b16 %v10421
    %v11209 = vunpack.c.l.b16 %v10422
    %v11210 = vunpack.c.h.b16 %v10422
    %v11211 = vunpack.c.l.b16 %v10423
    %v11212 = vunpack.c.h.b16 %v10423
    %v11213 = vunpack.c.l.b16 %v10424
    %v11214 = vunpack.c.h.b16 %v10424
    %v11215 = vpack.c.b16 %v10707, %v10703
    %v11216 = vpack.c.b16 %v10708, %v10704
    %v11217 = vpack.c.b16 %v10709, %v10705
    %v11218 = vpack.c.b16 %v10710, %v10706
    %v11219 = vpack.c.b16 %v10715, %v10711
    %v11220 = vpack.c.b16 %v10716, %v10712
    %v11221 = vpack.c.b16 %v10717, %v10713
    %v11222 = vpack.c.b16 %v10718, %v10714
    %v11223 = vpack.c.b16 %v10723, %v10719
    %v11224 = vpack.c.b16 %v10724, %v10720
    %v11225 = vpack.c.b16 %v10725, %v10721
    %v11226 = vpack.c.b16 %v10726, %v10722
    %v11227 = vpack.c.b16 %v10731, %v10727
    %v11228 = vpack.c.b16 %v10732, %v10728
    %v11229 = vpack.c.b16 %v10733, %v10729
    %v11230 = vpack.c.b16 %v10734, %v10730
    %v11231 = vpack.c.b16 %v10739, %v10735
    %v11232 = vpack.c.b16 %v10740, %v10736
    %v11233 = vpack.c.b16 %v10741, %v10737
    %v11234 = vpack.c.b16 %v10742, %v10738
    %v11235 = vpack.c.b16 %v10747, %v10743
    %v11236 = vpack.c.b16 %v10748, %v10744
    %v11237 = vpack.c.b16 %v10749, %v10745
    %v11238 = vpack.c.b16 %v10750, %v10746
    %v11239 = vpack.c.b16 %v10755, %v10751
    %v11240 = vpack.c.b16 %v10756, %v10752
    %v11241 = vpack.c.b16 %v10757, %v10753
    %v11242 = vpack.c.b16 %v10758, %v10754
    %v11243 = vpack.c.b16 %v10763, %v10759
    %v11244 = vpack.c.b16 %v10764, %v10760
    %v11245 = vpack.c.b16 %v10765, %v10761
    %v11246 = vpack.c.b16 %v10766, %v10762
    %v11247 = vpack.c.b16 %v10771, %v10767
    %v11248 = vpack.c.b16 %v10772, %v10768
    %v11249 = vpack.c.b16 %v10773, %v10769
    %v11250 = vpack.c.b16 %v10774, %v10770
    %v11251 = vpack.c.b16 %v10779, %v10775
    %v11252 = vpack.c.b16 %v10780, %v10776
    %v11253 = vpack.c.b16 %v10781, %v10777
    %v11254 = vpack.c.b16 %v10782, %v10778
    %v11255 = vpack.c.b16 %v10787, %v10783
    %v11256 = vpack.c.b16 %v10788, %v10784
    %v11257 = vpack.c.b16 %v10789, %v10785
    %v11258 = vpack.c.b16 %v10790, %v10786
    %v11259 = vpack.c.b16 %v10795, %v10791
    %v11260 = vpack.c.b16 %v10796, %v10792
    %v11261 = vpack.c.b16 %v10797, %v10793
    %v11262 = vpack.c.b16 %v10798, %v10794
    %v11263 = vpack.c.b16 %v10803, %v10799
    %v11264 = vpack.c.b16 %v10804, %v10800
    %v11265 = vpack.c.b16 %v10805, %v10801
    %v11266 = vpack.c.b16 %v10806, %v10802
    %v11267 = vpack.c.b16 %v10811, %v10807
    %v11268 = vpack.c.b16 %v10812, %v10808
    %v11269 = vpack.c.b16 %v10813, %v10809
    %v11270 = vpack.c.b16 %v10814, %v10810
    %v11271 = vpack.c.b16 %v10819, %v10815
    %v11272 = vpack.c.b16 %v10820, %v10816
    %v11273 = vpack.c.b16 %v10821, %v10817
    %v11274 = vpack.c.b16 %v10822, %v10818
    %v11275 = vpack.c.b16 %v10827, %v10823
    %v11276 = vpack.c.b16 %v10828, %v10824
    %v11277 = vpack.c.b16 %v10829, %v10825
    %v11278 = vpack.c.b16 %v10830, %v10826
    %v11279 = vpack.c.b16 %v10835, %v10831
    %v11280 = vpack.c.b16 %v10836, %v10832
    %v11281 = vpack.c.b16 %v10837, %v10833
    %v11282 = vpack.c.b16 %v10838, %v10834
    %v11283 = vpack.c.b16 %v10843, %v10839
    %v11284 = vpack.c.b16 %v10844, %v10840
    %v11285 = vpack.c.b16 %v10845, %v10841
    %v11286 = vpack.c.b16 %v10846, %v10842
    %v11287 = vpack.c.b16 %v10851, %v10847
    %v11288 = vpack.c.b16 %v10852, %v10848
    %v11289 = vpack.c.b16 %v10853, %v10849
    %v11290 = vpack.c.b16 %v10854, %v10850
    %v11291 = vpack.c.b16 %v10859, %v10855
    %v11292 = vpack.c.b16 %v10860, %v10856
    %v11293 = vpack.c.b16 %v10861, %v10857
    %v11294 = vpack.c.b16 %v10862, %v10858
    %v11295 = vpack.c.b16 %v10867, %v10863
    %v11296 = vpack.c.b16 %v10868, %v10864
    %v11297 = vpack.c.b16 %v10869, %v10865
    %v11298 = vpack.c.b16 %v10870, %v10866
    %v11299 = vpack.c.b16 %v10875, %v10871
    %v11300 = vpack.c.b16 %v10876, %v10872
    %v11301 = vpack.c.b16 %v10877, %v10873
    %v11302 = vpack.c.b16 %v10878, %v10874
    %v11303 = vpack.c.b16 %v10883, %v10879
    %v11304 = vpack.c.b16 %v10884, %v10880
    %v11305 = vpack.c.b16 %v10885, %v10881
    %v11306 = vpack.c.b16 %v10886, %v10882
    %v11307 = vpack.c.b16 %v10891, %v10887
    %v11308 = vpack.c.b16 %v10892, %v10888
    %v11309 = vpack.c.b16 %v10893, %v10889
    %v11310 = vpack.c.b16 %v10894, %v10890
    %v11311 = vpack.c.b16 %v10899, %v10895
    %v11312 = vpack.c.b16 %v10900, %v10896
    %v11313 = vpack.c.b16 %v10901, %v10897
    %v11314 = vpack.c.b16 %v10902, %v10898
    %v11315 = vpack.c.b16 %v10907, %v10903
    %v11316 = vpack.c.b16 %v10908, %v10904
    %v11317 = vpack.c.b16 %v10909, %v10905
    %v11318 = vpack.c.b16 %v10910, %v10906
    %v11319 = vpack.c.b16 %v10915, %v10911
    %v11320 = vpack.c.b16 %v10916, %v10912
    %v11321 = vpack.c.b16 %v10917, %v10913
    %v11322 = vpack.c.b16 %v10918, %v10914
    %v11323 = vpack.c.b16 %v10923, %v10919
    %v11324 = vpack.c.b16 %v10924, %v10920
    %v11325 = vpack.c.b16 %v10925, %v10921
    %v11326 = vpack.c.b16 %v10926, %v10922
    %v11327 = vpack.c.b16 %v10931, %v10927
    %v11328 = vpack.c.b16 %v10932, %v10928
    %v11329 = vpack.c.b16 %v10933, %v10929
    %v11330 = vpack.c.b16 %v10934, %v10930
    %v11331 = vpack.c.b16 %v10939, %v10935
    %v11332 = vpack.c.b16 %v10940, %v10936
    %v11333 = vpack.c.b16 %v10941, %v10937
    %v11334 = vpack.c.b16 %v10942, %v10938
    %v11335 = vpack.c.b16 %v10947, %v10943
    %v11336 = vpack.c.b16 %v10948, %v10944
    %v11337 = vpack.c.b16 %v10949, %v10945
    %v11338 = vpack.c.b16 %v10950, %v10946
    %v11339 = vpack.c.b16 %v10955, %v10951
    %v11340 = vpack.c.b16 %v10956, %v10952
    %v11341 = vpack.c.b16 %v10957, %v10953
    %v11342 = vpack.c.b16 %v10958, %v10954
    %v11343 = vpack.c.b16 %v10963, %v10959
    %v11344 = vpack.c.b16 %v10964, %v10960
    %v11345 = vpack.c.b16 %v10965, %v10961
    %v11346 = vpack.c.b16 %v10966, %v10962
    %v11347 = vpack.c.b16 %v10971, %v10967
    %v11348 = vpack.c.b16 %v10972, %v10968
    %v11349 = vpack.c.b16 %v10973, %v10969
    %v11350 = vpack.c.b16 %v10974, %v10970
    %v11351 = vpack.c.b16 %v10979, %v10975
    %v11352 = vpack.c.b16 %v10980, %v10976
    %v11353 = vpack.c.b16 %v10981, %v10977
    %v11354 = vpack.c.b16 %v10982, %v10978
    %v11355 = vpack.c.b16 %v10987, %v10983
    %v11356 = vpack.c.b16 %v10988, %v10984
    %v11357 = vpack.c.b16 %v10989, %v10985
    %v11358 = vpack.c.b16 %v10990, %v10986
    %v11359 = vpack.c.b16 %v10995, %v10991
    %v11360 = vpack.c.b16 %v10996, %v10992
    %v11361 = vpack.c.b16 %v10997, %v10993
    %v11362 = vpack.c.b16 %v10998, %v10994
    %v11363 = vpack.c.b16 %v11003, %v10999
    %v11364 = vpack.c.b16 %v11004, %v11000
    %v11365 = vpack.c.b16 %v11005, %v11001
    %v11366 = vpack.c.b16 %v11006, %v11002
    %v11367 = vpack.c.b16 %v11011, %v11007
    %v11368 = vpack.c.b16 %v11012, %v11008
    %v11369 = vpack.c.b16 %v11013, %v11009
    %v11370 = vpack.c.b16 %v11014, %v11010
    %v11371 = vpack.c.b16 %v11019, %v11015
    %v11372 = vpack.c.b16 %v11020, %v11016
    %v11373 = vpack.c.b16 %v11021, %v11017
    %v11374 = vpack.c.b16 %v11022, %v11018
    %v11375 = vpack.c.b16 %v11027, %v11023
    %v11376 = vpack.c.b16 %v11028, %v11024
    %v11377 = vpack.c.b16 %v11029, %v11025
    %v11378 = vpack.c.b16 %v11030, %v11026
    %v11379 = vpack.c.b16 %v11035, %v11031
    %v11380 = vpack.c.b16 %v11036, %v11032
    %v11381 = vpack.c.b16 %v11037, %v11033
    %v11382 = vpack.c.b16 %v11038, %v11034
    %v11383 = vpack.c.b16 %v11043, %v11039
    %v11384 = vpack.c.b16 %v11044, %v11040
    %v11385 = vpack.c.b16 %v11045, %v11041
    %v11386 = vpack.c.b16 %v11046, %v11042
    %v11387 = vpack.c.b16 %v11051, %v11047
    %v11388 = vpack.c.b16 %v11052, %v11048
    %v11389 = vpack.c.b16 %v11053, %v11049
    %v11390 = vpack.c.b16 %v11054, %v11050
    %v11391 = vpack.c.b16 %v11059, %v11055
    %v11392 = vpack.c.b16 %v11060, %v11056
    %v11393 = vpack.c.b16 %v11061, %v11057
    %v11394 = vpack.c.b16 %v11062, %v11058
    %v11395 = vpack.c.b16 %v11067, %v11063
    %v11396 = vpack.c.b16 %v11068, %v11064
    %v11397 = vpack.c.b16 %v11069, %v11065
    %v11398 = vpack.c.b16 %v11070, %v11066
    %v11399 = vpack.c.b16 %v11075, %v11071
    %v11400 = vpack.c.b16 %v11076, %v11072
    %v11401 = vpack.c.b16 %v11077, %v11073
    %v11402 = vpack.c.b16 %v11078, %v11074
    %v11403 = vpack.c.b16 %v11083, %v11079
    %v11404 = vpack.c.b16 %v11084, %v11080
    %v11405 = vpack.c.b16 %v11085, %v11081
    %v11406 = vpack.c.b16 %v11086, %v11082
    %v11407 = vpack.c.b16 %v11091, %v11087
    %v11408 = vpack.c.b16 %v11092, %v11088
    %v11409 = vpack.c.b16 %v11093, %v11089
    %v11410 = vpack.c.b16 %v11094, %v11090
    %v11411 = vpack.c.b16 %v11099, %v11095
    %v11412 = vpack.c.b16 %v11100, %v11096
    %v11413 = vpack.c.b16 %v11101, %v11097
    %v11414 = vpack.c.b16 %v11102, %v11098
    %v11415 = vpack.c.b16 %v11107, %v11103
    %v11416 = vpack.c.b16 %v11108, %v11104
    %v11417 = vpack.c.b16 %v11109, %v11105
    %v11418 = vpack.c.b16 %v11110, %v11106
    %v11419 = vpack.c.b16 %v11115, %v11111
    %v11420 = vpack.c.b16 %v11116, %v11112
    %v11421 = vpack.c.b16 %v11117, %v11113
    %v11422 = vpack.c.b16 %v11118, %v11114
    %v11423 = vpack.c.b16 %v11123, %v11119
    %v11424 = vpack.c.b16 %v11124, %v11120
    %v11425 = vpack.c.b16 %v11125, %v11121
    %v11426 = vpack.c.b16 %v11126, %v11122
    %v11427 = vpack.c.b16 %v11131, %v11127
    %v11428 = vpack.c.b16 %v11132, %v11128
    %v11429 = vpack.c.b16 %v11133, %v11129
    %v11430 = vpack.c.b16 %v11134, %v11130
    %v11431 = vpack.c.b16 %v11139, %v11135
    %v11432 = vpack.c.b16 %v11140, %v11136
    %v11433 = vpack.c.b16 %v11141, %v11137
    %v11434 = vpack.c.b16 %v11142, %v11138
    %v11435 = vpack.c.b16 %v11147, %v11143
    %v11436 = vpack.c.b16 %v11148, %v11144
    %v11437 = vpack.c.b16 %v11149, %v11145
    %v11438 = vpack.c.b16 %v11150, %v11146
    %v11439 = vpack.c.b16 %v11155, %v11151
    %v11440 = vpack.c.b16 %v11156, %v11152
    %v11441 = vpack.c.b16 %v11157, %v11153
    %v11442 = vpack.c.b16 %v11158, %v11154
    %v11443 = vpack.c.b16 %v11163, %v11159
    %v11444 = vpack.c.b16 %v11164, %v11160
    %v11445 = vpack.c.b16 %v11165, %v11161
    %v11446 = vpack.c.b16 %v11166, %v11162
    %v11447 = vpack.c.b16 %v11171, %v11167
    %v11448 = vpack.c.b16 %v11172, %v11168
    %v11449 = vpack.c.b16 %v11173, %v11169
    %v11450 = vpack.c.b16 %v11174, %v11170
    %v11451 = vpack.c.b16 %v11179, %v11175
    %v11452 = vpack.c.b16 %v11180, %v11176
    %v11453 = vpack.c.b16 %v11181, %v11177
    %v11454 = vpack.c.b16 %v11182, %v11178
    %v11455 = vpack.c.b16 %v11187, %v11183
    %v11456 = vpack.c.b16 %v11188, %v11184
    %v11457 = vpack.c.b16 %v11189, %v11185
    %v11458 = vpack.c.b16 %v11190, %v11186
    %v11459 = vpack.c.b16 %v11195, %v11191
    %v11460 = vpack.c.b16 %v11196, %v11192
    %v11461 = vpack.c.b16 %v11197, %v11193
    %v11462 = vpack.c.b16 %v11198, %v11194
    %v11463 = vpack.c.b16 %v11203, %v11199
    %v11464 = vpack.c.b16 %v11204, %v11200
    %v11465 = vpack.c.b16 %v11205, %v11201
    %v11466 = vpack.c.b16 %v11206, %v11202
    %v11467 = vpack.c.b16 %v11211, %v11207
    %v11468 = vpack.c.b16 %v11212, %v11208
    %v11469 = vpack.c.b16 %v11213, %v11209
    %v11470 = vpack.c.b16 %v11214, %v11210
    %11727 = vmatprep.subr.bf16.mxu0 %v11244
    %11728 = vmatpush1.bf16.msra.mxu0 %v11243
    %11729 = vmatprep.subr.bf16.mxu0 %v11240
    %11730 = vmatpush1.bf16.msra.mxu0 %v11239
    %11731 = vmatprep.subr.bf16.mxu0 %v11236
    %11732 = vmatpush1.bf16.msra.mxu0 %v11235
    %11733 = vmatprep.subr.bf16.mxu0 %v11232
    %11734 = vmatpush1.bf16.msra.mxu0 %v11231
    %11735 = vmatprep.subr.bf16.mxu0 %v11228
    %11736 = vmatpush1.bf16.msra.mxu0 %v11227
    %11737 = vmatprep.subr.bf16.mxu0 %v11224
    %11738 = vmatpush1.bf16.msra.mxu0 %v11223
    %11739 = vmatprep.subr.bf16.mxu0 %v11220
    %11740 = vmatpush1.bf16.msra.mxu0 %v11219
    %11741 = vmatprep.subr.bf16.mxu0 %v11216
    %11742 = vmatpush1.bf16.msra.mxu0 %v11215
    %11743 = vmatprep.subr.bf16.mxu0 %v11276
    %11744 = vmatpush2.bf16.msra.mxu0 %v11275
    %11745 = vmatprep.subr.bf16.mxu0 %v11272
    %11746 = vmatpush2.bf16.msra.mxu0 %v11271
    %11747 = vmatprep.subr.bf16.mxu0 %v11268
    %11748 = vmatpush2.bf16.msra.mxu0 %v11267
    %11749 = vmatprep.subr.bf16.mxu0 %v11264
    %11750 = vmatpush2.bf16.msra.mxu0 %v11263
    %11751 = vmatprep.subr.bf16.mxu0 %v11260
    %11752 = vmatpush2.bf16.msra.mxu0 %v11259
    %11753 = vmatprep.subr.bf16.mxu0 %v11256
    %11754 = vmatpush2.bf16.msra.mxu0 %v11255
    %11755 = vmatprep.subr.bf16.mxu0 %v11252
    %11756 = vmatpush2.bf16.msra.mxu0 %v11251
    %11757 = vmatprep.subr.bf16.mxu0 %v11248
    %11758 = vmatpush2.bf16.msra.mxu0 %v11247
    %11759 = vmatprep.mubr.bf16.mxu0 %v10162
    %11760 = vmatmul.mubr.bf16.gmra.mxu0 %v10161
    %v11761 = vpop.f32.mrf.mxu0
    %v11762 = vadd.f32 %v10430, %v11761
    %v11763 = vpop.f32.mrf.mxu0
    %v11764 = vadd.f32 %v10434, %v11763
    %v11765 = vpop.f32.mrf.mxu0
    %v11766 = vpop.f32.mrf.mxu0
    %11767 = vdwg.mxu0
    %11768 = vmatprep.subr.bf16.mxu0 %v11308
    %11769 = vmatpush1.bf16.msra.mxu0 %v11307
    %11770 = vmatprep.subr.bf16.mxu0 %v11304
    %11771 = vmatpush1.bf16.msra.mxu0 %v11303
    %11772 = vmatprep.subr.bf16.mxu0 %v11300
    %11773 = vmatpush1.bf16.msra.mxu0 %v11299
    %11774 = vmatprep.subr.bf16.mxu0 %v11296
    %11775 = vmatpush1.bf16.msra.mxu0 %v11295
    %11776 = vmatprep.subr.bf16.mxu0 %v11292
    %11777 = vmatpush1.bf16.msra.mxu0 %v11291
    %11778 = vmatprep.subr.bf16.mxu0 %v11288
    %11779 = vmatpush1.bf16.msra.mxu0 %v11287
    %11780 = vmatprep.subr.bf16.mxu0 %v11284
    %11781 = vmatpush1.bf16.msra.mxu0 %v11283
    %11782 = vmatprep.subr.bf16.mxu0 %v11280
    %11783 = vmatpush1.bf16.msra.mxu0 %v11279
    %11784 = vmatprep.subr.bf16.mxu0 %v11340
    %11785 = vmatpush2.bf16.msra.mxu0 %v11339
    %11786 = vmatprep.subr.bf16.mxu0 %v11336
    %11787 = vmatpush2.bf16.msra.mxu0 %v11335
    %11788 = vmatprep.subr.bf16.mxu0 %v11332
    %11789 = vmatpush2.bf16.msra.mxu0 %v11331
    %11790 = vmatprep.subr.bf16.mxu0 %v11328
    %11791 = vmatpush2.bf16.msra.mxu0 %v11327
    %11792 = vmatprep.subr.bf16.mxu0 %v11324
    %11793 = vmatpush2.bf16.msra.mxu0 %v11323
    %11794 = vmatprep.subr.bf16.mxu0 %v11320
    %11795 = vmatpush2.bf16.msra.mxu0 %v11319
    %11796 = vmatprep.subr.bf16.mxu0 %v11316
    %11797 = vmatpush2.bf16.msra.mxu0 %v11315
    %11798 = vmatprep.subr.bf16.mxu0 %v11312
    %11799 = vmatpush2.bf16.msra.mxu0 %v11311
    %11800 = vmatprep.mubr.bf16.mxu0 %v10164
    %11801 = vmatmul.mubr.bf16.gmra.mxu0 %v10163
    %v11802 = vpop.f32.mrf.mxu0
    %v11803 = vadd.f32 %v11762, %v11802
    %v11804 = vpop.f32.mrf.mxu0
    %v11805 = vadd.f32 %v11764, %v11804
    %v11806 = vpop.f32.mrf.mxu0
    %v11807 = vpop.f32.mrf.mxu0
    %11808 = vdwg.mxu0
    %11809 = vmatprep.subr.bf16.mxu0 %v11372
    %11810 = vmatpush1.bf16.msra.mxu0 %v11371
    %11811 = vmatprep.subr.bf16.mxu0 %v11368
    %11812 = vmatpush1.bf16.msra.mxu0 %v11367
    %11813 = vmatprep.subr.bf16.mxu0 %v11364
    %11814 = vmatpush1.bf16.msra.mxu0 %v11363
    %11815 = vmatprep.subr.bf16.mxu0 %v11360
    %11816 = vmatpush1.bf16.msra.mxu0 %v11359
    %11817 = vmatprep.subr.bf16.mxu0 %v11356
    %11818 = vmatpush1.bf16.msra.mxu0 %v11355
    %11819 = vmatprep.subr.bf16.mxu0 %v11352
    %11820 = vmatpush1.bf16.msra.mxu0 %v11351
    %11821 = vmatprep.subr.bf16.mxu0 %v11348
    %11822 = vmatpush1.bf16.msra.mxu0 %v11347
    %11823 = vmatprep.subr.bf16.mxu0 %v11344
    %11824 = vmatpush1.bf16.msra.mxu0 %v11343
    %11825 = vmatprep.subr.bf16.mxu0 %v11404
    %11826 = vmatpush2.bf16.msra.mxu0 %v11403
    %11827 = vmatprep.subr.bf16.mxu0 %v11400
    %11828 = vmatpush2.bf16.msra.mxu0 %v11399
    %11829 = vmatprep.subr.bf16.mxu0 %v11396
    %11830 = vmatpush2.bf16.msra.mxu0 %v11395
    %11831 = vmatprep.subr.bf16.mxu0 %v11392
    %11832 = vmatpush2.bf16.msra.mxu0 %v11391
    %11833 = vmatprep.subr.bf16.mxu0 %v11388
    %11834 = vmatpush2.bf16.msra.mxu0 %v11387
    %11835 = vmatprep.subr.bf16.mxu0 %v11384
    %11836 = vmatpush2.bf16.msra.mxu0 %v11383
    %11837 = vmatprep.subr.bf16.mxu0 %v11380
    %11838 = vmatpush2.bf16.msra.mxu0 %v11379
    %11839 = vmatprep.subr.bf16.mxu0 %v11376
    %11840 = vmatpush2.bf16.msra.mxu0 %v11375
    %11841 = vmatprep.mubr.bf16.mxu0 %v10166
    %11842 = vmatmul.mubr.bf16.gmra.mxu0 %v10165
    %v11843 = vpop.f32.mrf.mxu0
    %v11844 = vadd.f32 %v11803, %v11843
    %v11845 = vpop.f32.mrf.mxu0
    %v11846 = vadd.f32 %v11805, %v11845
    %v11847 = vpop.f32.mrf.mxu0
    %v11848 = vpop.f32.mrf.mxu0
    %11849 = vdwg.mxu0
    %11850 = vmatprep.subr.bf16.mxu0 %v11436
    %11851 = vmatpush1.bf16.msra.mxu0 %v11435
    %11852 = vmatprep.subr.bf16.mxu0 %v11432
    %11853 = vmatpush1.bf16.msra.mxu0 %v11431
    %11854 = vmatprep.subr.bf16.mxu0 %v11428
    %11855 = vmatpush1.bf16.msra.mxu0 %v11427
    %11856 = vmatprep.subr.bf16.mxu0 %v11424
    %11857 = vmatpush1.bf16.msra.mxu0 %v11423
    %11858 = vmatprep.subr.bf16.mxu0 %v11420
    %11859 = vmatpush1.bf16.msra.mxu0 %v11419
    %11860 = vmatprep.subr.bf16.mxu0 %v11416
    %11861 = vmatpush1.bf16.msra.mxu0 %v11415
    %11862 = vmatprep.subr.bf16.mxu0 %v11412
    %11863 = vmatpush1.bf16.msra.mxu0 %v11411
    %11864 = vmatprep.subr.bf16.mxu0 %v11408
    %11865 = vmatpush1.bf16.msra.mxu0 %v11407
    %11866 = vmatprep.subr.bf16.mxu0 %v11468
    %11867 = vmatpush2.bf16.msra.mxu0 %v11467
    %11868 = vmatprep.subr.bf16.mxu0 %v11464
    %11869 = vmatpush2.bf16.msra.mxu0 %v11463
    %11870 = vmatprep.subr.bf16.mxu0 %v11460
    %11871 = vmatpush2.bf16.msra.mxu0 %v11459
    %11872 = vmatprep.subr.bf16.mxu0 %v11456
    %11873 = vmatpush2.bf16.msra.mxu0 %v11455
    %11874 = vmatprep.subr.bf16.mxu0 %v11452
    %11875 = vmatpush2.bf16.msra.mxu0 %v11451
    %11876 = vmatprep.subr.bf16.mxu0 %v11448
    %11877 = vmatpush2.bf16.msra.mxu0 %v11447
    %11878 = vmatprep.subr.bf16.mxu0 %v11444
    %11879 = vmatpush2.bf16.msra.mxu0 %v11443
    %11880 = vmatprep.subr.bf16.mxu0 %v11440
    %11881 = vmatpush2.bf16.msra.mxu0 %v11439
    %11882 = vmatprep.mubr.bf16.mxu0 %v10168
    %11883 = vmatmul.mubr.bf16.gmra.mxu0 %v10167
    %v11884 = vpop.f32.mrf.mxu0
    %v11885 = vadd.f32 %v11844, %v11884
    %v11886 = vpop.f32.mrf.mxu0
    %v11887 = vadd.f32 %v11846, %v11886
    %v11888 = vpop.f32.mrf.mxu0
    %v11889 = vpop.f32.mrf.mxu0
    %11890 = vdwg.mxu0
    %11891 = vmatprep.subr.bf16.mxu0 %v11246
    %11892 = vmatpush1.bf16.msra.mxu0 %v11245
    %11893 = vmatprep.subr.bf16.mxu0 %v11242
    %11894 = vmatpush1.bf16.msra.mxu0 %v11241
    %11895 = vmatprep.subr.bf16.mxu0 %v11238
    %11896 = vmatpush1.bf16.msra.mxu0 %v11237
    %11897 = vmatprep.subr.bf16.mxu0 %v11234
    %11898 = vmatpush1.bf16.msra.mxu0 %v11233
    %11899 = vmatprep.subr.bf16.mxu0 %v11230
    %11900 = vmatpush1.bf16.msra.mxu0 %v11229
    %11901 = vmatprep.subr.bf16.mxu0 %v11226
    %11902 = vmatpush1.bf16.msra.mxu0 %v11225
    %11903 = vmatprep.subr.bf16.mxu0 %v11222
    %11904 = vmatpush1.bf16.msra.mxu0 %v11221
    %11905 = vmatprep.subr.bf16.mxu0 %v11218
    %11906 = vmatpush1.bf16.msra.mxu0 %v11217
    %11907 = vmatprep.subr.bf16.mxu0 %v11278
    %11908 = vmatpush2.bf16.msra.mxu0 %v11277
    %11909 = vmatprep.subr.bf16.mxu0 %v11274
    %11910 = vmatpush2.bf16.msra.mxu0 %v11273
    %11911 = vmatprep.subr.bf16.mxu0 %v11270
    %11912 = vmatpush2.bf16.msra.mxu0 %v11269
    %11913 = vmatprep.subr.bf16.mxu0 %v11266
    %11914 = vmatpush2.bf16.msra.mxu0 %v11265
    %11915 = vmatprep.subr.bf16.mxu0 %v11262
    %11916 = vmatpush2.bf16.msra.mxu0 %v11261
    %11917 = vmatprep.subr.bf16.mxu0 %v11258
    %11918 = vmatpush2.bf16.msra.mxu0 %v11257
    %11919 = vmatprep.subr.bf16.mxu0 %v11254
    %11920 = vmatpush2.bf16.msra.mxu0 %v11253
    %11921 = vmatprep.subr.bf16.mxu0 %v11250
    %11922 = vmatpush2.bf16.msra.mxu0 %v11249
    %11923 = vmatprep.mubr.bf16.mxu0 %v10162
    %11924 = vmatmul.mubr.bf16.gmra.mxu0 %v10161
    %v11925 = vpop.f32.mrf.mxu0
    %v11926 = vadd.f32 %v10438, %v11925
    %v11927 = vpop.f32.mrf.mxu0
    %v11928 = vadd.f32 %v10442, %v11927
    %v11929 = vpop.f32.mrf.mxu0
    %v11930 = vpop.f32.mrf.mxu0
    %11931 = vdwg.mxu0
    %11932 = vmatprep.subr.bf16.mxu0 %v11310
    %11933 = vmatpush1.bf16.msra.mxu0 %v11309
    %11934 = vmatprep.subr.bf16.mxu0 %v11306
    %11935 = vmatpush1.bf16.msra.mxu0 %v11305
    %11936 = vmatprep.subr.bf16.mxu0 %v11302
    %11937 = vmatpush1.bf16.msra.mxu0 %v11301
    %11938 = vmatprep.subr.bf16.mxu0 %v11298
    %11939 = vmatpush1.bf16.msra.mxu0 %v11297
    %11940 = vmatprep.subr.bf16.mxu0 %v11294
    %11941 = vmatpush1.bf16.msra.mxu0 %v11293
    %11942 = vmatprep.subr.bf16.mxu0 %v11290
    %11943 = vmatpush1.bf16.msra.mxu0 %v11289
    %11944 = vmatprep.subr.bf16.mxu0 %v11286
    %11945 = vmatpush1.bf16.msra.mxu0 %v11285
    %11946 = vmatprep.subr.bf16.mxu0 %v11282
    %11947 = vmatpush1.bf16.msra.mxu0 %v11281
    %11948 = vmatprep.subr.bf16.mxu0 %v11342
    %11949 = vmatpush2.bf16.msra.mxu0 %v11341
    %11950 = vmatprep.subr.bf16.mxu0 %v11338
    %11951 = vmatpush2.bf16.msra.mxu0 %v11337
    %11952 = vmatprep.subr.bf16.mxu0 %v11334
    %11953 = vmatpush2.bf16.msra.mxu0 %v11333
    %11954 = vmatprep.subr.bf16.mxu0 %v11330
    %11955 = vmatpush2.bf16.msra.mxu0 %v11329
    %11956 = vmatprep.subr.bf16.mxu0 %v11326
    %11957 = vmatpush2.bf16.msra.mxu0 %v11325
    %11958 = vmatprep.subr.bf16.mxu0 %v11322
    %11959 = vmatpush2.bf16.msra.mxu0 %v11321
    %11960 = vmatprep.subr.bf16.mxu0 %v11318
    %11961 = vmatpush2.bf16.msra.mxu0 %v11317
    %11962 = vmatprep.subr.bf16.mxu0 %v11314
    %11963 = vmatpush2.bf16.msra.mxu0 %v11313
    %11964 = vmatprep.mubr.bf16.mxu0 %v10164
    %11965 = vmatmul.mubr.bf16.gmra.mxu0 %v10163
    %v11966 = vpop.f32.mrf.mxu0
    %v11967 = vadd.f32 %v11926, %v11966
    %v11968 = vpop.f32.mrf.mxu0
    %v11969 = vadd.f32 %v11928, %v11968
    %v11970 = vpop.f32.mrf.mxu0
    %v11971 = vpop.f32.mrf.mxu0
    %11972 = vdwg.mxu0
    %11973 = vmatprep.subr.bf16.mxu0 %v11374
    %11974 = vmatpush1.bf16.msra.mxu0 %v11373
    %11975 = vmatprep.subr.bf16.mxu0 %v11370
    %11976 = vmatpush1.bf16.msra.mxu0 %v11369
    %11977 = vmatprep.subr.bf16.mxu0 %v11366
    %11978 = vmatpush1.bf16.msra.mxu0 %v11365
    %11979 = vmatprep.subr.bf16.mxu0 %v11362
    %11980 = vmatpush1.bf16.msra.mxu0 %v11361
    %11981 = vmatprep.subr.bf16.mxu0 %v11358
    %11982 = vmatpush1.bf16.msra.mxu0 %v11357
    %11983 = vmatprep.subr.bf16.mxu0 %v11354
    %11984 = vmatpush1.bf16.msra.mxu0 %v11353
    %11985 = vmatprep.subr.bf16.mxu0 %v11350
    %11986 = vmatpush1.bf16.msra.mxu0 %v11349
    %11987 = vmatprep.subr.bf16.mxu0 %v11346
    %11988 = vmatpush1.bf16.msra.mxu0 %v11345
    %11989 = vmatprep.subr.bf16.mxu0 %v11406
    %11990 = vmatpush2.bf16.msra.mxu0 %v11405
    %11991 = vmatprep.subr.bf16.mxu0 %v11402
    %11992 = vmatpush2.bf16.msra.mxu0 %v11401
    %11993 = vmatprep.subr.bf16.mxu0 %v11398
    %11994 = vmatpush2.bf16.msra.mxu0 %v11397
    %11995 = vmatprep.subr.bf16.mxu0 %v11394
    %11996 = vmatpush2.bf16.msra.mxu0 %v11393
    %11997 = vmatprep.subr.bf16.mxu0 %v11390
    %11998 = vmatpush2.bf16.msra.mxu0 %v11389
    %11999 = vmatprep.subr.bf16.mxu0 %v11386
    %12000 = vmatpush2.bf16.msra.mxu0 %v11385
    %12001 = vmatprep.subr.bf16.mxu0 %v11382
    %12002 = vmatpush2.bf16.msra.mxu0 %v11381
    %12003 = vmatprep.subr.bf16.mxu0 %v11378
    %12004 = vmatpush2.bf16.msra.mxu0 %v11377
    %12005 = vmatprep.mubr.bf16.mxu0 %v10166
    %12006 = vmatmul.mubr.bf16.gmra.mxu0 %v10165
    %v12007 = vpop.f32.mrf.mxu0
    %v12008 = vadd.f32 %v11967, %v12007
    %v12009 = vpop.f32.mrf.mxu0
    %v12010 = vadd.f32 %v11969, %v12009
    %v12011 = vpop.f32.mrf.mxu0
    %v12012 = vpop.f32.mrf.mxu0
    %12013 = vdwg.mxu0
    %12014 = vmatprep.subr.bf16.mxu0 %v11438
    %12015 = vmatpush1.bf16.msra.mxu0 %v11437
    %12016 = vmatprep.subr.bf16.mxu0 %v11434
    %12017 = vmatpush1.bf16.msra.mxu0 %v11433
    %12018 = vmatprep.subr.bf16.mxu0 %v11430
    %12019 = vmatpush1.bf16.msra.mxu0 %v11429
    %12020 = vmatprep.subr.bf16.mxu0 %v11426
    %12021 = vmatpush1.bf16.msra.mxu0 %v11425
    %12022 = vmatprep.subr.bf16.mxu0 %v11422
    %12023 = vmatpush1.bf16.msra.mxu0 %v11421
    %12024 = vmatprep.subr.bf16.mxu0 %v11418
    %12025 = vmatpush1.bf16.msra.mxu0 %v11417
    %12026 = vmatprep.subr.bf16.mxu0 %v11414
    %12027 = vmatpush1.bf16.msra.mxu0 %v11413
    %12028 = vmatprep.subr.bf16.mxu0 %v11410
    %12029 = vmatpush1.bf16.msra.mxu0 %v11409
    %12030 = vmatprep.subr.bf16.mxu0 %v11470
    %12031 = vmatpush2.bf16.msra.mxu0 %v11469
    %12032 = vmatprep.subr.bf16.mxu0 %v11466
    %12033 = vmatpush2.bf16.msra.mxu0 %v11465
    %12034 = vmatprep.subr.bf16.mxu0 %v11462
    %12035 = vmatpush2.bf16.msra.mxu0 %v11461
    %12036 = vmatprep.subr.bf16.mxu0 %v11458
    %12037 = vmatpush2.bf16.msra.mxu0 %v11457
    %12038 = vmatprep.subr.bf16.mxu0 %v11454
    %12039 = vmatpush2.bf16.msra.mxu0 %v11453
    %12040 = vmatprep.subr.bf16.mxu0 %v11450
    %12041 = vmatpush2.bf16.msra.mxu0 %v11449
    %12042 = vmatprep.subr.bf16.mxu0 %v11446
    %12043 = vmatpush2.bf16.msra.mxu0 %v11445
    %12044 = vmatprep.subr.bf16.mxu0 %v11442
    %12045 = vmatpush2.bf16.msra.mxu0 %v11441
    %12046 = vmatprep.mubr.bf16.mxu0 %v10168
    %12047 = vmatmul.mubr.bf16.gmra.mxu0 %v10167
    %v12048 = vpop.f32.mrf.mxu0
    %v12049 = vadd.f32 %v12008, %v12048
    %v12050 = vpop.f32.mrf.mxu0
    %v12051 = vadd.f32 %v12010, %v12050
    %v12052 = vpop.f32.mrf.mxu0
    %v12053 = vpop.f32.mrf.mxu0
    %12054 = vdwg.mxu0
    %v12055 = vmax.f32 %v11885, 0.0
    %v12056 = vmax.f32 %v11887, 0.0
    %v12057 = vmax.f32 %v12049, 0.0
    %v12058 = vmax.f32 %v12051, 0.0
    %12059 = vst [vmem:[#allocation19] sm:$0xff] %v12055
    %12060 = vst [vmem:[#allocation19 + $0x8] sm:$0xff] %v12056
    %12061 = vst [vmem:[#allocation19 + $0x10] sm:$0xff] %v12057
    %12062 = vst [vmem:[#allocation19 + $0x18] sm:$0xff] %v12058
    // Predicated region
    $region86: #{tpu_custom_call.1} parent=1 // pred_check
      _
    $region87: #{tpu_custom_call.1} parent=1 // pred_check_branch
      %12064 = sbr.rel (0) target = $region89
    $region88: #{tpu_custom_call.1} parent=1 // pred_region
      %s12066 = ssub.s32 512, 512
      %12067 = vsyncadd [#allocation4], %s12066
      %s12069 = sshll.u32 [#allocation19], 4
      %s12070 = int_to_ptr.vmem [resolvable:$true] %s12069
      %12072 = dma.vmem_to_hbm [thread:$0]  %s12070, 512, %s11, [#allocation4]
    $region89: #{tpu_custom_call.1} parent=1 // pred_fallthru
      _
    // Predicated region
    $region90: #{tpu_custom_call.1} parent=1 // pred_check
      _
    $region91: #{tpu_custom_call.1} parent=1 // pred_check_branch
      %12074 = sbr.rel (0) target = $region93
    $region92: #{tpu_custom_call.1} parent=1 // pred_region
      %12075 = dma.done [#allocation4], 512
    $region93: #{tpu_custom_call.1} parent=1 // pred_fallthru
      _
    %12076 = vsyncpa [#allocation3], 1
    %12077 = vsyncpa [#allocation6], 1
    %12078 = vsyncpa [#allocation9], 1
    %12079 = vsyncpa [#allocation12], 1
    %12080 = vsyncpa [#allocation15], 1
    %12081 = vsyncpa [#allocation18], 1
    %12082 = vsyncpa [#allocation4], 1

</llo_original>
